<compile_context>
chip_gen: v7x
topology: tpu7x:2x2x1
jax: 0.10.0
libtpu: 0.0.40
codegen_flags: <defaults>
</compile_context>

<pallas_src>
import functools

import jax
import jax.numpy as jnp
from jax.experimental import pallas as pl
from jax.experimental.pallas import tpu as pltpu


def ffwd_kernel(x_ref, w1_ref, b1_ref, w2_ref, b2_ref, o_ref, *, hidden_chunk):
    """One (TM, C) row tile: y = ReLU(x @ W1 + b1) @ W2 + b2 (f32 accumulation)."""
    tm = x_ref.shape[0]
    h_dim = w1_ref.shape[1]
    c = w2_ref.shape[1]

    xb = x_ref[...].astype(jnp.bfloat16)  # bf16 MXU operand

    # Start the accumulator from the broadcast output bias (saves a final pass).
    y = jnp.broadcast_to(b2_ref[...].astype(jnp.float32), (tm, c))

    # Unrolled-at-trace loop over hidden chunks with static ref slices: keeps
    # only a (TM, hidden_chunk) f32 slab live instead of the full (TM, H).
    for h0 in range(0, h_dim, hidden_chunk):
        th = min(hidden_chunk, h_dim - h0)
        h = jnp.dot(xb, w1_ref[:, h0:h0 + th],
                    preferred_element_type=jnp.float32)
        h = jnp.maximum(h + b1_ref[:, h0:h0 + th], 0.0)  # bias + ReLU in f32
        y = y + jnp.dot(h.astype(jnp.bfloat16), w2_ref[h0:h0 + th, :],
                        preferred_element_type=jnp.float32)

    # TODO(synk): dropout (p=0.2, training mode) not applied — eval semantics.
    o_ref[...] = y.astype(o_ref.dtype)


def prepare_ffwd_params(params):
    """One-time cast/reshape of parameters for the kernel (NOT per call).

    Weights -> bf16 (half the HBM->VMEM bytes, bf16 MXU path); biases stay f32
    and are reshaped to (1, N) rows for lane-major broadcast.
    """
    h_dim = params["w1"].shape[1]
    c = params["w2"].shape[1]
    return {
        "w1": params["w1"].astype(jnp.bfloat16),
        "b1": params["b1"].astype(jnp.float32).reshape(1, h_dim),
        "w2": params["w2"].astype(jnp.bfloat16),
        "b2": params["b2"].astype(jnp.float32).reshape(1, c),
    }


def _pick_tile_m(m, block_m):
    """Row-tile size: multiple of 8 sublanes, <= block_m, and — when rows allow —
    small enough that the grid has >= 2 steps so dimension_semantics=("parallel",)
    can shard row tiles across both TensorCores on v7x."""
    if m <= 8:
        return m  # single full-extent block (equal to full array dim is allowed)
    tm = min(block_m, (m // 8) * 8)
    half = (((m + 1) // 2) // 8) * 8
    if half >= 8:
        tm = min(tm, half)
    return max(tm, 8)


def feedforward(x, prepared, *, block_m=512, hidden_chunk=512):
    """x: (..., C). Computes ReLU(x @ W1 + b1) @ W2 + b2 (dropout = eval mode).

    `prepared` must come from prepare_ffwd_params (bf16 weights, f32 row biases).
    """
    orig_shape = x.shape
    C = orig_shape[-1]
    H = prepared["w1"].shape[1]
    x2 = x.reshape(-1, C)
    M = x2.shape[0]

    TM = _pick_tile_m(M, block_m)
    grid = (pl.cdiv(M, TM),)  # ragged last block handled by Pallas (masked store)

    kernel = functools.partial(ffwd_kernel, hidden_chunk=min(hidden_chunk, H))

    flops = 2 * M * C * H * 2  # two (M x C x H) matmuls
    bytes_accessed = (x2.size * x2.dtype.itemsize
                      + prepared["w1"].size * 2 + prepared["w2"].size * 2
                      + prepared["b1"].size * 4 + prepared["b2"].size * 4
                      + M * C * x.dtype.itemsize)

    def const_spec(shape):
        # Constant block index -> DMA'd once, resident in VMEM across the grid.
        # Buffered(1) drops the useless second pipeline buffer.
        return pl.BlockSpec(shape, lambda i: (0, 0),
                            pipeline_mode=pl.Buffered(buffer_count=1))

    out = pl.pallas_call(
        kernel,
        out_shape=jax.ShapeDtypeStruct((M, C), x.dtype),
        grid_spec=pltpu.PrefetchScalarGridSpec(
            num_scalar_prefetch=0,
            grid=grid,
            in_specs=[
                pl.BlockSpec((TM, C), lambda i: (i, 0)),
                const_spec((C, H)),
                const_spec((1, H)),
                const_spec((H, C)),
                const_spec((1, C)),
            ],
            out_specs=pl.BlockSpec((TM, C), lambda i: (i, 0)),
        ),
        compiler_params=pltpu.CompilerParams(
            dimension_semantics=("parallel",),  # shard row tiles across TCs (v7x)
        ),
        cost_estimate=pl.CostEstimate(
            flops=flops, transcendentals=0, bytes_accessed=bytes_accessed),
    )(x2, prepared["w1"], prepared["b1"], prepared["w2"], prepared["b2"])

    return out.reshape(orig_shape)


def feedforward_reference(x, params):
    """Pure-JAX f32 reference mirroring the PyTorch Feedforward (eval mode)."""
    h = jnp.maximum(x @ params["w1"] + params["b1"], 0.0)
    return h @ params["w2"] + params["b2"]


def init_params(key, n_embd):
    k1, k2, k3, k4 = jax.random.split(key, 4)
    s = 0.02
    return {
        # Linear weights stored (in_features, out_features): y = x @ W + b
        # (transpose of PyTorch nn.Linear.weight).
        "w1": s * jax.random.normal(k1, (n_embd, 4 * n_embd), jnp.float32),
        "b1": s * jax.random.normal(k2, (4 * n_embd,), jnp.float32),
        "w2": s * jax.random.normal(k3, (4 * n_embd, n_embd), jnp.float32),
        "b2": s * jax.random.normal(k4, (n_embd,), jnp.float32),
    }


if __name__ == "__main__":
    # Module default n_embd=384 (3 * 128 lanes); B*T = 256 rows -> tile picker
    # chooses TM=128 so the grid has 2 parallel steps (both v7x TCs busy).
    B, T, n_embd = 2, 128, 384

    key = jax.random.PRNGKey(0)
    kx, kp = jax.random.split(key)
    x = jax.random.normal(kx, (B, T, n_embd), jnp.float32)
    params = init_params(kp, n_embd)
    prepared = prepare_ffwd_params(params)  # one-time bf16 weight cast

    out = feedforward(x, prepared)
    out = jax.block_until_ready(out)

    ref = feedforward_reference(x, params)
    assert out.shape == (B, T, n_embd)
    max_err = float(jnp.max(jnp.abs(out - ref)))
    # bf16 MXU operands (f32 accumulation) vs pure-f32 reference.
    assert jnp.allclose(out, ref, atol=2e-2, rtol=2e-2), max_err

    print("KERNEL_OK")
</pallas_src>

<mosaic_0001>
module attributes {stable_mosaic.version = 11 : i64} {
  func.func @ffwd_kernel(%arg0: i32, %arg1: memref<128x384xf32, #tpu.memory_space<vmem>>, %arg2: memref<384x1536xbf16, #tpu.memory_space<vmem>>, %arg3: memref<1x1536xf32, #tpu.memory_space<vmem>>, %arg4: memref<1536x384xbf16, #tpu.memory_space<vmem>>, %arg5: memref<1x384xf32, #tpu.memory_space<vmem>>, %arg6: memref<128x384xf32, #tpu.memory_space<vmem>>) attributes {dimension_semantics = [#tpu.dimension_semantics<parallel>], iteration_bounds = array<i64: 2>, scalar_prefetch = 0 : i64, scratch_operands = 0 : i64, tpu.core_type = #tpu.core_type<tc>, window_params = [{transform_indices = @transform_0, window_bounds = array<i64: 128, 384>}, {pipeline_mode = #tpu.pipeline_mode<synchronous>, transform_indices = @transform_1, window_bounds = array<i64: 384, 1536>}, {pipeline_mode = #tpu.pipeline_mode<synchronous>, transform_indices = @transform_2, window_bounds = array<i64: 1, 1536>}, {pipeline_mode = #tpu.pipeline_mode<synchronous>, transform_indices = @transform_3, window_bounds = array<i64: 1536, 384>}, {pipeline_mode = #tpu.pipeline_mode<synchronous>, transform_indices = @transform_4, window_bounds = array<i64: 1, 384>}, {transform_indices = @transform_5, window_bounds = array<i64: 128, 384>}]} {
    %c0 = arith.constant 0 : index
    %c0_0 = arith.constant 0 : index
    %0 = vector.load %arg1[%c0, %c0_0] : memref<128x384xf32, #tpu.memory_space<vmem>>, vector<128x384xf32>
    %1 = arith.truncf %0 : vector<128x384xf32> to vector<128x384xbf16>
    %c0_1 = arith.constant 0 : index
    %c0_2 = arith.constant 0 : index
    %2 = vector.load %arg5[%c0_1, %c0_2] : memref<1x384xf32, #tpu.memory_space<vmem>>, vector<1x384xf32>
    %3 = vector.shape_cast %2 : vector<1x384xf32> to vector<1x384xf32>
    %4 = vector.broadcast %3 : vector<1x384xf32> to vector<128x384xf32>
    %c0_3 = arith.constant 0 : index
    %c0_4 = arith.constant 0 : index
    %5 = vector.load %arg2[%c0_3, %c0_4] : memref<384x1536xbf16, #tpu.memory_space<vmem>>, vector<384x512xbf16>
    %cst = arith.constant dense<0.000000e+00> : vector<128x512xf32>
    %6 = tpu.matmul %1, %5, %cst {dimension_numbers = #tpu.dot_dimension_numbers<[1], [0], [0], [1], [0, 0, 1, 1], [], []>} : vector<128x384xbf16>, vector<384x512xbf16>, vector<128x512xf32> -> vector<128x512xf32>
    %c0_5 = arith.constant 0 : index
    %c0_6 = arith.constant 0 : index
    %7 = vector.load %arg3[%c0_5, %c0_6] : memref<1x1536xf32, #tpu.memory_space<vmem>>, vector<1x512xf32>
    %8 = vector.broadcast %7 : vector<1x512xf32> to vector<128x512xf32>
    %9 = arith.addf %6, %8 : vector<128x512xf32>
    %cst_7 = arith.constant 0.000000e+00 : f32
    %10 = vector.broadcast %cst_7 : f32 to vector<128x512xf32>
    %11 = arith.maximumf %9, %10 : vector<128x512xf32>
    %12 = arith.truncf %11 : vector<128x512xf32> to vector<128x512xbf16>
    %c0_8 = arith.constant 0 : index
    %c0_9 = arith.constant 0 : index
    %13 = vector.load %arg4[%c0_8, %c0_9] : memref<1536x384xbf16, #tpu.memory_space<vmem>>, vector<512x384xbf16>
    %cst_10 = arith.constant dense<0.000000e+00> : vector<128x384xf32>
    %14 = tpu.matmul %12, %13, %cst_10 {dimension_numbers = #tpu.dot_dimension_numbers<[1], [0], [0], [1], [0, 0, 1, 1], [], []>} : vector<128x512xbf16>, vector<512x384xbf16>, vector<128x384xf32> -> vector<128x384xf32>
    %15 = arith.addf %4, %14 : vector<128x384xf32>
    %c0_11 = arith.constant 0 : index
    %c512 = arith.constant 512 : index
    %16 = vector.load %arg2[%c0_11, %c512] : memref<384x1536xbf16, #tpu.memory_space<vmem>>, vector<384x512xbf16>
    %cst_12 = arith.constant dense<0.000000e+00> : vector<128x512xf32>
    %17 = tpu.matmul %1, %16, %cst_12 {dimension_numbers = #tpu.dot_dimension_numbers<[1], [0], [0], [1], [0, 0, 1, 1], [], []>} : vector<128x384xbf16>, vector<384x512xbf16>, vector<128x512xf32> -> vector<128x512xf32>
    %c0_13 = arith.constant 0 : index
    %c512_14 = arith.constant 512 : index
    %18 = vector.load %arg3[%c0_13, %c512_14] : memref<1x1536xf32, #tpu.memory_space<vmem>>, vector<1x512xf32>
    %19 = vector.broadcast %18 : vector<1x512xf32> to vector<128x512xf32>
    %20 = arith.addf %17, %19 : vector<128x512xf32>
    %cst_15 = arith.constant 0.000000e+00 : f32
    %21 = vector.broadcast %cst_15 : f32 to vector<128x512xf32>
    %22 = arith.maximumf %20, %21 : vector<128x512xf32>
    %23 = arith.truncf %22 : vector<128x512xf32> to vector<128x512xbf16>
    %c512_16 = arith.constant 512 : index
    %c0_17 = arith.constant 0 : index
    %24 = vector.load %arg4[%c512_16, %c0_17] : memref<1536x384xbf16, #tpu.memory_space<vmem>>, vector<512x384xbf16>
    %cst_18 = arith.constant dense<0.000000e+00> : vector<128x384xf32>
    %25 = tpu.matmul %23, %24, %cst_18 {dimension_numbers = #tpu.dot_dimension_numbers<[1], [0], [0], [1], [0, 0, 1, 1], [], []>} : vector<128x512xbf16>, vector<512x384xbf16>, vector<128x384xf32> -> vector<128x384xf32>
    %26 = arith.addf %15, %25 : vector<128x384xf32>
    %c0_19 = arith.constant 0 : index
    %c1024 = arith.constant 1024 : index
    %27 = vector.load %arg2[%c0_19, %c1024] : memref<384x1536xbf16, #tpu.memory_space<vmem>>, vector<384x512xbf16>
    %cst_20 = arith.constant dense<0.000000e+00> : vector<128x512xf32>
    %28 = tpu.matmul %1, %27, %cst_20 {dimension_numbers = #tpu.dot_dimension_numbers<[1], [0], [0], [1], [0, 0, 1, 1], [], []>} : vector<128x384xbf16>, vector<384x512xbf16>, vector<128x512xf32> -> vector<128x512xf32>
    %c0_21 = arith.constant 0 : index
    %c1024_22 = arith.constant 1024 : index
    %29 = vector.load %arg3[%c0_21, %c1024_22] : memref<1x1536xf32, #tpu.memory_space<vmem>>, vector<1x512xf32>
    %30 = vector.broadcast %29 : vector<1x512xf32> to vector<128x512xf32>
    %31 = arith.addf %28, %30 : vector<128x512xf32>
    %cst_23 = arith.constant 0.000000e+00 : f32
    %32 = vector.broadcast %cst_23 : f32 to vector<128x512xf32>
    %33 = arith.maximumf %31, %32 : vector<128x512xf32>
    %34 = arith.truncf %33 : vector<128x512xf32> to vector<128x512xbf16>
    %c1024_24 = arith.constant 1024 : index
    %c0_25 = arith.constant 0 : index
    %35 = vector.load %arg4[%c1024_24, %c0_25] : memref<1536x384xbf16, #tpu.memory_space<vmem>>, vector<512x384xbf16>
    %cst_26 = arith.constant dense<0.000000e+00> : vector<128x384xf32>
    %36 = tpu.matmul %34, %35, %cst_26 {dimension_numbers = #tpu.dot_dimension_numbers<[1], [0], [0], [1], [0, 0, 1, 1], [], []>} : vector<128x512xbf16>, vector<512x384xbf16>, vector<128x384xf32> -> vector<128x384xf32>
    %37 = arith.addf %26, %36 : vector<128x384xf32>
    %c0_27 = arith.constant 0 : index
    %c0_28 = arith.constant 0 : index
    %38 = vector.load %arg6[%c0_27, %c0_28] : memref<128x384xf32, #tpu.memory_space<vmem>>, vector<128x384xf32>
    tpu.vector_store %arg6[%c0_27, %c0_28], %37 {strides = array<i32>} : memref<128x384xf32, #tpu.memory_space<vmem>>, vector<128x384xf32>,
    return
  }
  func.func @transform_0(%arg0: i32) -> (i32, i32) {
    %c0_i32 = arith.constant 0 : i32
    %c0_i32_0 = arith.constant 0 : i32
    return %arg0, %c0_i32 : i32, i32
  }
  func.func @transform_1(%arg0: i32) -> (i32, i32) {
    %c0_i32 = arith.constant 0 : i32
    %c0_i32_0 = arith.constant 0 : i32
    %c0_i32_1 = arith.constant 0 : i32
    return %c0_i32, %c0_i32_0 : i32, i32
  }
  func.func @transform_2(%arg0: i32) -> (i32, i32) {
    %c0_i32 = arith.constant 0 : i32
    %c0_i32_0 = arith.constant 0 : i32
    %c0_i32_1 = arith.constant 0 : i32
    return %c0_i32, %c0_i32_0 : i32, i32
  }
  func.func @transform_3(%arg0: i32) -> (i32, i32) {
    %c0_i32 = arith.constant 0 : i32
    %c0_i32_0 = arith.constant 0 : i32
    %c0_i32_1 = arith.constant 0 : i32
    return %c0_i32, %c0_i32_0 : i32, i32
  }
  func.func @transform_4(%arg0: i32) -> (i32, i32) {
    %c0_i32 = arith.constant 0 : i32
    %c0_i32_0 = arith.constant 0 : i32
    %c0_i32_1 = arith.constant 0 : i32
    return %c0_i32, %c0_i32_0 : i32, i32
  }
  func.func @transform_5(%arg0: i32) -> (i32, i32) {
    %c0_i32 = arith.constant 0 : i32
    %c0_i32_0 = arith.constant 0 : i32
    return %arg0, %c0_i32 : i32, i32
  }
}

</mosaic_0001>

<llo_original>
// kernel: tpu_custom_call.1
$region0: #{tpu_custom_call.1}
  #allocation0 [shape = 'u32[]', space=smem, size = 0x4, offset = 0x4, fixed_abs, tag = 'smem constant byte address 0x4 - core index']
  #allocation1 [shape = 'u32[144,128]{1,0:T(1,128)}', space=vmem, size = 0x12000, scoped, tag = 'internal scratch']
  %s0 = inlined_call_operand.hbm [shape: f32[256,384], index: 0, kind: input, shape index: {}]
  %s1 = inlined_call_operand.hbm [shape: bf16[384,1536], index: 1, kind: input, shape index: {}]
  %s2 = inlined_call_operand.hbm [shape: f32[1,1536], index: 2, kind: input, shape index: {}]
  %s3 = inlined_call_operand.hbm [shape: bf16[1536,384], index: 3, kind: input, shape index: {}]
  %s4 = inlined_call_operand.hbm [shape: f32[1,384], index: 4, kind: input, shape index: {}]
  %s5 = inlined_call_operand.hbm [shape: f32[256,384], index: 5, kind: output, shape index: {}]
  %s6 = sld [smem:[#allocation0]]
  $region73: #{tpu_custom_call.1} parent=0
    _
  %s8 = ssub.s32 1, %s6
  %s9 = scalar_select 0, %s8, %s6
  $region1: #{tpu_custom_call.1} parent=0
    #allocation2 [shape = 'u8[393216]{0}', space=vmem, size = 0x60000, scoped, tag = 'input window, operand 0']
    #allocation3 [shape = 's32[2]{0}', space=sflag, size = 0x8, scoped, tag = 'scoped memory for tpu_custom_call.1']
    #allocation4 [shape = 's32[2]{0}', space=sflag, size = 0x8, scoped, tag = 'scoped memory for tpu_custom_call.1']
    #allocation5 [shape = 'u8[1179648]{0}', space=vmem, size = 0x120000, scoped, tag = 'input window, operand 1, single buffered']
    #allocation6 [shape = 's32[1]{0}', space=sflag, size = 0x4, scoped, tag = 'scoped memory for tpu_custom_call.1']
    #allocation7 [shape = 'u8[6144]{0}', space=vmem, size = 0x1800, scoped, tag = 'input window, operand 2, single buffered']
    #allocation8 [shape = 'u8[1179648]{0}', space=vmem, size = 0x120000, scoped, tag = 'input window, operand 3, single buffered']
    #allocation9 [shape = 's32[1]{0}', space=sflag, size = 0x4, scoped, tag = 'scoped memory for tpu_custom_call.1']
    #allocation10 [shape = 'u8[1536]{0}', space=vmem, size = 0x800, scoped, tag = 'input window, operand 4, single buffered']
    #allocation11 [shape = 'u8[393216]{0}', space=vmem, size = 0x60000, scoped, tag = 'output window, operand 0']
    %10 = vsyncpa [#allocation3], 0
    %s11 = scalar_lea.sflag [#allocation3], 1
    %12 = vsyncpa %s11, 0
    %13 = vsyncpa [#allocation6], 0
    %14 = vsyncpa [#allocation9], 0
    %15 = vsyncpa [#allocation4], 0
    %s16 = scalar_lea.sflag [#allocation4], 1
    %17 = vsyncpa %s16, 0
    loop: start=0, step=1, limit=4
    $region2: #{tpu_custom_call.1} parent=1 // loop_pre_header
      _
    $region3: #{tpu_custom_call.1} parent=1 // loop_header
      %s19 = sphi 0, %s23
      %p20 = scmp.ge.s32.totalorder %s19, 4
      %s29 = sphi 0, %s31
      %s32 = sphi 0, %s29
      %s33 = sphi 0, %s32
      %s49 = sphi 0, %s33
      %s53 = sphi 0, %s53
      %s55 = sphi 0, %s53
      %s56 = sphi 0, %s55
      %s70 = sphi 0, %s56
      %s74 = sphi 0, %s74
      %s76 = sphi 0, %s74
      %s77 = sphi 0, %s76
      %s91 = sphi 0, %s77
      %s95 = sphi 0, %s95
      %s97 = sphi 0, %s95
      %s98 = sphi 0, %s97
      %s112 = sphi 0, %s98
      %s116 = sphi 0, %s116
      %s118 = sphi 0, %s116
      %s119 = sphi 0, %s118
      %s133 = sphi 0, %s119
      %s139 = sphi 0, %s141
      %s142 = sphi 0, %s139
      %s143 = sphi 0, %s142
      %s159 = sphi 0, %s143
    $region4: #{tpu_custom_call.1} parent=1 // loop_header_branch
      %22 = sbr.rel (%p20) target = $region8
    $region5: #{tpu_custom_call.1} parent=1 // loop_body
      %s24 = ssub.s32 %s19, 1
      %s25 = ssub.s32 %s19, 2
      %s26 = sadd.s32 %s19, 1
      %s27 = ssub.s32 %s19, %s26
      %p28 = scmp.eq.s32.totalorder %s27, 0
      %s30 = sadd.s32 %s29, 1
      %s31 = scalar_select %p28, %s29, %s30
      %p34 = pneg %p28
      %p35 = scmp.eq.s32.totalorder %s19, 1
      %p36 = por %p34, %p35
      %p37 = scmp.ne.s32.totalorder %s29, %s32
      %p38 = scmp.eq.s32.totalorder %s19, 0
      %p39 = por %p37, %p38
      %p40 = scmp.ne.s32.totalorder %s29, %s32
      %p41 = scmp.eq.s32.totalorder %s24, 1
      %p42 = por %p40, %p41
      %p43 = scmp.ne.s32.totalorder %s32, %s33
      %p44 = scmp.eq.s32.totalorder %s24, 0
      %p45 = por %p43, %p44
      %p46 = scmp.ne.s32.totalorder %s32, %s33
      %p47 = scmp.eq.s32.totalorder %s25, 1
      %p48 = por %p46, %p47
      %p50 = scmp.ne.s32.totalorder %s33, %s49
      %p51 = scmp.eq.s32.totalorder %s25, 0
      %p52 = por %p50, %p51
      %s54 = sadd.s32 %s53, 1
      %p57 = scmp.eq.s32.totalorder %s19, 1
      %p58 = scmp.ne.s32.totalorder %s53, %s55
      %p59 = scmp.eq.s32.totalorder %s19, 0
      %p60 = por %p58, %p59
      %p61 = scmp.ne.s32.totalorder %s53, %s55
      %p62 = scmp.eq.s32.totalorder %s24, 1
      %p63 = por %p61, %p62
      %p64 = scmp.ne.s32.totalorder %s55, %s56
      %p65 = scmp.eq.s32.totalorder %s24, 0
      %p66 = por %p64, %p65
      %p67 = scmp.ne.s32.totalorder %s55, %s56
      %p68 = scmp.eq.s32.totalorder %s25, 1
      %p69 = por %p67, %p68
      %p71 = scmp.ne.s32.totalorder %s56, %s70
      %p72 = scmp.eq.s32.totalorder %s25, 0
      %p73 = por %p71, %p72
      %s75 = sadd.s32 %s74, 1
      %p78 = scmp.eq.s32.totalorder %s19, 1
      %p79 = scmp.ne.s32.totalorder %s74, %s76
      %p80 = scmp.eq.s32.totalorder %s19, 0
      %p81 = por %p79, %p80
      %p82 = scmp.ne.s32.totalorder %s74, %s76
      %p83 = scmp.eq.s32.totalorder %s24, 1
      %p84 = por %p82, %p83
      %p85 = scmp.ne.s32.totalorder %s76, %s77
      %p86 = scmp.eq.s32.totalorder %s24, 0
      %p87 = por %p85, %p86
      %p88 = scmp.ne.s32.totalorder %s76, %s77
      %p89 = scmp.eq.s32.totalorder %s25, 1
      %p90 = por %p88, %p89
      %p92 = scmp.ne.s32.totalorder %s77, %s91
      %p93 = scmp.eq.s32.totalorder %s25, 0
      %p94 = por %p92, %p93
      %s96 = sadd.s32 %s95, 1
      %p99 = scmp.eq.s32.totalorder %s19, 1
      %p100 = scmp.ne.s32.totalorder %s95, %s97
      %p101 = scmp.eq.s32.totalorder %s19, 0
      %p102 = por %p100, %p101
      %p103 = scmp.ne.s32.totalorder %s95, %s97
      %p104 = scmp.eq.s32.totalorder %s24, 1
      %p105 = por %p103, %p104
      %p106 = scmp.ne.s32.totalorder %s97, %s98
      %p107 = scmp.eq.s32.totalorder %s24, 0
      %p108 = por %p106, %p107
      %p109 = scmp.ne.s32.totalorder %s97, %s98
      %p110 = scmp.eq.s32.totalorder %s25, 1
      %p111 = por %p109, %p110
      %p113 = scmp.ne.s32.totalorder %s98, %s112
      %p114 = scmp.eq.s32.totalorder %s25, 0
      %p115 = por %p113, %p114
      %s117 = sadd.s32 %s116, 1
      %p120 = scmp.eq.s32.totalorder %s19, 1
      %p121 = scmp.ne.s32.totalorder %s116, %s118
      %p122 = scmp.eq.s32.totalorder %s19, 0
      %p123 = por %p121, %p122
      %p124 = scmp.ne.s32.totalorder %s116, %s118
      %p125 = scmp.eq.s32.totalorder %s24, 1
      %p126 = por %p124, %p125
      %p127 = scmp.ne.s32.totalorder %s118, %s119
      %p128 = scmp.eq.s32.totalorder %s24, 0
      %p129 = por %p127, %p128
      %p130 = scmp.ne.s32.totalorder %s118, %s119
      %p131 = scmp.eq.s32.totalorder %s25, 1
      %p132 = por %p130, %p131
      %p134 = scmp.ne.s32.totalorder %s119, %s133
      %p135 = scmp.eq.s32.totalorder %s25, 0
      %p136 = por %p134, %p135
      %s137 = ssub.s32 %s19, %s26
      %p138 = scmp.eq.s32.totalorder %s137, 0
      %s140 = sadd.s32 %s139, 1
      %s141 = scalar_select %p138, %s139, %s140
      %p144 = pneg %p138
      %p145 = scmp.eq.s32.totalorder %s19, 1
      %p146 = por %p144, %p145
      %p147 = scmp.ne.s32.totalorder %s139, %s142
      %p148 = scmp.eq.s32.totalorder %s19, 0
      %p149 = por %p147, %p148
      %p150 = scmp.ne.s32.totalorder %s139, %s142
      %p151 = scmp.eq.s32.totalorder %s24, 1
      %p152 = por %p150, %p151
      %p153 = scmp.ne.s32.totalorder %s142, %s143
      %p154 = scmp.eq.s32.totalorder %s24, 0
      %p155 = por %p153, %p154
      %p156 = scmp.ne.s32.totalorder %s142, %s143
      %p157 = scmp.eq.s32.totalorder %s25, 1
      %p158 = por %p156, %p157
      %p160 = scmp.ne.s32.totalorder %s143, %s159
      %p161 = scmp.eq.s32.totalorder %s25, 0
      %p162 = por %p160, %p161
      %p163 = scmp.le.s32.totalorder 1, %s19
      %p164 = scmp.lt.s32.totalorder %s19, 3
      %p165 = pnand %p163, %p164
      %p166 = pneg %p165
      // Predicated region
      $region9: #{tpu_custom_call.1} parent=5 // pred_check
        _
      $region10: #{tpu_custom_call.1} parent=5 // pred_check_branch
        %168 = sbr.rel (%p165) target = $region12
      $region11: #{tpu_custom_call.1} parent=5 // pred_region
        %s169 = ssub.s32 %s19, 1
        // Predicated region
        $region13: #{tpu_custom_call.1} parent=11 // pred_check
          %p170 = pneg %p66
        $region14: #{tpu_custom_call.1} parent=11 // pred_check_branch
          %172 = sbr.rel (%p170) target = $region16
        $region15: #{tpu_custom_call.1} parent=11 // pred_region
          %s174 = ssub.s32 36864, 36864
          %175 = vsyncadd [#allocation6], %s174
          %s176 = sshll.u32 [#allocation5], 4
          %s177 = int_to_ptr.vmem [resolvable:$true] %s176
          %182 = dma.hbm_to_vmem [thread:$0]  %s1, 36864, %s177, [#allocation6], 768, 768, 48
        $region16: #{tpu_custom_call.1} parent=11 // pred_fallthru
          _
        // Predicated region
        $region17: #{tpu_custom_call.1} parent=11 // pred_check
          %p183 = pneg %p87
        $region18: #{tpu_custom_call.1} parent=11 // pred_check_branch
          %185 = sbr.rel (%p183) target = $region20
        $region19: #{tpu_custom_call.1} parent=11 // pred_region
          %s187 = ssub.s32 192, 192
          %188 = vsyncadd [#allocation6], %s187
          %s190 = sshll.u32 [#allocation7], 4
          %s191 = int_to_ptr.vmem [resolvable:$true] %s190
          %193 = dma.hbm_to_vmem [thread:$0]  %s2, 192, %s191, [#allocation6]
        $region20: #{tpu_custom_call.1} parent=11 // pred_fallthru
          _
        // Predicated region
        $region21: #{tpu_custom_call.1} parent=11 // pred_check
          %p194 = pneg %p108
        $region22: #{tpu_custom_call.1} parent=11 // pred_check_branch
          %196 = sbr.rel (%p194) target = $region24
        $region23: #{tpu_custom_call.1} parent=11 // pred_region
          %s198 = ssub.s32 36864, 36864
          %199 = vsyncadd [#allocation9], %s198
          %s200 = sshll.u32 [#allocation8], 4
          %s201 = int_to_ptr.vmem [resolvable:$true] %s200
          %206 = dma.hbm_to_vmem [thread:$0]  %s3, 36864, %s201, [#allocation9], 192, 192, 12
        $region24: #{tpu_custom_call.1} parent=11 // pred_fallthru
          _
        // Predicated region
        $region25: #{tpu_custom_call.1} parent=11 // pred_check
          %p207 = pneg %p129
        $region26: #{tpu_custom_call.1} parent=11 // pred_check_branch
          %209 = sbr.rel (%p207) target = $region28
        $region27: #{tpu_custom_call.1} parent=11 // pred_region
          %s211 = ssub.s32 48, 48
          %212 = vsyncadd [#allocation9], %s211
          %s214 = sshll.u32 [#allocation10], 4
          %s215 = int_to_ptr.vmem [resolvable:$true] %s214
          %217 = dma.hbm_to_vmem [thread:$0]  %s4, 48, %s215, [#allocation9]
        $region28: #{tpu_custom_call.1} parent=11 // pred_fallthru
          _
      $region12: #{tpu_custom_call.1} parent=5 // pred_fallthru
        _
      %p218 = scmp.lt.s32.totalorder %s19, 2
      // Predicated region
      $region29: #{tpu_custom_call.1} parent=5 // pred_check
        %p219 = pneg %p218
      $region30: #{tpu_custom_call.1} parent=5 // pred_check_branch
        %221 = sbr.rel (%p219) target = $region32
      $region31: #{tpu_custom_call.1} parent=5 // pred_region
        // Predicated region
        $region33: #{tpu_custom_call.1} parent=31 // pred_check
          %p222 = pneg %p39
        $region34: #{tpu_custom_call.1} parent=31 // pred_check_branch
          %224 = sbr.rel (%p222) target = $region36
        $region35: #{tpu_custom_call.1} parent=31 // pred_region
          %s225 = sand.u32 %s29, 1
          %s226 = scalar_lea.sflag [#allocation3], %s225
          %s227 = sand.u32 %s29, 1
          %s228 = smul.addr %s227, 384
          %s229 = scalar_lea.vmem [#allocation2], %s228
          %s230 = smul.u32 16, %s19
          %s232 = ssub.s32 6144, 6144
          %233 = vsyncadd %s226, %s232
          %s234 = smul.addr %s230, 3
          %s235 = smul.addr %s234, 128
          %s236 = scalar_lea.hbm %s0, %s235
          %s237 = sshll.u32 %s229, 4
          %s238 = int_to_ptr.vmem [resolvable:$true] %s237
          %243 = dma.hbm_to_vmem [thread:$0]  %s236, 6144, %s238, %s226, 384, 384, 24
        $region36: #{tpu_custom_call.1} parent=31 // pred_fallthru
          _
      $region32: #{tpu_custom_call.1} parent=5 // pred_fallthru
        _
      %p244 = scmp.le.s32.totalorder 1, %s19
      %p245 = scmp.lt.s32.totalorder %s19, 3
      %p246 = pnand %p244, %p245
      %p247 = pneg %p246
      // Predicated region
      $region37: #{tpu_custom_call.1} parent=5 // pred_check
        _
      $region38: #{tpu_custom_call.1} parent=5 // pred_check_branch
        %249 = sbr.rel (%p246) target = $region40
      $region39: #{tpu_custom_call.1} parent=5 // pred_region
        %s250 = ssub.s32 %s19, 1
        %s251 = sand.u32 %s32, 1
        %s252 = scalar_lea.sflag [#allocation3], %s251
        %s253 = sand.u32 %s32, 1
        %s254 = smul.addr %s253, 384
        %s255 = scalar_lea.vmem [#allocation2], %s254
        // Predicated region
        $region41: #{tpu_custom_call.1} parent=39 // pred_check
          %p256 = pneg %p45
        $region42: #{tpu_custom_call.1} parent=39 // pred_check_branch
          %258 = sbr.rel (%p256) target = $region44
        $region43: #{tpu_custom_call.1} parent=39 // pred_region
          %259 = dma.done %s252, 6144
        $region44: #{tpu_custom_call.1} parent=39 // pred_fallthru
          _
        // Predicated region
        $region45: #{tpu_custom_call.1} parent=39 // pred_check
          %p260 = pneg %p66
        $region46: #{tpu_custom_call.1} parent=39 // pred_check_branch
          %262 = sbr.rel (%p260) target = $region48
        $region47: #{tpu_custom_call.1} parent=39 // pred_region
          %263 = dma.done [#allocation6], 36864
        $region48: #{tpu_custom_call.1} parent=39 // pred_fallthru
          _
        // Predicated region
        $region49: #{tpu_custom_call.1} parent=39 // pred_check
          %p264 = pneg %p87
        $region50: #{tpu_custom_call.1} parent=39 // pred_check_branch
          %266 = sbr.rel (%p264) target = $region52
        $region51: #{tpu_custom_call.1} parent=39 // pred_region
          %267 = dma.done [#allocation6], 192
        $region52: #{tpu_custom_call.1} parent=39 // pred_fallthru
          _
        // Predicated region
        $region53: #{tpu_custom_call.1} parent=39 // pred_check
          %p268 = pneg %p108
        $region54: #{tpu_custom_call.1} parent=39 // pred_check_branch
          %270 = sbr.rel (%p268) target = $region56
        $region55: #{tpu_custom_call.1} parent=39 // pred_region
          %271 = dma.done [#allocation9], 36864
        $region56: #{tpu_custom_call.1} parent=39 // pred_fallthru
          _
        // Predicated region
        $region57: #{tpu_custom_call.1} parent=39 // pred_check
          %p272 = pneg %p129
        $region58: #{tpu_custom_call.1} parent=39 // pred_check_branch
          %274 = sbr.rel (%p272) target = $region60
        $region59: #{tpu_custom_call.1} parent=39 // pred_region
          %275 = dma.done [#allocation9], 48
        $region60: #{tpu_custom_call.1} parent=39 // pred_fallthru
          _
        %s276 = sand.u32 %s32, 1
        %s277 = scalar_lea.sflag [#allocation3], %s276
        %s278 = sand.u32 %s32, 1
        %s279 = smul.addr %s278, 384
        %s280 = scalar_lea.vmem [#allocation2], %s279
        %p281 = pneg %p45
        %p282 = pneg %p42
        %p283 = pneg %p66
        %p284 = pneg %p63
        %p285 = pneg %p87
        %p286 = pneg %p84
        %p287 = pneg %p108
        %p288 = pneg %p105
        %p289 = pneg %p129
        %p290 = pneg %p126
        %p291 = pneg %p155
        %p292 = pneg %p152
        %s293 = sand.u32 %s142, 1
        %s294 = scalar_lea.sflag [#allocation4], %s293
        %s295 = sand.u32 %s142, 1
        %s296 = smul.addr %s295, 384
        %s297 = scalar_lea.vmem [#allocation11], %s296
        %s298 = smul.u32 16, %s24
        %s299 = smul.u32 16, %s24
        %v301 = vld [vmem:[%s255] sm:$0xff]
        %v302 = vld [vmem:[%s255 + $0x8] sm:$0xff]
        %v303 = vld [vmem:[%s255 + $0x10] sm:$0xff]
        %v304 = vld [vmem:[%s255 + $0x18] sm:$0xff]
        %v305 = vld [vmem:[%s255 + $0x20] sm:$0xff]
        %v306 = vld [vmem:[%s255 + $0x28] sm:$0xff]
        %v307 = vld [vmem:[%s255 + $0x30] sm:$0xff]
        %v308 = vld [vmem:[%s255 + $0x38] sm:$0xff]
        %v309 = vld [vmem:[%s255 + $0x40] sm:$0xff]
        %v310 = vld [vmem:[%s255 + $0x48] sm:$0xff]
        %v311 = vld [vmem:[%s255 + $0x50] sm:$0xff]
        %v312 = vld [vmem:[%s255 + $0x58] sm:$0xff]
        %v313 = vld [vmem:[%s255 + $0x60] sm:$0xff]
        %v314 = vld [vmem:[%s255 + $0x68] sm:$0xff]
        %v315 = vld [vmem:[%s255 + $0x70] sm:$0xff]
        %v316 = vld [vmem:[%s255 + $0x78] sm:$0xff]
        %v317 = vld [vmem:[%s255 + $0x80] sm:$0xff]
        %v318 = vld [vmem:[%s255 + $0x88] sm:$0xff]
        %v319 = vld [vmem:[%s255 + $0x90] sm:$0xff]
        %v320 = vld [vmem:[%s255 + $0x98] sm:$0xff]
        %v321 = vld [vmem:[%s255 + $0xa0] sm:$0xff]
        %v322 = vld [vmem:[%s255 + $0xa8] sm:$0xff]
        %v323 = vld [vmem:[%s255 + $0xb0] sm:$0xff]
        %v324 = vld [vmem:[%s255 + $0xb8] sm:$0xff]
        %v325 = vld [vmem:[%s255 + $0xc0] sm:$0xff]
        %v326 = vld [vmem:[%s255 + $0xc8] sm:$0xff]
        %v327 = vld [vmem:[%s255 + $0xd0] sm:$0xff]
        %v328 = vld [vmem:[%s255 + $0xd8] sm:$0xff]
        %v329 = vld [vmem:[%s255 + $0xe0] sm:$0xff]
        %v330 = vld [vmem:[%s255 + $0xe8] sm:$0xff]
        %v331 = vld [vmem:[%s255 + $0xf0] sm:$0xff]
        %v332 = vld [vmem:[%s255 + $0xf8] sm:$0xff]
        %v333 = vld [vmem:[%s255 + $0x100] sm:$0xff]
        %v334 = vld [vmem:[%s255 + $0x108] sm:$0xff]
        %v335 = vld [vmem:[%s255 + $0x110] sm:$0xff]
        %v336 = vld [vmem:[%s255 + $0x118] sm:$0xff]
        %v337 = vld [vmem:[%s255 + $0x120] sm:$0xff]
        %v338 = vld [vmem:[%s255 + $0x128] sm:$0xff]
        %v339 = vld [vmem:[%s255 + $0x130] sm:$0xff]
        %v340 = vld [vmem:[%s255 + $0x138] sm:$0xff]
        %v341 = vld [vmem:[%s255 + $0x140] sm:$0xff]
        %v342 = vld [vmem:[%s255 + $0x148] sm:$0xff]
        %v343 = vld [vmem:[%s255 + $0x150] sm:$0xff]
        %v344 = vld [vmem:[%s255 + $0x158] sm:$0xff]
        %v345 = vld [vmem:[%s255 + $0x160] sm:$0xff]
        %v346 = vld [vmem:[%s255 + $0x168] sm:$0xff]
        %v347 = vld [vmem:[%s255 + $0x170] sm:$0xff]
        %v348 = vld [vmem:[%s255 + $0x178] sm:$0xff]
        %v349 = vpack.c.bf16 %v304, %v301
        %v350 = vpack.c.bf16 %v305, %v302
        %v351 = vpack.c.bf16 %v306, %v303
        %v352 = vpack.c.bf16 %v310, %v307
        %v353 = vpack.c.bf16 %v311, %v308
        %v354 = vpack.c.bf16 %v312, %v309
        %v355 = vpack.c.bf16 %v316, %v313
        %v356 = vpack.c.bf16 %v317, %v314
        %v357 = vpack.c.bf16 %v318, %v315
        %v358 = vpack.c.bf16 %v322, %v319
        %v359 = vpack.c.bf16 %v323, %v320
        %v360 = vpack.c.bf16 %v324, %v321
        %v361 = vpack.c.bf16 %v328, %v325
        %v362 = vpack.c.bf16 %v329, %v326
        %v363 = vpack.c.bf16 %v330, %v327
        %v364 = vpack.c.bf16 %v334, %v331
        %v365 = vpack.c.bf16 %v335, %v332
        %v366 = vpack.c.bf16 %v336, %v333
        %v367 = vpack.c.bf16 %v340, %v337
        %v368 = vpack.c.bf16 %v341, %v338
        %v369 = vpack.c.bf16 %v342, %v339
        %v370 = vpack.c.bf16 %v346, %v343
        %v371 = vpack.c.bf16 %v347, %v344
        %v372 = vpack.c.bf16 %v348, %v345
        %v373 = vld [vmem:[#allocation10] sm:$0x7]
        %v375 = vlaneseq
        %v376 = vshrl.u32 %v375, 7
        %v377 = vsub.s32 0, %v376
        %v378 = vrot.slane %v373, %v377
        %v379 = vlaneseq
        %v380 = vshrl.u32 %v379, 7
        %v381 = vsub.s32 1, %v380
        %v382 = vrot.slane %v373, %v381
        %v383 = vlaneseq
        %v384 = vshrl.u32 %v383, 7
        %v385 = vsub.s32 2, %v384
        %v386 = vrot.slane %v373, %v385
        %v390 = vld [vmem:[#allocation5] sm:$0xff]
        %v391 = vld [vmem:[#allocation5 + $0x8] sm:$0xff]
        %v392 = vld [vmem:[#allocation5 + $0x30] sm:$0xff]
        %v393 = vld [vmem:[#allocation5 + $0x38] sm:$0xff]
        %v394 = vld [vmem:[#allocation5 + $0x60] sm:$0xff]
        %v395 = vld [vmem:[#allocation5 + $0x68] sm:$0xff]
        %v396 = vld [vmem:[#allocation5 + $0x90] sm:$0xff]
        %v397 = vld [vmem:[#allocation5 + $0x98] sm:$0xff]
        %v398 = vld [vmem:[#allocation5 + $0xc0] sm:$0xff]
        %v399 = vld [vmem:[#allocation5 + $0xc8] sm:$0xff]
        %v400 = vld [vmem:[#allocation5 + $0xf0] sm:$0xff]
        %v401 = vld [vmem:[#allocation5 + $0xf8] sm:$0xff]
        %v402 = vld [vmem:[#allocation5 + $0x120] sm:$0xff]
        %v403 = vld [vmem:[#allocation5 + $0x128] sm:$0xff]
        %v404 = vld [vmem:[#allocation5 + $0x150] sm:$0xff]
        %v405 = vld [vmem:[#allocation5 + $0x158] sm:$0xff]
        %v406 = vld [vmem:[#allocation5 + $0x180] sm:$0xff]
        %v407 = vld [vmem:[#allocation5 + $0x188] sm:$0xff]
        %v408 = vld [vmem:[#allocation5 + $0x1b0] sm:$0xff]
        %v409 = vld [vmem:[#allocation5 + $0x1b8] sm:$0xff]
        %v410 = vld [vmem:[#allocation5 + $0x1e0] sm:$0xff]
        %v411 = vld [vmem:[#allocation5 + $0x1e8] sm:$0xff]
        %v412 = vld [vmem:[#allocation5 + $0x210] sm:$0xff]
        %v413 = vld [vmem:[#allocation5 + $0x218] sm:$0xff]
        %v414 = vld [vmem:[#allocation5 + $0x240] sm:$0xff]
        %v415 = vld [vmem:[#allocation5 + $0x248] sm:$0xff]
        %v416 = vld [vmem:[#allocation5 + $0x270] sm:$0xff]
        %v417 = vld [vmem:[#allocation5 + $0x278] sm:$0xff]
        %v418 = vld [vmem:[#allocation5 + $0x2a0] sm:$0xff]
        %v419 = vld [vmem:[#allocation5 + $0x2a8] sm:$0xff]
        %v420 = vld [vmem:[#allocation5 + $0x2d0] sm:$0xff]
        %v421 = vld [vmem:[#allocation5 + $0x2d8] sm:$0xff]
        %v422 = vld [vmem:[#allocation5 + $0x300] sm:$0xff]
        %v423 = vld [vmem:[#allocation5 + $0x308] sm:$0xff]
        %v424 = vld [vmem:[#allocation5 + $0x330] sm:$0xff]
        %v425 = vld [vmem:[#allocation5 + $0x338] sm:$0xff]
        %v426 = vld [vmem:[#allocation5 + $0x360] sm:$0xff]
        %v427 = vld [vmem:[#allocation5 + $0x368] sm:$0xff]
        %v428 = vld [vmem:[#allocation5 + $0x390] sm:$0xff]
        %v429 = vld [vmem:[#allocation5 + $0x398] sm:$0xff]
        %v430 = vld [vmem:[#allocation5 + $0x3c0] sm:$0xff]
        %v431 = vld [vmem:[#allocation5 + $0x3c8] sm:$0xff]
        %v432 = vld [vmem:[#allocation5 + $0x3f0] sm:$0xff]
        %v433 = vld [vmem:[#allocation5 + $0x3f8] sm:$0xff]
        %v434 = vld [vmem:[#allocation5 + $0x420] sm:$0xff]
        %v435 = vld [vmem:[#allocation5 + $0x428] sm:$0xff]
        %v436 = vld [vmem:[#allocation5 + $0x450] sm:$0xff]
        %v437 = vld [vmem:[#allocation5 + $0x458] sm:$0xff]
        %v438 = vld [vmem:[#allocation5 + $0x480] sm:$0xff]
        %v439 = vld [vmem:[#allocation5 + $0x488] sm:$0xff]
        %v440 = vld [vmem:[#allocation5 + $0x4b0] sm:$0xff]
        %v441 = vld [vmem:[#allocation5 + $0x4b8] sm:$0xff]
        %v442 = vld [vmem:[#allocation5 + $0x4e0] sm:$0xff]
        %v443 = vld [vmem:[#allocation5 + $0x4e8] sm:$0xff]
        %v444 = vld [vmem:[#allocation5 + $0x510] sm:$0xff]
        %v445 = vld [vmem:[#allocation5 + $0x518] sm:$0xff]
        %v446 = vld [vmem:[#allocation5 + $0x540] sm:$0xff]
        %v447 = vld [vmem:[#allocation5 + $0x548] sm:$0xff]
        %v448 = vld [vmem:[#allocation5 + $0x570] sm:$0xff]
        %v449 = vld [vmem:[#allocation5 + $0x578] sm:$0xff]
        %v450 = vld [vmem:[#allocation5 + $0x5a0] sm:$0xff]
        %v451 = vld [vmem:[#allocation5 + $0x5a8] sm:$0xff]
        %v452 = vld [vmem:[#allocation5 + $0x5d0] sm:$0xff]
        %v453 = vld [vmem:[#allocation5 + $0x5d8] sm:$0xff]
        %v454 = vld [vmem:[#allocation5 + $0x600] sm:$0xff]
        %v455 = vld [vmem:[#allocation5 + $0x608] sm:$0xff]
        %v456 = vld [vmem:[#allocation5 + $0x630] sm:$0xff]
        %v457 = vld [vmem:[#allocation5 + $0x638] sm:$0xff]
        %v458 = vld [vmem:[#allocation5 + $0x660] sm:$0xff]
        %v459 = vld [vmem:[#allocation5 + $0x668] sm:$0xff]
        %v460 = vld [vmem:[#allocation5 + $0x690] sm:$0xff]
        %v461 = vld [vmem:[#allocation5 + $0x698] sm:$0xff]
        %v462 = vld [vmem:[#allocation5 + $0x6c0] sm:$0xff]
        %v463 = vld [vmem:[#allocation5 + $0x6c8] sm:$0xff]
        %v464 = vld [vmem:[#allocation5 + $0x6f0] sm:$0xff]
        %v465 = vld [vmem:[#allocation5 + $0x6f8] sm:$0xff]
        %v466 = vld [vmem:[#allocation5 + $0x720] sm:$0xff]
        %v467 = vld [vmem:[#allocation5 + $0x728] sm:$0xff]
        %v468 = vld [vmem:[#allocation5 + $0x750] sm:$0xff]
        %v469 = vld [vmem:[#allocation5 + $0x758] sm:$0xff]
        %v470 = vld [vmem:[#allocation5 + $0x780] sm:$0xff]
        %v471 = vld [vmem:[#allocation5 + $0x788] sm:$0xff]
        %v472 = vld [vmem:[#allocation5 + $0x7b0] sm:$0xff]
        %v473 = vld [vmem:[#allocation5 + $0x7b8] sm:$0xff]
        %v474 = vld [vmem:[#allocation5 + $0x7e0] sm:$0xff]
        %v475 = vld [vmem:[#allocation5 + $0x7e8] sm:$0xff]
        %v476 = vld [vmem:[#allocation5 + $0x810] sm:$0xff]
        %v477 = vld [vmem:[#allocation5 + $0x818] sm:$0xff]
        %v478 = vld [vmem:[#allocation5 + $0x840] sm:$0xff]
        %v479 = vld [vmem:[#allocation5 + $0x848] sm:$0xff]
        %v480 = vld [vmem:[#allocation5 + $0x870] sm:$0xff]
        %v481 = vld [vmem:[#allocation5 + $0x878] sm:$0xff]
        %v482 = vld [vmem:[#allocation5 + $0x8a0] sm:$0xff]
        %v483 = vld [vmem:[#allocation5 + $0x8a8] sm:$0xff]
        %v484 = vld [vmem:[#allocation5 + $0x8d0] sm:$0xff]
        %v485 = vld [vmem:[#allocation5 + $0x8d8] sm:$0xff]
        %v486 = vld [vmem:[#allocation7] sm:$0xf]
        %v488 = vlaneseq
        %v489 = vshrl.u32 %v488, 7
        %v490 = vsub.s32 0, %v489
        %v491 = vrot.slane %v486, %v490
        %v492 = vlaneseq
        %v493 = vshrl.u32 %v492, 7
        %v494 = vsub.s32 1, %v493
        %v495 = vrot.slane %v486, %v494
        %v496 = vlaneseq
        %v497 = vshrl.u32 %v496, 7
        %v498 = vsub.s32 2, %v497
        %v499 = vrot.slane %v486, %v498
        %v500 = vlaneseq
        %v501 = vshrl.u32 %v500, 7
        %v502 = vsub.s32 3, %v501
        %v503 = vrot.slane %v486, %v502
        %v604 = vunpack.c.l.b16 %v390
        %v605 = vunpack.c.h.b16 %v390
        %v606 = vunpack.c.l.b16 %v391
        %v607 = vunpack.c.h.b16 %v391
        %v608 = vunpack.c.l.b16 %v392
        %v609 = vunpack.c.h.b16 %v392
        %v610 = vunpack.c.l.b16 %v393
        %v611 = vunpack.c.h.b16 %v393
        %v612 = vunpack.c.l.b16 %v394
        %v613 = vunpack.c.h.b16 %v394
        %v614 = vunpack.c.l.b16 %v395
        %v615 = vunpack.c.h.b16 %v395
        %v616 = vunpack.c.l.b16 %v396
        %v617 = vunpack.c.h.b16 %v396
        %v618 = vunpack.c.l.b16 %v397
        %v619 = vunpack.c.h.b16 %v397
        %v620 = vunpack.c.l.b16 %v398
        %v621 = vunpack.c.h.b16 %v398
        %v622 = vunpack.c.l.b16 %v399
        %v623 = vunpack.c.h.b16 %v399
        %v624 = vunpack.c.l.b16 %v400
        %v625 = vunpack.c.h.b16 %v400
        %v626 = vunpack.c.l.b16 %v401
        %v627 = vunpack.c.h.b16 %v401
        %v628 = vunpack.c.l.b16 %v402
        %v629 = vunpack.c.h.b16 %v402
        %v630 = vunpack.c.l.b16 %v403
        %v631 = vunpack.c.h.b16 %v403
        %v632 = vunpack.c.l.b16 %v404
        %v633 = vunpack.c.h.b16 %v404
        %v634 = vunpack.c.l.b16 %v405
        %v635 = vunpack.c.h.b16 %v405
        %v636 = vunpack.c.l.b16 %v406
        %v637 = vunpack.c.h.b16 %v406
        %v638 = vunpack.c.l.b16 %v407
        %v639 = vunpack.c.h.b16 %v407
        %v640 = vunpack.c.l.b16 %v408
        %v641 = vunpack.c.h.b16 %v408
        %v642 = vunpack.c.l.b16 %v409
        %v643 = vunpack.c.h.b16 %v409
        %v644 = vunpack.c.l.b16 %v410
        %v645 = vunpack.c.h.b16 %v410
        %v646 = vunpack.c.l.b16 %v411
        %v647 = vunpack.c.h.b16 %v411
        %v648 = vunpack.c.l.b16 %v412
        %v649 = vunpack.c.h.b16 %v412
        %v650 = vunpack.c.l.b16 %v413
        %v651 = vunpack.c.h.b16 %v413
        %v652 = vunpack.c.l.b16 %v414
        %v653 = vunpack.c.h.b16 %v414
        %v654 = vunpack.c.l.b16 %v415
        %v655 = vunpack.c.h.b16 %v415
        %v656 = vunpack.c.l.b16 %v416
        %v657 = vunpack.c.h.b16 %v416
        %v658 = vunpack.c.l.b16 %v417
        %v659 = vunpack.c.h.b16 %v417
        %v660 = vunpack.c.l.b16 %v418
        %v661 = vunpack.c.h.b16 %v418
        %v662 = vunpack.c.l.b16 %v419
        %v663 = vunpack.c.h.b16 %v419
        %v664 = vunpack.c.l.b16 %v420
        %v665 = vunpack.c.h.b16 %v420
        %v666 = vunpack.c.l.b16 %v421
        %v667 = vunpack.c.h.b16 %v421
        %v668 = vunpack.c.l.b16 %v422
        %v669 = vunpack.c.h.b16 %v422
        %v670 = vunpack.c.l.b16 %v423
        %v671 = vunpack.c.h.b16 %v423
        %v672 = vunpack.c.l.b16 %v424
        %v673 = vunpack.c.h.b16 %v424
        %v674 = vunpack.c.l.b16 %v425
        %v675 = vunpack.c.h.b16 %v425
        %v676 = vunpack.c.l.b16 %v426
        %v677 = vunpack.c.h.b16 %v426
        %v678 = vunpack.c.l.b16 %v427
        %v679 = vunpack.c.h.b16 %v427
        %v680 = vunpack.c.l.b16 %v428
        %v681 = vunpack.c.h.b16 %v428
        %v682 = vunpack.c.l.b16 %v429
        %v683 = vunpack.c.h.b16 %v429
        %v684 = vunpack.c.l.b16 %v430
        %v685 = vunpack.c.h.b16 %v430
        %v686 = vunpack.c.l.b16 %v431
        %v687 = vunpack.c.h.b16 %v431
        %v688 = vunpack.c.l.b16 %v432
        %v689 = vunpack.c.h.b16 %v432
        %v690 = vunpack.c.l.b16 %v433
        %v691 = vunpack.c.h.b16 %v433
        %v692 = vunpack.c.l.b16 %v434
        %v693 = vunpack.c.h.b16 %v434
        %v694 = vunpack.c.l.b16 %v435
        %v695 = vunpack.c.h.b16 %v435
        %v696 = vunpack.c.l.b16 %v436
        %v697 = vunpack.c.h.b16 %v436
        %v698 = vunpack.c.l.b16 %v437
        %v699 = vunpack.c.h.b16 %v437
        %v700 = vunpack.c.l.b16 %v438
        %v701 = vunpack.c.h.b16 %v438
        %v702 = vunpack.c.l.b16 %v439
        %v703 = vunpack.c.h.b16 %v439
        %v704 = vunpack.c.l.b16 %v440
        %v705 = vunpack.c.h.b16 %v440
        %v706 = vunpack.c.l.b16 %v441
        %v707 = vunpack.c.h.b16 %v441
        %v708 = vunpack.c.l.b16 %v442
        %v709 = vunpack.c.h.b16 %v442
        %v710 = vunpack.c.l.b16 %v443
        %v711 = vunpack.c.h.b16 %v443
        %v712 = vunpack.c.l.b16 %v444
        %v713 = vunpack.c.h.b16 %v444
        %v714 = vunpack.c.l.b16 %v445
        %v715 = vunpack.c.h.b16 %v445
        %v716 = vunpack.c.l.b16 %v446
        %v717 = vunpack.c.h.b16 %v446
        %v718 = vunpack.c.l.b16 %v447
        %v719 = vunpack.c.h.b16 %v447
        %v720 = vunpack.c.l.b16 %v448
        %v721 = vunpack.c.h.b16 %v448
        %v722 = vunpack.c.l.b16 %v449
        %v723 = vunpack.c.h.b16 %v449
        %v724 = vunpack.c.l.b16 %v450
        %v725 = vunpack.c.h.b16 %v450
        %v726 = vunpack.c.l.b16 %v451
        %v727 = vunpack.c.h.b16 %v451
        %v728 = vunpack.c.l.b16 %v452
        %v729 = vunpack.c.h.b16 %v452
        %v730 = vunpack.c.l.b16 %v453
        %v731 = vunpack.c.h.b16 %v453
        %v732 = vunpack.c.l.b16 %v454
        %v733 = vunpack.c.h.b16 %v454
        %v734 = vunpack.c.l.b16 %v455
        %v735 = vunpack.c.h.b16 %v455
        %v736 = vunpack.c.l.b16 %v456
        %v737 = vunpack.c.h.b16 %v456
        %v738 = vunpack.c.l.b16 %v457
        %v739 = vunpack.c.h.b16 %v457
        %v740 = vunpack.c.l.b16 %v458
        %v741 = vunpack.c.h.b16 %v458
        %v742 = vunpack.c.l.b16 %v459
        %v743 = vunpack.c.h.b16 %v459
        %v744 = vunpack.c.l.b16 %v460
        %v745 = vunpack.c.h.b16 %v460
        %v746 = vunpack.c.l.b16 %v461
        %v747 = vunpack.c.h.b16 %v461
        %v748 = vunpack.c.l.b16 %v462
        %v749 = vunpack.c.h.b16 %v462
        %v750 = vunpack.c.l.b16 %v463
        %v751 = vunpack.c.h.b16 %v463
        %v752 = vunpack.c.l.b16 %v464
        %v753 = vunpack.c.h.b16 %v464
        %v754 = vunpack.c.l.b16 %v465
        %v755 = vunpack.c.h.b16 %v465
        %v756 = vunpack.c.l.b16 %v466
        %v757 = vunpack.c.h.b16 %v466
        %v758 = vunpack.c.l.b16 %v467
        %v759 = vunpack.c.h.b16 %v467
        %v760 = vunpack.c.l.b16 %v468
        %v761 = vunpack.c.h.b16 %v468
        %v762 = vunpack.c.l.b16 %v469
        %v763 = vunpack.c.h.b16 %v469
        %v764 = vunpack.c.l.b16 %v470
        %v765 = vunpack.c.h.b16 %v470
        %v766 = vunpack.c.l.b16 %v471
        %v767 = vunpack.c.h.b16 %v471
        %v768 = vunpack.c.l.b16 %v472
        %v769 = vunpack.c.h.b16 %v472
        %v770 = vunpack.c.l.b16 %v473
        %v771 = vunpack.c.h.b16 %v473
        %v772 = vunpack.c.l.b16 %v474
        %v773 = vunpack.c.h.b16 %v474
        %v774 = vunpack.c.l.b16 %v475
        %v775 = vunpack.c.h.b16 %v475
        %v776 = vunpack.c.l.b16 %v476
        %v777 = vunpack.c.h.b16 %v476
        %v778 = vunpack.c.l.b16 %v477
        %v779 = vunpack.c.h.b16 %v477
        %v780 = vunpack.c.l.b16 %v478
        %v781 = vunpack.c.h.b16 %v478
        %v782 = vunpack.c.l.b16 %v479
        %v783 = vunpack.c.h.b16 %v479
        %v784 = vunpack.c.l.b16 %v480
        %v785 = vunpack.c.h.b16 %v480
        %v786 = vunpack.c.l.b16 %v481
        %v787 = vunpack.c.h.b16 %v481
        %v788 = vunpack.c.l.b16 %v482
        %v789 = vunpack.c.h.b16 %v482
        %v790 = vunpack.c.l.b16 %v483
        %v791 = vunpack.c.h.b16 %v483
        %v792 = vunpack.c.l.b16 %v484
        %v793 = vunpack.c.h.b16 %v484
        %v794 = vunpack.c.l.b16 %v485
        %v795 = vunpack.c.h.b16 %v485
        %v796 = vpack.c.b16 %v608, %v604
        %v797 = vpack.c.b16 %v609, %v605
        %v798 = vpack.c.b16 %v610, %v606
        %v799 = vpack.c.b16 %v611, %v607
        %v800 = vpack.c.b16 %v616, %v612
        %v801 = vpack.c.b16 %v617, %v613
        %v802 = vpack.c.b16 %v618, %v614
        %v803 = vpack.c.b16 %v619, %v615
        %v804 = vpack.c.b16 %v624, %v620
        %v805 = vpack.c.b16 %v625, %v621
        %v806 = vpack.c.b16 %v626, %v622
        %v807 = vpack.c.b16 %v627, %v623
        %v808 = vpack.c.b16 %v632, %v628
        %v809 = vpack.c.b16 %v633, %v629
        %v810 = vpack.c.b16 %v634, %v630
        %v811 = vpack.c.b16 %v635, %v631
        %v812 = vpack.c.b16 %v640, %v636
        %v813 = vpack.c.b16 %v641, %v637
        %v814 = vpack.c.b16 %v642, %v638
        %v815 = vpack.c.b16 %v643, %v639
        %v816 = vpack.c.b16 %v648, %v644
        %v817 = vpack.c.b16 %v649, %v645
        %v818 = vpack.c.b16 %v650, %v646
        %v819 = vpack.c.b16 %v651, %v647
        %v820 = vpack.c.b16 %v656, %v652
        %v821 = vpack.c.b16 %v657, %v653
        %v822 = vpack.c.b16 %v658, %v654
        %v823 = vpack.c.b16 %v659, %v655
        %v824 = vpack.c.b16 %v664, %v660
        %v825 = vpack.c.b16 %v665, %v661
        %v826 = vpack.c.b16 %v666, %v662
        %v827 = vpack.c.b16 %v667, %v663
        %v828 = vpack.c.b16 %v672, %v668
        %v829 = vpack.c.b16 %v673, %v669
        %v830 = vpack.c.b16 %v674, %v670
        %v831 = vpack.c.b16 %v675, %v671
        %v832 = vpack.c.b16 %v680, %v676
        %v833 = vpack.c.b16 %v681, %v677
        %v834 = vpack.c.b16 %v682, %v678
        %v835 = vpack.c.b16 %v683, %v679
        %v836 = vpack.c.b16 %v688, %v684
        %v837 = vpack.c.b16 %v689, %v685
        %v838 = vpack.c.b16 %v690, %v686
        %v839 = vpack.c.b16 %v691, %v687
        %v840 = vpack.c.b16 %v696, %v692
        %v841 = vpack.c.b16 %v697, %v693
        %v842 = vpack.c.b16 %v698, %v694
        %v843 = vpack.c.b16 %v699, %v695
        %v844 = vpack.c.b16 %v704, %v700
        %v845 = vpack.c.b16 %v705, %v701
        %v846 = vpack.c.b16 %v706, %v702
        %v847 = vpack.c.b16 %v707, %v703
        %v848 = vpack.c.b16 %v712, %v708
        %v849 = vpack.c.b16 %v713, %v709
        %v850 = vpack.c.b16 %v714, %v710
        %v851 = vpack.c.b16 %v715, %v711
        %v852 = vpack.c.b16 %v720, %v716
        %v853 = vpack.c.b16 %v721, %v717
        %v854 = vpack.c.b16 %v722, %v718
        %v855 = vpack.c.b16 %v723, %v719
        %v856 = vpack.c.b16 %v728, %v724
        %v857 = vpack.c.b16 %v729, %v725
        %v858 = vpack.c.b16 %v730, %v726
        %v859 = vpack.c.b16 %v731, %v727
        %v860 = vpack.c.b16 %v736, %v732
        %v861 = vpack.c.b16 %v737, %v733
        %v862 = vpack.c.b16 %v738, %v734
        %v863 = vpack.c.b16 %v739, %v735
        %v864 = vpack.c.b16 %v744, %v740
        %v865 = vpack.c.b16 %v745, %v741
        %v866 = vpack.c.b16 %v746, %v742
        %v867 = vpack.c.b16 %v747, %v743
        %v868 = vpack.c.b16 %v752, %v748
        %v869 = vpack.c.b16 %v753, %v749
        %v870 = vpack.c.b16 %v754, %v750
        %v871 = vpack.c.b16 %v755, %v751
        %v872 = vpack.c.b16 %v760, %v756
        %v873 = vpack.c.b16 %v761, %v757
        %v874 = vpack.c.b16 %v762, %v758
        %v875 = vpack.c.b16 %v763, %v759
        %v876 = vpack.c.b16 %v768, %v764
        %v877 = vpack.c.b16 %v769, %v765
        %v878 = vpack.c.b16 %v770, %v766
        %v879 = vpack.c.b16 %v771, %v767
        %v880 = vpack.c.b16 %v776, %v772
        %v881 = vpack.c.b16 %v777, %v773
        %v882 = vpack.c.b16 %v778, %v774
        %v883 = vpack.c.b16 %v779, %v775
        %v884 = vpack.c.b16 %v784, %v780
        %v885 = vpack.c.b16 %v785, %v781
        %v886 = vpack.c.b16 %v786, %v782
        %v887 = vpack.c.b16 %v787, %v783
        %v888 = vpack.c.b16 %v792, %v788
        %v889 = vpack.c.b16 %v793, %v789
        %v890 = vpack.c.b16 %v794, %v790
        %v891 = vpack.c.b16 %v795, %v791
        %988 = vmatprep.subr.bf16.mxu0 %v797
        %989 = vmatpush1.bf16.msra.mxu0 %v796
        %990 = vmatprep.subr.bf16.mxu0 %v801
        %991 = vmatpush1.bf16.msra.mxu0 %v800
        %992 = vmatprep.subr.bf16.mxu0 %v805
        %993 = vmatpush1.bf16.msra.mxu0 %v804
        %994 = vmatprep.subr.bf16.mxu0 %v809
        %995 = vmatpush1.bf16.msra.mxu0 %v808
        %996 = vmatprep.subr.bf16.mxu0 %v813
        %997 = vmatpush1.bf16.msra.mxu0 %v812
        %998 = vmatprep.subr.bf16.mxu0 %v817
        %999 = vmatpush1.bf16.msra.mxu0 %v816
        %1000 = vmatprep.subr.bf16.mxu0 %v821
        %1001 = vmatpush1.bf16.msra.mxu0 %v820
        %1002 = vmatprep.subr.bf16.mxu0 %v825
        %1003 = vmatpush1.bf16.msra.mxu0 %v824
        %1004 = vmatprep.subr.bf16.mxu0 %v829
        %1005 = vmatpush1.bf16.msra.mxu0 %v828
        %1006 = vmatprep.subr.bf16.mxu0 %v833
        %1007 = vmatpush1.bf16.msra.mxu0 %v832
        %1008 = vmatprep.subr.bf16.mxu0 %v837
        %1009 = vmatpush1.bf16.msra.mxu0 %v836
        %1010 = vmatprep.subr.bf16.mxu0 %v841
        %1011 = vmatpush1.bf16.msra.mxu0 %v840
        %1012 = vmatprep.subr.bf16.mxu0 %v845
        %1013 = vmatpush1.bf16.msra.mxu0 %v844
        %1014 = vmatprep.subr.bf16.mxu0 %v849
        %1015 = vmatpush1.bf16.msra.mxu0 %v848
        %1016 = vmatprep.subr.bf16.mxu0 %v853
        %1017 = vmatpush1.bf16.msra.mxu0 %v852
        %1018 = vmatprep.subr.bf16.mxu0 %v857
        %1019 = vmatpush1.bf16.msra.mxu0 %v856
        %1020 = vmatprep.mubr.bf16.mxu0 %v350
        %1021 = vmatmul.mubr.bf16.gmra.mrb[0].mxu0 %v349
        %v1022 = vpop.f32.mrb[0].mxu0
        %v1023 = vadd.f32 %v491, %v1022
        %v1024 = vpop.f32.mrb[0].mxu0
        %v1025 = vadd.f32 %v495, %v1024
        %v1026 = vpop.f32.mrb[0].mxu0
        %v1027 = vadd.f32 %v491, %v1026
        %v1028 = vpop.f32.mrb[0].mxu0
        %v1029 = vadd.f32 %v495, %v1028
        %1030 = vmatprep.mubr.bf16.mxu0 %v353
        %1031 = vmatmul.mubr.bf16.gmra.mrb[0].mxu0 %v352
        %v1032 = vpop.f32.mrb[0].mxu0
        %v1033 = vadd.f32 %v491, %v1032
        %v1034 = vpop.f32.mrb[0].mxu0
        %v1035 = vadd.f32 %v495, %v1034
        %v1036 = vpop.f32.mrb[0].mxu0
        %v1037 = vadd.f32 %v491, %v1036
        %v1038 = vpop.f32.mrb[0].mxu0
        %v1039 = vadd.f32 %v495, %v1038
        %1040 = vmatprep.mubr.bf16.mxu0 %v356
        %1041 = vmatmul.mubr.bf16.gmra.mrb[0].mxu0 %v355
        %v1042 = vpop.f32.mrb[0].mxu0
        %v1043 = vadd.f32 %v491, %v1042
        %v1044 = vpop.f32.mrb[0].mxu0
        %v1045 = vadd.f32 %v495, %v1044
        %v1046 = vpop.f32.mrb[0].mxu0
        %v1047 = vadd.f32 %v491, %v1046
        %v1048 = vpop.f32.mrb[0].mxu0
        %v1049 = vadd.f32 %v495, %v1048
        %1050 = vmatprep.mubr.bf16.mxu0 %v359
        %1051 = vmatmul.mubr.bf16.gmra.mrb[0].mxu0 %v358
        %v1052 = vpop.f32.mrb[0].mxu0
        %v1053 = vadd.f32 %v491, %v1052
        %v1054 = vpop.f32.mrb[0].mxu0
        %v1055 = vadd.f32 %v495, %v1054
        %v1056 = vpop.f32.mrb[0].mxu0
        %v1057 = vadd.f32 %v491, %v1056
        %v1058 = vpop.f32.mrb[0].mxu0
        %v1059 = vadd.f32 %v495, %v1058
        %1060 = vmatprep.mubr.bf16.mxu0 %v362
        %1061 = vmatmul.mubr.bf16.gmra.mrb[0].mxu0 %v361
        %v1062 = vpop.f32.mrb[0].mxu0
        %v1063 = vadd.f32 %v491, %v1062
        %v1064 = vpop.f32.mrb[0].mxu0
        %v1065 = vadd.f32 %v495, %v1064
        %v1066 = vpop.f32.mrb[0].mxu0
        %v1067 = vadd.f32 %v491, %v1066
        %v1068 = vpop.f32.mrb[0].mxu0
        %v1069 = vadd.f32 %v495, %v1068
        %1070 = vmatprep.mubr.bf16.mxu0 %v365
        %1071 = vmatmul.mubr.bf16.gmra.mrb[0].mxu0 %v364
        %v1072 = vpop.f32.mrb[0].mxu0
        %v1073 = vadd.f32 %v491, %v1072
        %v1074 = vpop.f32.mrb[0].mxu0
        %v1075 = vadd.f32 %v495, %v1074
        %v1076 = vpop.f32.mrb[0].mxu0
        %v1077 = vadd.f32 %v491, %v1076
        %v1078 = vpop.f32.mrb[0].mxu0
        %v1079 = vadd.f32 %v495, %v1078
        %1080 = vmatprep.mubr.bf16.mxu0 %v368
        %1081 = vmatmul.mubr.bf16.gmra.mrb[0].mxu0 %v367
        %v1082 = vpop.f32.mrb[0].mxu0
        %v1083 = vadd.f32 %v491, %v1082
        %v1084 = vpop.f32.mrb[0].mxu0
        %v1085 = vadd.f32 %v495, %v1084
        %v1086 = vpop.f32.mrb[0].mxu0
        %v1087 = vadd.f32 %v491, %v1086
        %v1088 = vpop.f32.mrb[0].mxu0
        %v1089 = vadd.f32 %v495, %v1088
        %1090 = vmatprep.mubr.bf16.mxu0 %v371
        %1091 = vmatmul.mubr.bf16.gmra.mrb[0].mxu0 %v370
        %v1092 = vpop.f32.mrb[0].mxu0
        %v1093 = vadd.f32 %v491, %v1092
        %v1094 = vpop.f32.mrb[0].mxu0
        %v1095 = vadd.f32 %v495, %v1094
        %v1096 = vpop.f32.mrb[0].mxu0
        %v1097 = vadd.f32 %v491, %v1096
        %v1098 = vpop.f32.mrb[0].mxu0
        %v1099 = vadd.f32 %v495, %v1098
        %1100 = vdwg.mxu0
        %1101 = vmatprep.subr.bf16.mxu0 %v861
        %1102 = vmatpush1.bf16.msra.mxu0 %v860
        %1103 = vmatprep.subr.bf16.mxu0 %v865
        %1104 = vmatpush1.bf16.msra.mxu0 %v864
        %1105 = vmatprep.subr.bf16.mxu0 %v869
        %1106 = vmatpush1.bf16.msra.mxu0 %v868
        %1107 = vmatprep.subr.bf16.mxu0 %v873
        %1108 = vmatpush1.bf16.msra.mxu0 %v872
        %1109 = vmatprep.subr.bf16.mxu0 %v877
        %1110 = vmatpush1.bf16.msra.mxu0 %v876
        %1111 = vmatprep.subr.bf16.mxu0 %v881
        %1112 = vmatpush1.bf16.msra.mxu0 %v880
        %1113 = vmatprep.subr.bf16.mxu0 %v885
        %1114 = vmatpush1.bf16.msra.mxu0 %v884
        %1115 = vmatprep.subr.bf16.mxu0 %v889
        %1116 = vmatpush1.bf16.msra.mxu0 %v888
        %1117 = vmatprep.subr.bf16.mxu0 0
        %1118 = vmatpush1.bf16.msra.mxu0 0
        %1119 = vmatprep.subr.bf16.mxu0 0
        %1120 = vmatpush1.bf16.msra.mxu0 0
        %1121 = vmatprep.subr.bf16.mxu0 0
        %1122 = vmatpush1.bf16.msra.mxu0 0
        %1123 = vmatprep.subr.bf16.mxu0 0
        %1124 = vmatpush1.bf16.msra.mxu0 0
        %1125 = vmatprep.subr.bf16.mxu0 0
        %1126 = vmatpush1.bf16.msra.mxu0 0
        %1127 = vmatprep.subr.bf16.mxu0 0
        %1128 = vmatpush1.bf16.msra.mxu0 0
        %1129 = vmatprep.subr.bf16.mxu0 0
        %1130 = vmatpush1.bf16.msra.mxu0 0
        %1131 = vmatprep.subr.bf16.mxu0 0
        %1132 = vmatpush1.bf16.msra.mxu0 0
        %1133 = vmatprep.mubr.bf16.mxu0 0
        %1134 = vmatmul.mubr.bf16.gmra.mrb[0].mxu0 %v351
        %v1135 = vpop.f32.mrb[0].mxu0
        %v1136 = vadd.f32 %v1023, %v1135
        %v1137 = vpop.f32.mrb[0].mxu0
        %v1138 = vadd.f32 %v1025, %v1137
        %v1139 = vpop.f32.mrb[0].mxu0
        %v1140 = vadd.f32 %v1027, %v1139
        %v1141 = vpop.f32.mrb[0].mxu0
        %v1142 = vadd.f32 %v1029, %v1141
        %1143 = vmatprep.mubr.bf16.mxu0 0
        %1144 = vmatmul.mubr.bf16.gmra.mrb[0].mxu0 %v354
        %v1145 = vpop.f32.mrb[0].mxu0
        %v1146 = vadd.f32 %v1033, %v1145
        %v1147 = vpop.f32.mrb[0].mxu0
        %v1148 = vadd.f32 %v1035, %v1147
        %v1149 = vpop.f32.mrb[0].mxu0
        %v1150 = vadd.f32 %v1037, %v1149
        %v1151 = vpop.f32.mrb[0].mxu0
        %v1152 = vadd.f32 %v1039, %v1151
        %1153 = vmatprep.mubr.bf16.mxu0 0
        %1154 = vmatmul.mubr.bf16.gmra.mrb[0].mxu0 %v357
        %v1155 = vpop.f32.mrb[0].mxu0
        %v1156 = vadd.f32 %v1043, %v1155
        %v1157 = vpop.f32.mrb[0].mxu0
        %v1158 = vadd.f32 %v1045, %v1157
        %v1159 = vpop.f32.mrb[0].mxu0
        %v1160 = vadd.f32 %v1047, %v1159
        %v1161 = vpop.f32.mrb[0].mxu0
        %v1162 = vadd.f32 %v1049, %v1161
        %1163 = vmatprep.mubr.bf16.mxu0 0
        %1164 = vmatmul.mubr.bf16.gmra.mrb[0].mxu0 %v360
        %v1165 = vpop.f32.mrb[0].mxu0
        %v1166 = vadd.f32 %v1053, %v1165
        %v1167 = vpop.f32.mrb[0].mxu0
        %v1168 = vadd.f32 %v1055, %v1167
        %v1169 = vpop.f32.mrb[0].mxu0
        %v1170 = vadd.f32 %v1057, %v1169
        %v1171 = vpop.f32.mrb[0].mxu0
        %v1172 = vadd.f32 %v1059, %v1171
        %1173 = vmatprep.mubr.bf16.mxu0 0
        %1174 = vmatmul.mubr.bf16.gmra.mrb[0].mxu0 %v363
        %v1175 = vpop.f32.mrb[0].mxu0
        %v1176 = vadd.f32 %v1063, %v1175
        %v1177 = vpop.f32.mrb[0].mxu0
        %v1178 = vadd.f32 %v1065, %v1177
        %v1179 = vpop.f32.mrb[0].mxu0
        %v1180 = vadd.f32 %v1067, %v1179
        %v1181 = vpop.f32.mrb[0].mxu0
        %v1182 = vadd.f32 %v1069, %v1181
        %1183 = vmatprep.mubr.bf16.mxu0 0
        %1184 = vmatmul.mubr.bf16.gmra.mrb[0].mxu0 %v366
        %v1185 = vpop.f32.mrb[0].mxu0
        %v1186 = vadd.f32 %v1073, %v1185
        %v1187 = vpop.f32.mrb[0].mxu0
        %v1188 = vadd.f32 %v1075, %v1187
        %v1189 = vpop.f32.mrb[0].mxu0
        %v1190 = vadd.f32 %v1077, %v1189
        %v1191 = vpop.f32.mrb[0].mxu0
        %v1192 = vadd.f32 %v1079, %v1191
        %1193 = vmatprep.mubr.bf16.mxu0 0
        %1194 = vmatmul.mubr.bf16.gmra.mrb[0].mxu0 %v369
        %v1195 = vpop.f32.mrb[0].mxu0
        %v1196 = vadd.f32 %v1083, %v1195
        %v1197 = vpop.f32.mrb[0].mxu0
        %v1198 = vadd.f32 %v1085, %v1197
        %v1199 = vpop.f32.mrb[0].mxu0
        %v1200 = vadd.f32 %v1087, %v1199
        %v1201 = vpop.f32.mrb[0].mxu0
        %v1202 = vadd.f32 %v1089, %v1201
        %1203 = vmatprep.mubr.bf16.mxu0 0
        %1204 = vmatmul.mubr.bf16.gmra.mrb[0].mxu0 %v372
        %v1205 = vpop.f32.mrb[0].mxu0
        %v1206 = vadd.f32 %v1093, %v1205
        %v1207 = vpop.f32.mrb[0].mxu0
        %v1208 = vadd.f32 %v1095, %v1207
        %v1209 = vpop.f32.mrb[0].mxu0
        %v1210 = vadd.f32 %v1097, %v1209
        %v1211 = vpop.f32.mrb[0].mxu0
        %v1212 = vadd.f32 %v1099, %v1211
        %1213 = vdwg.mxu0
        %1214 = vmatprep.subr.bf16.mxu0 %v799
        %1215 = vmatpush1.bf16.msra.mxu0 %v798
        %1216 = vmatprep.subr.bf16.mxu0 %v803
        %1217 = vmatpush1.bf16.msra.mxu0 %v802
        %1218 = vmatprep.subr.bf16.mxu0 %v807
        %1219 = vmatpush1.bf16.msra.mxu0 %v806
        %1220 = vmatprep.subr.bf16.mxu0 %v811
        %1221 = vmatpush1.bf16.msra.mxu0 %v810
        %1222 = vmatprep.subr.bf16.mxu0 %v815
        %1223 = vmatpush1.bf16.msra.mxu0 %v814
        %1224 = vmatprep.subr.bf16.mxu0 %v819
        %1225 = vmatpush1.bf16.msra.mxu0 %v818
        %1226 = vmatprep.subr.bf16.mxu0 %v823
        %1227 = vmatpush1.bf16.msra.mxu0 %v822
        %1228 = vmatprep.subr.bf16.mxu0 %v827
        %1229 = vmatpush1.bf16.msra.mxu0 %v826
        %1230 = vmatprep.subr.bf16.mxu0 %v831
        %1231 = vmatpush1.bf16.msra.mxu0 %v830
        %1232 = vmatprep.subr.bf16.mxu0 %v835
        %1233 = vmatpush1.bf16.msra.mxu0 %v834
        %1234 = vmatprep.subr.bf16.mxu0 %v839
        %1235 = vmatpush1.bf16.msra.mxu0 %v838
        %1236 = vmatprep.subr.bf16.mxu0 %v843
        %1237 = vmatpush1.bf16.msra.mxu0 %v842
        %1238 = vmatprep.subr.bf16.mxu0 %v847
        %1239 = vmatpush1.bf16.msra.mxu0 %v846
        %1240 = vmatprep.subr.bf16.mxu0 %v851
        %1241 = vmatpush1.bf16.msra.mxu0 %v850
        %1242 = vmatprep.subr.bf16.mxu0 %v855
        %1243 = vmatpush1.bf16.msra.mxu0 %v854
        %1244 = vmatprep.subr.bf16.mxu0 %v859
        %1245 = vmatpush1.bf16.msra.mxu0 %v858
        %1246 = vmatprep.mubr.bf16.mxu0 %v350
        %1247 = vmatmul.mubr.bf16.gmra.mrb[0].mxu0 %v349
        %v1248 = vpop.f32.mrb[0].mxu0
        %v1249 = vadd.f32 %v499, %v1248
        %v1250 = vpop.f32.mrb[0].mxu0
        %v1251 = vadd.f32 %v503, %v1250
        %v1252 = vpop.f32.mrb[0].mxu0
        %v1253 = vadd.f32 %v499, %v1252
        %v1254 = vpop.f32.mrb[0].mxu0
        %v1255 = vadd.f32 %v503, %v1254
        %1256 = vmatprep.mubr.bf16.mxu0 %v353
        %1257 = vmatmul.mubr.bf16.gmra.mrb[0].mxu0 %v352
        %v1258 = vpop.f32.mrb[0].mxu0
        %v1259 = vadd.f32 %v499, %v1258
        %v1260 = vpop.f32.mrb[0].mxu0
        %v1261 = vadd.f32 %v503, %v1260
        %v1262 = vpop.f32.mrb[0].mxu0
        %v1263 = vadd.f32 %v499, %v1262
        %v1264 = vpop.f32.mrb[0].mxu0
        %v1265 = vadd.f32 %v503, %v1264
        %1266 = vmatprep.mubr.bf16.mxu0 %v356
        %1267 = vmatmul.mubr.bf16.gmra.mrb[0].mxu0 %v355
        %v1268 = vpop.f32.mrb[0].mxu0
        %v1269 = vadd.f32 %v499, %v1268
        %v1270 = vpop.f32.mrb[0].mxu0
        %v1271 = vadd.f32 %v503, %v1270
        %v1272 = vpop.f32.mrb[0].mxu0
        %v1273 = vadd.f32 %v499, %v1272
        %v1274 = vpop.f32.mrb[0].mxu0
        %v1275 = vadd.f32 %v503, %v1274
        %1276 = vmatprep.mubr.bf16.mxu0 %v359
        %1277 = vmatmul.mubr.bf16.gmra.mrb[0].mxu0 %v358
        %v1278 = vpop.f32.mrb[0].mxu0
        %v1279 = vadd.f32 %v499, %v1278
        %v1280 = vpop.f32.mrb[0].mxu0
        %v1281 = vadd.f32 %v503, %v1280
        %v1282 = vpop.f32.mrb[0].mxu0
        %v1283 = vadd.f32 %v499, %v1282
        %v1284 = vpop.f32.mrb[0].mxu0
        %v1285 = vadd.f32 %v503, %v1284
        %1286 = vmatprep.mubr.bf16.mxu0 %v362
        %1287 = vmatmul.mubr.bf16.gmra.mrb[0].mxu0 %v361
        %v1288 = vpop.f32.mrb[0].mxu0
        %v1289 = vadd.f32 %v499, %v1288
        %v1290 = vpop.f32.mrb[0].mxu0
        %v1291 = vadd.f32 %v503, %v1290
        %v1292 = vpop.f32.mrb[0].mxu0
        %v1293 = vadd.f32 %v499, %v1292
        %v1294 = vpop.f32.mrb[0].mxu0
        %v1295 = vadd.f32 %v503, %v1294
        %1296 = vmatprep.mubr.bf16.mxu0 %v365
        %1297 = vmatmul.mubr.bf16.gmra.mrb[0].mxu0 %v364
        %v1298 = vpop.f32.mrb[0].mxu0
        %v1299 = vadd.f32 %v499, %v1298
        %v1300 = vpop.f32.mrb[0].mxu0
        %v1301 = vadd.f32 %v503, %v1300
        %v1302 = vpop.f32.mrb[0].mxu0
        %v1303 = vadd.f32 %v499, %v1302
        %v1304 = vpop.f32.mrb[0].mxu0
        %v1305 = vadd.f32 %v503, %v1304
        %1306 = vmatprep.mubr.bf16.mxu0 %v368
        %1307 = vmatmul.mubr.bf16.gmra.mrb[0].mxu0 %v367
        %v1308 = vpop.f32.mrb[0].mxu0
        %v1309 = vadd.f32 %v499, %v1308
        %v1310 = vpop.f32.mrb[0].mxu0
        %v1311 = vadd.f32 %v503, %v1310
        %v1312 = vpop.f32.mrb[0].mxu0
        %v1313 = vadd.f32 %v499, %v1312
        %v1314 = vpop.f32.mrb[0].mxu0
        %v1315 = vadd.f32 %v503, %v1314
        %1316 = vmatprep.mubr.bf16.mxu0 %v371
        %1317 = vmatmul.mubr.bf16.gmra.mrb[0].mxu0 %v370
        %v1318 = vpop.f32.mrb[0].mxu0
        %v1319 = vadd.f32 %v499, %v1318
        %v1320 = vpop.f32.mrb[0].mxu0
        %v1321 = vadd.f32 %v503, %v1320
        %v1322 = vpop.f32.mrb[0].mxu0
        %v1323 = vadd.f32 %v499, %v1322
        %v1324 = vpop.f32.mrb[0].mxu0
        %v1325 = vadd.f32 %v503, %v1324
        %1326 = vdwg.mxu0
        %1327 = vmatprep.subr.bf16.mxu0 %v863
        %1328 = vmatpush1.bf16.msra.mxu0 %v862
        %1329 = vmatprep.subr.bf16.mxu0 %v867
        %1330 = vmatpush1.bf16.msra.mxu0 %v866
        %1331 = vmatprep.subr.bf16.mxu0 %v871
        %1332 = vmatpush1.bf16.msra.mxu0 %v870
        %1333 = vmatprep.subr.bf16.mxu0 %v875
        %1334 = vmatpush1.bf16.msra.mxu0 %v874
        %1335 = vmatprep.subr.bf16.mxu0 %v879
        %1336 = vmatpush1.bf16.msra.mxu0 %v878
        %1337 = vmatprep.subr.bf16.mxu0 %v883
        %1338 = vmatpush1.bf16.msra.mxu0 %v882
        %1339 = vmatprep.subr.bf16.mxu0 %v887
        %1340 = vmatpush1.bf16.msra.mxu0 %v886
        %1341 = vmatprep.subr.bf16.mxu0 %v891
        %1342 = vmatpush1.bf16.msra.mxu0 %v890
        %1343 = vmatprep.subr.bf16.mxu0 0
        %1344 = vmatpush1.bf16.msra.mxu0 0
        %1345 = vmatprep.subr.bf16.mxu0 0
        %1346 = vmatpush1.bf16.msra.mxu0 0
        %1347 = vmatprep.subr.bf16.mxu0 0
        %1348 = vmatpush1.bf16.msra.mxu0 0
        %1349 = vmatprep.subr.bf16.mxu0 0
        %1350 = vmatpush1.bf16.msra.mxu0 0
        %1351 = vmatprep.subr.bf16.mxu0 0
        %1352 = vmatpush1.bf16.msra.mxu0 0
        %1353 = vmatprep.subr.bf16.mxu0 0
        %1354 = vmatpush1.bf16.msra.mxu0 0
        %1355 = vmatprep.subr.bf16.mxu0 0
        %1356 = vmatpush1.bf16.msra.mxu0 0
        %1357 = vmatprep.subr.bf16.mxu0 0
        %1358 = vmatpush1.bf16.msra.mxu0 0
        %1359 = vmatprep.mubr.bf16.mxu0 0
        %1360 = vmatmul.mubr.bf16.gmra.mrb[0].mxu0 %v351
        %v1361 = vpop.f32.mrb[0].mxu0
        %v1362 = vadd.f32 %v1249, %v1361
        %v1363 = vpop.f32.mrb[0].mxu0
        %v1364 = vadd.f32 %v1251, %v1363
        %v1365 = vpop.f32.mrb[0].mxu0
        %v1366 = vadd.f32 %v1253, %v1365
        %v1367 = vpop.f32.mrb[0].mxu0
        %v1368 = vadd.f32 %v1255, %v1367
        %1369 = vmatprep.mubr.bf16.mxu0 0
        %1370 = vmatmul.mubr.bf16.gmra.mrb[0].mxu0 %v354
        %v1371 = vpop.f32.mrb[0].mxu0
        %v1372 = vadd.f32 %v1259, %v1371
        %v1373 = vpop.f32.mrb[0].mxu0
        %v1374 = vadd.f32 %v1261, %v1373
        %v1375 = vpop.f32.mrb[0].mxu0
        %v1376 = vadd.f32 %v1263, %v1375
        %v1377 = vpop.f32.mrb[0].mxu0
        %v1378 = vadd.f32 %v1265, %v1377
        %1379 = vmatprep.mubr.bf16.mxu0 0
        %1380 = vmatmul.mubr.bf16.gmra.mrb[0].mxu0 %v357
        %v1381 = vpop.f32.mrb[0].mxu0
        %v1382 = vadd.f32 %v1269, %v1381
        %v1383 = vpop.f32.mrb[0].mxu0
        %v1384 = vadd.f32 %v1271, %v1383
        %v1385 = vpop.f32.mrb[0].mxu0
        %v1386 = vadd.f32 %v1273, %v1385
        %v1387 = vpop.f32.mrb[0].mxu0
        %v1388 = vadd.f32 %v1275, %v1387
        %1389 = vmatprep.mubr.bf16.mxu0 0
        %1390 = vmatmul.mubr.bf16.gmra.mrb[0].mxu0 %v360
        %v1391 = vpop.f32.mrb[0].mxu0
        %v1392 = vadd.f32 %v1279, %v1391
        %v1393 = vpop.f32.mrb[0].mxu0
        %v1394 = vadd.f32 %v1281, %v1393
        %v1395 = vpop.f32.mrb[0].mxu0
        %v1396 = vadd.f32 %v1283, %v1395
        %v1397 = vpop.f32.mrb[0].mxu0
        %v1398 = vadd.f32 %v1285, %v1397
        %1399 = vmatprep.mubr.bf16.mxu0 0
        %1400 = vmatmul.mubr.bf16.gmra.mrb[0].mxu0 %v363
        %v1401 = vpop.f32.mrb[0].mxu0
        %v1402 = vadd.f32 %v1289, %v1401
        %v1403 = vpop.f32.mrb[0].mxu0
        %v1404 = vadd.f32 %v1291, %v1403
        %v1405 = vpop.f32.mrb[0].mxu0
        %v1406 = vadd.f32 %v1293, %v1405
        %v1407 = vpop.f32.mrb[0].mxu0
        %v1408 = vadd.f32 %v1295, %v1407
        %1409 = vmatprep.mubr.bf16.mxu0 0
        %1410 = vmatmul.mubr.bf16.gmra.mrb[0].mxu0 %v366
        %v1411 = vpop.f32.mrb[0].mxu0
        %v1412 = vadd.f32 %v1299, %v1411
        %v1413 = vpop.f32.mrb[0].mxu0
        %v1414 = vadd.f32 %v1301, %v1413
        %v1415 = vpop.f32.mrb[0].mxu0
        %v1416 = vadd.f32 %v1303, %v1415
        %v1417 = vpop.f32.mrb[0].mxu0
        %v1418 = vadd.f32 %v1305, %v1417
        %1419 = vmatprep.mubr.bf16.mxu0 0
        %1420 = vmatmul.mubr.bf16.gmra.mrb[0].mxu0 %v369
        %v1421 = vpop.f32.mrb[0].mxu0
        %v1422 = vadd.f32 %v1309, %v1421
        %v1423 = vpop.f32.mrb[0].mxu0
        %v1424 = vadd.f32 %v1311, %v1423
        %v1425 = vpop.f32.mrb[0].mxu0
        %v1426 = vadd.f32 %v1313, %v1425
        %v1427 = vpop.f32.mrb[0].mxu0
        %v1428 = vadd.f32 %v1315, %v1427
        %1429 = vmatprep.mubr.bf16.mxu0 0
        %1430 = vmatmul.mubr.bf16.gmra.mrb[0].mxu0 %v372
        %v1431 = vpop.f32.mrb[0].mxu0
        %v1432 = vadd.f32 %v1319, %v1431
        %v1433 = vpop.f32.mrb[0].mxu0
        %v1434 = vadd.f32 %v1321, %v1433
        %v1435 = vpop.f32.mrb[0].mxu0
        %v1436 = vadd.f32 %v1323, %v1435
        %v1437 = vpop.f32.mrb[0].mxu0
        %v1438 = vadd.f32 %v1325, %v1437
        %1439 = vdwg.mxu0
        %v1440 = vmax.f32 %v1136, 0.0
        %v1441 = vmax.f32 %v1138, 0.0
        %v1442 = vmax.f32 %v1362, 0.0
        %v1443 = vmax.f32 %v1364, 0.0
        %v1444 = vmax.f32 %v1140, 0.0
        %v1445 = vmax.f32 %v1142, 0.0
        %v1446 = vmax.f32 %v1366, 0.0
        %v1447 = vmax.f32 %v1368, 0.0
        %v1448 = vmax.f32 %v1146, 0.0
        %v1449 = vmax.f32 %v1148, 0.0
        %v1450 = vmax.f32 %v1372, 0.0
        %v1451 = vmax.f32 %v1374, 0.0
        %v1452 = vmax.f32 %v1150, 0.0
        %v1453 = vmax.f32 %v1152, 0.0
        %v1454 = vmax.f32 %v1376, 0.0
        %v1455 = vmax.f32 %v1378, 0.0
        %v1456 = vmax.f32 %v1156, 0.0
        %v1457 = vmax.f32 %v1158, 0.0
        %v1458 = vmax.f32 %v1382, 0.0
        %v1459 = vmax.f32 %v1384, 0.0
        %v1460 = vmax.f32 %v1160, 0.0
        %v1461 = vmax.f32 %v1162, 0.0
        %v1462 = vmax.f32 %v1386, 0.0
        %v1463 = vmax.f32 %v1388, 0.0
        %v1464 = vmax.f32 %v1166, 0.0
        %v1465 = vmax.f32 %v1168, 0.0
        %v1466 = vmax.f32 %v1392, 0.0
        %v1467 = vmax.f32 %v1394, 0.0
        %v1468 = vmax.f32 %v1170, 0.0
        %v1469 = vmax.f32 %v1172, 0.0
        %v1470 = vmax.f32 %v1396, 0.0
        %v1471 = vmax.f32 %v1398, 0.0
        %v1472 = vmax.f32 %v1176, 0.0
        %v1473 = vmax.f32 %v1178, 0.0
        %v1474 = vmax.f32 %v1402, 0.0
        %v1475 = vmax.f32 %v1404, 0.0
        %v1476 = vmax.f32 %v1180, 0.0
        %v1477 = vmax.f32 %v1182, 0.0
        %v1478 = vmax.f32 %v1406, 0.0
        %v1479 = vmax.f32 %v1408, 0.0
        %v1480 = vmax.f32 %v1186, 0.0
        %v1481 = vmax.f32 %v1188, 0.0
        %v1482 = vmax.f32 %v1412, 0.0
        %v1483 = vmax.f32 %v1414, 0.0
        %v1484 = vmax.f32 %v1190, 0.0
        %v1485 = vmax.f32 %v1192, 0.0
        %v1486 = vmax.f32 %v1416, 0.0
        %v1487 = vmax.f32 %v1418, 0.0
        %v1488 = vmax.f32 %v1196, 0.0
        %v1489 = vmax.f32 %v1198, 0.0
        %v1490 = vmax.f32 %v1422, 0.0
        %v1491 = vmax.f32 %v1424, 0.0
        %v1492 = vmax.f32 %v1200, 0.0
        %v1493 = vmax.f32 %v1202, 0.0
        %v1494 = vmax.f32 %v1426, 0.0
        %v1495 = vmax.f32 %v1428, 0.0
        %v1496 = vmax.f32 %v1206, 0.0
        %v1497 = vmax.f32 %v1208, 0.0
        %v1498 = vmax.f32 %v1432, 0.0
        %v1499 = vmax.f32 %v1434, 0.0
        %v1500 = vmax.f32 %v1210, 0.0
        %v1501 = vmax.f32 %v1212, 0.0
        %v1502 = vmax.f32 %v1436, 0.0
        %v1503 = vmax.f32 %v1438, 0.0
        %v1504 = vpack.c.bf16 %v1444, %v1440
        %v1505 = vpack.c.bf16 %v1445, %v1441
        %v1506 = vpack.c.bf16 %v1446, %v1442
        %v1507 = vpack.c.bf16 %v1447, %v1443
        %v1508 = vpack.c.bf16 %v1452, %v1448
        %v1509 = vpack.c.bf16 %v1453, %v1449
        %v1510 = vpack.c.bf16 %v1454, %v1450
        %v1511 = vpack.c.bf16 %v1455, %v1451
        %v1512 = vpack.c.bf16 %v1460, %v1456
        %v1513 = vpack.c.bf16 %v1461, %v1457
        %v1514 = vpack.c.bf16 %v1462, %v1458
        %v1515 = vpack.c.bf16 %v1463, %v1459
        %v1516 = vpack.c.bf16 %v1468, %v1464
        %v1517 = vpack.c.bf16 %v1469, %v1465
        %v1518 = vpack.c.bf16 %v1470, %v1466
        %v1519 = vpack.c.bf16 %v1471, %v1467
        %v1520 = vpack.c.bf16 %v1476, %v1472
        %v1521 = vpack.c.bf16 %v1477, %v1473
        %v1522 = vpack.c.bf16 %v1478, %v1474
        %v1523 = vpack.c.bf16 %v1479, %v1475
        %v1524 = vpack.c.bf16 %v1484, %v1480
        %v1525 = vpack.c.bf16 %v1485, %v1481
        %v1526 = vpack.c.bf16 %v1486, %v1482
        %v1527 = vpack.c.bf16 %v1487, %v1483
        %v1528 = vpack.c.bf16 %v1492, %v1488
        %v1529 = vpack.c.bf16 %v1493, %v1489
        %v1530 = vpack.c.bf16 %v1494, %v1490
        %v1531 = vpack.c.bf16 %v1495, %v1491
        %v1532 = vpack.c.bf16 %v1500, %v1496
        %v1533 = vpack.c.bf16 %v1501, %v1497
        %v1534 = vpack.c.bf16 %v1502, %v1498
        %v1535 = vpack.c.bf16 %v1503, %v1499
        %v1536 = vld [vmem:[#allocation8] sm:$0xff]
        %v1537 = vld [vmem:[#allocation8 + $0x8] sm:$0xf]
        %v1538 = vld [vmem:[#allocation8 + $0xc] sm:$0xff]
        %v1539 = vld [vmem:[#allocation8 + $0x14] sm:$0xf]
        %v1540 = vld [vmem:[#allocation8 + $0x18] sm:$0xff]
        %v1541 = vld [vmem:[#allocation8 + $0x20] sm:$0xf]
        %v1542 = vld [vmem:[#allocation8 + $0x24] sm:$0xff]
        %v1543 = vld [vmem:[#allocation8 + $0x2c] sm:$0xf]
        %v1544 = vld [vmem:[#allocation8 + $0x30] sm:$0xff]
        %v1545 = vld [vmem:[#allocation8 + $0x38] sm:$0xf]
        %v1546 = vld [vmem:[#allocation8 + $0x3c] sm:$0xff]
        %v1547 = vld [vmem:[#allocation8 + $0x44] sm:$0xf]
        %v1548 = vld [vmem:[#allocation8 + $0x48] sm:$0xff]
        %v1549 = vld [vmem:[#allocation8 + $0x50] sm:$0xf]
        %v1550 = vld [vmem:[#allocation8 + $0x54] sm:$0xff]
        %v1551 = vld [vmem:[#allocation8 + $0x5c] sm:$0xf]
        %v1552 = vld [vmem:[#allocation8 + $0x60] sm:$0xff]
        %v1553 = vld [vmem:[#allocation8 + $0x68] sm:$0xf]
        %v1554 = vld [vmem:[#allocation8 + $0x6c] sm:$0xff]
        %v1555 = vld [vmem:[#allocation8 + $0x74] sm:$0xf]
        %v1556 = vld [vmem:[#allocation8 + $0x78] sm:$0xff]
        %v1557 = vld [vmem:[#allocation8 + $0x80] sm:$0xf]
        %v1558 = vld [vmem:[#allocation8 + $0x84] sm:$0xff]
        %v1559 = vld [vmem:[#allocation8 + $0x8c] sm:$0xf]
        %v1560 = vld [vmem:[#allocation8 + $0x90] sm:$0xff]
        %v1561 = vld [vmem:[#allocation8 + $0x98] sm:$0xf]
        %v1562 = vld [vmem:[#allocation8 + $0x9c] sm:$0xff]
        %v1563 = vld [vmem:[#allocation8 + $0xa4] sm:$0xf]
        %v1564 = vld [vmem:[#allocation8 + $0xa8] sm:$0xff]
        %v1565 = vld [vmem:[#allocation8 + $0xb0] sm:$0xf]
        %v1566 = vld [vmem:[#allocation8 + $0xb4] sm:$0xff]
        %v1567 = vld [vmem:[#allocation8 + $0xbc] sm:$0xf]
        %v1568 = vld [vmem:[#allocation8 + $0xc0] sm:$0xff]
        %v1569 = vld [vmem:[#allocation8 + $0xc8] sm:$0xf]
        %v1570 = vld [vmem:[#allocation8 + $0xcc] sm:$0xff]
        %v1571 = vld [vmem:[#allocation8 + $0xd4] sm:$0xf]
        %v1572 = vld [vmem:[#allocation8 + $0xd8] sm:$0xff]
        %v1573 = vld [vmem:[#allocation8 + $0xe0] sm:$0xf]
        %v1574 = vld [vmem:[#allocation8 + $0xe4] sm:$0xff]
        %v1575 = vld [vmem:[#allocation8 + $0xec] sm:$0xf]
        %v1576 = vld [vmem:[#allocation8 + $0xf0] sm:$0xff]
        %v1577 = vld [vmem:[#allocation8 + $0xf8] sm:$0xf]
        %v1578 = vld [vmem:[#allocation8 + $0xfc] sm:$0xff]
        %v1579 = vld [vmem:[#allocation8 + $0x104] sm:$0xf]
        %v1580 = vld [vmem:[#allocation8 + $0x108] sm:$0xff]
        %v1581 = vld [vmem:[#allocation8 + $0x110] sm:$0xf]
        %v1582 = vld [vmem:[#allocation8 + $0x114] sm:$0xff]
        %v1583 = vld [vmem:[#allocation8 + $0x11c] sm:$0xf]
        %v1584 = vld [vmem:[#allocation8 + $0x120] sm:$0xff]
        %v1585 = vld [vmem:[#allocation8 + $0x128] sm:$0xf]
        %v1586 = vld [vmem:[#allocation8 + $0x12c] sm:$0xff]
        %v1587 = vld [vmem:[#allocation8 + $0x134] sm:$0xf]
        %v1588 = vld [vmem:[#allocation8 + $0x138] sm:$0xff]
        %v1589 = vld [vmem:[#allocation8 + $0x140] sm:$0xf]
        %v1590 = vld [vmem:[#allocation8 + $0x144] sm:$0xff]
        %v1591 = vld [vmem:[#allocation8 + $0x14c] sm:$0xf]
        %v1592 = vld [vmem:[#allocation8 + $0x150] sm:$0xff]
        %v1593 = vld [vmem:[#allocation8 + $0x158] sm:$0xf]
        %v1594 = vld [vmem:[#allocation8 + $0x15c] sm:$0xff]
        %v1595 = vld [vmem:[#allocation8 + $0x164] sm:$0xf]
        %v1596 = vld [vmem:[#allocation8 + $0x168] sm:$0xff]
        %v1597 = vld [vmem:[#allocation8 + $0x170] sm:$0xf]
        %v1598 = vld [vmem:[#allocation8 + $0x174] sm:$0xff]
        %v1599 = vld [vmem:[#allocation8 + $0x17c] sm:$0xf]
        %v1600 = vld [vmem:[#allocation8 + $0x180] sm:$0xff]
        %v1601 = vld [vmem:[#allocation8 + $0x188] sm:$0xf]
        %v1602 = vld [vmem:[#allocation8 + $0x18c] sm:$0xff]
        %v1603 = vld [vmem:[#allocation8 + $0x194] sm:$0xf]
        %v1604 = vld [vmem:[#allocation8 + $0x198] sm:$0xff]
        %v1605 = vld [vmem:[#allocation8 + $0x1a0] sm:$0xf]
        %v1606 = vld [vmem:[#allocation8 + $0x1a4] sm:$0xff]
        %v1607 = vld [vmem:[#allocation8 + $0x1ac] sm:$0xf]
        %v1608 = vld [vmem:[#allocation8 + $0x1b0] sm:$0xff]
        %v1609 = vld [vmem:[#allocation8 + $0x1b8] sm:$0xf]
        %v1610 = vld [vmem:[#allocation8 + $0x1bc] sm:$0xff]
        %v1611 = vld [vmem:[#allocation8 + $0x1c4] sm:$0xf]
        %v1612 = vld [vmem:[#allocation8 + $0x1c8] sm:$0xff]
        %v1613 = vld [vmem:[#allocation8 + $0x1d0] sm:$0xf]
        %v1614 = vld [vmem:[#allocation8 + $0x1d4] sm:$0xff]
        %v1615 = vld [vmem:[#allocation8 + $0x1dc] sm:$0xf]
        %v1616 = vld [vmem:[#allocation8 + $0x1e0] sm:$0xff]
        %v1617 = vld [vmem:[#allocation8 + $0x1e8] sm:$0xf]
        %v1618 = vld [vmem:[#allocation8 + $0x1ec] sm:$0xff]
        %v1619 = vld [vmem:[#allocation8 + $0x1f4] sm:$0xf]
        %v1620 = vld [vmem:[#allocation8 + $0x1f8] sm:$0xff]
        %v1621 = vld [vmem:[#allocation8 + $0x200] sm:$0xf]
        %v1622 = vld [vmem:[#allocation8 + $0x204] sm:$0xff]
        %v1623 = vld [vmem:[#allocation8 + $0x20c] sm:$0xf]
        %v1624 = vld [vmem:[#allocation8 + $0x210] sm:$0xff]
        %v1625 = vld [vmem:[#allocation8 + $0x218] sm:$0xf]
        %v1626 = vld [vmem:[#allocation8 + $0x21c] sm:$0xff]
        %v1627 = vld [vmem:[#allocation8 + $0x224] sm:$0xf]
        %v1628 = vld [vmem:[#allocation8 + $0x228] sm:$0xff]
        %v1629 = vld [vmem:[#allocation8 + $0x230] sm:$0xf]
        %v1630 = vld [vmem:[#allocation8 + $0x234] sm:$0xff]
        %v1631 = vld [vmem:[#allocation8 + $0x23c] sm:$0xf]
        %v1632 = vld [vmem:[#allocation8 + $0x240] sm:$0xff]
        %v1633 = vld [vmem:[#allocation8 + $0x248] sm:$0xf]
        %v1634 = vld [vmem:[#allocation8 + $0x24c] sm:$0xff]
        %v1635 = vld [vmem:[#allocation8 + $0x254] sm:$0xf]
        %v1636 = vld [vmem:[#allocation8 + $0x258] sm:$0xff]
        %v1637 = vld [vmem:[#allocation8 + $0x260] sm:$0xf]
        %v1638 = vld [vmem:[#allocation8 + $0x264] sm:$0xff]
        %v1639 = vld [vmem:[#allocation8 + $0x26c] sm:$0xf]
        %v1640 = vld [vmem:[#allocation8 + $0x270] sm:$0xff]
        %v1641 = vld [vmem:[#allocation8 + $0x278] sm:$0xf]
        %v1642 = vld [vmem:[#allocation8 + $0x27c] sm:$0xff]
        %v1643 = vld [vmem:[#allocation8 + $0x284] sm:$0xf]
        %v1644 = vld [vmem:[#allocation8 + $0x288] sm:$0xff]
        %v1645 = vld [vmem:[#allocation8 + $0x290] sm:$0xf]
        %v1646 = vld [vmem:[#allocation8 + $0x294] sm:$0xff]
        %v1647 = vld [vmem:[#allocation8 + $0x29c] sm:$0xf]
        %v1648 = vld [vmem:[#allocation8 + $0x2a0] sm:$0xff]
        %v1649 = vld [vmem:[#allocation8 + $0x2a8] sm:$0xf]
        %v1650 = vld [vmem:[#allocation8 + $0x2ac] sm:$0xff]
        %v1651 = vld [vmem:[#allocation8 + $0x2b4] sm:$0xf]
        %v1652 = vld [vmem:[#allocation8 + $0x2b8] sm:$0xff]
        %v1653 = vld [vmem:[#allocation8 + $0x2c0] sm:$0xf]
        %v1654 = vld [vmem:[#allocation8 + $0x2c4] sm:$0xff]
        %v1655 = vld [vmem:[#allocation8 + $0x2cc] sm:$0xf]
        %v1656 = vld [vmem:[#allocation8 + $0x2d0] sm:$0xff]
        %v1657 = vld [vmem:[#allocation8 + $0x2d8] sm:$0xf]
        %v1658 = vld [vmem:[#allocation8 + $0x2dc] sm:$0xff]
        %v1659 = vld [vmem:[#allocation8 + $0x2e4] sm:$0xf]
        %v1660 = vld [vmem:[#allocation8 + $0x2e8] sm:$0xff]
        %v1661 = vld [vmem:[#allocation8 + $0x2f0] sm:$0xf]
        %v1662 = vld [vmem:[#allocation8 + $0x2f4] sm:$0xff]
        %v1663 = vld [vmem:[#allocation8 + $0x2fc] sm:$0xf]
        %v1792 = vunpack.c.l.b16 %v1536
        %v1793 = vunpack.c.h.b16 %v1536
        %v1794 = vunpack.c.l.b16 %v1537
        %v1795 = vunpack.c.l.b16 %v1538
        %v1796 = vunpack.c.h.b16 %v1538
        %v1797 = vunpack.c.l.b16 %v1539
        %v1798 = vunpack.c.l.b16 %v1540
        %v1799 = vunpack.c.h.b16 %v1540
        %v1800 = vunpack.c.l.b16 %v1541
        %v1801 = vunpack.c.l.b16 %v1542
        %v1802 = vunpack.c.h.b16 %v1542
        %v1803 = vunpack.c.l.b16 %v1543
        %v1804 = vunpack.c.l.b16 %v1544
        %v1805 = vunpack.c.h.b16 %v1544
        %v1806 = vunpack.c.l.b16 %v1545
        %v1807 = vunpack.c.l.b16 %v1546
        %v1808 = vunpack.c.h.b16 %v1546
        %v1809 = vunpack.c.l.b16 %v1547
        %v1810 = vunpack.c.l.b16 %v1548
        %v1811 = vunpack.c.h.b16 %v1548
        %v1812 = vunpack.c.l.b16 %v1549
        %v1813 = vunpack.c.l.b16 %v1550
        %v1814 = vunpack.c.h.b16 %v1550
        %v1815 = vunpack.c.l.b16 %v1551
        %v1816 = vunpack.c.l.b16 %v1552
        %v1817 = vunpack.c.h.b16 %v1552
        %v1818 = vunpack.c.l.b16 %v1553
        %v1819 = vunpack.c.l.b16 %v1554
        %v1820 = vunpack.c.h.b16 %v1554
        %v1821 = vunpack.c.l.b16 %v1555
        %v1822 = vunpack.c.l.b16 %v1556
        %v1823 = vunpack.c.h.b16 %v1556
        %v1824 = vunpack.c.l.b16 %v1557
        %v1825 = vunpack.c.l.b16 %v1558
        %v1826 = vunpack.c.h.b16 %v1558
        %v1827 = vunpack.c.l.b16 %v1559
        %v1828 = vunpack.c.l.b16 %v1560
        %v1829 = vunpack.c.h.b16 %v1560
        %v1830 = vunpack.c.l.b16 %v1561
        %v1831 = vunpack.c.l.b16 %v1562
        %v1832 = vunpack.c.h.b16 %v1562
        %v1833 = vunpack.c.l.b16 %v1563
        %v1834 = vunpack.c.l.b16 %v1564
        %v1835 = vunpack.c.h.b16 %v1564
        %v1836 = vunpack.c.l.b16 %v1565
        %v1837 = vunpack.c.l.b16 %v1566
        %v1838 = vunpack.c.h.b16 %v1566
        %v1839 = vunpack.c.l.b16 %v1567
        %v1840 = vunpack.c.l.b16 %v1568
        %v1841 = vunpack.c.h.b16 %v1568
        %v1842 = vunpack.c.l.b16 %v1569
        %v1843 = vunpack.c.l.b16 %v1570
        %v1844 = vunpack.c.h.b16 %v1570
        %v1845 = vunpack.c.l.b16 %v1571
        %v1846 = vunpack.c.l.b16 %v1572
        %v1847 = vunpack.c.h.b16 %v1572
        %v1848 = vunpack.c.l.b16 %v1573
        %v1849 = vunpack.c.l.b16 %v1574
        %v1850 = vunpack.c.h.b16 %v1574
        %v1851 = vunpack.c.l.b16 %v1575
        %v1852 = vunpack.c.l.b16 %v1576
        %v1853 = vunpack.c.h.b16 %v1576
        %v1854 = vunpack.c.l.b16 %v1577
        %v1855 = vunpack.c.l.b16 %v1578
        %v1856 = vunpack.c.h.b16 %v1578
        %v1857 = vunpack.c.l.b16 %v1579
        %v1858 = vunpack.c.l.b16 %v1580
        %v1859 = vunpack.c.h.b16 %v1580
        %v1860 = vunpack.c.l.b16 %v1581
        %v1861 = vunpack.c.l.b16 %v1582
        %v1862 = vunpack.c.h.b16 %v1582
        %v1863 = vunpack.c.l.b16 %v1583
        %v1864 = vunpack.c.l.b16 %v1584
        %v1865 = vunpack.c.h.b16 %v1584
        %v1866 = vunpack.c.l.b16 %v1585
        %v1867 = vunpack.c.l.b16 %v1586
        %v1868 = vunpack.c.h.b16 %v1586
        %v1869 = vunpack.c.l.b16 %v1587
        %v1870 = vunpack.c.l.b16 %v1588
        %v1871 = vunpack.c.h.b16 %v1588
        %v1872 = vunpack.c.l.b16 %v1589
        %v1873 = vunpack.c.l.b16 %v1590
        %v1874 = vunpack.c.h.b16 %v1590
        %v1875 = vunpack.c.l.b16 %v1591
        %v1876 = vunpack.c.l.b16 %v1592
        %v1877 = vunpack.c.h.b16 %v1592
        %v1878 = vunpack.c.l.b16 %v1593
        %v1879 = vunpack.c.l.b16 %v1594
        %v1880 = vunpack.c.h.b16 %v1594
        %v1881 = vunpack.c.l.b16 %v1595
        %v1882 = vunpack.c.l.b16 %v1596
        %v1883 = vunpack.c.h.b16 %v1596
        %v1884 = vunpack.c.l.b16 %v1597
        %v1885 = vunpack.c.l.b16 %v1598
        %v1886 = vunpack.c.h.b16 %v1598
        %v1887 = vunpack.c.l.b16 %v1599
        %v1888 = vunpack.c.l.b16 %v1600
        %v1889 = vunpack.c.h.b16 %v1600
        %v1890 = vunpack.c.l.b16 %v1601
        %v1891 = vunpack.c.l.b16 %v1602
        %v1892 = vunpack.c.h.b16 %v1602
        %v1893 = vunpack.c.l.b16 %v1603
        %v1894 = vunpack.c.l.b16 %v1604
        %v1895 = vunpack.c.h.b16 %v1604
        %v1896 = vunpack.c.l.b16 %v1605
        %v1897 = vunpack.c.l.b16 %v1606
        %v1898 = vunpack.c.h.b16 %v1606
        %v1899 = vunpack.c.l.b16 %v1607
        %v1900 = vunpack.c.l.b16 %v1608
        %v1901 = vunpack.c.h.b16 %v1608
        %v1902 = vunpack.c.l.b16 %v1609
        %v1903 = vunpack.c.l.b16 %v1610
        %v1904 = vunpack.c.h.b16 %v1610
        %v1905 = vunpack.c.l.b16 %v1611
        %v1906 = vunpack.c.l.b16 %v1612
        %v1907 = vunpack.c.h.b16 %v1612
        %v1908 = vunpack.c.l.b16 %v1613
        %v1909 = vunpack.c.l.b16 %v1614
        %v1910 = vunpack.c.h.b16 %v1614
        %v1911 = vunpack.c.l.b16 %v1615
        %v1912 = vunpack.c.l.b16 %v1616
        %v1913 = vunpack.c.h.b16 %v1616
        %v1914 = vunpack.c.l.b16 %v1617
        %v1915 = vunpack.c.l.b16 %v1618
        %v1916 = vunpack.c.h.b16 %v1618
        %v1917 = vunpack.c.l.b16 %v1619
        %v1918 = vunpack.c.l.b16 %v1620
        %v1919 = vunpack.c.h.b16 %v1620
        %v1920 = vunpack.c.l.b16 %v1621
        %v1921 = vunpack.c.l.b16 %v1622
        %v1922 = vunpack.c.h.b16 %v1622
        %v1923 = vunpack.c.l.b16 %v1623
        %v1924 = vunpack.c.l.b16 %v1624
        %v1925 = vunpack.c.h.b16 %v1624
        %v1926 = vunpack.c.l.b16 %v1625
        %v1927 = vunpack.c.l.b16 %v1626
        %v1928 = vunpack.c.h.b16 %v1626
        %v1929 = vunpack.c.l.b16 %v1627
        %v1930 = vunpack.c.l.b16 %v1628
        %v1931 = vunpack.c.h.b16 %v1628
        %v1932 = vunpack.c.l.b16 %v1629
        %v1933 = vunpack.c.l.b16 %v1630
        %v1934 = vunpack.c.h.b16 %v1630
        %v1935 = vunpack.c.l.b16 %v1631
        %v1936 = vunpack.c.l.b16 %v1632
        %v1937 = vunpack.c.h.b16 %v1632
        %v1938 = vunpack.c.l.b16 %v1633
        %v1939 = vunpack.c.l.b16 %v1634
        %v1940 = vunpack.c.h.b16 %v1634
        %v1941 = vunpack.c.l.b16 %v1635
        %v1942 = vunpack.c.l.b16 %v1636
        %v1943 = vunpack.c.h.b16 %v1636
        %v1944 = vunpack.c.l.b16 %v1637
        %v1945 = vunpack.c.l.b16 %v1638
        %v1946 = vunpack.c.h.b16 %v1638
        %v1947 = vunpack.c.l.b16 %v1639
        %v1948 = vunpack.c.l.b16 %v1640
        %v1949 = vunpack.c.h.b16 %v1640
        %v1950 = vunpack.c.l.b16 %v1641
        %v1951 = vunpack.c.l.b16 %v1642
        %v1952 = vunpack.c.h.b16 %v1642
        %v1953 = vunpack.c.l.b16 %v1643
        %v1954 = vunpack.c.l.b16 %v1644
        %v1955 = vunpack.c.h.b16 %v1644
        %v1956 = vunpack.c.l.b16 %v1645
        %v1957 = vunpack.c.l.b16 %v1646
        %v1958 = vunpack.c.h.b16 %v1646
        %v1959 = vunpack.c.l.b16 %v1647
        %v1960 = vunpack.c.l.b16 %v1648
        %v1961 = vunpack.c.h.b16 %v1648
        %v1962 = vunpack.c.l.b16 %v1649
        %v1963 = vunpack.c.l.b16 %v1650
        %v1964 = vunpack.c.h.b16 %v1650
        %v1965 = vunpack.c.l.b16 %v1651
        %v1966 = vunpack.c.l.b16 %v1652
        %v1967 = vunpack.c.h.b16 %v1652
        %v1968 = vunpack.c.l.b16 %v1653
        %v1969 = vunpack.c.l.b16 %v1654
        %v1970 = vunpack.c.h.b16 %v1654
        %v1971 = vunpack.c.l.b16 %v1655
        %v1972 = vunpack.c.l.b16 %v1656
        %v1973 = vunpack.c.h.b16 %v1656
        %v1974 = vunpack.c.l.b16 %v1657
        %v1975 = vunpack.c.l.b16 %v1658
        %v1976 = vunpack.c.h.b16 %v1658
        %v1977 = vunpack.c.l.b16 %v1659
        %v1978 = vunpack.c.l.b16 %v1660
        %v1979 = vunpack.c.h.b16 %v1660
        %v1980 = vunpack.c.l.b16 %v1661
        %v1981 = vunpack.c.l.b16 %v1662
        %v1982 = vunpack.c.h.b16 %v1662
        %v1983 = vunpack.c.l.b16 %v1663
        %v1984 = vpack.c.b16 %v1795, %v1792
        %v1985 = vpack.c.b16 %v1796, %v1793
        %v1986 = vpack.c.b16 %v1797, %v1794
        %v1987 = vpack.c.b16 %v1801, %v1798
        %v1988 = vpack.c.b16 %v1802, %v1799
        %v1989 = vpack.c.b16 %v1803, %v1800
        %v1990 = vpack.c.b16 %v1807, %v1804
        %v1991 = vpack.c.b16 %v1808, %v1805
        %v1992 = vpack.c.b16 %v1809, %v1806
        %v1993 = vpack.c.b16 %v1813, %v1810
        %v1994 = vpack.c.b16 %v1814, %v1811
        %v1995 = vpack.c.b16 %v1815, %v1812
        %v1996 = vpack.c.b16 %v1819, %v1816
        %v1997 = vpack.c.b16 %v1820, %v1817
        %v1998 = vpack.c.b16 %v1821, %v1818
        %v1999 = vpack.c.b16 %v1825, %v1822
        %v2000 = vpack.c.b16 %v1826, %v1823
        %v2001 = vpack.c.b16 %v1827, %v1824
        %v2002 = vpack.c.b16 %v1831, %v1828
        %v2003 = vpack.c.b16 %v1832, %v1829
        %v2004 = vpack.c.b16 %v1833, %v1830
        %v2005 = vpack.c.b16 %v1837, %v1834
        %v2006 = vpack.c.b16 %v1838, %v1835
        %v2007 = vpack.c.b16 %v1839, %v1836
        %v2008 = vpack.c.b16 %v1843, %v1840
        %v2009 = vpack.c.b16 %v1844, %v1841
        %v2010 = vpack.c.b16 %v1845, %v1842
        %v2011 = vpack.c.b16 %v1849, %v1846
        %v2012 = vpack.c.b16 %v1850, %v1847
        %v2013 = vpack.c.b16 %v1851, %v1848
        %v2014 = vpack.c.b16 %v1855, %v1852
        %v2015 = vpack.c.b16 %v1856, %v1853
        %v2016 = vpack.c.b16 %v1857, %v1854
        %v2017 = vpack.c.b16 %v1861, %v1858
        %v2018 = vpack.c.b16 %v1862, %v1859
        %v2019 = vpack.c.b16 %v1863, %v1860
        %v2020 = vpack.c.b16 %v1867, %v1864
        %v2021 = vpack.c.b16 %v1868, %v1865
        %v2022 = vpack.c.b16 %v1869, %v1866
        %v2023 = vpack.c.b16 %v1873, %v1870
        %v2024 = vpack.c.b16 %v1874, %v1871
        %v2025 = vpack.c.b16 %v1875, %v1872
        %v2026 = vpack.c.b16 %v1879, %v1876
        %v2027 = vpack.c.b16 %v1880, %v1877
        %v2028 = vpack.c.b16 %v1881, %v1878
        %v2029 = vpack.c.b16 %v1885, %v1882
        %v2030 = vpack.c.b16 %v1886, %v1883
        %v2031 = vpack.c.b16 %v1887, %v1884
        %v2032 = vpack.c.b16 %v1891, %v1888
        %v2033 = vpack.c.b16 %v1892, %v1889
        %v2034 = vpack.c.b16 %v1893, %v1890
        %v2035 = vpack.c.b16 %v1897, %v1894
        %v2036 = vpack.c.b16 %v1898, %v1895
        %v2037 = vpack.c.b16 %v1899, %v1896
        %v2038 = vpack.c.b16 %v1903, %v1900
        %v2039 = vpack.c.b16 %v1904, %v1901
        %v2040 = vpack.c.b16 %v1905, %v1902
        %v2041 = vpack.c.b16 %v1909, %v1906
        %v2042 = vpack.c.b16 %v1910, %v1907
        %v2043 = vpack.c.b16 %v1911, %v1908
        %v2044 = vpack.c.b16 %v1915, %v1912
        %v2045 = vpack.c.b16 %v1916, %v1913
        %v2046 = vpack.c.b16 %v1917, %v1914
        %v2047 = vpack.c.b16 %v1921, %v1918
        %v2048 = vpack.c.b16 %v1922, %v1919
        %v2049 = vpack.c.b16 %v1923, %v1920
        %v2050 = vpack.c.b16 %v1927, %v1924
        %v2051 = vpack.c.b16 %v1928, %v1925
        %v2052 = vpack.c.b16 %v1929, %v1926
        %v2053 = vpack.c.b16 %v1933, %v1930
        %v2054 = vpack.c.b16 %v1934, %v1931
        %v2055 = vpack.c.b16 %v1935, %v1932
        %v2056 = vpack.c.b16 %v1939, %v1936
        %v2057 = vpack.c.b16 %v1940, %v1937
        %v2058 = vpack.c.b16 %v1941, %v1938
        %v2059 = vpack.c.b16 %v1945, %v1942
        %v2060 = vpack.c.b16 %v1946, %v1943
        %v2061 = vpack.c.b16 %v1947, %v1944
        %v2062 = vpack.c.b16 %v1951, %v1948
        %v2063 = vpack.c.b16 %v1952, %v1949
        %v2064 = vpack.c.b16 %v1953, %v1950
        %v2065 = vpack.c.b16 %v1957, %v1954
        %v2066 = vpack.c.b16 %v1958, %v1955
        %v2067 = vpack.c.b16 %v1959, %v1956
        %v2068 = vpack.c.b16 %v1963, %v1960
        %v2069 = vpack.c.b16 %v1964, %v1961
        %v2070 = vpack.c.b16 %v1965, %v1962
        %v2071 = vpack.c.b16 %v1969, %v1966
        %v2072 = vpack.c.b16 %v1970, %v1967
        %v2073 = vpack.c.b16 %v1971, %v1968
        %v2074 = vpack.c.b16 %v1975, %v1972
        %v2075 = vpack.c.b16 %v1976, %v1973
        %v2076 = vpack.c.b16 %v1977, %v1974
        %v2077 = vpack.c.b16 %v1981, %v1978
        %v2078 = vpack.c.b16 %v1982, %v1979
        %v2079 = vpack.c.b16 %v1983, %v1980
        %2176 = vmatprep.subr.bf16.mxu0 %v1985
        %2177 = vmatpush1.bf16.msra.mxu0 %v1984
        %2178 = vmatprep.subr.bf16.mxu0 %v1988
        %2179 = vmatpush1.bf16.msra.mxu0 %v1987
        %2180 = vmatprep.subr.bf16.mxu0 %v1991
        %2181 = vmatpush1.bf16.msra.mxu0 %v1990
        %2182 = vmatprep.subr.bf16.mxu0 %v1994
        %2183 = vmatpush1.bf16.msra.mxu0 %v1993
        %2184 = vmatprep.subr.bf16.mxu0 %v1997
        %2185 = vmatpush1.bf16.msra.mxu0 %v1996
        %2186 = vmatprep.subr.bf16.mxu0 %v2000
        %2187 = vmatpush1.bf16.msra.mxu0 %v1999
        %2188 = vmatprep.subr.bf16.mxu0 %v2003
        %2189 = vmatpush1.bf16.msra.mxu0 %v2002
        %2190 = vmatprep.subr.bf16.mxu0 %v2006
        %2191 = vmatpush1.bf16.msra.mxu0 %v2005
        %2192 = vmatprep.subr.bf16.mxu0 %v2009
        %2193 = vmatpush1.bf16.msra.mxu0 %v2008
        %2194 = vmatprep.subr.bf16.mxu0 %v2012
        %2195 = vmatpush1.bf16.msra.mxu0 %v2011
        %2196 = vmatprep.subr.bf16.mxu0 %v2015
        %2197 = vmatpush1.bf16.msra.mxu0 %v2014
        %2198 = vmatprep.subr.bf16.mxu0 %v2018
        %2199 = vmatpush1.bf16.msra.mxu0 %v2017
        %2200 = vmatprep.subr.bf16.mxu0 %v2021
        %2201 = vmatpush1.bf16.msra.mxu0 %v2020
        %2202 = vmatprep.subr.bf16.mxu0 %v2024
        %2203 = vmatpush1.bf16.msra.mxu0 %v2023
        %2204 = vmatprep.subr.bf16.mxu0 %v2027
        %2205 = vmatpush1.bf16.msra.mxu0 %v2026
        %2206 = vmatprep.subr.bf16.mxu0 %v2030
        %2207 = vmatpush1.bf16.msra.mxu0 %v2029
        %2208 = vmatprep.mubr.bf16.mxu0 %v1505
        %2209 = vmatmul.mubr.bf16.gmra.mrb[0].mxu0 %v1504
        %v2210 = vpop.f32.mrb[0].mxu0
        %v2211 = vadd.f32 0.0, %v2210
        %v2212 = vpop.f32.mrb[0].mxu0
        %v2213 = vadd.f32 0.0, %v2212
        %v2214 = vpop.f32.mrb[0].mxu0
        %v2215 = vadd.f32 0.0, %v2214
        %v2216 = vpop.f32.mrb[0].mxu0
        %v2217 = vadd.f32 0.0, %v2216
        %2218 = vmatprep.mubr.bf16.mxu0 %v1509
        %2219 = vmatmul.mubr.bf16.gmra.mrb[0].mxu0 %v1508
        %v2220 = vpop.f32.mrb[0].mxu0
        %v2221 = vadd.f32 0.0, %v2220
        %v2222 = vpop.f32.mrb[0].mxu0
        %v2223 = vadd.f32 0.0, %v2222
        %v2224 = vpop.f32.mrb[0].mxu0
        %v2225 = vadd.f32 0.0, %v2224
        %v2226 = vpop.f32.mrb[0].mxu0
        %v2227 = vadd.f32 0.0, %v2226
        %2228 = vmatprep.mubr.bf16.mxu0 %v1513
        %2229 = vmatmul.mubr.bf16.gmra.mrb[0].mxu0 %v1512
        %v2230 = vpop.f32.mrb[0].mxu0
        %v2231 = vadd.f32 0.0, %v2230
        %v2232 = vpop.f32.mrb[0].mxu0
        %v2233 = vadd.f32 0.0, %v2232
        %v2234 = vpop.f32.mrb[0].mxu0
        %v2235 = vadd.f32 0.0, %v2234
        %v2236 = vpop.f32.mrb[0].mxu0
        %v2237 = vadd.f32 0.0, %v2236
        %2238 = vmatprep.mubr.bf16.mxu0 %v1517
        %2239 = vmatmul.mubr.bf16.gmra.mrb[0].mxu0 %v1516
        %v2240 = vpop.f32.mrb[0].mxu0
        %v2241 = vadd.f32 0.0, %v2240
        %v2242 = vpop.f32.mrb[0].mxu0
        %v2243 = vadd.f32 0.0, %v2242
        %v2244 = vpop.f32.mrb[0].mxu0
        %v2245 = vadd.f32 0.0, %v2244
        %v2246 = vpop.f32.mrb[0].mxu0
        %v2247 = vadd.f32 0.0, %v2246
        %2248 = vmatprep.mubr.bf16.mxu0 %v1521
        %2249 = vmatmul.mubr.bf16.gmra.mrb[0].mxu0 %v1520
        %v2250 = vpop.f32.mrb[0].mxu0
        %v2251 = vadd.f32 0.0, %v2250
        %v2252 = vpop.f32.mrb[0].mxu0
        %v2253 = vadd.f32 0.0, %v2252
        %v2254 = vpop.f32.mrb[0].mxu0
        %v2255 = vadd.f32 0.0, %v2254
        %v2256 = vpop.f32.mrb[0].mxu0
        %v2257 = vadd.f32 0.0, %v2256
        %2258 = vmatprep.mubr.bf16.mxu0 %v1525
        %2259 = vmatmul.mubr.bf16.gmra.mrb[0].mxu0 %v1524
        %v2260 = vpop.f32.mrb[0].mxu0
        %v2261 = vadd.f32 0.0, %v2260
        %v2262 = vpop.f32.mrb[0].mxu0
        %v2263 = vadd.f32 0.0, %v2262
        %v2264 = vpop.f32.mrb[0].mxu0
        %v2265 = vadd.f32 0.0, %v2264
        %v2266 = vpop.f32.mrb[0].mxu0
        %v2267 = vadd.f32 0.0, %v2266
        %2268 = vmatprep.mubr.bf16.mxu0 %v1529
        %2269 = vmatmul.mubr.bf16.gmra.mrb[0].mxu0 %v1528
        %v2270 = vpop.f32.mrb[0].mxu0
        %v2271 = vadd.f32 0.0, %v2270
        %v2272 = vpop.f32.mrb[0].mxu0
        %v2273 = vadd.f32 0.0, %v2272
        %v2274 = vpop.f32.mrb[0].mxu0
        %v2275 = vadd.f32 0.0, %v2274
        %v2276 = vpop.f32.mrb[0].mxu0
        %v2277 = vadd.f32 0.0, %v2276
        %2278 = vmatprep.mubr.bf16.mxu0 %v1533
        %2279 = vmatmul.mubr.bf16.gmra.mrb[0].mxu0 %v1532
        %v2280 = vpop.f32.mrb[0].mxu0
        %v2281 = vadd.f32 0.0, %v2280
        %v2282 = vpop.f32.mrb[0].mxu0
        %v2283 = vadd.f32 0.0, %v2282
        %v2284 = vpop.f32.mrb[0].mxu0
        %v2285 = vadd.f32 0.0, %v2284
        %v2286 = vpop.f32.mrb[0].mxu0
        %v2287 = vadd.f32 0.0, %v2286
        %2288 = vdwg.mxu0
        %2289 = vmatprep.subr.bf16.mxu0 %v2033
        %2290 = vmatpush1.bf16.msra.mxu0 %v2032
        %2291 = vmatprep.subr.bf16.mxu0 %v2036
        %2292 = vmatpush1.bf16.msra.mxu0 %v2035
        %2293 = vmatprep.subr.bf16.mxu0 %v2039
        %2294 = vmatpush1.bf16.msra.mxu0 %v2038
        %2295 = vmatprep.subr.bf16.mxu0 %v2042
        %2296 = vmatpush1.bf16.msra.mxu0 %v2041
        %2297 = vmatprep.subr.bf16.mxu0 %v2045
        %2298 = vmatpush1.bf16.msra.mxu0 %v2044
        %2299 = vmatprep.subr.bf16.mxu0 %v2048
        %2300 = vmatpush1.bf16.msra.mxu0 %v2047
        %2301 = vmatprep.subr.bf16.mxu0 %v2051
        %2302 = vmatpush1.bf16.msra.mxu0 %v2050
        %2303 = vmatprep.subr.bf16.mxu0 %v2054
        %2304 = vmatpush1.bf16.msra.mxu0 %v2053
        %2305 = vmatprep.subr.bf16.mxu0 %v2057
        %2306 = vmatpush1.bf16.msra.mxu0 %v2056
        %2307 = vmatprep.subr.bf16.mxu0 %v2060
        %2308 = vmatpush1.bf16.msra.mxu0 %v2059
        %2309 = vmatprep.subr.bf16.mxu0 %v2063
        %2310 = vmatpush1.bf16.msra.mxu0 %v2062
        %2311 = vmatprep.subr.bf16.mxu0 %v2066
        %2312 = vmatpush1.bf16.msra.mxu0 %v2065
        %2313 = vmatprep.subr.bf16.mxu0 %v2069
        %2314 = vmatpush1.bf16.msra.mxu0 %v2068
        %2315 = vmatprep.subr.bf16.mxu0 %v2072
        %2316 = vmatpush1.bf16.msra.mxu0 %v2071
        %2317 = vmatprep.subr.bf16.mxu0 %v2075
        %2318 = vmatpush1.bf16.msra.mxu0 %v2074
        %2319 = vmatprep.subr.bf16.mxu0 %v2078
        %2320 = vmatpush1.bf16.msra.mxu0 %v2077
        %2321 = vmatprep.mubr.bf16.mxu0 %v1507
        %2322 = vmatmul.mubr.bf16.gmra.mrb[0].mxu0 %v1506
        %v2323 = vpop.f32.mrb[0].mxu0
        %v2324 = vadd.f32 %v2211, %v2323
        %v2325 = vpop.f32.mrb[0].mxu0
        %v2326 = vadd.f32 %v2213, %v2325
        %v2327 = vpop.f32.mrb[0].mxu0
        %v2328 = vadd.f32 %v2215, %v2327
        %v2329 = vpop.f32.mrb[0].mxu0
        %v2330 = vadd.f32 %v2217, %v2329
        %2331 = vmatprep.mubr.bf16.mxu0 %v1511
        %2332 = vmatmul.mubr.bf16.gmra.mrb[0].mxu0 %v1510
        %v2333 = vpop.f32.mrb[0].mxu0
        %v2334 = vadd.f32 %v2221, %v2333
        %v2335 = vpop.f32.mrb[0].mxu0
        %v2336 = vadd.f32 %v2223, %v2335
        %v2337 = vpop.f32.mrb[0].mxu0
        %v2338 = vadd.f32 %v2225, %v2337
        %v2339 = vpop.f32.mrb[0].mxu0
        %v2340 = vadd.f32 %v2227, %v2339
        %2341 = vmatprep.mubr.bf16.mxu0 %v1515
        %2342 = vmatmul.mubr.bf16.gmra.mrb[0].mxu0 %v1514
        %v2343 = vpop.f32.mrb[0].mxu0
        %v2344 = vadd.f32 %v2231, %v2343
        %v2345 = vpop.f32.mrb[0].mxu0
        %v2346 = vadd.f32 %v2233, %v2345
        %v2347 = vpop.f32.mrb[0].mxu0
        %v2348 = vadd.f32 %v2235, %v2347
        %v2349 = vpop.f32.mrb[0].mxu0
        %v2350 = vadd.f32 %v2237, %v2349
        %2351 = vmatprep.mubr.bf16.mxu0 %v1519
        %2352 = vmatmul.mubr.bf16.gmra.mrb[0].mxu0 %v1518
        %v2353 = vpop.f32.mrb[0].mxu0
        %v2354 = vadd.f32 %v2241, %v2353
        %v2355 = vpop.f32.mrb[0].mxu0
        %v2356 = vadd.f32 %v2243, %v2355
        %v2357 = vpop.f32.mrb[0].mxu0
        %v2358 = vadd.f32 %v2245, %v2357
        %v2359 = vpop.f32.mrb[0].mxu0
        %v2360 = vadd.f32 %v2247, %v2359
        %2361 = vmatprep.mubr.bf16.mxu0 %v1523
        %2362 = vmatmul.mubr.bf16.gmra.mrb[0].mxu0 %v1522
        %v2363 = vpop.f32.mrb[0].mxu0
        %v2364 = vadd.f32 %v2251, %v2363
        %v2365 = vpop.f32.mrb[0].mxu0
        %v2366 = vadd.f32 %v2253, %v2365
        %v2367 = vpop.f32.mrb[0].mxu0
        %v2368 = vadd.f32 %v2255, %v2367
        %v2369 = vpop.f32.mrb[0].mxu0
        %v2370 = vadd.f32 %v2257, %v2369
        %2371 = vmatprep.mubr.bf16.mxu0 %v1527
        %2372 = vmatmul.mubr.bf16.gmra.mrb[0].mxu0 %v1526
        %v2373 = vpop.f32.mrb[0].mxu0
        %v2374 = vadd.f32 %v2261, %v2373
        %v2375 = vpop.f32.mrb[0].mxu0
        %v2376 = vadd.f32 %v2263, %v2375
        %v2377 = vpop.f32.mrb[0].mxu0
        %v2378 = vadd.f32 %v2265, %v2377
        %v2379 = vpop.f32.mrb[0].mxu0
        %v2380 = vadd.f32 %v2267, %v2379
        %2381 = vmatprep.mubr.bf16.mxu0 %v1531
        %2382 = vmatmul.mubr.bf16.gmra.mrb[0].mxu0 %v1530
        %v2383 = vpop.f32.mrb[0].mxu0
        %v2384 = vadd.f32 %v2271, %v2383
        %v2385 = vpop.f32.mrb[0].mxu0
        %v2386 = vadd.f32 %v2273, %v2385
        %v2387 = vpop.f32.mrb[0].mxu0
        %v2388 = vadd.f32 %v2275, %v2387
        %v2389 = vpop.f32.mrb[0].mxu0
        %v2390 = vadd.f32 %v2277, %v2389
        %2391 = vmatprep.mubr.bf16.mxu0 %v1535
        %2392 = vmatmul.mubr.bf16.gmra.mrb[0].mxu0 %v1534
        %v2393 = vpop.f32.mrb[0].mxu0
        %v2394 = vadd.f32 %v2281, %v2393
        %v2395 = vpop.f32.mrb[0].mxu0
        %v2396 = vadd.f32 %v2283, %v2395
        %v2397 = vpop.f32.mrb[0].mxu0
        %v2398 = vadd.f32 %v2285, %v2397
        %v2399 = vpop.f32.mrb[0].mxu0
        %v2400 = vadd.f32 %v2287, %v2399
        %2401 = vdwg.mxu0
        %2402 = vmatprep.subr.bf16.mxu0 0
        %2403 = vmatpush1.bf16.msra.mxu0 %v1986
        %2404 = vmatprep.subr.bf16.mxu0 0
        %2405 = vmatpush1.bf16.msra.mxu0 %v1989
        %2406 = vmatprep.subr.bf16.mxu0 0
        %2407 = vmatpush1.bf16.msra.mxu0 %v1992
        %2408 = vmatprep.subr.bf16.mxu0 0
        %2409 = vmatpush1.bf16.msra.mxu0 %v1995
        %2410 = vmatprep.subr.bf16.mxu0 0
        %2411 = vmatpush1.bf16.msra.mxu0 %v1998
        %2412 = vmatprep.subr.bf16.mxu0 0
        %2413 = vmatpush1.bf16.msra.mxu0 %v2001
        %2414 = vmatprep.subr.bf16.mxu0 0
        %2415 = vmatpush1.bf16.msra.mxu0 %v2004
        %2416 = vmatprep.subr.bf16.mxu0 0
        %2417 = vmatpush1.bf16.msra.mxu0 %v2007
        %2418 = vmatprep.subr.bf16.mxu0 0
        %2419 = vmatpush1.bf16.msra.mxu0 %v2010
        %2420 = vmatprep.subr.bf16.mxu0 0
        %2421 = vmatpush1.bf16.msra.mxu0 %v2013
        %2422 = vmatprep.subr.bf16.mxu0 0
        %2423 = vmatpush1.bf16.msra.mxu0 %v2016
        %2424 = vmatprep.subr.bf16.mxu0 0
        %2425 = vmatpush1.bf16.msra.mxu0 %v2019
        %2426 = vmatprep.subr.bf16.mxu0 0
        %2427 = vmatpush1.bf16.msra.mxu0 %v2022
        %2428 = vmatprep.subr.bf16.mxu0 0
        %2429 = vmatpush1.bf16.msra.mxu0 %v2025
        %2430 = vmatprep.subr.bf16.mxu0 0
        %2431 = vmatpush1.bf16.msra.mxu0 %v2028
        %2432 = vmatprep.subr.bf16.mxu0 0
        %2433 = vmatpush1.bf16.msra.mxu0 %v2031
        %2434 = vmatprep.mubr.bf16.mxu0 %v1505
        %2435 = vmatmul.mubr.bf16.gmra.mrb[0].mxu0 %v1504
        %v2436 = vpop.f32.mrb[0].mxu0
        %v2437 = vadd.f32 0.0, %v2436
        %v2438 = vpop.f32.mrb[0].mxu0
        %v2439 = vpop.f32.mrb[0].mxu0
        %v2440 = vadd.f32 0.0, %v2439
        %v2441 = vpop.f32.mrb[0].mxu0
        %2442 = vmatprep.mubr.bf16.mxu0 %v1509
        %2443 = vmatmul.mubr.bf16.gmra.mrb[0].mxu0 %v1508
        %v2444 = vpop.f32.mrb[0].mxu0
        %v2445 = vadd.f32 0.0, %v2444
        %v2446 = vpop.f32.mrb[0].mxu0
        %v2447 = vpop.f32.mrb[0].mxu0
        %v2448 = vadd.f32 0.0, %v2447
        %v2449 = vpop.f32.mrb[0].mxu0
        %2450 = vmatprep.mubr.bf16.mxu0 %v1513
        %2451 = vmatmul.mubr.bf16.gmra.mrb[0].mxu0 %v1512
        %v2452 = vpop.f32.mrb[0].mxu0
        %v2453 = vadd.f32 0.0, %v2452
        %v2454 = vpop.f32.mrb[0].mxu0
        %v2455 = vpop.f32.mrb[0].mxu0
        %v2456 = vadd.f32 0.0, %v2455
        %v2457 = vpop.f32.mrb[0].mxu0
        %2458 = vmatprep.mubr.bf16.mxu0 %v1517
        %2459 = vmatmul.mubr.bf16.gmra.mrb[0].mxu0 %v1516
        %v2460 = vpop.f32.mrb[0].mxu0
        %v2461 = vadd.f32 0.0, %v2460
        %v2462 = vpop.f32.mrb[0].mxu0
        %v2463 = vpop.f32.mrb[0].mxu0
        %v2464 = vadd.f32 0.0, %v2463
        %v2465 = vpop.f32.mrb[0].mxu0
        %2466 = vmatprep.mubr.bf16.mxu0 %v1521
        %2467 = vmatmul.mubr.bf16.gmra.mrb[0].mxu0 %v1520
        %v2468 = vpop.f32.mrb[0].mxu0
        %v2469 = vadd.f32 0.0, %v2468
        %v2470 = vpop.f32.mrb[0].mxu0
        %v2471 = vpop.f32.mrb[0].mxu0
        %v2472 = vadd.f32 0.0, %v2471
        %v2473 = vpop.f32.mrb[0].mxu0
        %2474 = vmatprep.mubr.bf16.mxu0 %v1525
        %2475 = vmatmul.mubr.bf16.gmra.mrb[0].mxu0 %v1524
        %v2476 = vpop.f32.mrb[0].mxu0
        %v2477 = vadd.f32 0.0, %v2476
        %v2478 = vpop.f32.mrb[0].mxu0
        %v2479 = vpop.f32.mrb[0].mxu0
        %v2480 = vadd.f32 0.0, %v2479
        %v2481 = vpop.f32.mrb[0].mxu0
        %2482 = vmatprep.mubr.bf16.mxu0 %v1529
        %2483 = vmatmul.mubr.bf16.gmra.mrb[0].mxu0 %v1528
        %v2484 = vpop.f32.mrb[0].mxu0
        %v2485 = vadd.f32 0.0, %v2484
        %v2486 = vpop.f32.mrb[0].mxu0
        %v2487 = vpop.f32.mrb[0].mxu0
        %v2488 = vadd.f32 0.0, %v2487
        %v2489 = vpop.f32.mrb[0].mxu0
        %2490 = vmatprep.mubr.bf16.mxu0 %v1533
        %2491 = vmatmul.mubr.bf16.gmra.mrb[0].mxu0 %v1532
        %v2492 = vpop.f32.mrb[0].mxu0
        %v2493 = vadd.f32 0.0, %v2492
        %v2494 = vpop.f32.mrb[0].mxu0
        %v2495 = vpop.f32.mrb[0].mxu0
        %v2496 = vadd.f32 0.0, %v2495
        %v2497 = vpop.f32.mrb[0].mxu0
        %2498 = vdwg.mxu0
        %2499 = vmatprep.subr.bf16.mxu0 0
        %2500 = vmatpush1.bf16.msra.mxu0 %v2034
        %2501 = vmatprep.subr.bf16.mxu0 0
        %2502 = vmatpush1.bf16.msra.mxu0 %v2037
        %2503 = vmatprep.subr.bf16.mxu0 0
        %2504 = vmatpush1.bf16.msra.mxu0 %v2040
        %2505 = vmatprep.subr.bf16.mxu0 0
        %2506 = vmatpush1.bf16.msra.mxu0 %v2043
        %2507 = vmatprep.subr.bf16.mxu0 0
        %2508 = vmatpush1.bf16.msra.mxu0 %v2046
        %2509 = vmatprep.subr.bf16.mxu0 0
        %2510 = vmatpush1.bf16.msra.mxu0 %v2049
        %2511 = vmatprep.subr.bf16.mxu0 0
        %2512 = vmatpush1.bf16.msra.mxu0 %v2052
        %2513 = vmatprep.subr.bf16.mxu0 0
        %2514 = vmatpush1.bf16.msra.mxu0 %v2055
        %2515 = vmatprep.subr.bf16.mxu0 0
        %2516 = vmatpush1.bf16.msra.mxu0 %v2058
        %2517 = vmatprep.subr.bf16.mxu0 0
        %2518 = vmatpush1.bf16.msra.mxu0 %v2061
        %2519 = vmatprep.subr.bf16.mxu0 0
        %2520 = vmatpush1.bf16.msra.mxu0 %v2064
        %2521 = vmatprep.subr.bf16.mxu0 0
        %2522 = vmatpush1.bf16.msra.mxu0 %v2067
        %2523 = vmatprep.subr.bf16.mxu0 0
        %2524 = vmatpush1.bf16.msra.mxu0 %v2070
        %2525 = vmatprep.subr.bf16.mxu0 0
        %2526 = vmatpush1.bf16.msra.mxu0 %v2073
        %2527 = vmatprep.subr.bf16.mxu0 0
        %2528 = vmatpush1.bf16.msra.mxu0 %v2076
        %2529 = vmatprep.subr.bf16.mxu0 0
        %2530 = vmatpush1.bf16.msra.mxu0 %v2079
        %2531 = vmatprep.mubr.bf16.mxu0 %v1507
        %2532 = vmatmul.mubr.bf16.gmra.mrb[0].mxu0 %v1506
        %v2533 = vpop.f32.mrb[0].mxu0
        %v2534 = vadd.f32 %v2437, %v2533
        %v2535 = vpop.f32.mrb[0].mxu0
        %v2536 = vpop.f32.mrb[0].mxu0
        %v2537 = vadd.f32 %v2440, %v2536
        %v2538 = vpop.f32.mrb[0].mxu0
        %2539 = vmatprep.mubr.bf16.mxu0 %v1511
        %2540 = vmatmul.mubr.bf16.gmra.mrb[0].mxu0 %v1510
        %v2541 = vpop.f32.mrb[0].mxu0
        %v2542 = vadd.f32 %v2445, %v2541
        %v2543 = vpop.f32.mrb[0].mxu0
        %v2544 = vpop.f32.mrb[0].mxu0
        %v2545 = vadd.f32 %v2448, %v2544
        %v2546 = vpop.f32.mrb[0].mxu0
        %2547 = vmatprep.mubr.bf16.mxu0 %v1515
        %2548 = vmatmul.mubr.bf16.gmra.mrb[0].mxu0 %v1514
        %v2549 = vpop.f32.mrb[0].mxu0
        %v2550 = vadd.f32 %v2453, %v2549
        %v2551 = vpop.f32.mrb[0].mxu0
        %v2552 = vpop.f32.mrb[0].mxu0
        %v2553 = vadd.f32 %v2456, %v2552
        %v2554 = vpop.f32.mrb[0].mxu0
        %2555 = vmatprep.mubr.bf16.mxu0 %v1519
        %2556 = vmatmul.mubr.bf16.gmra.mrb[0].mxu0 %v1518
        %v2557 = vpop.f32.mrb[0].mxu0
        %v2558 = vadd.f32 %v2461, %v2557
        %v2559 = vpop.f32.mrb[0].mxu0
        %v2560 = vpop.f32.mrb[0].mxu0
        %v2561 = vadd.f32 %v2464, %v2560
        %v2562 = vpop.f32.mrb[0].mxu0
        %2563 = vmatprep.mubr.bf16.mxu0 %v1523
        %2564 = vmatmul.mubr.bf16.gmra.mrb[0].mxu0 %v1522
        %v2565 = vpop.f32.mrb[0].mxu0
        %v2566 = vadd.f32 %v2469, %v2565
        %v2567 = vpop.f32.mrb[0].mxu0
        %v2568 = vpop.f32.mrb[0].mxu0
        %v2569 = vadd.f32 %v2472, %v2568
        %v2570 = vpop.f32.mrb[0].mxu0
        %2571 = vmatprep.mubr.bf16.mxu0 %v1527
        %2572 = vmatmul.mubr.bf16.gmra.mrb[0].mxu0 %v1526
        %v2573 = vpop.f32.mrb[0].mxu0
        %v2574 = vadd.f32 %v2477, %v2573
        %v2575 = vpop.f32.mrb[0].mxu0
        %v2576 = vpop.f32.mrb[0].mxu0
        %v2577 = vadd.f32 %v2480, %v2576
        %v2578 = vpop.f32.mrb[0].mxu0
        %2579 = vmatprep.mubr.bf16.mxu0 %v1531
        %2580 = vmatmul.mubr.bf16.gmra.mrb[0].mxu0 %v1530
        %v2581 = vpop.f32.mrb[0].mxu0
        %v2582 = vadd.f32 %v2485, %v2581
        %v2583 = vpop.f32.mrb[0].mxu0
        %v2584 = vpop.f32.mrb[0].mxu0
        %v2585 = vadd.f32 %v2488, %v2584
        %v2586 = vpop.f32.mrb[0].mxu0
        %2587 = vmatprep.mubr.bf16.mxu0 %v1535
        %2588 = vmatmul.mubr.bf16.gmra.mrb[0].mxu0 %v1534
        %v2589 = vpop.f32.mrb[0].mxu0
        %v2590 = vadd.f32 %v2493, %v2589
        %v2591 = vpop.f32.mrb[0].mxu0
        %v2592 = vpop.f32.mrb[0].mxu0
        %v2593 = vadd.f32 %v2496, %v2592
        %v2594 = vpop.f32.mrb[0].mxu0
        %2595 = vdwg.mxu0
        %v2596 = vadd.f32 %v378, %v2324
        %v2597 = vadd.f32 %v382, %v2326
        %v2598 = vadd.f32 %v386, %v2534
        %v2599 = vadd.f32 %v378, %v2328
        %v2600 = vadd.f32 %v382, %v2330
        %v2601 = vadd.f32 %v386, %v2537
        %v2602 = vadd.f32 %v378, %v2334
        %v2603 = vadd.f32 %v382, %v2336
        %v2604 = vadd.f32 %v386, %v2542
        %v2605 = vadd.f32 %v378, %v2338
        %v2606 = vadd.f32 %v382, %v2340
        %v2607 = vadd.f32 %v386, %v2545
        %v2608 = vadd.f32 %v378, %v2344
        %v2609 = vadd.f32 %v382, %v2346
        %v2610 = vadd.f32 %v386, %v2550
        %v2611 = vadd.f32 %v378, %v2348
        %v2612 = vadd.f32 %v382, %v2350
        %v2613 = vadd.f32 %v386, %v2553
        %v2614 = vadd.f32 %v378, %v2354
        %v2615 = vadd.f32 %v382, %v2356
        %v2616 = vadd.f32 %v386, %v2558
        %v2617 = vadd.f32 %v378, %v2358
        %v2618 = vadd.f32 %v382, %v2360
        %v2619 = vadd.f32 %v386, %v2561
        %v2620 = vadd.f32 %v378, %v2364
        %v2621 = vadd.f32 %v382, %v2366
        %v2622 = vadd.f32 %v386, %v2566
        %v2623 = vadd.f32 %v378, %v2368
        %v2624 = vadd.f32 %v382, %v2370
        %v2625 = vadd.f32 %v386, %v2569
        %v2626 = vadd.f32 %v378, %v2374
        %v2627 = vadd.f32 %v382, %v2376
        %v2628 = vadd.f32 %v386, %v2574
        %v2629 = vadd.f32 %v378, %v2378
        %v2630 = vadd.f32 %v382, %v2380
        %v2631 = vadd.f32 %v386, %v2577
        %v2632 = vadd.f32 %v378, %v2384
        %v2633 = vadd.f32 %v382, %v2386
        %v2634 = vadd.f32 %v386, %v2582
        %v2635 = vadd.f32 %v378, %v2388
        %v2636 = vadd.f32 %v382, %v2390
        %v2637 = vadd.f32 %v386, %v2585
        %v2638 = vadd.f32 %v378, %v2394
        %v2639 = vadd.f32 %v382, %v2396
        %v2640 = vadd.f32 %v386, %v2590
        %v2641 = vadd.f32 %v378, %v2398
        %v2642 = vadd.f32 %v382, %v2400
        %v2643 = vadd.f32 %v386, %v2593
        %v2644 = vld [vmem:[#allocation5 + $0x10] sm:$0xff]
        %v2645 = vld [vmem:[#allocation5 + $0x18] sm:$0xff]
        %v2646 = vld [vmem:[#allocation5 + $0x40] sm:$0xff]
        %v2647 = vld [vmem:[#allocation5 + $0x48] sm:$0xff]
        %v2648 = vld [vmem:[#allocation5 + $0x70] sm:$0xff]
        %v2649 = vld [vmem:[#allocation5 + $0x78] sm:$0xff]
        %v2650 = vld [vmem:[#allocation5 + $0xa0] sm:$0xff]
        %v2651 = vld [vmem:[#allocation5 + $0xa8] sm:$0xff]
        %v2652 = vld [vmem:[#allocation5 + $0xd0] sm:$0xff]
        %v2653 = vld [vmem:[#allocation5 + $0xd8] sm:$0xff]
        %v2654 = vld [vmem:[#allocation5 + $0x100] sm:$0xff]
        %v2655 = vld [vmem:[#allocation5 + $0x108] sm:$0xff]
        %v2656 = vld [vmem:[#allocation5 + $0x130] sm:$0xff]
        %v2657 = vld [vmem:[#allocation5 + $0x138] sm:$0xff]
        %v2658 = vld [vmem:[#allocation5 + $0x160] sm:$0xff]
        %v2659 = vld [vmem:[#allocation5 + $0x168] sm:$0xff]
        %v2660 = vld [vmem:[#allocation5 + $0x190] sm:$0xff]
        %v2661 = vld [vmem:[#allocation5 + $0x198] sm:$0xff]
        %v2662 = vld [vmem:[#allocation5 + $0x1c0] sm:$0xff]
        %v2663 = vld [vmem:[#allocation5 + $0x1c8] sm:$0xff]
        %v2664 = vld [vmem:[#allocation5 + $0x1f0] sm:$0xff]
        %v2665 = vld [vmem:[#allocation5 + $0x1f8] sm:$0xff]
        %v2666 = vld [vmem:[#allocation5 + $0x220] sm:$0xff]
        %v2667 = vld [vmem:[#allocation5 + $0x228] sm:$0xff]
        %v2668 = vld [vmem:[#allocation5 + $0x250] sm:$0xff]
        %v2669 = vld [vmem:[#allocation5 + $0x258] sm:$0xff]
        %v2670 = vld [vmem:[#allocation5 + $0x280] sm:$0xff]
        %v2671 = vld [vmem:[#allocation5 + $0x288] sm:$0xff]
        %v2672 = vld [vmem:[#allocation5 + $0x2b0] sm:$0xff]
        %v2673 = vld [vmem:[#allocation5 + $0x2b8] sm:$0xff]
        %v2674 = vld [vmem:[#allocation5 + $0x2e0] sm:$0xff]
        %v2675 = vld [vmem:[#allocation5 + $0x2e8] sm:$0xff]
        %v2676 = vld [vmem:[#allocation5 + $0x310] sm:$0xff]
        %v2677 = vld [vmem:[#allocation5 + $0x318] sm:$0xff]
        %v2678 = vld [vmem:[#allocation5 + $0x340] sm:$0xff]
        %v2679 = vld [vmem:[#allocation5 + $0x348] sm:$0xff]
        %v2680 = vld [vmem:[#allocation5 + $0x370] sm:$0xff]
        %v2681 = vld [vmem:[#allocation5 + $0x378] sm:$0xff]
        %v2682 = vld [vmem:[#allocation5 + $0x3a0] sm:$0xff]
        %v2683 = vld [vmem:[#allocation5 + $0x3a8] sm:$0xff]
        %v2684 = vld [vmem:[#allocation5 + $0x3d0] sm:$0xff]
        %v2685 = vld [vmem:[#allocation5 + $0x3d8] sm:$0xff]
        %v2686 = vld [vmem:[#allocation5 + $0x400] sm:$0xff]
        %v2687 = vld [vmem:[#allocation5 + $0x408] sm:$0xff]
        %v2688 = vld [vmem:[#allocation5 + $0x430] sm:$0xff]
        %v2689 = vld [vmem:[#allocation5 + $0x438] sm:$0xff]
        %v2690 = vld [vmem:[#allocation5 + $0x460] sm:$0xff]
        %v2691 = vld [vmem:[#allocation5 + $0x468] sm:$0xff]
        %v2692 = vld [vmem:[#allocation5 + $0x490] sm:$0xff]
        %v2693 = vld [vmem:[#allocation5 + $0x498] sm:$0xff]
        %v2694 = vld [vmem:[#allocation5 + $0x4c0] sm:$0xff]
        %v2695 = vld [vmem:[#allocation5 + $0x4c8] sm:$0xff]
        %v2696 = vld [vmem:[#allocation5 + $0x4f0] sm:$0xff]
        %v2697 = vld [vmem:[#allocation5 + $0x4f8] sm:$0xff]
        %v2698 = vld [vmem:[#allocation5 + $0x520] sm:$0xff]
        %v2699 = vld [vmem:[#allocation5 + $0x528] sm:$0xff]
        %v2700 = vld [vmem:[#allocation5 + $0x550] sm:$0xff]
        %v2701 = vld [vmem:[#allocation5 + $0x558] sm:$0xff]
        %v2702 = vld [vmem:[#allocation5 + $0x580] sm:$0xff]
        %v2703 = vld [vmem:[#allocation5 + $0x588] sm:$0xff]
        %v2704 = vld [vmem:[#allocation5 + $0x5b0] sm:$0xff]
        %v2705 = vld [vmem:[#allocation5 + $0x5b8] sm:$0xff]
        %v2706 = vld [vmem:[#allocation5 + $0x5e0] sm:$0xff]
        %v2707 = vld [vmem:[#allocation5 + $0x5e8] sm:$0xff]
        %v2708 = vld [vmem:[#allocation5 + $0x610] sm:$0xff]
        %v2709 = vld [vmem:[#allocation5 + $0x618] sm:$0xff]
        %v2710 = vld [vmem:[#allocation5 + $0x640] sm:$0xff]
        %v2711 = vld [vmem:[#allocation5 + $0x648] sm:$0xff]
        %v2712 = vld [vmem:[#allocation5 + $0x670] sm:$0xff]
        %v2713 = vld [vmem:[#allocation5 + $0x678] sm:$0xff]
        %v2714 = vld [vmem:[#allocation5 + $0x6a0] sm:$0xff]
        %v2715 = vld [vmem:[#allocation5 + $0x6a8] sm:$0xff]
        %v2716 = vld [vmem:[#allocation5 + $0x6d0] sm:$0xff]
        %v2717 = vld [vmem:[#allocation5 + $0x6d8] sm:$0xff]
        %v2718 = vld [vmem:[#allocation5 + $0x700] sm:$0xff]
        %v2719 = vld [vmem:[#allocation5 + $0x708] sm:$0xff]
        %v2720 = vld [vmem:[#allocation5 + $0x730] sm:$0xff]
        %v2721 = vld [vmem:[#allocation5 + $0x738] sm:$0xff]
        %v2722 = vld [vmem:[#allocation5 + $0x760] sm:$0xff]
        %v2723 = vld [vmem:[#allocation5 + $0x768] sm:$0xff]
        %v2724 = vld [vmem:[#allocation5 + $0x790] sm:$0xff]
        %v2725 = vld [vmem:[#allocation5 + $0x798] sm:$0xff]
        %v2726 = vld [vmem:[#allocation5 + $0x7c0] sm:$0xff]
        %v2727 = vld [vmem:[#allocation5 + $0x7c8] sm:$0xff]
        %v2728 = vld [vmem:[#allocation5 + $0x7f0] sm:$0xff]
        %v2729 = vld [vmem:[#allocation5 + $0x7f8] sm:$0xff]
        %v2730 = vld [vmem:[#allocation5 + $0x820] sm:$0xff]
        %v2731 = vld [vmem:[#allocation5 + $0x828] sm:$0xff]
        %v2732 = vld [vmem:[#allocation5 + $0x850] sm:$0xff]
        %v2733 = vld [vmem:[#allocation5 + $0x858] sm:$0xff]
        %v2734 = vld [vmem:[#allocation5 + $0x880] sm:$0xff]
        %v2735 = vld [vmem:[#allocation5 + $0x888] sm:$0xff]
        %v2736 = vld [vmem:[#allocation5 + $0x8b0] sm:$0xff]
        %v2737 = vld [vmem:[#allocation5 + $0x8b8] sm:$0xff]
        %v2738 = vld [vmem:[#allocation5 + $0x8e0] sm:$0xff]
        %v2739 = vld [vmem:[#allocation5 + $0x8e8] sm:$0xff]
        %v2740 = vld [vmem:[#allocation7 + $0x4] sm:$0xf]
        %v2742 = vlaneseq
        %v2743 = vshrl.u32 %v2742, 7
        %v2744 = vsub.s32 0, %v2743
        %v2745 = vrot.slane %v2740, %v2744
        %v2746 = vlaneseq
        %v2747 = vshrl.u32 %v2746, 7
        %v2748 = vsub.s32 1, %v2747
        %v2749 = vrot.slane %v2740, %v2748
        %v2750 = vlaneseq
        %v2751 = vshrl.u32 %v2750, 7
        %v2752 = vsub.s32 2, %v2751
        %v2753 = vrot.slane %v2740, %v2752
        %v2754 = vlaneseq
        %v2755 = vshrl.u32 %v2754, 7
        %v2756 = vsub.s32 3, %v2755
        %v2757 = vrot.slane %v2740, %v2756
        %v2858 = vunpack.c.l.b16 %v2644
        %v2859 = vunpack.c.h.b16 %v2644
        %v2860 = vunpack.c.l.b16 %v2645
        %v2861 = vunpack.c.h.b16 %v2645
        %v2862 = vunpack.c.l.b16 %v2646
        %v2863 = vunpack.c.h.b16 %v2646
        %v2864 = vunpack.c.l.b16 %v2647
        %v2865 = vunpack.c.h.b16 %v2647
        %v2866 = vunpack.c.l.b16 %v2648
        %v2867 = vunpack.c.h.b16 %v2648
        %v2868 = vunpack.c.l.b16 %v2649
        %v2869 = vunpack.c.h.b16 %v2649
        %v2870 = vunpack.c.l.b16 %v2650
        %v2871 = vunpack.c.h.b16 %v2650
        %v2872 = vunpack.c.l.b16 %v2651
        %v2873 = vunpack.c.h.b16 %v2651
        %v2874 = vunpack.c.l.b16 %v2652
        %v2875 = vunpack.c.h.b16 %v2652
        %v2876 = vunpack.c.l.b16 %v2653
        %v2877 = vunpack.c.h.b16 %v2653
        %v2878 = vunpack.c.l.b16 %v2654
        %v2879 = vunpack.c.h.b16 %v2654
        %v2880 = vunpack.c.l.b16 %v2655
        %v2881 = vunpack.c.h.b16 %v2655
        %v2882 = vunpack.c.l.b16 %v2656
        %v2883 = vunpack.c.h.b16 %v2656
        %v2884 = vunpack.c.l.b16 %v2657
        %v2885 = vunpack.c.h.b16 %v2657
        %v2886 = vunpack.c.l.b16 %v2658
        %v2887 = vunpack.c.h.b16 %v2658
        %v2888 = vunpack.c.l.b16 %v2659
        %v2889 = vunpack.c.h.b16 %v2659
        %v2890 = vunpack.c.l.b16 %v2660
        %v2891 = vunpack.c.h.b16 %v2660
        %v2892 = vunpack.c.l.b16 %v2661
        %v2893 = vunpack.c.h.b16 %v2661
        %v2894 = vunpack.c.l.b16 %v2662
        %v2895 = vunpack.c.h.b16 %v2662
        %v2896 = vunpack.c.l.b16 %v2663
        %v2897 = vunpack.c.h.b16 %v2663
        %v2898 = vunpack.c.l.b16 %v2664
        %v2899 = vunpack.c.h.b16 %v2664
        %v2900 = vunpack.c.l.b16 %v2665
        %v2901 = vunpack.c.h.b16 %v2665
        %v2902 = vunpack.c.l.b16 %v2666
        %v2903 = vunpack.c.h.b16 %v2666
        %v2904 = vunpack.c.l.b16 %v2667
        %v2905 = vunpack.c.h.b16 %v2667
        %v2906 = vunpack.c.l.b16 %v2668
        %v2907 = vunpack.c.h.b16 %v2668
        %v2908 = vunpack.c.l.b16 %v2669
        %v2909 = vunpack.c.h.b16 %v2669
        %v2910 = vunpack.c.l.b16 %v2670
        %v2911 = vunpack.c.h.b16 %v2670
        %v2912 = vunpack.c.l.b16 %v2671
        %v2913 = vunpack.c.h.b16 %v2671
        %v2914 = vunpack.c.l.b16 %v2672
        %v2915 = vunpack.c.h.b16 %v2672
        %v2916 = vunpack.c.l.b16 %v2673
        %v2917 = vunpack.c.h.b16 %v2673
        %v2918 = vunpack.c.l.b16 %v2674
        %v2919 = vunpack.c.h.b16 %v2674
        %v2920 = vunpack.c.l.b16 %v2675
        %v2921 = vunpack.c.h.b16 %v2675
        %v2922 = vunpack.c.l.b16 %v2676
        %v2923 = vunpack.c.h.b16 %v2676
        %v2924 = vunpack.c.l.b16 %v2677
        %v2925 = vunpack.c.h.b16 %v2677
        %v2926 = vunpack.c.l.b16 %v2678
        %v2927 = vunpack.c.h.b16 %v2678
        %v2928 = vunpack.c.l.b16 %v2679
        %v2929 = vunpack.c.h.b16 %v2679
        %v2930 = vunpack.c.l.b16 %v2680
        %v2931 = vunpack.c.h.b16 %v2680
        %v2932 = vunpack.c.l.b16 %v2681
        %v2933 = vunpack.c.h.b16 %v2681
        %v2934 = vunpack.c.l.b16 %v2682
        %v2935 = vunpack.c.h.b16 %v2682
        %v2936 = vunpack.c.l.b16 %v2683
        %v2937 = vunpack.c.h.b16 %v2683
        %v2938 = vunpack.c.l.b16 %v2684
        %v2939 = vunpack.c.h.b16 %v2684
        %v2940 = vunpack.c.l.b16 %v2685
        %v2941 = vunpack.c.h.b16 %v2685
        %v2942 = vunpack.c.l.b16 %v2686
        %v2943 = vunpack.c.h.b16 %v2686
        %v2944 = vunpack.c.l.b16 %v2687
        %v2945 = vunpack.c.h.b16 %v2687
        %v2946 = vunpack.c.l.b16 %v2688
        %v2947 = vunpack.c.h.b16 %v2688
        %v2948 = vunpack.c.l.b16 %v2689
        %v2949 = vunpack.c.h.b16 %v2689
        %v2950 = vunpack.c.l.b16 %v2690
        %v2951 = vunpack.c.h.b16 %v2690
        %v2952 = vunpack.c.l.b16 %v2691
        %v2953 = vunpack.c.h.b16 %v2691
        %v2954 = vunpack.c.l.b16 %v2692
        %v2955 = vunpack.c.h.b16 %v2692
        %v2956 = vunpack.c.l.b16 %v2693
        %v2957 = vunpack.c.h.b16 %v2693
        %v2958 = vunpack.c.l.b16 %v2694
        %v2959 = vunpack.c.h.b16 %v2694
        %v2960 = vunpack.c.l.b16 %v2695
        %v2961 = vunpack.c.h.b16 %v2695
        %v2962 = vunpack.c.l.b16 %v2696
        %v2963 = vunpack.c.h.b16 %v2696
        %v2964 = vunpack.c.l.b16 %v2697
        %v2965 = vunpack.c.h.b16 %v2697
        %v2966 = vunpack.c.l.b16 %v2698
        %v2967 = vunpack.c.h.b16 %v2698
        %v2968 = vunpack.c.l.b16 %v2699
        %v2969 = vunpack.c.h.b16 %v2699
        %v2970 = vunpack.c.l.b16 %v2700
        %v2971 = vunpack.c.h.b16 %v2700
        %v2972 = vunpack.c.l.b16 %v2701
        %v2973 = vunpack.c.h.b16 %v2701
        %v2974 = vunpack.c.l.b16 %v2702
        %v2975 = vunpack.c.h.b16 %v2702
        %v2976 = vunpack.c.l.b16 %v2703
        %v2977 = vunpack.c.h.b16 %v2703
        %v2978 = vunpack.c.l.b16 %v2704
        %v2979 = vunpack.c.h.b16 %v2704
        %v2980 = vunpack.c.l.b16 %v2705
        %v2981 = vunpack.c.h.b16 %v2705
        %v2982 = vunpack.c.l.b16 %v2706
        %v2983 = vunpack.c.h.b16 %v2706
        %v2984 = vunpack.c.l.b16 %v2707
        %v2985 = vunpack.c.h.b16 %v2707
        %v2986 = vunpack.c.l.b16 %v2708
        %v2987 = vunpack.c.h.b16 %v2708
        %v2988 = vunpack.c.l.b16 %v2709
        %v2989 = vunpack.c.h.b16 %v2709
        %v2990 = vunpack.c.l.b16 %v2710
        %v2991 = vunpack.c.h.b16 %v2710
        %v2992 = vunpack.c.l.b16 %v2711
        %v2993 = vunpack.c.h.b16 %v2711
        %v2994 = vunpack.c.l.b16 %v2712
        %v2995 = vunpack.c.h.b16 %v2712
        %v2996 = vunpack.c.l.b16 %v2713
        %v2997 = vunpack.c.h.b16 %v2713
        %v2998 = vunpack.c.l.b16 %v2714
        %v2999 = vunpack.c.h.b16 %v2714
        %v3000 = vunpack.c.l.b16 %v2715
        %v3001 = vunpack.c.h.b16 %v2715
        %v3002 = vunpack.c.l.b16 %v2716
        %v3003 = vunpack.c.h.b16 %v2716
        %v3004 = vunpack.c.l.b16 %v2717
        %v3005 = vunpack.c.h.b16 %v2717
        %v3006 = vunpack.c.l.b16 %v2718
        %v3007 = vunpack.c.h.b16 %v2718
        %v3008 = vunpack.c.l.b16 %v2719
        %v3009 = vunpack.c.h.b16 %v2719
        %v3010 = vunpack.c.l.b16 %v2720
        %v3011 = vunpack.c.h.b16 %v2720
        %v3012 = vunpack.c.l.b16 %v2721
        %v3013 = vunpack.c.h.b16 %v2721
        %v3014 = vunpack.c.l.b16 %v2722
        %v3015 = vunpack.c.h.b16 %v2722
        %v3016 = vunpack.c.l.b16 %v2723
        %v3017 = vunpack.c.h.b16 %v2723
        %v3018 = vunpack.c.l.b16 %v2724
        %v3019 = vunpack.c.h.b16 %v2724
        %v3020 = vunpack.c.l.b16 %v2725
        %v3021 = vunpack.c.h.b16 %v2725
        %v3022 = vunpack.c.l.b16 %v2726
        %v3023 = vunpack.c.h.b16 %v2726
        %v3024 = vunpack.c.l.b16 %v2727
        %v3025 = vunpack.c.h.b16 %v2727
        %v3026 = vunpack.c.l.b16 %v2728
        %v3027 = vunpack.c.h.b16 %v2728
        %v3028 = vunpack.c.l.b16 %v2729
        %v3029 = vunpack.c.h.b16 %v2729
        %v3030 = vunpack.c.l.b16 %v2730
        %v3031 = vunpack.c.h.b16 %v2730
        %v3032 = vunpack.c.l.b16 %v2731
        %v3033 = vunpack.c.h.b16 %v2731
        %v3034 = vunpack.c.l.b16 %v2732
        %v3035 = vunpack.c.h.b16 %v2732
        %v3036 = vunpack.c.l.b16 %v2733
        %v3037 = vunpack.c.h.b16 %v2733
        %v3038 = vunpack.c.l.b16 %v2734
        %v3039 = vunpack.c.h.b16 %v2734
        %v3040 = vunpack.c.l.b16 %v2735
        %v3041 = vunpack.c.h.b16 %v2735
        %v3042 = vunpack.c.l.b16 %v2736
        %v3043 = vunpack.c.h.b16 %v2736
        %v3044 = vunpack.c.l.b16 %v2737
        %v3045 = vunpack.c.h.b16 %v2737
        %v3046 = vunpack.c.l.b16 %v2738
        %v3047 = vunpack.c.h.b16 %v2738
        %v3048 = vunpack.c.l.b16 %v2739
        %v3049 = vunpack.c.h.b16 %v2739
        %v3050 = vpack.c.b16 %v2862, %v2858
        %v3051 = vpack.c.b16 %v2863, %v2859
        %v3052 = vpack.c.b16 %v2864, %v2860
        %v3053 = vpack.c.b16 %v2865, %v2861
        %v3054 = vpack.c.b16 %v2870, %v2866
        %v3055 = vpack.c.b16 %v2871, %v2867
        %v3056 = vpack.c.b16 %v2872, %v2868
        %v3057 = vpack.c.b16 %v2873, %v2869
        %v3058 = vpack.c.b16 %v2878, %v2874
        %v3059 = vpack.c.b16 %v2879, %v2875
        %v3060 = vpack.c.b16 %v2880, %v2876
        %v3061 = vpack.c.b16 %v2881, %v2877
        %v3062 = vpack.c.b16 %v2886, %v2882
        %v3063 = vpack.c.b16 %v2887, %v2883
        %v3064 = vpack.c.b16 %v2888, %v2884
        %v3065 = vpack.c.b16 %v2889, %v2885
        %v3066 = vpack.c.b16 %v2894, %v2890
        %v3067 = vpack.c.b16 %v2895, %v2891
        %v3068 = vpack.c.b16 %v2896, %v2892
        %v3069 = vpack.c.b16 %v2897, %v2893
        %v3070 = vpack.c.b16 %v2902, %v2898
        %v3071 = vpack.c.b16 %v2903, %v2899
        %v3072 = vpack.c.b16 %v2904, %v2900
        %v3073 = vpack.c.b16 %v2905, %v2901
        %v3074 = vpack.c.b16 %v2910, %v2906
        %v3075 = vpack.c.b16 %v2911, %v2907
        %v3076 = vpack.c.b16 %v2912, %v2908
        %v3077 = vpack.c.b16 %v2913, %v2909
        %v3078 = vpack.c.b16 %v2918, %v2914
        %v3079 = vpack.c.b16 %v2919, %v2915
        %v3080 = vpack.c.b16 %v2920, %v2916
        %v3081 = vpack.c.b16 %v2921, %v2917
        %v3082 = vpack.c.b16 %v2926, %v2922
        %v3083 = vpack.c.b16 %v2927, %v2923
        %v3084 = vpack.c.b16 %v2928, %v2924
        %v3085 = vpack.c.b16 %v2929, %v2925
        %v3086 = vpack.c.b16 %v2934, %v2930
        %v3087 = vpack.c.b16 %v2935, %v2931
        %v3088 = vpack.c.b16 %v2936, %v2932
        %v3089 = vpack.c.b16 %v2937, %v2933
        %v3090 = vpack.c.b16 %v2942, %v2938
        %v3091 = vpack.c.b16 %v2943, %v2939
        %v3092 = vpack.c.b16 %v2944, %v2940
        %v3093 = vpack.c.b16 %v2945, %v2941
        %v3094 = vpack.c.b16 %v2950, %v2946
        %v3095 = vpack.c.b16 %v2951, %v2947
        %v3096 = vpack.c.b16 %v2952, %v2948
        %v3097 = vpack.c.b16 %v2953, %v2949
        %v3098 = vpack.c.b16 %v2958, %v2954
        %v3099 = vpack.c.b16 %v2959, %v2955
        %v3100 = vpack.c.b16 %v2960, %v2956
        %v3101 = vpack.c.b16 %v2961, %v2957
        %v3102 = vpack.c.b16 %v2966, %v2962
        %v3103 = vpack.c.b16 %v2967, %v2963
        %v3104 = vpack.c.b16 %v2968, %v2964
        %v3105 = vpack.c.b16 %v2969, %v2965
        %v3106 = vpack.c.b16 %v2974, %v2970
        %v3107 = vpack.c.b16 %v2975, %v2971
        %v3108 = vpack.c.b16 %v2976, %v2972
        %v3109 = vpack.c.b16 %v2977, %v2973
        %v3110 = vpack.c.b16 %v2982, %v2978
        %v3111 = vpack.c.b16 %v2983, %v2979
        %v3112 = vpack.c.b16 %v2984, %v2980
        %v3113 = vpack.c.b16 %v2985, %v2981
        %v3114 = vpack.c.b16 %v2990, %v2986
        %v3115 = vpack.c.b16 %v2991, %v2987
        %v3116 = vpack.c.b16 %v2992, %v2988
        %v3117 = vpack.c.b16 %v2993, %v2989
        %v3118 = vpack.c.b16 %v2998, %v2994
        %v3119 = vpack.c.b16 %v2999, %v2995
        %v3120 = vpack.c.b16 %v3000, %v2996
        %v3121 = vpack.c.b16 %v3001, %v2997
        %v3122 = vpack.c.b16 %v3006, %v3002
        %v3123 = vpack.c.b16 %v3007, %v3003
        %v3124 = vpack.c.b16 %v3008, %v3004
        %v3125 = vpack.c.b16 %v3009, %v3005
        %v3126 = vpack.c.b16 %v3014, %v3010
        %v3127 = vpack.c.b16 %v3015, %v3011
        %v3128 = vpack.c.b16 %v3016, %v3012
        %v3129 = vpack.c.b16 %v3017, %v3013
        %v3130 = vpack.c.b16 %v3022, %v3018
        %v3131 = vpack.c.b16 %v3023, %v3019
        %v3132 = vpack.c.b16 %v3024, %v3020
        %v3133 = vpack.c.b16 %v3025, %v3021
        %v3134 = vpack.c.b16 %v3030, %v3026
        %v3135 = vpack.c.b16 %v3031, %v3027
        %v3136 = vpack.c.b16 %v3032, %v3028
        %v3137 = vpack.c.b16 %v3033, %v3029
        %v3138 = vpack.c.b16 %v3038, %v3034
        %v3139 = vpack.c.b16 %v3039, %v3035
        %v3140 = vpack.c.b16 %v3040, %v3036
        %v3141 = vpack.c.b16 %v3041, %v3037
        %v3142 = vpack.c.b16 %v3046, %v3042
        %v3143 = vpack.c.b16 %v3047, %v3043
        %v3144 = vpack.c.b16 %v3048, %v3044
        %v3145 = vpack.c.b16 %v3049, %v3045
        %3242 = vmatprep.subr.bf16.mxu0 %v3051
        %3243 = vmatpush1.bf16.msra.mxu0 %v3050
        %3244 = vmatprep.subr.bf16.mxu0 %v3055
        %3245 = vmatpush1.bf16.msra.mxu0 %v3054
        %3246 = vmatprep.subr.bf16.mxu0 %v3059
        %3247 = vmatpush1.bf16.msra.mxu0 %v3058
        %3248 = vmatprep.subr.bf16.mxu0 %v3063
        %3249 = vmatpush1.bf16.msra.mxu0 %v3062
        %3250 = vmatprep.subr.bf16.mxu0 %v3067
        %3251 = vmatpush1.bf16.msra.mxu0 %v3066
        %3252 = vmatprep.subr.bf16.mxu0 %v3071
        %3253 = vmatpush1.bf16.msra.mxu0 %v3070
        %3254 = vmatprep.subr.bf16.mxu0 %v3075
        %3255 = vmatpush1.bf16.msra.mxu0 %v3074
        %3256 = vmatprep.subr.bf16.mxu0 %v3079
        %3257 = vmatpush1.bf16.msra.mxu0 %v3078
        %3258 = vmatprep.subr.bf16.mxu0 %v3083
        %3259 = vmatpush1.bf16.msra.mxu0 %v3082
        %3260 = vmatprep.subr.bf16.mxu0 %v3087
        %3261 = vmatpush1.bf16.msra.mxu0 %v3086
        %3262 = vmatprep.subr.bf16.mxu0 %v3091
        %3263 = vmatpush1.bf16.msra.mxu0 %v3090
        %3264 = vmatprep.subr.bf16.mxu0 %v3095
        %3265 = vmatpush1.bf16.msra.mxu0 %v3094
        %3266 = vmatprep.subr.bf16.mxu0 %v3099
        %3267 = vmatpush1.bf16.msra.mxu0 %v3098
        %3268 = vmatprep.subr.bf16.mxu0 %v3103
        %3269 = vmatpush1.bf16.msra.mxu0 %v3102
        %3270 = vmatprep.subr.bf16.mxu0 %v3107
        %3271 = vmatpush1.bf16.msra.mxu0 %v3106
        %3272 = vmatprep.subr.bf16.mxu0 %v3111
        %3273 = vmatpush1.bf16.msra.mxu0 %v3110
        %3274 = vmatprep.mubr.bf16.mxu0 %v350
        %3275 = vmatmul.mubr.bf16.gmra.mrb[0].mxu0 %v349
        %v3276 = vpop.f32.mrb[0].mxu0
        %v3277 = vadd.f32 %v2745, %v3276
        %v3278 = vpop.f32.mrb[0].mxu0
        %v3279 = vadd.f32 %v2749, %v3278
        %v3280 = vpop.f32.mrb[0].mxu0
        %v3281 = vadd.f32 %v2745, %v3280
        %v3282 = vpop.f32.mrb[0].mxu0
        %v3283 = vadd.f32 %v2749, %v3282
        %3284 = vmatprep.mubr.bf16.mxu0 %v353
        %3285 = vmatmul.mubr.bf16.gmra.mrb[0].mxu0 %v352
        %v3286 = vpop.f32.mrb[0].mxu0
        %v3287 = vadd.f32 %v2745, %v3286
        %v3288 = vpop.f32.mrb[0].mxu0
        %v3289 = vadd.f32 %v2749, %v3288
        %v3290 = vpop.f32.mrb[0].mxu0
        %v3291 = vadd.f32 %v2745, %v3290
        %v3292 = vpop.f32.mrb[0].mxu0
        %v3293 = vadd.f32 %v2749, %v3292
        %3294 = vmatprep.mubr.bf16.mxu0 %v356
        %3295 = vmatmul.mubr.bf16.gmra.mrb[0].mxu0 %v355
        %v3296 = vpop.f32.mrb[0].mxu0
        %v3297 = vadd.f32 %v2745, %v3296
        %v3298 = vpop.f32.mrb[0].mxu0
        %v3299 = vadd.f32 %v2749, %v3298
        %v3300 = vpop.f32.mrb[0].mxu0
        %v3301 = vadd.f32 %v2745, %v3300
        %v3302 = vpop.f32.mrb[0].mxu0
        %v3303 = vadd.f32 %v2749, %v3302
        %3304 = vmatprep.mubr.bf16.mxu0 %v359
        %3305 = vmatmul.mubr.bf16.gmra.mrb[0].mxu0 %v358
        %v3306 = vpop.f32.mrb[0].mxu0
        %v3307 = vadd.f32 %v2745, %v3306
        %v3308 = vpop.f32.mrb[0].mxu0
        %v3309 = vadd.f32 %v2749, %v3308
        %v3310 = vpop.f32.mrb[0].mxu0
        %v3311 = vadd.f32 %v2745, %v3310
        %v3312 = vpop.f32.mrb[0].mxu0
        %v3313 = vadd.f32 %v2749, %v3312
        %3314 = vmatprep.mubr.bf16.mxu0 %v362
        %3315 = vmatmul.mubr.bf16.gmra.mrb[0].mxu0 %v361
        %v3316 = vpop.f32.mrb[0].mxu0
        %v3317 = vadd.f32 %v2745, %v3316
        %v3318 = vpop.f32.mrb[0].mxu0
        %v3319 = vadd.f32 %v2749, %v3318
        %v3320 = vpop.f32.mrb[0].mxu0
        %v3321 = vadd.f32 %v2745, %v3320
        %v3322 = vpop.f32.mrb[0].mxu0
        %v3323 = vadd.f32 %v2749, %v3322
        %3324 = vmatprep.mubr.bf16.mxu0 %v365
        %3325 = vmatmul.mubr.bf16.gmra.mrb[0].mxu0 %v364
        %v3326 = vpop.f32.mrb[0].mxu0
        %v3327 = vadd.f32 %v2745, %v3326
        %v3328 = vpop.f32.mrb[0].mxu0
        %v3329 = vadd.f32 %v2749, %v3328
        %v3330 = vpop.f32.mrb[0].mxu0
        %v3331 = vadd.f32 %v2745, %v3330
        %v3332 = vpop.f32.mrb[0].mxu0
        %v3333 = vadd.f32 %v2749, %v3332
        %3334 = vmatprep.mubr.bf16.mxu0 %v368
        %3335 = vmatmul.mubr.bf16.gmra.mrb[0].mxu0 %v367
        %v3336 = vpop.f32.mrb[0].mxu0
        %v3337 = vadd.f32 %v2745, %v3336
        %v3338 = vpop.f32.mrb[0].mxu0
        %v3339 = vadd.f32 %v2749, %v3338
        %v3340 = vpop.f32.mrb[0].mxu0
        %v3341 = vadd.f32 %v2745, %v3340
        %v3342 = vpop.f32.mrb[0].mxu0
        %v3343 = vadd.f32 %v2749, %v3342
        %3344 = vmatprep.mubr.bf16.mxu0 %v371
        %3345 = vmatmul.mubr.bf16.gmra.mrb[0].mxu0 %v370
        %v3346 = vpop.f32.mrb[0].mxu0
        %v3347 = vadd.f32 %v2745, %v3346
        %v3348 = vpop.f32.mrb[0].mxu0
        %v3349 = vadd.f32 %v2749, %v3348
        %v3350 = vpop.f32.mrb[0].mxu0
        %v3351 = vadd.f32 %v2745, %v3350
        %v3352 = vpop.f32.mrb[0].mxu0
        %v3353 = vadd.f32 %v2749, %v3352
        %3354 = vdwg.mxu0
        %3355 = vmatprep.subr.bf16.mxu0 %v3115
        %3356 = vmatpush1.bf16.msra.mxu0 %v3114
        %3357 = vmatprep.subr.bf16.mxu0 %v3119
        %3358 = vmatpush1.bf16.msra.mxu0 %v3118
        %3359 = vmatprep.subr.bf16.mxu0 %v3123
        %3360 = vmatpush1.bf16.msra.mxu0 %v3122
        %3361 = vmatprep.subr.bf16.mxu0 %v3127
        %3362 = vmatpush1.bf16.msra.mxu0 %v3126
        %3363 = vmatprep.subr.bf16.mxu0 %v3131
        %3364 = vmatpush1.bf16.msra.mxu0 %v3130
        %3365 = vmatprep.subr.bf16.mxu0 %v3135
        %3366 = vmatpush1.bf16.msra.mxu0 %v3134
        %3367 = vmatprep.subr.bf16.mxu0 %v3139
        %3368 = vmatpush1.bf16.msra.mxu0 %v3138
        %3369 = vmatprep.subr.bf16.mxu0 %v3143
        %3370 = vmatpush1.bf16.msra.mxu0 %v3142
        %3371 = vmatprep.subr.bf16.mxu0 0
        %3372 = vmatpush1.bf16.msra.mxu0 0
        %3373 = vmatprep.subr.bf16.mxu0 0
        %3374 = vmatpush1.bf16.msra.mxu0 0
        %3375 = vmatprep.subr.bf16.mxu0 0
        %3376 = vmatpush1.bf16.msra.mxu0 0
        %3377 = vmatprep.subr.bf16.mxu0 0
        %3378 = vmatpush1.bf16.msra.mxu0 0
        %3379 = vmatprep.subr.bf16.mxu0 0
        %3380 = vmatpush1.bf16.msra.mxu0 0
        %3381 = vmatprep.subr.bf16.mxu0 0
        %3382 = vmatpush1.bf16.msra.mxu0 0
        %3383 = vmatprep.subr.bf16.mxu0 0
        %3384 = vmatpush1.bf16.msra.mxu0 0
        %3385 = vmatprep.subr.bf16.mxu0 0
        %3386 = vmatpush1.bf16.msra.mxu0 0
        %3387 = vmatprep.mubr.bf16.mxu0 0
        %3388 = vmatmul.mubr.bf16.gmra.mrb[0].mxu0 %v351
        %v3389 = vpop.f32.mrb[0].mxu0
        %v3390 = vadd.f32 %v3277, %v3389
        %v3391 = vpop.f32.mrb[0].mxu0
        %v3392 = vadd.f32 %v3279, %v3391
        %v3393 = vpop.f32.mrb[0].mxu0
        %v3394 = vadd.f32 %v3281, %v3393
        %v3395 = vpop.f32.mrb[0].mxu0
        %v3396 = vadd.f32 %v3283, %v3395
        %3397 = vmatprep.mubr.bf16.mxu0 0
        %3398 = vmatmul.mubr.bf16.gmra.mrb[0].mxu0 %v354
        %v3399 = vpop.f32.mrb[0].mxu0
        %v3400 = vadd.f32 %v3287, %v3399
        %v3401 = vpop.f32.mrb[0].mxu0
        %v3402 = vadd.f32 %v3289, %v3401
        %v3403 = vpop.f32.mrb[0].mxu0
        %v3404 = vadd.f32 %v3291, %v3403
        %v3405 = vpop.f32.mrb[0].mxu0
        %v3406 = vadd.f32 %v3293, %v3405
        %3407 = vmatprep.mubr.bf16.mxu0 0
        %3408 = vmatmul.mubr.bf16.gmra.mrb[0].mxu0 %v357
        %v3409 = vpop.f32.mrb[0].mxu0
        %v3410 = vadd.f32 %v3297, %v3409
        %v3411 = vpop.f32.mrb[0].mxu0
        %v3412 = vadd.f32 %v3299, %v3411
        %v3413 = vpop.f32.mrb[0].mxu0
        %v3414 = vadd.f32 %v3301, %v3413
        %v3415 = vpop.f32.mrb[0].mxu0
        %v3416 = vadd.f32 %v3303, %v3415
        %3417 = vmatprep.mubr.bf16.mxu0 0
        %3418 = vmatmul.mubr.bf16.gmra.mrb[0].mxu0 %v360
        %v3419 = vpop.f32.mrb[0].mxu0
        %v3420 = vadd.f32 %v3307, %v3419
        %v3421 = vpop.f32.mrb[0].mxu0
        %v3422 = vadd.f32 %v3309, %v3421
        %v3423 = vpop.f32.mrb[0].mxu0
        %v3424 = vadd.f32 %v3311, %v3423
        %v3425 = vpop.f32.mrb[0].mxu0
        %v3426 = vadd.f32 %v3313, %v3425
        %3427 = vmatprep.mubr.bf16.mxu0 0
        %3428 = vmatmul.mubr.bf16.gmra.mrb[0].mxu0 %v363
        %v3429 = vpop.f32.mrb[0].mxu0
        %v3430 = vadd.f32 %v3317, %v3429
        %v3431 = vpop.f32.mrb[0].mxu0
        %v3432 = vadd.f32 %v3319, %v3431
        %v3433 = vpop.f32.mrb[0].mxu0
        %v3434 = vadd.f32 %v3321, %v3433
        %v3435 = vpop.f32.mrb[0].mxu0
        %v3436 = vadd.f32 %v3323, %v3435
        %3437 = vmatprep.mubr.bf16.mxu0 0
        %3438 = vmatmul.mubr.bf16.gmra.mrb[0].mxu0 %v366
        %v3439 = vpop.f32.mrb[0].mxu0
        %v3440 = vadd.f32 %v3327, %v3439
        %v3441 = vpop.f32.mrb[0].mxu0
        %v3442 = vadd.f32 %v3329, %v3441
        %v3443 = vpop.f32.mrb[0].mxu0
        %v3444 = vadd.f32 %v3331, %v3443
        %v3445 = vpop.f32.mrb[0].mxu0
        %v3446 = vadd.f32 %v3333, %v3445
        %3447 = vmatprep.mubr.bf16.mxu0 0
        %3448 = vmatmul.mubr.bf16.gmra.mrb[0].mxu0 %v369
        %v3449 = vpop.f32.mrb[0].mxu0
        %v3450 = vadd.f32 %v3337, %v3449
        %v3451 = vpop.f32.mrb[0].mxu0
        %v3452 = vadd.f32 %v3339, %v3451
        %v3453 = vpop.f32.mrb[0].mxu0
        %v3454 = vadd.f32 %v3341, %v3453
        %v3455 = vpop.f32.mrb[0].mxu0
        %v3456 = vadd.f32 %v3343, %v3455
        %3457 = vmatprep.mubr.bf16.mxu0 0
        %3458 = vmatmul.mubr.bf16.gmra.mrb[0].mxu0 %v372
        %v3459 = vpop.f32.mrb[0].mxu0
        %v3460 = vadd.f32 %v3347, %v3459
        %v3461 = vpop.f32.mrb[0].mxu0
        %v3462 = vadd.f32 %v3349, %v3461
        %v3463 = vpop.f32.mrb[0].mxu0
        %v3464 = vadd.f32 %v3351, %v3463
        %v3465 = vpop.f32.mrb[0].mxu0
        %v3466 = vadd.f32 %v3353, %v3465
        %3467 = vdwg.mxu0
        %3468 = vmatprep.subr.bf16.mxu0 %v3053
        %3469 = vmatpush1.bf16.msra.mxu0 %v3052
        %3470 = vmatprep.subr.bf16.mxu0 %v3057
        %3471 = vmatpush1.bf16.msra.mxu0 %v3056
        %3472 = vmatprep.subr.bf16.mxu0 %v3061
        %3473 = vmatpush1.bf16.msra.mxu0 %v3060
        %3474 = vmatprep.subr.bf16.mxu0 %v3065
        %3475 = vmatpush1.bf16.msra.mxu0 %v3064
        %3476 = vmatprep.subr.bf16.mxu0 %v3069
        %3477 = vmatpush1.bf16.msra.mxu0 %v3068
        %3478 = vmatprep.subr.bf16.mxu0 %v3073
        %3479 = vmatpush1.bf16.msra.mxu0 %v3072
        %3480 = vmatprep.subr.bf16.mxu0 %v3077
        %3481 = vmatpush1.bf16.msra.mxu0 %v3076
        %3482 = vmatprep.subr.bf16.mxu0 %v3081
        %3483 = vmatpush1.bf16.msra.mxu0 %v3080
        %3484 = vmatprep.subr.bf16.mxu0 %v3085
        %3485 = vmatpush1.bf16.msra.mxu0 %v3084
        %3486 = vmatprep.subr.bf16.mxu0 %v3089
        %3487 = vmatpush1.bf16.msra.mxu0 %v3088
        %3488 = vmatprep.subr.bf16.mxu0 %v3093
        %3489 = vmatpush1.bf16.msra.mxu0 %v3092
        %3490 = vmatprep.subr.bf16.mxu0 %v3097
        %3491 = vmatpush1.bf16.msra.mxu0 %v3096
        %3492 = vmatprep.subr.bf16.mxu0 %v3101
        %3493 = vmatpush1.bf16.msra.mxu0 %v3100
        %3494 = vmatprep.subr.bf16.mxu0 %v3105
        %3495 = vmatpush1.bf16.msra.mxu0 %v3104
        %3496 = vmatprep.subr.bf16.mxu0 %v3109
        %3497 = vmatpush1.bf16.msra.mxu0 %v3108
        %3498 = vmatprep.subr.bf16.mxu0 %v3113
        %3499 = vmatpush1.bf16.msra.mxu0 %v3112
        %3500 = vmatprep.mubr.bf16.mxu0 %v350
        %3501 = vmatmul.mubr.bf16.gmra.mrb[0].mxu0 %v349
        %v3502 = vpop.f32.mrb[0].mxu0
        %v3503 = vadd.f32 %v2753, %v3502
        %v3504 = vpop.f32.mrb[0].mxu0
        %v3505 = vadd.f32 %v2757, %v3504
        %v3506 = vpop.f32.mrb[0].mxu0
        %v3507 = vadd.f32 %v2753, %v3506
        %v3508 = vpop.f32.mrb[0].mxu0
        %v3509 = vadd.f32 %v2757, %v3508
        %3510 = vmatprep.mubr.bf16.mxu0 %v353
        %3511 = vmatmul.mubr.bf16.gmra.mrb[0].mxu0 %v352
        %v3512 = vpop.f32.mrb[0].mxu0
        %v3513 = vadd.f32 %v2753, %v3512
        %v3514 = vpop.f32.mrb[0].mxu0
        %v3515 = vadd.f32 %v2757, %v3514
        %v3516 = vpop.f32.mrb[0].mxu0
        %v3517 = vadd.f32 %v2753, %v3516
        %v3518 = vpop.f32.mrb[0].mxu0
        %v3519 = vadd.f32 %v2757, %v3518
        %3520 = vmatprep.mubr.bf16.mxu0 %v356
        %3521 = vmatmul.mubr.bf16.gmra.mrb[0].mxu0 %v355
        %v3522 = vpop.f32.mrb[0].mxu0
        %v3523 = vadd.f32 %v2753, %v3522
        %v3524 = vpop.f32.mrb[0].mxu0
        %v3525 = vadd.f32 %v2757, %v3524
        %v3526 = vpop.f32.mrb[0].mxu0
        %v3527 = vadd.f32 %v2753, %v3526
        %v3528 = vpop.f32.mrb[0].mxu0
        %v3529 = vadd.f32 %v2757, %v3528
        %3530 = vmatprep.mubr.bf16.mxu0 %v359
        %3531 = vmatmul.mubr.bf16.gmra.mrb[0].mxu0 %v358
        %v3532 = vpop.f32.mrb[0].mxu0
        %v3533 = vadd.f32 %v2753, %v3532
        %v3534 = vpop.f32.mrb[0].mxu0
        %v3535 = vadd.f32 %v2757, %v3534
        %v3536 = vpop.f32.mrb[0].mxu0
        %v3537 = vadd.f32 %v2753, %v3536
        %v3538 = vpop.f32.mrb[0].mxu0
        %v3539 = vadd.f32 %v2757, %v3538
        %3540 = vmatprep.mubr.bf16.mxu0 %v362
        %3541 = vmatmul.mubr.bf16.gmra.mrb[0].mxu0 %v361
        %v3542 = vpop.f32.mrb[0].mxu0
        %v3543 = vadd.f32 %v2753, %v3542
        %v3544 = vpop.f32.mrb[0].mxu0
        %v3545 = vadd.f32 %v2757, %v3544
        %v3546 = vpop.f32.mrb[0].mxu0
        %v3547 = vadd.f32 %v2753, %v3546
        %v3548 = vpop.f32.mrb[0].mxu0
        %v3549 = vadd.f32 %v2757, %v3548
        %3550 = vmatprep.mubr.bf16.mxu0 %v365
        %3551 = vmatmul.mubr.bf16.gmra.mrb[0].mxu0 %v364
        %v3552 = vpop.f32.mrb[0].mxu0
        %v3553 = vadd.f32 %v2753, %v3552
        %v3554 = vpop.f32.mrb[0].mxu0
        %v3555 = vadd.f32 %v2757, %v3554
        %v3556 = vpop.f32.mrb[0].mxu0
        %v3557 = vadd.f32 %v2753, %v3556
        %v3558 = vpop.f32.mrb[0].mxu0
        %v3559 = vadd.f32 %v2757, %v3558
        %3560 = vmatprep.mubr.bf16.mxu0 %v368
        %3561 = vmatmul.mubr.bf16.gmra.mrb[0].mxu0 %v367
        %v3562 = vpop.f32.mrb[0].mxu0
        %v3563 = vadd.f32 %v2753, %v3562
        %v3564 = vpop.f32.mrb[0].mxu0
        %v3565 = vadd.f32 %v2757, %v3564
        %v3566 = vpop.f32.mrb[0].mxu0
        %v3567 = vadd.f32 %v2753, %v3566
        %v3568 = vpop.f32.mrb[0].mxu0
        %v3569 = vadd.f32 %v2757, %v3568
        %3570 = vmatprep.mubr.bf16.mxu0 %v371
        %3571 = vmatmul.mubr.bf16.gmra.mrb[0].mxu0 %v370
        %v3572 = vpop.f32.mrb[0].mxu0
        %v3573 = vadd.f32 %v2753, %v3572
        %v3574 = vpop.f32.mrb[0].mxu0
        %v3575 = vadd.f32 %v2757, %v3574
        %v3576 = vpop.f32.mrb[0].mxu0
        %v3577 = vadd.f32 %v2753, %v3576
        %v3578 = vpop.f32.mrb[0].mxu0
        %v3579 = vadd.f32 %v2757, %v3578
        %3580 = vdwg.mxu0
        %3581 = vmatprep.subr.bf16.mxu0 %v3117
        %3582 = vmatpush1.bf16.msra.mxu0 %v3116
        %3583 = vmatprep.subr.bf16.mxu0 %v3121
        %3584 = vmatpush1.bf16.msra.mxu0 %v3120
        %3585 = vmatprep.subr.bf16.mxu0 %v3125
        %3586 = vmatpush1.bf16.msra.mxu0 %v3124
        %3587 = vmatprep.subr.bf16.mxu0 %v3129
        %3588 = vmatpush1.bf16.msra.mxu0 %v3128
        %3589 = vmatprep.subr.bf16.mxu0 %v3133
        %3590 = vmatpush1.bf16.msra.mxu0 %v3132
        %3591 = vmatprep.subr.bf16.mxu0 %v3137
        %3592 = vmatpush1.bf16.msra.mxu0 %v3136
        %3593 = vmatprep.subr.bf16.mxu0 %v3141
        %3594 = vmatpush1.bf16.msra.mxu0 %v3140
        %3595 = vmatprep.subr.bf16.mxu0 %v3145
        %3596 = vmatpush1.bf16.msra.mxu0 %v3144
        %3597 = vmatprep.subr.bf16.mxu0 0
        %3598 = vmatpush1.bf16.msra.mxu0 0
        %3599 = vmatprep.subr.bf16.mxu0 0
        %3600 = vmatpush1.bf16.msra.mxu0 0
        %3601 = vmatprep.subr.bf16.mxu0 0
        %3602 = vmatpush1.bf16.msra.mxu0 0
        %3603 = vmatprep.subr.bf16.mxu0 0
        %3604 = vmatpush1.bf16.msra.mxu0 0
        %3605 = vmatprep.subr.bf16.mxu0 0
        %3606 = vmatpush1.bf16.msra.mxu0 0
        %3607 = vmatprep.subr.bf16.mxu0 0
        %3608 = vmatpush1.bf16.msra.mxu0 0
        %3609 = vmatprep.subr.bf16.mxu0 0
        %3610 = vmatpush1.bf16.msra.mxu0 0
        %3611 = vmatprep.subr.bf16.mxu0 0
        %3612 = vmatpush1.bf16.msra.mxu0 0
        %3613 = vmatprep.mubr.bf16.mxu0 0
        %3614 = vmatmul.mubr.bf16.gmra.mrb[0].mxu0 %v351
        %v3615 = vpop.f32.mrb[0].mxu0
        %v3616 = vadd.f32 %v3503, %v3615
        %v3617 = vpop.f32.mrb[0].mxu0
        %v3618 = vadd.f32 %v3505, %v3617
        %v3619 = vpop.f32.mrb[0].mxu0
        %v3620 = vadd.f32 %v3507, %v3619
        %v3621 = vpop.f32.mrb[0].mxu0
        %v3622 = vadd.f32 %v3509, %v3621
        %3623 = vmatprep.mubr.bf16.mxu0 0
        %3624 = vmatmul.mubr.bf16.gmra.mrb[0].mxu0 %v354
        %v3625 = vpop.f32.mrb[0].mxu0
        %v3626 = vadd.f32 %v3513, %v3625
        %v3627 = vpop.f32.mrb[0].mxu0
        %v3628 = vadd.f32 %v3515, %v3627
        %v3629 = vpop.f32.mrb[0].mxu0
        %v3630 = vadd.f32 %v3517, %v3629
        %v3631 = vpop.f32.mrb[0].mxu0
        %v3632 = vadd.f32 %v3519, %v3631
        %3633 = vmatprep.mubr.bf16.mxu0 0
        %3634 = vmatmul.mubr.bf16.gmra.mrb[0].mxu0 %v357
        %v3635 = vpop.f32.mrb[0].mxu0
        %v3636 = vadd.f32 %v3523, %v3635
        %v3637 = vpop.f32.mrb[0].mxu0
        %v3638 = vadd.f32 %v3525, %v3637
        %v3639 = vpop.f32.mrb[0].mxu0
        %v3640 = vadd.f32 %v3527, %v3639
        %v3641 = vpop.f32.mrb[0].mxu0
        %v3642 = vadd.f32 %v3529, %v3641
        %3643 = vmatprep.mubr.bf16.mxu0 0
        %3644 = vmatmul.mubr.bf16.gmra.mrb[0].mxu0 %v360
        %v3645 = vpop.f32.mrb[0].mxu0
        %v3646 = vadd.f32 %v3533, %v3645
        %v3647 = vpop.f32.mrb[0].mxu0
        %v3648 = vadd.f32 %v3535, %v3647
        %v3649 = vpop.f32.mrb[0].mxu0
        %v3650 = vadd.f32 %v3537, %v3649
        %v3651 = vpop.f32.mrb[0].mxu0
        %v3652 = vadd.f32 %v3539, %v3651
        %3653 = vmatprep.mubr.bf16.mxu0 0
        %3654 = vmatmul.mubr.bf16.gmra.mrb[0].mxu0 %v363
        %v3655 = vpop.f32.mrb[0].mxu0
        %v3656 = vadd.f32 %v3543, %v3655
        %v3657 = vpop.f32.mrb[0].mxu0
        %v3658 = vadd.f32 %v3545, %v3657
        %v3659 = vpop.f32.mrb[0].mxu0
        %v3660 = vadd.f32 %v3547, %v3659
        %v3661 = vpop.f32.mrb[0].mxu0
        %v3662 = vadd.f32 %v3549, %v3661
        %3663 = vmatprep.mubr.bf16.mxu0 0
        %3664 = vmatmul.mubr.bf16.gmra.mrb[0].mxu0 %v366
        %v3665 = vpop.f32.mrb[0].mxu0
        %v3666 = vadd.f32 %v3553, %v3665
        %v3667 = vpop.f32.mrb[0].mxu0
        %v3668 = vadd.f32 %v3555, %v3667
        %v3669 = vpop.f32.mrb[0].mxu0
        %v3670 = vadd.f32 %v3557, %v3669
        %v3671 = vpop.f32.mrb[0].mxu0
        %v3672 = vadd.f32 %v3559, %v3671
        %3673 = vmatprep.mubr.bf16.mxu0 0
        %3674 = vmatmul.mubr.bf16.gmra.mrb[0].mxu0 %v369
        %v3675 = vpop.f32.mrb[0].mxu0
        %v3676 = vadd.f32 %v3563, %v3675
        %v3677 = vpop.f32.mrb[0].mxu0
        %v3678 = vadd.f32 %v3565, %v3677
        %v3679 = vpop.f32.mrb[0].mxu0
        %v3680 = vadd.f32 %v3567, %v3679
        %v3681 = vpop.f32.mrb[0].mxu0
        %v3682 = vadd.f32 %v3569, %v3681
        %3683 = vmatprep.mubr.bf16.mxu0 0
        %3684 = vmatmul.mubr.bf16.gmra.mrb[0].mxu0 %v372
        %v3685 = vpop.f32.mrb[0].mxu0
        %v3686 = vadd.f32 %v3573, %v3685
        %v3687 = vpop.f32.mrb[0].mxu0
        %v3688 = vadd.f32 %v3575, %v3687
        %v3689 = vpop.f32.mrb[0].mxu0
        %v3690 = vadd.f32 %v3577, %v3689
        %v3691 = vpop.f32.mrb[0].mxu0
        %v3692 = vadd.f32 %v3579, %v3691
        %3693 = vdwg.mxu0
        %v3694 = vmax.f32 %v3390, 0.0
        %v3695 = vmax.f32 %v3392, 0.0
        %v3696 = vmax.f32 %v3616, 0.0
        %v3697 = vmax.f32 %v3618, 0.0
        %v3698 = vmax.f32 %v3394, 0.0
        %v3699 = vmax.f32 %v3396, 0.0
        %v3700 = vmax.f32 %v3620, 0.0
        %v3701 = vmax.f32 %v3622, 0.0
        %v3702 = vmax.f32 %v3400, 0.0
        %v3703 = vmax.f32 %v3402, 0.0
        %v3704 = vmax.f32 %v3626, 0.0
        %v3705 = vmax.f32 %v3628, 0.0
        %v3706 = vmax.f32 %v3404, 0.0
        %v3707 = vmax.f32 %v3406, 0.0
        %v3708 = vmax.f32 %v3630, 0.0
        %v3709 = vmax.f32 %v3632, 0.0
        %v3710 = vmax.f32 %v3410, 0.0
        %v3711 = vmax.f32 %v3412, 0.0
        %v3712 = vmax.f32 %v3636, 0.0
        %v3713 = vmax.f32 %v3638, 0.0
        %v3714 = vmax.f32 %v3414, 0.0
        %v3715 = vmax.f32 %v3416, 0.0
        %v3716 = vmax.f32 %v3640, 0.0
        %v3717 = vmax.f32 %v3642, 0.0
        %v3718 = vmax.f32 %v3420, 0.0
        %v3719 = vmax.f32 %v3422, 0.0
        %v3720 = vmax.f32 %v3646, 0.0
        %v3721 = vmax.f32 %v3648, 0.0
        %v3722 = vmax.f32 %v3424, 0.0
        %v3723 = vmax.f32 %v3426, 0.0
        %v3724 = vmax.f32 %v3650, 0.0
        %v3725 = vmax.f32 %v3652, 0.0
        %v3726 = vmax.f32 %v3430, 0.0
        %v3727 = vmax.f32 %v3432, 0.0
        %v3728 = vmax.f32 %v3656, 0.0
        %v3729 = vmax.f32 %v3658, 0.0
        %v3730 = vmax.f32 %v3434, 0.0
        %v3731 = vmax.f32 %v3436, 0.0
        %v3732 = vmax.f32 %v3660, 0.0
        %v3733 = vmax.f32 %v3662, 0.0
        %v3734 = vmax.f32 %v3440, 0.0
        %v3735 = vmax.f32 %v3442, 0.0
        %v3736 = vmax.f32 %v3666, 0.0
        %v3737 = vmax.f32 %v3668, 0.0
        %v3738 = vmax.f32 %v3444, 0.0
        %v3739 = vmax.f32 %v3446, 0.0
        %v3740 = vmax.f32 %v3670, 0.0
        %v3741 = vmax.f32 %v3672, 0.0
        %v3742 = vmax.f32 %v3450, 0.0
        %v3743 = vmax.f32 %v3452, 0.0
        %v3744 = vmax.f32 %v3676, 0.0
        %v3745 = vmax.f32 %v3678, 0.0
        %v3746 = vmax.f32 %v3454, 0.0
        %v3747 = vmax.f32 %v3456, 0.0
        %v3748 = vmax.f32 %v3680, 0.0
        %v3749 = vmax.f32 %v3682, 0.0
        %v3750 = vmax.f32 %v3460, 0.0
        %v3751 = vmax.f32 %v3462, 0.0
        %v3752 = vmax.f32 %v3686, 0.0
        %v3753 = vmax.f32 %v3688, 0.0
        %v3754 = vmax.f32 %v3464, 0.0
        %v3755 = vmax.f32 %v3466, 0.0
        %v3756 = vmax.f32 %v3690, 0.0
        %v3757 = vmax.f32 %v3692, 0.0
        %v3758 = vpack.c.bf16 %v3698, %v3694
        %v3759 = vpack.c.bf16 %v3699, %v3695
        %v3760 = vpack.c.bf16 %v3700, %v3696
        %v3761 = vpack.c.bf16 %v3701, %v3697
        %v3762 = vpack.c.bf16 %v3706, %v3702
        %v3763 = vpack.c.bf16 %v3707, %v3703
        %v3764 = vpack.c.bf16 %v3708, %v3704
        %v3765 = vpack.c.bf16 %v3709, %v3705
        %v3766 = vpack.c.bf16 %v3714, %v3710
        %v3767 = vpack.c.bf16 %v3715, %v3711
        %v3768 = vpack.c.bf16 %v3716, %v3712
        %v3769 = vpack.c.bf16 %v3717, %v3713
        %v3770 = vpack.c.bf16 %v3722, %v3718
        %v3771 = vpack.c.bf16 %v3723, %v3719
        %v3772 = vpack.c.bf16 %v3724, %v3720
        %v3773 = vpack.c.bf16 %v3725, %v3721
        %v3774 = vpack.c.bf16 %v3730, %v3726
        %v3775 = vpack.c.bf16 %v3731, %v3727
        %v3776 = vpack.c.bf16 %v3732, %v3728
        %v3777 = vpack.c.bf16 %v3733, %v3729
        %v3778 = vpack.c.bf16 %v3738, %v3734
        %v3779 = vpack.c.bf16 %v3739, %v3735
        %v3780 = vpack.c.bf16 %v3740, %v3736
        %v3781 = vpack.c.bf16 %v3741, %v3737
        %v3782 = vpack.c.bf16 %v3746, %v3742
        %v3783 = vpack.c.bf16 %v3747, %v3743
        %v3784 = vpack.c.bf16 %v3748, %v3744
        %v3785 = vpack.c.bf16 %v3749, %v3745
        %v3786 = vpack.c.bf16 %v3754, %v3750
        %v3787 = vpack.c.bf16 %v3755, %v3751
        %v3788 = vpack.c.bf16 %v3756, %v3752
        %v3789 = vpack.c.bf16 %v3757, %v3753
        %v3790 = vld [vmem:[#allocation8 + $0x300] sm:$0xff]
        %v3791 = vld [vmem:[#allocation8 + $0x308] sm:$0xf]
        %v3792 = vld [vmem:[#allocation8 + $0x30c] sm:$0xff]
        %v3793 = vld [vmem:[#allocation8 + $0x314] sm:$0xf]
        %v3794 = vld [vmem:[#allocation8 + $0x318] sm:$0xff]
        %v3795 = vld [vmem:[#allocation8 + $0x320] sm:$0xf]
        %v3796 = vld [vmem:[#allocation8 + $0x324] sm:$0xff]
        %v3797 = vld [vmem:[#allocation8 + $0x32c] sm:$0xf]
        %v3798 = vld [vmem:[#allocation8 + $0x330] sm:$0xff]
        %v3799 = vld [vmem:[#allocation8 + $0x338] sm:$0xf]
        %v3800 = vld [vmem:[#allocation8 + $0x33c] sm:$0xff]
        %v3801 = vld [vmem:[#allocation8 + $0x344] sm:$0xf]
        %v3802 = vld [vmem:[#allocation8 + $0x348] sm:$0xff]
        %v3803 = vld [vmem:[#allocation8 + $0x350] sm:$0xf]
        %v3804 = vld [vmem:[#allocation8 + $0x354] sm:$0xff]
        %v3805 = vld [vmem:[#allocation8 + $0x35c] sm:$0xf]
        %v3806 = vld [vmem:[#allocation8 + $0x360] sm:$0xff]
        %v3807 = vld [vmem:[#allocation8 + $0x368] sm:$0xf]
        %v3808 = vld [vmem:[#allocation8 + $0x36c] sm:$0xff]
        %v3809 = vld [vmem:[#allocation8 + $0x374] sm:$0xf]
        %v3810 = vld [vmem:[#allocation8 + $0x378] sm:$0xff]
        %v3811 = vld [vmem:[#allocation8 + $0x380] sm:$0xf]
        %v3812 = vld [vmem:[#allocation8 + $0x384] sm:$0xff]
        %v3813 = vld [vmem:[#allocation8 + $0x38c] sm:$0xf]
        %v3814 = vld [vmem:[#allocation8 + $0x390] sm:$0xff]
        %v3815 = vld [vmem:[#allocation8 + $0x398] sm:$0xf]
        %v3816 = vld [vmem:[#allocation8 + $0x39c] sm:$0xff]
        %v3817 = vld [vmem:[#allocation8 + $0x3a4] sm:$0xf]
        %v3818 = vld [vmem:[#allocation8 + $0x3a8] sm:$0xff]
        %v3819 = vld [vmem:[#allocation8 + $0x3b0] sm:$0xf]
        %v3820 = vld [vmem:[#allocation8 + $0x3b4] sm:$0xff]
        %v3821 = vld [vmem:[#allocation8 + $0x3bc] sm:$0xf]
        %v3822 = vld [vmem:[#allocation8 + $0x3c0] sm:$0xff]
        %v3823 = vld [vmem:[#allocation8 + $0x3c8] sm:$0xf]
        %v3824 = vld [vmem:[#allocation8 + $0x3cc] sm:$0xff]
        %v3825 = vld [vmem:[#allocation8 + $0x3d4] sm:$0xf]
        %v3826 = vld [vmem:[#allocation8 + $0x3d8] sm:$0xff]
        %v3827 = vld [vmem:[#allocation8 + $0x3e0] sm:$0xf]
        %v3828 = vld [vmem:[#allocation8 + $0x3e4] sm:$0xff]
        %v3829 = vld [vmem:[#allocation8 + $0x3ec] sm:$0xf]
        %v3830 = vld [vmem:[#allocation8 + $0x3f0] sm:$0xff]
        %v3831 = vld [vmem:[#allocation8 + $0x3f8] sm:$0xf]
        %v3832 = vld [vmem:[#allocation8 + $0x3fc] sm:$0xff]
        %v3833 = vld [vmem:[#allocation8 + $0x404] sm:$0xf]
        %v3834 = vld [vmem:[#allocation8 + $0x408] sm:$0xff]
        %v3835 = vld [vmem:[#allocation8 + $0x410] sm:$0xf]
        %v3836 = vld [vmem:[#allocation8 + $0x414] sm:$0xff]
        %v3837 = vld [vmem:[#allocation8 + $0x41c] sm:$0xf]
        %v3838 = vld [vmem:[#allocation8 + $0x420] sm:$0xff]
        %v3839 = vld [vmem:[#allocation8 + $0x428] sm:$0xf]
        %v3840 = vld [vmem:[#allocation8 + $0x42c] sm:$0xff]
        %v3841 = vld [vmem:[#allocation8 + $0x434] sm:$0xf]
        %v3842 = vld [vmem:[#allocation8 + $0x438] sm:$0xff]
        %v3843 = vld [vmem:[#allocation8 + $0x440] sm:$0xf]
        %v3844 = vld [vmem:[#allocation8 + $0x444] sm:$0xff]
        %v3845 = vld [vmem:[#allocation8 + $0x44c] sm:$0xf]
        %v3846 = vld [vmem:[#allocation8 + $0x450] sm:$0xff]
        %v3847 = vld [vmem:[#allocation8 + $0x458] sm:$0xf]
        %v3848 = vld [vmem:[#allocation8 + $0x45c] sm:$0xff]
        %v3849 = vld [vmem:[#allocation8 + $0x464] sm:$0xf]
        %v3850 = vld [vmem:[#allocation8 + $0x468] sm:$0xff]
        %v3851 = vld [vmem:[#allocation8 + $0x470] sm:$0xf]
        %v3852 = vld [vmem:[#allocation8 + $0x474] sm:$0xff]
        %v3853 = vld [vmem:[#allocation8 + $0x47c] sm:$0xf]
        %v3854 = vld [vmem:[#allocation8 + $0x480] sm:$0xff]
        %v3855 = vld [vmem:[#allocation8 + $0x488] sm:$0xf]
        %v3856 = vld [vmem:[#allocation8 + $0x48c] sm:$0xff]
        %v3857 = vld [vmem:[#allocation8 + $0x494] sm:$0xf]
        %v3858 = vld [vmem:[#allocation8 + $0x498] sm:$0xff]
        %v3859 = vld [vmem:[#allocation8 + $0x4a0] sm:$0xf]
        %v3860 = vld [vmem:[#allocation8 + $0x4a4] sm:$0xff]
        %v3861 = vld [vmem:[#allocation8 + $0x4ac] sm:$0xf]
        %v3862 = vld [vmem:[#allocation8 + $0x4b0] sm:$0xff]
        %v3863 = vld [vmem:[#allocation8 + $0x4b8] sm:$0xf]
        %v3864 = vld [vmem:[#allocation8 + $0x4bc] sm:$0xff]
        %v3865 = vld [vmem:[#allocation8 + $0x4c4] sm:$0xf]
        %v3866 = vld [vmem:[#allocation8 + $0x4c8] sm:$0xff]
        %v3867 = vld [vmem:[#allocation8 + $0x4d0] sm:$0xf]
        %v3868 = vld [vmem:[#allocation8 + $0x4d4] sm:$0xff]
        %v3869 = vld [vmem:[#allocation8 + $0x4dc] sm:$0xf]
        %v3870 = vld [vmem:[#allocation8 + $0x4e0] sm:$0xff]
        %v3871 = vld [vmem:[#allocation8 + $0x4e8] sm:$0xf]
        %v3872 = vld [vmem:[#allocation8 + $0x4ec] sm:$0xff]
        %v3873 = vld [vmem:[#allocation8 + $0x4f4] sm:$0xf]
        %v3874 = vld [vmem:[#allocation8 + $0x4f8] sm:$0xff]
        %v3875 = vld [vmem:[#allocation8 + $0x500] sm:$0xf]
        %v3876 = vld [vmem:[#allocation8 + $0x504] sm:$0xff]
        %v3877 = vld [vmem:[#allocation8 + $0x50c] sm:$0xf]
        %v3878 = vld [vmem:[#allocation8 + $0x510] sm:$0xff]
        %v3879 = vld [vmem:[#allocation8 + $0x518] sm:$0xf]
        %v3880 = vld [vmem:[#allocation8 + $0x51c] sm:$0xff]
        %v3881 = vld [vmem:[#allocation8 + $0x524] sm:$0xf]
        %v3882 = vld [vmem:[#allocation8 + $0x528] sm:$0xff]
        %v3883 = vld [vmem:[#allocation8 + $0x530] sm:$0xf]
        %v3884 = vld [vmem:[#allocation8 + $0x534] sm:$0xff]
        %v3885 = vld [vmem:[#allocation8 + $0x53c] sm:$0xf]
        %v3886 = vld [vmem:[#allocation8 + $0x540] sm:$0xff]
        %v3887 = vld [vmem:[#allocation8 + $0x548] sm:$0xf]
        %v3888 = vld [vmem:[#allocation8 + $0x54c] sm:$0xff]
        %v3889 = vld [vmem:[#allocation8 + $0x554] sm:$0xf]
        %v3890 = vld [vmem:[#allocation8 + $0x558] sm:$0xff]
        %v3891 = vld [vmem:[#allocation8 + $0x560] sm:$0xf]
        %v3892 = vld [vmem:[#allocation8 + $0x564] sm:$0xff]
        %v3893 = vld [vmem:[#allocation8 + $0x56c] sm:$0xf]
        %v3894 = vld [vmem:[#allocation8 + $0x570] sm:$0xff]
        %v3895 = vld [vmem:[#allocation8 + $0x578] sm:$0xf]
        %v3896 = vld [vmem:[#allocation8 + $0x57c] sm:$0xff]
        %v3897 = vld [vmem:[#allocation8 + $0x584] sm:$0xf]
        %v3898 = vld [vmem:[#allocation8 + $0x588] sm:$0xff]
        %v3899 = vld [vmem:[#allocation8 + $0x590] sm:$0xf]
        %v3900 = vld [vmem:[#allocation8 + $0x594] sm:$0xff]
        %v3901 = vld [vmem:[#allocation8 + $0x59c] sm:$0xf]
        %v3902 = vld [vmem:[#allocation8 + $0x5a0] sm:$0xff]
        %v3903 = vld [vmem:[#allocation8 + $0x5a8] sm:$0xf]
        %v3904 = vld [vmem:[#allocation8 + $0x5ac] sm:$0xff]
        %v3905 = vld [vmem:[#allocation8 + $0x5b4] sm:$0xf]
        %v3906 = vld [vmem:[#allocation8 + $0x5b8] sm:$0xff]
        %v3907 = vld [vmem:[#allocation8 + $0x5c0] sm:$0xf]
        %v3908 = vld [vmem:[#allocation8 + $0x5c4] sm:$0xff]
        %v3909 = vld [vmem:[#allocation8 + $0x5cc] sm:$0xf]
        %v3910 = vld [vmem:[#allocation8 + $0x5d0] sm:$0xff]
        %v3911 = vld [vmem:[#allocation8 + $0x5d8] sm:$0xf]
        %v3912 = vld [vmem:[#allocation8 + $0x5dc] sm:$0xff]
        %v3913 = vld [vmem:[#allocation8 + $0x5e4] sm:$0xf]
        %v3914 = vld [vmem:[#allocation8 + $0x5e8] sm:$0xff]
        %v3915 = vld [vmem:[#allocation8 + $0x5f0] sm:$0xf]
        %v3916 = vld [vmem:[#allocation8 + $0x5f4] sm:$0xff]
        %v3917 = vld [vmem:[#allocation8 + $0x5fc] sm:$0xf]
        %v4046 = vunpack.c.l.b16 %v3790
        %v4047 = vunpack.c.h.b16 %v3790
        %v4048 = vunpack.c.l.b16 %v3791
        %v4049 = vunpack.c.l.b16 %v3792
        %v4050 = vunpack.c.h.b16 %v3792
        %v4051 = vunpack.c.l.b16 %v3793
        %v4052 = vunpack.c.l.b16 %v3794
        %v4053 = vunpack.c.h.b16 %v3794
        %v4054 = vunpack.c.l.b16 %v3795
        %v4055 = vunpack.c.l.b16 %v3796
        %v4056 = vunpack.c.h.b16 %v3796
        %v4057 = vunpack.c.l.b16 %v3797
        %v4058 = vunpack.c.l.b16 %v3798
        %v4059 = vunpack.c.h.b16 %v3798
        %v4060 = vunpack.c.l.b16 %v3799
        %v4061 = vunpack.c.l.b16 %v3800
        %v4062 = vunpack.c.h.b16 %v3800
        %v4063 = vunpack.c.l.b16 %v3801
        %v4064 = vunpack.c.l.b16 %v3802
        %v4065 = vunpack.c.h.b16 %v3802
        %v4066 = vunpack.c.l.b16 %v3803
        %v4067 = vunpack.c.l.b16 %v3804
        %v4068 = vunpack.c.h.b16 %v3804
        %v4069 = vunpack.c.l.b16 %v3805
        %v4070 = vunpack.c.l.b16 %v3806
        %v4071 = vunpack.c.h.b16 %v3806
        %v4072 = vunpack.c.l.b16 %v3807
        %v4073 = vunpack.c.l.b16 %v3808
        %v4074 = vunpack.c.h.b16 %v3808
        %v4075 = vunpack.c.l.b16 %v3809
        %v4076 = vunpack.c.l.b16 %v3810
        %v4077 = vunpack.c.h.b16 %v3810
        %v4078 = vunpack.c.l.b16 %v3811
        %v4079 = vunpack.c.l.b16 %v3812
        %v4080 = vunpack.c.h.b16 %v3812
        %v4081 = vunpack.c.l.b16 %v3813
        %v4082 = vunpack.c.l.b16 %v3814
        %v4083 = vunpack.c.h.b16 %v3814
        %v4084 = vunpack.c.l.b16 %v3815
        %v4085 = vunpack.c.l.b16 %v3816
        %v4086 = vunpack.c.h.b16 %v3816
        %v4087 = vunpack.c.l.b16 %v3817
        %v4088 = vunpack.c.l.b16 %v3818
        %v4089 = vunpack.c.h.b16 %v3818
        %v4090 = vunpack.c.l.b16 %v3819
        %v4091 = vunpack.c.l.b16 %v3820
        %v4092 = vunpack.c.h.b16 %v3820
        %v4093 = vunpack.c.l.b16 %v3821
        %v4094 = vunpack.c.l.b16 %v3822
        %v4095 = vunpack.c.h.b16 %v3822
        %v4096 = vunpack.c.l.b16 %v3823
        %v4097 = vunpack.c.l.b16 %v3824
        %v4098 = vunpack.c.h.b16 %v3824
        %v4099 = vunpack.c.l.b16 %v3825
        %v4100 = vunpack.c.l.b16 %v3826
        %v4101 = vunpack.c.h.b16 %v3826
        %v4102 = vunpack.c.l.b16 %v3827
        %v4103 = vunpack.c.l.b16 %v3828
        %v4104 = vunpack.c.h.b16 %v3828
        %v4105 = vunpack.c.l.b16 %v3829
        %v4106 = vunpack.c.l.b16 %v3830
        %v4107 = vunpack.c.h.b16 %v3830
        %v4108 = vunpack.c.l.b16 %v3831
        %v4109 = vunpack.c.l.b16 %v3832
        %v4110 = vunpack.c.h.b16 %v3832
        %v4111 = vunpack.c.l.b16 %v3833
        %v4112 = vunpack.c.l.b16 %v3834
        %v4113 = vunpack.c.h.b16 %v3834
        %v4114 = vunpack.c.l.b16 %v3835
        %v4115 = vunpack.c.l.b16 %v3836
        %v4116 = vunpack.c.h.b16 %v3836
        %v4117 = vunpack.c.l.b16 %v3837
        %v4118 = vunpack.c.l.b16 %v3838
        %v4119 = vunpack.c.h.b16 %v3838
        %v4120 = vunpack.c.l.b16 %v3839
        %v4121 = vunpack.c.l.b16 %v3840
        %v4122 = vunpack.c.h.b16 %v3840
        %v4123 = vunpack.c.l.b16 %v3841
        %v4124 = vunpack.c.l.b16 %v3842
        %v4125 = vunpack.c.h.b16 %v3842
        %v4126 = vunpack.c.l.b16 %v3843
        %v4127 = vunpack.c.l.b16 %v3844
        %v4128 = vunpack.c.h.b16 %v3844
        %v4129 = vunpack.c.l.b16 %v3845
        %v4130 = vunpack.c.l.b16 %v3846
        %v4131 = vunpack.c.h.b16 %v3846
        %v4132 = vunpack.c.l.b16 %v3847
        %v4133 = vunpack.c.l.b16 %v3848
        %v4134 = vunpack.c.h.b16 %v3848
        %v4135 = vunpack.c.l.b16 %v3849
        %v4136 = vunpack.c.l.b16 %v3850
        %v4137 = vunpack.c.h.b16 %v3850
        %v4138 = vunpack.c.l.b16 %v3851
        %v4139 = vunpack.c.l.b16 %v3852
        %v4140 = vunpack.c.h.b16 %v3852
        %v4141 = vunpack.c.l.b16 %v3853
        %v4142 = vunpack.c.l.b16 %v3854
        %v4143 = vunpack.c.h.b16 %v3854
        %v4144 = vunpack.c.l.b16 %v3855
        %v4145 = vunpack.c.l.b16 %v3856
        %v4146 = vunpack.c.h.b16 %v3856
        %v4147 = vunpack.c.l.b16 %v3857
        %v4148 = vunpack.c.l.b16 %v3858
        %v4149 = vunpack.c.h.b16 %v3858
        %v4150 = vunpack.c.l.b16 %v3859
        %v4151 = vunpack.c.l.b16 %v3860
        %v4152 = vunpack.c.h.b16 %v3860
        %v4153 = vunpack.c.l.b16 %v3861
        %v4154 = vunpack.c.l.b16 %v3862
        %v4155 = vunpack.c.h.b16 %v3862
        %v4156 = vunpack.c.l.b16 %v3863
        %v4157 = vunpack.c.l.b16 %v3864
        %v4158 = vunpack.c.h.b16 %v3864
        %v4159 = vunpack.c.l.b16 %v3865
        %v4160 = vunpack.c.l.b16 %v3866
        %v4161 = vunpack.c.h.b16 %v3866
        %v4162 = vunpack.c.l.b16 %v3867
        %v4163 = vunpack.c.l.b16 %v3868
        %v4164 = vunpack.c.h.b16 %v3868
        %v4165 = vunpack.c.l.b16 %v3869
        %v4166 = vunpack.c.l.b16 %v3870
        %v4167 = vunpack.c.h.b16 %v3870
        %v4168 = vunpack.c.l.b16 %v3871
        %v4169 = vunpack.c.l.b16 %v3872
        %v4170 = vunpack.c.h.b16 %v3872
        %v4171 = vunpack.c.l.b16 %v3873
        %v4172 = vunpack.c.l.b16 %v3874
        %v4173 = vunpack.c.h.b16 %v3874
        %v4174 = vunpack.c.l.b16 %v3875
        %v4175 = vunpack.c.l.b16 %v3876
        %v4176 = vunpack.c.h.b16 %v3876
        %v4177 = vunpack.c.l.b16 %v3877
        %v4178 = vunpack.c.l.b16 %v3878
        %v4179 = vunpack.c.h.b16 %v3878
        %v4180 = vunpack.c.l.b16 %v3879
        %v4181 = vunpack.c.l.b16 %v3880
        %v4182 = vunpack.c.h.b16 %v3880
        %v4183 = vunpack.c.l.b16 %v3881
        %v4184 = vunpack.c.l.b16 %v3882
        %v4185 = vunpack.c.h.b16 %v3882
        %v4186 = vunpack.c.l.b16 %v3883
        %v4187 = vunpack.c.l.b16 %v3884
        %v4188 = vunpack.c.h.b16 %v3884
        %v4189 = vunpack.c.l.b16 %v3885
        %v4190 = vunpack.c.l.b16 %v3886
        %v4191 = vunpack.c.h.b16 %v3886
        %v4192 = vunpack.c.l.b16 %v3887
        %v4193 = vunpack.c.l.b16 %v3888
        %v4194 = vunpack.c.h.b16 %v3888
        %v4195 = vunpack.c.l.b16 %v3889
        %v4196 = vunpack.c.l.b16 %v3890
        %v4197 = vunpack.c.h.b16 %v3890
        %v4198 = vunpack.c.l.b16 %v3891
        %v4199 = vunpack.c.l.b16 %v3892
        %v4200 = vunpack.c.h.b16 %v3892
        %v4201 = vunpack.c.l.b16 %v3893
        %v4202 = vunpack.c.l.b16 %v3894
        %v4203 = vunpack.c.h.b16 %v3894
        %v4204 = vunpack.c.l.b16 %v3895
        %v4205 = vunpack.c.l.b16 %v3896
        %v4206 = vunpack.c.h.b16 %v3896
        %v4207 = vunpack.c.l.b16 %v3897
        %v4208 = vunpack.c.l.b16 %v3898
        %v4209 = vunpack.c.h.b16 %v3898
        %v4210 = vunpack.c.l.b16 %v3899
        %v4211 = vunpack.c.l.b16 %v3900
        %v4212 = vunpack.c.h.b16 %v3900
        %v4213 = vunpack.c.l.b16 %v3901
        %v4214 = vunpack.c.l.b16 %v3902
        %v4215 = vunpack.c.h.b16 %v3902
        %v4216 = vunpack.c.l.b16 %v3903
        %v4217 = vunpack.c.l.b16 %v3904
        %v4218 = vunpack.c.h.b16 %v3904
        %v4219 = vunpack.c.l.b16 %v3905
        %v4220 = vunpack.c.l.b16 %v3906
        %v4221 = vunpack.c.h.b16 %v3906
        %v4222 = vunpack.c.l.b16 %v3907
        %v4223 = vunpack.c.l.b16 %v3908
        %v4224 = vunpack.c.h.b16 %v3908
        %v4225 = vunpack.c.l.b16 %v3909
        %v4226 = vunpack.c.l.b16 %v3910
        %v4227 = vunpack.c.h.b16 %v3910
        %v4228 = vunpack.c.l.b16 %v3911
        %v4229 = vunpack.c.l.b16 %v3912
        %v4230 = vunpack.c.h.b16 %v3912
        %v4231 = vunpack.c.l.b16 %v3913
        %v4232 = vunpack.c.l.b16 %v3914
        %v4233 = vunpack.c.h.b16 %v3914
        %v4234 = vunpack.c.l.b16 %v3915
        %v4235 = vunpack.c.l.b16 %v3916
        %v4236 = vunpack.c.h.b16 %v3916
        %v4237 = vunpack.c.l.b16 %v3917
        %v4238 = vpack.c.b16 %v4049, %v4046
        %v4239 = vpack.c.b16 %v4050, %v4047
        %v4240 = vpack.c.b16 %v4051, %v4048
        %v4241 = vpack.c.b16 %v4055, %v4052
        %v4242 = vpack.c.b16 %v4056, %v4053
        %v4243 = vpack.c.b16 %v4057, %v4054
        %v4244 = vpack.c.b16 %v4061, %v4058
        %v4245 = vpack.c.b16 %v4062, %v4059
        %v4246 = vpack.c.b16 %v4063, %v4060
        %v4247 = vpack.c.b16 %v4067, %v4064
        %v4248 = vpack.c.b16 %v4068, %v4065
        %v4249 = vpack.c.b16 %v4069, %v4066
        %v4250 = vpack.c.b16 %v4073, %v4070
        %v4251 = vpack.c.b16 %v4074, %v4071
        %v4252 = vpack.c.b16 %v4075, %v4072
        %v4253 = vpack.c.b16 %v4079, %v4076
        %v4254 = vpack.c.b16 %v4080, %v4077
        %v4255 = vpack.c.b16 %v4081, %v4078
        %v4256 = vpack.c.b16 %v4085, %v4082
        %v4257 = vpack.c.b16 %v4086, %v4083
        %v4258 = vpack.c.b16 %v4087, %v4084
        %v4259 = vpack.c.b16 %v4091, %v4088
        %v4260 = vpack.c.b16 %v4092, %v4089
        %v4261 = vpack.c.b16 %v4093, %v4090
        %v4262 = vpack.c.b16 %v4097, %v4094
        %v4263 = vpack.c.b16 %v4098, %v4095
        %v4264 = vpack.c.b16 %v4099, %v4096
        %v4265 = vpack.c.b16 %v4103, %v4100
        %v4266 = vpack.c.b16 %v4104, %v4101
        %v4267 = vpack.c.b16 %v4105, %v4102
        %v4268 = vpack.c.b16 %v4109, %v4106
        %v4269 = vpack.c.b16 %v4110, %v4107
        %v4270 = vpack.c.b16 %v4111, %v4108
        %v4271 = vpack.c.b16 %v4115, %v4112
        %v4272 = vpack.c.b16 %v4116, %v4113
        %v4273 = vpack.c.b16 %v4117, %v4114
        %v4274 = vpack.c.b16 %v4121, %v4118
        %v4275 = vpack.c.b16 %v4122, %v4119
        %v4276 = vpack.c.b16 %v4123, %v4120
        %v4277 = vpack.c.b16 %v4127, %v4124
        %v4278 = vpack.c.b16 %v4128, %v4125
        %v4279 = vpack.c.b16 %v4129, %v4126
        %v4280 = vpack.c.b16 %v4133, %v4130
        %v4281 = vpack.c.b16 %v4134, %v4131
        %v4282 = vpack.c.b16 %v4135, %v4132
        %v4283 = vpack.c.b16 %v4139, %v4136
        %v4284 = vpack.c.b16 %v4140, %v4137
        %v4285 = vpack.c.b16 %v4141, %v4138
        %v4286 = vpack.c.b16 %v4145, %v4142
        %v4287 = vpack.c.b16 %v4146, %v4143
        %v4288 = vpack.c.b16 %v4147, %v4144
        %v4289 = vpack.c.b16 %v4151, %v4148
        %v4290 = vpack.c.b16 %v4152, %v4149
        %v4291 = vpack.c.b16 %v4153, %v4150
        %v4292 = vpack.c.b16 %v4157, %v4154
        %v4293 = vpack.c.b16 %v4158, %v4155
        %v4294 = vpack.c.b16 %v4159, %v4156
        %v4295 = vpack.c.b16 %v4163, %v4160
        %v4296 = vpack.c.b16 %v4164, %v4161
        %v4297 = vpack.c.b16 %v4165, %v4162
        %v4298 = vpack.c.b16 %v4169, %v4166
        %v4299 = vpack.c.b16 %v4170, %v4167
        %v4300 = vpack.c.b16 %v4171, %v4168
        %v4301 = vpack.c.b16 %v4175, %v4172
        %v4302 = vpack.c.b16 %v4176, %v4173
        %v4303 = vpack.c.b16 %v4177, %v4174
        %v4304 = vpack.c.b16 %v4181, %v4178
        %v4305 = vpack.c.b16 %v4182, %v4179
        %v4306 = vpack.c.b16 %v4183, %v4180
        %v4307 = vpack.c.b16 %v4187, %v4184
        %v4308 = vpack.c.b16 %v4188, %v4185
        %v4309 = vpack.c.b16 %v4189, %v4186
        %v4310 = vpack.c.b16 %v4193, %v4190
        %v4311 = vpack.c.b16 %v4194, %v4191
        %v4312 = vpack.c.b16 %v4195, %v4192
        %v4313 = vpack.c.b16 %v4199, %v4196
        %v4314 = vpack.c.b16 %v4200, %v4197
        %v4315 = vpack.c.b16 %v4201, %v4198
        %v4316 = vpack.c.b16 %v4205, %v4202
        %v4317 = vpack.c.b16 %v4206, %v4203
        %v4318 = vpack.c.b16 %v4207, %v4204
        %v4319 = vpack.c.b16 %v4211, %v4208
        %v4320 = vpack.c.b16 %v4212, %v4209
        %v4321 = vpack.c.b16 %v4213, %v4210
        %v4322 = vpack.c.b16 %v4217, %v4214
        %v4323 = vpack.c.b16 %v4218, %v4215
        %v4324 = vpack.c.b16 %v4219, %v4216
        %v4325 = vpack.c.b16 %v4223, %v4220
        %v4326 = vpack.c.b16 %v4224, %v4221
        %v4327 = vpack.c.b16 %v4225, %v4222
        %v4328 = vpack.c.b16 %v4229, %v4226
        %v4329 = vpack.c.b16 %v4230, %v4227
        %v4330 = vpack.c.b16 %v4231, %v4228
        %v4331 = vpack.c.b16 %v4235, %v4232
        %v4332 = vpack.c.b16 %v4236, %v4233
        %v4333 = vpack.c.b16 %v4237, %v4234
        %4430 = vmatprep.subr.bf16.mxu0 %v4239
        %4431 = vmatpush1.bf16.msra.mxu0 %v4238
        %4432 = vmatprep.subr.bf16.mxu0 %v4242
        %4433 = vmatpush1.bf16.msra.mxu0 %v4241
        %4434 = vmatprep.subr.bf16.mxu0 %v4245
        %4435 = vmatpush1.bf16.msra.mxu0 %v4244
        %4436 = vmatprep.subr.bf16.mxu0 %v4248
        %4437 = vmatpush1.bf16.msra.mxu0 %v4247
        %4438 = vmatprep.subr.bf16.mxu0 %v4251
        %4439 = vmatpush1.bf16.msra.mxu0 %v4250
        %4440 = vmatprep.subr.bf16.mxu0 %v4254
        %4441 = vmatpush1.bf16.msra.mxu0 %v4253
        %4442 = vmatprep.subr.bf16.mxu0 %v4257
        %4443 = vmatpush1.bf16.msra.mxu0 %v4256
        %4444 = vmatprep.subr.bf16.mxu0 %v4260
        %4445 = vmatpush1.bf16.msra.mxu0 %v4259
        %4446 = vmatprep.subr.bf16.mxu0 %v4263
        %4447 = vmatpush1.bf16.msra.mxu0 %v4262
        %4448 = vmatprep.subr.bf16.mxu0 %v4266
        %4449 = vmatpush1.bf16.msra.mxu0 %v4265
        %4450 = vmatprep.subr.bf16.mxu0 %v4269
        %4451 = vmatpush1.bf16.msra.mxu0 %v4268
        %4452 = vmatprep.subr.bf16.mxu0 %v4272
        %4453 = vmatpush1.bf16.msra.mxu0 %v4271
        %4454 = vmatprep.subr.bf16.mxu0 %v4275
        %4455 = vmatpush1.bf16.msra.mxu0 %v4274
        %4456 = vmatprep.subr.bf16.mxu0 %v4278
        %4457 = vmatpush1.bf16.msra.mxu0 %v4277
        %4458 = vmatprep.subr.bf16.mxu0 %v4281
        %4459 = vmatpush1.bf16.msra.mxu0 %v4280
        %4460 = vmatprep.subr.bf16.mxu0 %v4284
        %4461 = vmatpush1.bf16.msra.mxu0 %v4283
        %4462 = vmatprep.mubr.bf16.mxu0 %v3759
        %4463 = vmatmul.mubr.bf16.gmra.mrb[0].mxu0 %v3758
        %v4464 = vpop.f32.mrb[0].mxu0
        %v4465 = vadd.f32 0.0, %v4464
        %v4466 = vpop.f32.mrb[0].mxu0
        %v4467 = vadd.f32 0.0, %v4466
        %v4468 = vpop.f32.mrb[0].mxu0
        %v4469 = vadd.f32 0.0, %v4468
        %v4470 = vpop.f32.mrb[0].mxu0
        %v4471 = vadd.f32 0.0, %v4470
        %4472 = vmatprep.mubr.bf16.mxu0 %v3763
        %4473 = vmatmul.mubr.bf16.gmra.mrb[0].mxu0 %v3762
        %v4474 = vpop.f32.mrb[0].mxu0
        %v4475 = vadd.f32 0.0, %v4474
        %v4476 = vpop.f32.mrb[0].mxu0
        %v4477 = vadd.f32 0.0, %v4476
        %v4478 = vpop.f32.mrb[0].mxu0
        %v4479 = vadd.f32 0.0, %v4478
        %v4480 = vpop.f32.mrb[0].mxu0
        %v4481 = vadd.f32 0.0, %v4480
        %4482 = vmatprep.mubr.bf16.mxu0 %v3767
        %4483 = vmatmul.mubr.bf16.gmra.mrb[0].mxu0 %v3766
        %v4484 = vpop.f32.mrb[0].mxu0
        %v4485 = vadd.f32 0.0, %v4484
        %v4486 = vpop.f32.mrb[0].mxu0
        %v4487 = vadd.f32 0.0, %v4486
        %v4488 = vpop.f32.mrb[0].mxu0
        %v4489 = vadd.f32 0.0, %v4488
        %v4490 = vpop.f32.mrb[0].mxu0
        %v4491 = vadd.f32 0.0, %v4490
        %4492 = vmatprep.mubr.bf16.mxu0 %v3771
        %4493 = vmatmul.mubr.bf16.gmra.mrb[0].mxu0 %v3770
        %v4494 = vpop.f32.mrb[0].mxu0
        %v4495 = vadd.f32 0.0, %v4494
        %v4496 = vpop.f32.mrb[0].mxu0
        %v4497 = vadd.f32 0.0, %v4496
        %v4498 = vpop.f32.mrb[0].mxu0
        %v4499 = vadd.f32 0.0, %v4498
        %v4500 = vpop.f32.mrb[0].mxu0
        %v4501 = vadd.f32 0.0, %v4500
        %4502 = vmatprep.mubr.bf16.mxu0 %v3775
        %4503 = vmatmul.mubr.bf16.gmra.mrb[0].mxu0 %v3774
        %v4504 = vpop.f32.mrb[0].mxu0
        %v4505 = vadd.f32 0.0, %v4504
        %v4506 = vpop.f32.mrb[0].mxu0
        %v4507 = vadd.f32 0.0, %v4506
        %v4508 = vpop.f32.mrb[0].mxu0
        %v4509 = vadd.f32 0.0, %v4508
        %v4510 = vpop.f32.mrb[0].mxu0
        %v4511 = vadd.f32 0.0, %v4510
        %4512 = vmatprep.mubr.bf16.mxu0 %v3779
        %4513 = vmatmul.mubr.bf16.gmra.mrb[0].mxu0 %v3778
        %v4514 = vpop.f32.mrb[0].mxu0
        %v4515 = vadd.f32 0.0, %v4514
        %v4516 = vpop.f32.mrb[0].mxu0
        %v4517 = vadd.f32 0.0, %v4516
        %v4518 = vpop.f32.mrb[0].mxu0
        %v4519 = vadd.f32 0.0, %v4518
        %v4520 = vpop.f32.mrb[0].mxu0
        %v4521 = vadd.f32 0.0, %v4520
        %4522 = vmatprep.mubr.bf16.mxu0 %v3783
        %4523 = vmatmul.mubr.bf16.gmra.mrb[0].mxu0 %v3782
        %v4524 = vpop.f32.mrb[0].mxu0
        %v4525 = vadd.f32 0.0, %v4524
        %v4526 = vpop.f32.mrb[0].mxu0
        %v4527 = vadd.f32 0.0, %v4526
        %v4528 = vpop.f32.mrb[0].mxu0
        %v4529 = vadd.f32 0.0, %v4528
        %v4530 = vpop.f32.mrb[0].mxu0
        %v4531 = vadd.f32 0.0, %v4530
        %4532 = vmatprep.mubr.bf16.mxu0 %v3787
        %4533 = vmatmul.mubr.bf16.gmra.mrb[0].mxu0 %v3786
        %v4534 = vpop.f32.mrb[0].mxu0
        %v4535 = vadd.f32 0.0, %v4534
        %v4536 = vpop.f32.mrb[0].mxu0
        %v4537 = vadd.f32 0.0, %v4536
        %v4538 = vpop.f32.mrb[0].mxu0
        %v4539 = vadd.f32 0.0, %v4538
        %v4540 = vpop.f32.mrb[0].mxu0
        %v4541 = vadd.f32 0.0, %v4540
        %4542 = vdwg.mxu0
        %4543 = vmatprep.subr.bf16.mxu0 %v4287
        %4544 = vmatpush1.bf16.msra.mxu0 %v4286
        %4545 = vmatprep.subr.bf16.mxu0 %v4290
        %4546 = vmatpush1.bf16.msra.mxu0 %v4289
        %4547 = vmatprep.subr.bf16.mxu0 %v4293
        %4548 = vmatpush1.bf16.msra.mxu0 %v4292
        %4549 = vmatprep.subr.bf16.mxu0 %v4296
        %4550 = vmatpush1.bf16.msra.mxu0 %v4295
        %4551 = vmatprep.subr.bf16.mxu0 %v4299
        %4552 = vmatpush1.bf16.msra.mxu0 %v4298
        %4553 = vmatprep.subr.bf16.mxu0 %v4302
        %4554 = vmatpush1.bf16.msra.mxu0 %v4301
        %4555 = vmatprep.subr.bf16.mxu0 %v4305
        %4556 = vmatpush1.bf16.msra.mxu0 %v4304
        %4557 = vmatprep.subr.bf16.mxu0 %v4308
        %4558 = vmatpush1.bf16.msra.mxu0 %v4307
        %4559 = vmatprep.subr.bf16.mxu0 %v4311
        %4560 = vmatpush1.bf16.msra.mxu0 %v4310
        %4561 = vmatprep.subr.bf16.mxu0 %v4314
        %4562 = vmatpush1.bf16.msra.mxu0 %v4313
        %4563 = vmatprep.subr.bf16.mxu0 %v4317
        %4564 = vmatpush1.bf16.msra.mxu0 %v4316
        %4565 = vmatprep.subr.bf16.mxu0 %v4320
        %4566 = vmatpush1.bf16.msra.mxu0 %v4319
        %4567 = vmatprep.subr.bf16.mxu0 %v4323
        %4568 = vmatpush1.bf16.msra.mxu0 %v4322
        %4569 = vmatprep.subr.bf16.mxu0 %v4326
        %4570 = vmatpush1.bf16.msra.mxu0 %v4325
        %4571 = vmatprep.subr.bf16.mxu0 %v4329
        %4572 = vmatpush1.bf16.msra.mxu0 %v4328
        %4573 = vmatprep.subr.bf16.mxu0 %v4332
        %4574 = vmatpush1.bf16.msra.mxu0 %v4331
        %4575 = vmatprep.mubr.bf16.mxu0 %v3761
        %4576 = vmatmul.mubr.bf16.gmra.mrb[0].mxu0 %v3760
        %v4577 = vpop.f32.mrb[0].mxu0
        %v4578 = vadd.f32 %v4465, %v4577
        %v4579 = vpop.f32.mrb[0].mxu0
        %v4580 = vadd.f32 %v4467, %v4579
        %v4581 = vpop.f32.mrb[0].mxu0
        %v4582 = vadd.f32 %v4469, %v4581
        %v4583 = vpop.f32.mrb[0].mxu0
        %v4584 = vadd.f32 %v4471, %v4583
        %4585 = vmatprep.mubr.bf16.mxu0 %v3765
        %4586 = vmatmul.mubr.bf16.gmra.mrb[0].mxu0 %v3764
        %v4587 = vpop.f32.mrb[0].mxu0
        %v4588 = vadd.f32 %v4475, %v4587
        %v4589 = vpop.f32.mrb[0].mxu0
        %v4590 = vadd.f32 %v4477, %v4589
        %v4591 = vpop.f32.mrb[0].mxu0
        %v4592 = vadd.f32 %v4479, %v4591
        %v4593 = vpop.f32.mrb[0].mxu0
        %v4594 = vadd.f32 %v4481, %v4593
        %4595 = vmatprep.mubr.bf16.mxu0 %v3769
        %4596 = vmatmul.mubr.bf16.gmra.mrb[0].mxu0 %v3768
        %v4597 = vpop.f32.mrb[0].mxu0
        %v4598 = vadd.f32 %v4485, %v4597
        %v4599 = vpop.f32.mrb[0].mxu0
        %v4600 = vadd.f32 %v4487, %v4599
        %v4601 = vpop.f32.mrb[0].mxu0
        %v4602 = vadd.f32 %v4489, %v4601
        %v4603 = vpop.f32.mrb[0].mxu0
        %v4604 = vadd.f32 %v4491, %v4603
        %4605 = vmatprep.mubr.bf16.mxu0 %v3773
        %4606 = vmatmul.mubr.bf16.gmra.mrb[0].mxu0 %v3772
        %v4607 = vpop.f32.mrb[0].mxu0
        %v4608 = vadd.f32 %v4495, %v4607
        %v4609 = vpop.f32.mrb[0].mxu0
        %v4610 = vadd.f32 %v4497, %v4609
        %v4611 = vpop.f32.mrb[0].mxu0
        %v4612 = vadd.f32 %v4499, %v4611
        %v4613 = vpop.f32.mrb[0].mxu0
        %v4614 = vadd.f32 %v4501, %v4613
        %4615 = vmatprep.mubr.bf16.mxu0 %v3777
        %4616 = vmatmul.mubr.bf16.gmra.mrb[0].mxu0 %v3776
        %v4617 = vpop.f32.mrb[0].mxu0
        %v4618 = vadd.f32 %v4505, %v4617
        %v4619 = vpop.f32.mrb[0].mxu0
        %v4620 = vadd.f32 %v4507, %v4619
        %v4621 = vpop.f32.mrb[0].mxu0
        %v4622 = vadd.f32 %v4509, %v4621
        %v4623 = vpop.f32.mrb[0].mxu0
        %v4624 = vadd.f32 %v4511, %v4623
        %4625 = vmatprep.mubr.bf16.mxu0 %v3781
        %4626 = vmatmul.mubr.bf16.gmra.mrb[0].mxu0 %v3780
        %v4627 = vpop.f32.mrb[0].mxu0
        %v4628 = vadd.f32 %v4515, %v4627
        %v4629 = vpop.f32.mrb[0].mxu0
        %v4630 = vadd.f32 %v4517, %v4629
        %v4631 = vpop.f32.mrb[0].mxu0
        %v4632 = vadd.f32 %v4519, %v4631
        %v4633 = vpop.f32.mrb[0].mxu0
        %v4634 = vadd.f32 %v4521, %v4633
        %4635 = vmatprep.mubr.bf16.mxu0 %v3785
        %4636 = vmatmul.mubr.bf16.gmra.mrb[0].mxu0 %v3784
        %v4637 = vpop.f32.mrb[0].mxu0
        %v4638 = vadd.f32 %v4525, %v4637
        %v4639 = vpop.f32.mrb[0].mxu0
        %v4640 = vadd.f32 %v4527, %v4639
        %v4641 = vpop.f32.mrb[0].mxu0
        %v4642 = vadd.f32 %v4529, %v4641
        %v4643 = vpop.f32.mrb[0].mxu0
        %v4644 = vadd.f32 %v4531, %v4643
        %4645 = vmatprep.mubr.bf16.mxu0 %v3789
        %4646 = vmatmul.mubr.bf16.gmra.mrb[0].mxu0 %v3788
        %v4647 = vpop.f32.mrb[0].mxu0
        %v4648 = vadd.f32 %v4535, %v4647
        %v4649 = vpop.f32.mrb[0].mxu0
        %v4650 = vadd.f32 %v4537, %v4649
        %v4651 = vpop.f32.mrb[0].mxu0
        %v4652 = vadd.f32 %v4539, %v4651
        %v4653 = vpop.f32.mrb[0].mxu0
        %v4654 = vadd.f32 %v4541, %v4653
        %4655 = vdwg.mxu0
        %4656 = vmatprep.subr.bf16.mxu0 0
        %4657 = vmatpush1.bf16.msra.mxu0 %v4240
        %4658 = vmatprep.subr.bf16.mxu0 0
        %4659 = vmatpush1.bf16.msra.mxu0 %v4243
        %4660 = vmatprep.subr.bf16.mxu0 0
        %4661 = vmatpush1.bf16.msra.mxu0 %v4246
        %4662 = vmatprep.subr.bf16.mxu0 0
        %4663 = vmatpush1.bf16.msra.mxu0 %v4249
        %4664 = vmatprep.subr.bf16.mxu0 0
        %4665 = vmatpush1.bf16.msra.mxu0 %v4252
        %4666 = vmatprep.subr.bf16.mxu0 0
        %4667 = vmatpush1.bf16.msra.mxu0 %v4255
        %4668 = vmatprep.subr.bf16.mxu0 0
        %4669 = vmatpush1.bf16.msra.mxu0 %v4258
        %4670 = vmatprep.subr.bf16.mxu0 0
        %4671 = vmatpush1.bf16.msra.mxu0 %v4261
        %4672 = vmatprep.subr.bf16.mxu0 0
        %4673 = vmatpush1.bf16.msra.mxu0 %v4264
        %4674 = vmatprep.subr.bf16.mxu0 0
        %4675 = vmatpush1.bf16.msra.mxu0 %v4267
        %4676 = vmatprep.subr.bf16.mxu0 0
        %4677 = vmatpush1.bf16.msra.mxu0 %v4270
        %4678 = vmatprep.subr.bf16.mxu0 0
        %4679 = vmatpush1.bf16.msra.mxu0 %v4273
        %4680 = vmatprep.subr.bf16.mxu0 0
        %4681 = vmatpush1.bf16.msra.mxu0 %v4276
        %4682 = vmatprep.subr.bf16.mxu0 0
        %4683 = vmatpush1.bf16.msra.mxu0 %v4279
        %4684 = vmatprep.subr.bf16.mxu0 0
        %4685 = vmatpush1.bf16.msra.mxu0 %v4282
        %4686 = vmatprep.subr.bf16.mxu0 0
        %4687 = vmatpush1.bf16.msra.mxu0 %v4285
        %4688 = vmatprep.mubr.bf16.mxu0 %v3759
        %4689 = vmatmul.mubr.bf16.gmra.mrb[0].mxu0 %v3758
        %v4690 = vpop.f32.mrb[0].mxu0
        %v4691 = vadd.f32 0.0, %v4690
        %v4692 = vpop.f32.mrb[0].mxu0
        %v4693 = vpop.f32.mrb[0].mxu0
        %v4694 = vadd.f32 0.0, %v4693
        %v4695 = vpop.f32.mrb[0].mxu0
        %4696 = vmatprep.mubr.bf16.mxu0 %v3763
        %4697 = vmatmul.mubr.bf16.gmra.mrb[0].mxu0 %v3762
        %v4698 = vpop.f32.mrb[0].mxu0
        %v4699 = vadd.f32 0.0, %v4698
        %v4700 = vpop.f32.mrb[0].mxu0
        %v4701 = vpop.f32.mrb[0].mxu0
        %v4702 = vadd.f32 0.0, %v4701
        %v4703 = vpop.f32.mrb[0].mxu0
        %4704 = vmatprep.mubr.bf16.mxu0 %v3767
        %4705 = vmatmul.mubr.bf16.gmra.mrb[0].mxu0 %v3766
        %v4706 = vpop.f32.mrb[0].mxu0
        %v4707 = vadd.f32 0.0, %v4706
        %v4708 = vpop.f32.mrb[0].mxu0
        %v4709 = vpop.f32.mrb[0].mxu0
        %v4710 = vadd.f32 0.0, %v4709
        %v4711 = vpop.f32.mrb[0].mxu0
        %4712 = vmatprep.mubr.bf16.mxu0 %v3771
        %4713 = vmatmul.mubr.bf16.gmra.mrb[0].mxu0 %v3770
        %v4714 = vpop.f32.mrb[0].mxu0
        %v4715 = vadd.f32 0.0, %v4714
        %v4716 = vpop.f32.mrb[0].mxu0
        %v4717 = vpop.f32.mrb[0].mxu0
        %v4718 = vadd.f32 0.0, %v4717
        %v4719 = vpop.f32.mrb[0].mxu0
        %4720 = vmatprep.mubr.bf16.mxu0 %v3775
        %4721 = vmatmul.mubr.bf16.gmra.mrb[0].mxu0 %v3774
        %v4722 = vpop.f32.mrb[0].mxu0
        %v4723 = vadd.f32 0.0, %v4722
        %v4724 = vpop.f32.mrb[0].mxu0
        %v4725 = vpop.f32.mrb[0].mxu0
        %v4726 = vadd.f32 0.0, %v4725
        %v4727 = vpop.f32.mrb[0].mxu0
        %4728 = vmatprep.mubr.bf16.mxu0 %v3779
        %4729 = vmatmul.mubr.bf16.gmra.mrb[0].mxu0 %v3778
        %v4730 = vpop.f32.mrb[0].mxu0
        %v4731 = vadd.f32 0.0, %v4730
        %v4732 = vpop.f32.mrb[0].mxu0
        %v4733 = vpop.f32.mrb[0].mxu0
        %v4734 = vadd.f32 0.0, %v4733
        %v4735 = vpop.f32.mrb[0].mxu0
        %4736 = vmatprep.mubr.bf16.mxu0 %v3783
        %4737 = vmatmul.mubr.bf16.gmra.mrb[0].mxu0 %v3782
        %v4738 = vpop.f32.mrb[0].mxu0
        %v4739 = vadd.f32 0.0, %v4738
        %v4740 = vpop.f32.mrb[0].mxu0
        %v4741 = vpop.f32.mrb[0].mxu0
        %v4742 = vadd.f32 0.0, %v4741
        %v4743 = vpop.f32.mrb[0].mxu0
        %4744 = vmatprep.mubr.bf16.mxu0 %v3787
        %4745 = vmatmul.mubr.bf16.gmra.mrb[0].mxu0 %v3786
        %v4746 = vpop.f32.mrb[0].mxu0
        %v4747 = vadd.f32 0.0, %v4746
        %v4748 = vpop.f32.mrb[0].mxu0
        %v4749 = vpop.f32.mrb[0].mxu0
        %v4750 = vadd.f32 0.0, %v4749
        %v4751 = vpop.f32.mrb[0].mxu0
        %4752 = vdwg.mxu0
        %4753 = vmatprep.subr.bf16.mxu0 0
        %4754 = vmatpush1.bf16.msra.mxu0 %v4288
        %4755 = vmatprep.subr.bf16.mxu0 0
        %4756 = vmatpush1.bf16.msra.mxu0 %v4291
        %4757 = vmatprep.subr.bf16.mxu0 0
        %4758 = vmatpush1.bf16.msra.mxu0 %v4294
        %4759 = vmatprep.subr.bf16.mxu0 0
        %4760 = vmatpush1.bf16.msra.mxu0 %v4297
        %4761 = vmatprep.subr.bf16.mxu0 0
        %4762 = vmatpush1.bf16.msra.mxu0 %v4300
        %4763 = vmatprep.subr.bf16.mxu0 0
        %4764 = vmatpush1.bf16.msra.mxu0 %v4303
        %4765 = vmatprep.subr.bf16.mxu0 0
        %4766 = vmatpush1.bf16.msra.mxu0 %v4306
        %4767 = vmatprep.subr.bf16.mxu0 0
        %4768 = vmatpush1.bf16.msra.mxu0 %v4309
        %4769 = vmatprep.subr.bf16.mxu0 0
        %4770 = vmatpush1.bf16.msra.mxu0 %v4312
        %4771 = vmatprep.subr.bf16.mxu0 0
        %4772 = vmatpush1.bf16.msra.mxu0 %v4315
        %4773 = vmatprep.subr.bf16.mxu0 0
        %4774 = vmatpush1.bf16.msra.mxu0 %v4318
        %4775 = vmatprep.subr.bf16.mxu0 0
        %4776 = vmatpush1.bf16.msra.mxu0 %v4321
        %4777 = vmatprep.subr.bf16.mxu0 0
        %4778 = vmatpush1.bf16.msra.mxu0 %v4324
        %4779 = vmatprep.subr.bf16.mxu0 0
        %4780 = vmatpush1.bf16.msra.mxu0 %v4327
        %4781 = vmatprep.subr.bf16.mxu0 0
        %4782 = vmatpush1.bf16.msra.mxu0 %v4330
        %4783 = vmatprep.subr.bf16.mxu0 0
        %4784 = vmatpush1.bf16.msra.mxu0 %v4333
        %4785 = vmatprep.mubr.bf16.mxu0 %v3761
        %4786 = vmatmul.mubr.bf16.gmra.mrb[0].mxu0 %v3760
        %v4787 = vpop.f32.mrb[0].mxu0
        %v4788 = vadd.f32 %v4691, %v4787
        %v4789 = vpop.f32.mrb[0].mxu0
        %v4790 = vpop.f32.mrb[0].mxu0
        %v4791 = vadd.f32 %v4694, %v4790
        %v4792 = vpop.f32.mrb[0].mxu0
        %4793 = vmatprep.mubr.bf16.mxu0 %v3765
        %4794 = vmatmul.mubr.bf16.gmra.mrb[0].mxu0 %v3764
        %v4795 = vpop.f32.mrb[0].mxu0
        %v4796 = vadd.f32 %v4699, %v4795
        %v4797 = vpop.f32.mrb[0].mxu0
        %v4798 = vpop.f32.mrb[0].mxu0
        %v4799 = vadd.f32 %v4702, %v4798
        %v4800 = vpop.f32.mrb[0].mxu0
        %4801 = vmatprep.mubr.bf16.mxu0 %v3769
        %4802 = vmatmul.mubr.bf16.gmra.mrb[0].mxu0 %v3768
        %v4803 = vpop.f32.mrb[0].mxu0
        %v4804 = vadd.f32 %v4707, %v4803
        %v4805 = vpop.f32.mrb[0].mxu0
        %v4806 = vpop.f32.mrb[0].mxu0
        %v4807 = vadd.f32 %v4710, %v4806
        %v4808 = vpop.f32.mrb[0].mxu0
        %4809 = vmatprep.mubr.bf16.mxu0 %v3773
        %4810 = vmatmul.mubr.bf16.gmra.mrb[0].mxu0 %v3772
        %v4811 = vpop.f32.mrb[0].mxu0
        %v4812 = vadd.f32 %v4715, %v4811
        %v4813 = vpop.f32.mrb[0].mxu0
        %v4814 = vpop.f32.mrb[0].mxu0
        %v4815 = vadd.f32 %v4718, %v4814
        %v4816 = vpop.f32.mrb[0].mxu0
        %4817 = vmatprep.mubr.bf16.mxu0 %v3777
        %4818 = vmatmul.mubr.bf16.gmra.mrb[0].mxu0 %v3776
        %v4819 = vpop.f32.mrb[0].mxu0
        %v4820 = vadd.f32 %v4723, %v4819
        %v4821 = vpop.f32.mrb[0].mxu0
        %v4822 = vpop.f32.mrb[0].mxu0
        %v4823 = vadd.f32 %v4726, %v4822
        %v4824 = vpop.f32.mrb[0].mxu0
        %4825 = vmatprep.mubr.bf16.mxu0 %v3781
        %4826 = vmatmul.mubr.bf16.gmra.mrb[0].mxu0 %v3780
        %v4827 = vpop.f32.mrb[0].mxu0
        %v4828 = vadd.f32 %v4731, %v4827
        %v4829 = vpop.f32.mrb[0].mxu0
        %v4830 = vpop.f32.mrb[0].mxu0
        %v4831 = vadd.f32 %v4734, %v4830
        %v4832 = vpop.f32.mrb[0].mxu0
        %4833 = vmatprep.mubr.bf16.mxu0 %v3785
        %4834 = vmatmul.mubr.bf16.gmra.mrb[0].mxu0 %v3784
        %v4835 = vpop.f32.mrb[0].mxu0
        %v4836 = vadd.f32 %v4739, %v4835
        %v4837 = vpop.f32.mrb[0].mxu0
        %v4838 = vpop.f32.mrb[0].mxu0
        %v4839 = vadd.f32 %v4742, %v4838
        %v4840 = vpop.f32.mrb[0].mxu0
        %4841 = vmatprep.mubr.bf16.mxu0 %v3789
        %4842 = vmatmul.mubr.bf16.gmra.mrb[0].mxu0 %v3788
        %v4843 = vpop.f32.mrb[0].mxu0
        %v4844 = vadd.f32 %v4747, %v4843
        %v4845 = vpop.f32.mrb[0].mxu0
        %v4846 = vpop.f32.mrb[0].mxu0
        %v4847 = vadd.f32 %v4750, %v4846
        %v4848 = vpop.f32.mrb[0].mxu0
        %4849 = vdwg.mxu0
        %v4850 = vadd.f32 %v2596, %v4578
        %v4851 = vadd.f32 %v2597, %v4580
        %v4852 = vadd.f32 %v2598, %v4788
        %v4853 = vadd.f32 %v2599, %v4582
        %v4854 = vadd.f32 %v2600, %v4584
        %v4855 = vadd.f32 %v2601, %v4791
        %v4856 = vadd.f32 %v2602, %v4588
        %v4857 = vadd.f32 %v2603, %v4590
        %v4858 = vadd.f32 %v2604, %v4796
        %v4859 = vadd.f32 %v2605, %v4592
        %v4860 = vadd.f32 %v2606, %v4594
        %v4861 = vadd.f32 %v2607, %v4799
        %v4862 = vadd.f32 %v2608, %v4598
        %v4863 = vadd.f32 %v2609, %v4600
        %v4864 = vadd.f32 %v2610, %v4804
        %v4865 = vadd.f32 %v2611, %v4602
        %v4866 = vadd.f32 %v2612, %v4604
        %v4867 = vadd.f32 %v2613, %v4807
        %v4868 = vadd.f32 %v2614, %v4608
        %v4869 = vadd.f32 %v2615, %v4610
        %v4870 = vadd.f32 %v2616, %v4812
        %v4871 = vadd.f32 %v2617, %v4612
        %v4872 = vadd.f32 %v2618, %v4614
        %v4873 = vadd.f32 %v2619, %v4815
        %v4874 = vadd.f32 %v2620, %v4618
        %v4875 = vadd.f32 %v2621, %v4620
        %v4876 = vadd.f32 %v2622, %v4820
        %v4877 = vadd.f32 %v2623, %v4622
        %v4878 = vadd.f32 %v2624, %v4624
        %v4879 = vadd.f32 %v2625, %v4823
        %v4880 = vadd.f32 %v2626, %v4628
        %v4881 = vadd.f32 %v2627, %v4630
        %v4882 = vadd.f32 %v2628, %v4828
        %v4883 = vadd.f32 %v2629, %v4632
        %v4884 = vadd.f32 %v2630, %v4634
        %v4885 = vadd.f32 %v2631, %v4831
        %v4886 = vadd.f32 %v2632, %v4638
        %v4887 = vadd.f32 %v2633, %v4640
        %v4888 = vadd.f32 %v2634, %v4836
        %v4889 = vadd.f32 %v2635, %v4642
        %v4890 = vadd.f32 %v2636, %v4644
        %v4891 = vadd.f32 %v2637, %v4839
        %v4892 = vadd.f32 %v2638, %v4648
        %v4893 = vadd.f32 %v2639, %v4650
        %v4894 = vadd.f32 %v2640, %v4844
        %v4895 = vadd.f32 %v2641, %v4652
        %v4896 = vadd.f32 %v2642, %v4654
        %v4897 = vadd.f32 %v2643, %v4847
        %v4898 = vld [vmem:[#allocation5 + $0x20] sm:$0xff]
        %v4899 = vld [vmem:[#allocation5 + $0x28] sm:$0xff]
        %v4900 = vld [vmem:[#allocation5 + $0x50] sm:$0xff]
        %v4901 = vld [vmem:[#allocation5 + $0x58] sm:$0xff]
        %v4902 = vld [vmem:[#allocation5 + $0x80] sm:$0xff]
        %v4903 = vld [vmem:[#allocation5 + $0x88] sm:$0xff]
        %v4904 = vld [vmem:[#allocation5 + $0xb0] sm:$0xff]
        %v4905 = vld [vmem:[#allocation5 + $0xb8] sm:$0xff]
        %v4906 = vld [vmem:[#allocation5 + $0xe0] sm:$0xff]
        %v4907 = vld [vmem:[#allocation5 + $0xe8] sm:$0xff]
        %v4908 = vld [vmem:[#allocation5 + $0x110] sm:$0xff]
        %v4909 = vld [vmem:[#allocation5 + $0x118] sm:$0xff]
        %v4910 = vld [vmem:[#allocation5 + $0x140] sm:$0xff]
        %v4911 = vld [vmem:[#allocation5 + $0x148] sm:$0xff]
        %v4912 = vld [vmem:[#allocation5 + $0x170] sm:$0xff]
        %v4913 = vld [vmem:[#allocation5 + $0x178] sm:$0xff]
        %v4914 = vld [vmem:[#allocation5 + $0x1a0] sm:$0xff]
        %v4915 = vld [vmem:[#allocation5 + $0x1a8] sm:$0xff]
        %v4916 = vld [vmem:[#allocation5 + $0x1d0] sm:$0xff]
        %v4917 = vld [vmem:[#allocation5 + $0x1d8] sm:$0xff]
        %v4918 = vld [vmem:[#allocation5 + $0x200] sm:$0xff]
        %v4919 = vld [vmem:[#allocation5 + $0x208] sm:$0xff]
        %v4920 = vld [vmem:[#allocation5 + $0x230] sm:$0xff]
        %v4921 = vld [vmem:[#allocation5 + $0x238] sm:$0xff]
        %v4922 = vld [vmem:[#allocation5 + $0x260] sm:$0xff]
        %v4923 = vld [vmem:[#allocation5 + $0x268] sm:$0xff]
        %v4924 = vld [vmem:[#allocation5 + $0x290] sm:$0xff]
        %v4925 = vld [vmem:[#allocation5 + $0x298] sm:$0xff]
        %v4926 = vld [vmem:[#allocation5 + $0x2c0] sm:$0xff]
        %v4927 = vld [vmem:[#allocation5 + $0x2c8] sm:$0xff]
        %v4928 = vld [vmem:[#allocation5 + $0x2f0] sm:$0xff]
        %v4929 = vld [vmem:[#allocation5 + $0x2f8] sm:$0xff]
        %v4930 = vld [vmem:[#allocation5 + $0x320] sm:$0xff]
        %v4931 = vld [vmem:[#allocation5 + $0x328] sm:$0xff]
        %v4932 = vld [vmem:[#allocation5 + $0x350] sm:$0xff]
        %v4933 = vld [vmem:[#allocation5 + $0x358] sm:$0xff]
        %v4934 = vld [vmem:[#allocation5 + $0x380] sm:$0xff]
        %v4935 = vld [vmem:[#allocation5 + $0x388] sm:$0xff]
        %v4936 = vld [vmem:[#allocation5 + $0x3b0] sm:$0xff]
        %v4937 = vld [vmem:[#allocation5 + $0x3b8] sm:$0xff]
        %v4938 = vld [vmem:[#allocation5 + $0x3e0] sm:$0xff]
        %v4939 = vld [vmem:[#allocation5 + $0x3e8] sm:$0xff]
        %v4940 = vld [vmem:[#allocation5 + $0x410] sm:$0xff]
        %v4941 = vld [vmem:[#allocation5 + $0x418] sm:$0xff]
        %v4942 = vld [vmem:[#allocation5 + $0x440] sm:$0xff]
        %v4943 = vld [vmem:[#allocation5 + $0x448] sm:$0xff]
        %v4944 = vld [vmem:[#allocation5 + $0x470] sm:$0xff]
        %v4945 = vld [vmem:[#allocation5 + $0x478] sm:$0xff]
        %v4946 = vld [vmem:[#allocation5 + $0x4a0] sm:$0xff]
        %v4947 = vld [vmem:[#allocation5 + $0x4a8] sm:$0xff]
        %v4948 = vld [vmem:[#allocation5 + $0x4d0] sm:$0xff]
        %v4949 = vld [vmem:[#allocation5 + $0x4d8] sm:$0xff]
        %v4950 = vld [vmem:[#allocation5 + $0x500] sm:$0xff]
        %v4951 = vld [vmem:[#allocation5 + $0x508] sm:$0xff]
        %v4952 = vld [vmem:[#allocation5 + $0x530] sm:$0xff]
        %v4953 = vld [vmem:[#allocation5 + $0x538] sm:$0xff]
        %v4954 = vld [vmem:[#allocation5 + $0x560] sm:$0xff]
        %v4955 = vld [vmem:[#allocation5 + $0x568] sm:$0xff]
        %v4956 = vld [vmem:[#allocation5 + $0x590] sm:$0xff]
        %v4957 = vld [vmem:[#allocation5 + $0x598] sm:$0xff]
        %v4958 = vld [vmem:[#allocation5 + $0x5c0] sm:$0xff]
        %v4959 = vld [vmem:[#allocation5 + $0x5c8] sm:$0xff]
        %v4960 = vld [vmem:[#allocation5 + $0x5f0] sm:$0xff]
        %v4961 = vld [vmem:[#allocation5 + $0x5f8] sm:$0xff]
        %v4962 = vld [vmem:[#allocation5 + $0x620] sm:$0xff]
        %v4963 = vld [vmem:[#allocation5 + $0x628] sm:$0xff]
        %v4964 = vld [vmem:[#allocation5 + $0x650] sm:$0xff]
        %v4965 = vld [vmem:[#allocation5 + $0x658] sm:$0xff]
        %v4966 = vld [vmem:[#allocation5 + $0x680] sm:$0xff]
        %v4967 = vld [vmem:[#allocation5 + $0x688] sm:$0xff]
        %v4968 = vld [vmem:[#allocation5 + $0x6b0] sm:$0xff]
        %v4969 = vld [vmem:[#allocation5 + $0x6b8] sm:$0xff]
        %v4970 = vld [vmem:[#allocation5 + $0x6e0] sm:$0xff]
        %v4971 = vld [vmem:[#allocation5 + $0x6e8] sm:$0xff]
        %v4972 = vld [vmem:[#allocation5 + $0x710] sm:$0xff]
        %v4973 = vld [vmem:[#allocation5 + $0x718] sm:$0xff]
        %v4974 = vld [vmem:[#allocation5 + $0x740] sm:$0xff]
        %v4975 = vld [vmem:[#allocation5 + $0x748] sm:$0xff]
        %v4976 = vld [vmem:[#allocation5 + $0x770] sm:$0xff]
        %v4977 = vld [vmem:[#allocation5 + $0x778] sm:$0xff]
        %v4978 = vld [vmem:[#allocation5 + $0x7a0] sm:$0xff]
        %v4979 = vld [vmem:[#allocation5 + $0x7a8] sm:$0xff]
        %v4980 = vld [vmem:[#allocation5 + $0x7d0] sm:$0xff]
        %v4981 = vld [vmem:[#allocation5 + $0x7d8] sm:$0xff]
        %v4982 = vld [vmem:[#allocation5 + $0x800] sm:$0xff]
        %v4983 = vld [vmem:[#allocation5 + $0x808] sm:$0xff]
        %v4984 = vld [vmem:[#allocation5 + $0x830] sm:$0xff]
        %v4985 = vld [vmem:[#allocation5 + $0x838] sm:$0xff]
        %v4986 = vld [vmem:[#allocation5 + $0x860] sm:$0xff]
        %v4987 = vld [vmem:[#allocation5 + $0x868] sm:$0xff]
        %v4988 = vld [vmem:[#allocation5 + $0x890] sm:$0xff]
        %v4989 = vld [vmem:[#allocation5 + $0x898] sm:$0xff]
        %v4990 = vld [vmem:[#allocation5 + $0x8c0] sm:$0xff]
        %v4991 = vld [vmem:[#allocation5 + $0x8c8] sm:$0xff]
        %v4992 = vld [vmem:[#allocation5 + $0x8f0] sm:$0xff]
        %v4993 = vld [vmem:[#allocation5 + $0x8f8] sm:$0xff]
        %v4994 = vld [vmem:[#allocation7 + $0x8] sm:$0xf]
        %v4996 = vlaneseq
        %v4997 = vshrl.u32 %v4996, 7
        %v4998 = vsub.s32 0, %v4997
        %v4999 = vrot.slane %v4994, %v4998
        %v5000 = vlaneseq
        %v5001 = vshrl.u32 %v5000, 7
        %v5002 = vsub.s32 1, %v5001
        %v5003 = vrot.slane %v4994, %v5002
        %v5004 = vlaneseq
        %v5005 = vshrl.u32 %v5004, 7
        %v5006 = vsub.s32 2, %v5005
        %v5007 = vrot.slane %v4994, %v5006
        %v5008 = vlaneseq
        %v5009 = vshrl.u32 %v5008, 7
        %v5010 = vsub.s32 3, %v5009
        %v5011 = vrot.slane %v4994, %v5010
        %v5112 = vunpack.c.l.b16 %v4898
        %v5113 = vunpack.c.h.b16 %v4898
        %v5114 = vunpack.c.l.b16 %v4899
        %v5115 = vunpack.c.h.b16 %v4899
        %v5116 = vunpack.c.l.b16 %v4900
        %v5117 = vunpack.c.h.b16 %v4900
        %v5118 = vunpack.c.l.b16 %v4901
        %v5119 = vunpack.c.h.b16 %v4901
        %v5120 = vunpack.c.l.b16 %v4902
        %v5121 = vunpack.c.h.b16 %v4902
        %v5122 = vunpack.c.l.b16 %v4903
        %v5123 = vunpack.c.h.b16 %v4903
        %v5124 = vunpack.c.l.b16 %v4904
        %v5125 = vunpack.c.h.b16 %v4904
        %v5126 = vunpack.c.l.b16 %v4905
        %v5127 = vunpack.c.h.b16 %v4905
        %v5128 = vunpack.c.l.b16 %v4906
        %v5129 = vunpack.c.h.b16 %v4906
        %v5130 = vunpack.c.l.b16 %v4907
        %v5131 = vunpack.c.h.b16 %v4907
        %v5132 = vunpack.c.l.b16 %v4908
        %v5133 = vunpack.c.h.b16 %v4908
        %v5134 = vunpack.c.l.b16 %v4909
        %v5135 = vunpack.c.h.b16 %v4909
        %v5136 = vunpack.c.l.b16 %v4910
        %v5137 = vunpack.c.h.b16 %v4910
        %v5138 = vunpack.c.l.b16 %v4911
        %v5139 = vunpack.c.h.b16 %v4911
        %v5140 = vunpack.c.l.b16 %v4912
        %v5141 = vunpack.c.h.b16 %v4912
        %v5142 = vunpack.c.l.b16 %v4913
        %v5143 = vunpack.c.h.b16 %v4913
        %v5144 = vunpack.c.l.b16 %v4914
        %v5145 = vunpack.c.h.b16 %v4914
        %v5146 = vunpack.c.l.b16 %v4915
        %v5147 = vunpack.c.h.b16 %v4915
        %v5148 = vunpack.c.l.b16 %v4916
        %v5149 = vunpack.c.h.b16 %v4916
        %v5150 = vunpack.c.l.b16 %v4917
        %v5151 = vunpack.c.h.b16 %v4917
        %v5152 = vunpack.c.l.b16 %v4918
        %v5153 = vunpack.c.h.b16 %v4918
        %v5154 = vunpack.c.l.b16 %v4919
        %v5155 = vunpack.c.h.b16 %v4919
        %v5156 = vunpack.c.l.b16 %v4920
        %v5157 = vunpack.c.h.b16 %v4920
        %v5158 = vunpack.c.l.b16 %v4921
        %v5159 = vunpack.c.h.b16 %v4921
        %v5160 = vunpack.c.l.b16 %v4922
        %v5161 = vunpack.c.h.b16 %v4922
        %v5162 = vunpack.c.l.b16 %v4923
        %v5163 = vunpack.c.h.b16 %v4923
        %v5164 = vunpack.c.l.b16 %v4924
        %v5165 = vunpack.c.h.b16 %v4924
        %v5166 = vunpack.c.l.b16 %v4925
        %v5167 = vunpack.c.h.b16 %v4925
        %v5168 = vunpack.c.l.b16 %v4926
        %v5169 = vunpack.c.h.b16 %v4926
        %v5170 = vunpack.c.l.b16 %v4927
        %v5171 = vunpack.c.h.b16 %v4927
        %v5172 = vunpack.c.l.b16 %v4928
        %v5173 = vunpack.c.h.b16 %v4928
        %v5174 = vunpack.c.l.b16 %v4929
        %v5175 = vunpack.c.h.b16 %v4929
        %v5176 = vunpack.c.l.b16 %v4930
        %v5177 = vunpack.c.h.b16 %v4930
        %v5178 = vunpack.c.l.b16 %v4931
        %v5179 = vunpack.c.h.b16 %v4931
        %v5180 = vunpack.c.l.b16 %v4932
        %v5181 = vunpack.c.h.b16 %v4932
        %v5182 = vunpack.c.l.b16 %v4933
        %v5183 = vunpack.c.h.b16 %v4933
        %v5184 = vunpack.c.l.b16 %v4934
        %v5185 = vunpack.c.h.b16 %v4934
        %v5186 = vunpack.c.l.b16 %v4935
        %v5187 = vunpack.c.h.b16 %v4935
        %v5188 = vunpack.c.l.b16 %v4936
        %v5189 = vunpack.c.h.b16 %v4936
        %v5190 = vunpack.c.l.b16 %v4937
        %v5191 = vunpack.c.h.b16 %v4937
        %v5192 = vunpack.c.l.b16 %v4938
        %v5193 = vunpack.c.h.b16 %v4938
        %v5194 = vunpack.c.l.b16 %v4939
        %v5195 = vunpack.c.h.b16 %v4939
        %v5196 = vunpack.c.l.b16 %v4940
        %v5197 = vunpack.c.h.b16 %v4940
        %v5198 = vunpack.c.l.b16 %v4941
        %v5199 = vunpack.c.h.b16 %v4941
        %v5200 = vunpack.c.l.b16 %v4942
        %v5201 = vunpack.c.h.b16 %v4942
        %v5202 = vunpack.c.l.b16 %v4943
        %v5203 = vunpack.c.h.b16 %v4943
        %v5204 = vunpack.c.l.b16 %v4944
        %v5205 = vunpack.c.h.b16 %v4944
        %v5206 = vunpack.c.l.b16 %v4945
        %v5207 = vunpack.c.h.b16 %v4945
        %v5208 = vunpack.c.l.b16 %v4946
        %v5209 = vunpack.c.h.b16 %v4946
        %v5210 = vunpack.c.l.b16 %v4947
        %v5211 = vunpack.c.h.b16 %v4947
        %v5212 = vunpack.c.l.b16 %v4948
        %v5213 = vunpack.c.h.b16 %v4948
        %v5214 = vunpack.c.l.b16 %v4949
        %v5215 = vunpack.c.h.b16 %v4949
        %v5216 = vunpack.c.l.b16 %v4950
        %v5217 = vunpack.c.h.b16 %v4950
        %v5218 = vunpack.c.l.b16 %v4951
        %v5219 = vunpack.c.h.b16 %v4951
        %v5220 = vunpack.c.l.b16 %v4952
        %v5221 = vunpack.c.h.b16 %v4952
        %v5222 = vunpack.c.l.b16 %v4953
        %v5223 = vunpack.c.h.b16 %v4953
        %v5224 = vunpack.c.l.b16 %v4954
        %v5225 = vunpack.c.h.b16 %v4954
        %v5226 = vunpack.c.l.b16 %v4955
        %v5227 = vunpack.c.h.b16 %v4955
        %v5228 = vunpack.c.l.b16 %v4956
        %v5229 = vunpack.c.h.b16 %v4956
        %v5230 = vunpack.c.l.b16 %v4957
        %v5231 = vunpack.c.h.b16 %v4957
        %v5232 = vunpack.c.l.b16 %v4958
        %v5233 = vunpack.c.h.b16 %v4958
        %v5234 = vunpack.c.l.b16 %v4959
        %v5235 = vunpack.c.h.b16 %v4959
        %v5236 = vunpack.c.l.b16 %v4960
        %v5237 = vunpack.c.h.b16 %v4960
        %v5238 = vunpack.c.l.b16 %v4961
        %v5239 = vunpack.c.h.b16 %v4961
        %v5240 = vunpack.c.l.b16 %v4962
        %v5241 = vunpack.c.h.b16 %v4962
        %v5242 = vunpack.c.l.b16 %v4963
        %v5243 = vunpack.c.h.b16 %v4963
        %v5244 = vunpack.c.l.b16 %v4964
        %v5245 = vunpack.c.h.b16 %v4964
        %v5246 = vunpack.c.l.b16 %v4965
        %v5247 = vunpack.c.h.b16 %v4965
        %v5248 = vunpack.c.l.b16 %v4966
        %v5249 = vunpack.c.h.b16 %v4966
        %v5250 = vunpack.c.l.b16 %v4967
        %v5251 = vunpack.c.h.b16 %v4967
        %v5252 = vunpack.c.l.b16 %v4968
        %v5253 = vunpack.c.h.b16 %v4968
        %v5254 = vunpack.c.l.b16 %v4969
        %v5255 = vunpack.c.h.b16 %v4969
        %v5256 = vunpack.c.l.b16 %v4970
        %v5257 = vunpack.c.h.b16 %v4970
        %v5258 = vunpack.c.l.b16 %v4971
        %v5259 = vunpack.c.h.b16 %v4971
        %v5260 = vunpack.c.l.b16 %v4972
        %v5261 = vunpack.c.h.b16 %v4972
        %v5262 = vunpack.c.l.b16 %v4973
        %v5263 = vunpack.c.h.b16 %v4973
        %v5264 = vunpack.c.l.b16 %v4974
        %v5265 = vunpack.c.h.b16 %v4974
        %v5266 = vunpack.c.l.b16 %v4975
        %v5267 = vunpack.c.h.b16 %v4975
        %v5268 = vunpack.c.l.b16 %v4976
        %v5269 = vunpack.c.h.b16 %v4976
        %v5270 = vunpack.c.l.b16 %v4977
        %v5271 = vunpack.c.h.b16 %v4977
        %v5272 = vunpack.c.l.b16 %v4978
        %v5273 = vunpack.c.h.b16 %v4978
        %v5274 = vunpack.c.l.b16 %v4979
        %v5275 = vunpack.c.h.b16 %v4979
        %v5276 = vunpack.c.l.b16 %v4980
        %v5277 = vunpack.c.h.b16 %v4980
        %v5278 = vunpack.c.l.b16 %v4981
        %v5279 = vunpack.c.h.b16 %v4981
        %v5280 = vunpack.c.l.b16 %v4982
        %v5281 = vunpack.c.h.b16 %v4982
        %v5282 = vunpack.c.l.b16 %v4983
        %v5283 = vunpack.c.h.b16 %v4983
        %v5284 = vunpack.c.l.b16 %v4984
        %v5285 = vunpack.c.h.b16 %v4984
        %v5286 = vunpack.c.l.b16 %v4985
        %v5287 = vunpack.c.h.b16 %v4985
        %v5288 = vunpack.c.l.b16 %v4986
        %v5289 = vunpack.c.h.b16 %v4986
        %v5290 = vunpack.c.l.b16 %v4987
        %v5291 = vunpack.c.h.b16 %v4987
        %v5292 = vunpack.c.l.b16 %v4988
        %v5293 = vunpack.c.h.b16 %v4988
        %v5294 = vunpack.c.l.b16 %v4989
        %v5295 = vunpack.c.h.b16 %v4989
        %v5296 = vunpack.c.l.b16 %v4990
        %v5297 = vunpack.c.h.b16 %v4990
        %v5298 = vunpack.c.l.b16 %v4991
        %v5299 = vunpack.c.h.b16 %v4991
        %v5300 = vunpack.c.l.b16 %v4992
        %v5301 = vunpack.c.h.b16 %v4992
        %v5302 = vunpack.c.l.b16 %v4993
        %v5303 = vunpack.c.h.b16 %v4993
        %v5304 = vpack.c.b16 %v5116, %v5112
        %v5305 = vpack.c.b16 %v5117, %v5113
        %v5306 = vpack.c.b16 %v5118, %v5114
        %v5307 = vpack.c.b16 %v5119, %v5115
        %v5308 = vpack.c.b16 %v5124, %v5120
        %v5309 = vpack.c.b16 %v5125, %v5121
        %v5310 = vpack.c.b16 %v5126, %v5122
        %v5311 = vpack.c.b16 %v5127, %v5123
        %v5312 = vpack.c.b16 %v5132, %v5128
        %v5313 = vpack.c.b16 %v5133, %v5129
        %v5314 = vpack.c.b16 %v5134, %v5130
        %v5315 = vpack.c.b16 %v5135, %v5131
        %v5316 = vpack.c.b16 %v5140, %v5136
        %v5317 = vpack.c.b16 %v5141, %v5137
        %v5318 = vpack.c.b16 %v5142, %v5138
        %v5319 = vpack.c.b16 %v5143, %v5139
        %v5320 = vpack.c.b16 %v5148, %v5144
        %v5321 = vpack.c.b16 %v5149, %v5145
        %v5322 = vpack.c.b16 %v5150, %v5146
        %v5323 = vpack.c.b16 %v5151, %v5147
        %v5324 = vpack.c.b16 %v5156, %v5152
        %v5325 = vpack.c.b16 %v5157, %v5153
        %v5326 = vpack.c.b16 %v5158, %v5154
        %v5327 = vpack.c.b16 %v5159, %v5155
        %v5328 = vpack.c.b16 %v5164, %v5160
        %v5329 = vpack.c.b16 %v5165, %v5161
        %v5330 = vpack.c.b16 %v5166, %v5162
        %v5331 = vpack.c.b16 %v5167, %v5163
        %v5332 = vpack.c.b16 %v5172, %v5168
        %v5333 = vpack.c.b16 %v5173, %v5169
        %v5334 = vpack.c.b16 %v5174, %v5170
        %v5335 = vpack.c.b16 %v5175, %v5171
        %v5336 = vpack.c.b16 %v5180, %v5176
        %v5337 = vpack.c.b16 %v5181, %v5177
        %v5338 = vpack.c.b16 %v5182, %v5178
        %v5339 = vpack.c.b16 %v5183, %v5179
        %v5340 = vpack.c.b16 %v5188, %v5184
        %v5341 = vpack.c.b16 %v5189, %v5185
        %v5342 = vpack.c.b16 %v5190, %v5186
        %v5343 = vpack.c.b16 %v5191, %v5187
        %v5344 = vpack.c.b16 %v5196, %v5192
        %v5345 = vpack.c.b16 %v5197, %v5193
        %v5346 = vpack.c.b16 %v5198, %v5194
        %v5347 = vpack.c.b16 %v5199, %v5195
        %v5348 = vpack.c.b16 %v5204, %v5200
        %v5349 = vpack.c.b16 %v5205, %v5201
        %v5350 = vpack.c.b16 %v5206, %v5202
        %v5351 = vpack.c.b16 %v5207, %v5203
        %v5352 = vpack.c.b16 %v5212, %v5208
        %v5353 = vpack.c.b16 %v5213, %v5209
        %v5354 = vpack.c.b16 %v5214, %v5210
        %v5355 = vpack.c.b16 %v5215, %v5211
        %v5356 = vpack.c.b16 %v5220, %v5216
        %v5357 = vpack.c.b16 %v5221, %v5217
        %v5358 = vpack.c.b16 %v5222, %v5218
        %v5359 = vpack.c.b16 %v5223, %v5219
        %v5360 = vpack.c.b16 %v5228, %v5224
        %v5361 = vpack.c.b16 %v5229, %v5225
        %v5362 = vpack.c.b16 %v5230, %v5226
        %v5363 = vpack.c.b16 %v5231, %v5227
        %v5364 = vpack.c.b16 %v5236, %v5232
        %v5365 = vpack.c.b16 %v5237, %v5233
        %v5366 = vpack.c.b16 %v5238, %v5234
        %v5367 = vpack.c.b16 %v5239, %v5235
        %v5368 = vpack.c.b16 %v5244, %v5240
        %v5369 = vpack.c.b16 %v5245, %v5241
        %v5370 = vpack.c.b16 %v5246, %v5242
        %v5371 = vpack.c.b16 %v5247, %v5243
        %v5372 = vpack.c.b16 %v5252, %v5248
        %v5373 = vpack.c.b16 %v5253, %v5249
        %v5374 = vpack.c.b16 %v5254, %v5250
        %v5375 = vpack.c.b16 %v5255, %v5251
        %v5376 = vpack.c.b16 %v5260, %v5256
        %v5377 = vpack.c.b16 %v5261, %v5257
        %v5378 = vpack.c.b16 %v5262, %v5258
        %v5379 = vpack.c.b16 %v5263, %v5259
        %v5380 = vpack.c.b16 %v5268, %v5264
        %v5381 = vpack.c.b16 %v5269, %v5265
        %v5382 = vpack.c.b16 %v5270, %v5266
        %v5383 = vpack.c.b16 %v5271, %v5267
        %v5384 = vpack.c.b16 %v5276, %v5272
        %v5385 = vpack.c.b16 %v5277, %v5273
        %v5386 = vpack.c.b16 %v5278, %v5274
        %v5387 = vpack.c.b16 %v5279, %v5275
        %v5388 = vpack.c.b16 %v5284, %v5280
        %v5389 = vpack.c.b16 %v5285, %v5281
        %v5390 = vpack.c.b16 %v5286, %v5282
        %v5391 = vpack.c.b16 %v5287, %v5283
        %v5392 = vpack.c.b16 %v5292, %v5288
        %v5393 = vpack.c.b16 %v5293, %v5289
        %v5394 = vpack.c.b16 %v5294, %v5290
        %v5395 = vpack.c.b16 %v5295, %v5291
        %v5396 = vpack.c.b16 %v5300, %v5296
        %v5397 = vpack.c.b16 %v5301, %v5297
        %v5398 = vpack.c.b16 %v5302, %v5298
        %v5399 = vpack.c.b16 %v5303, %v5299
        %5496 = vmatprep.subr.bf16.mxu0 %v5305
        %5497 = vmatpush1.bf16.msra.mxu0 %v5304
        %5498 = vmatprep.subr.bf16.mxu0 %v5309
        %5499 = vmatpush1.bf16.msra.mxu0 %v5308
        %5500 = vmatprep.subr.bf16.mxu0 %v5313
        %5501 = vmatpush1.bf16.msra.mxu0 %v5312
        %5502 = vmatprep.subr.bf16.mxu0 %v5317
        %5503 = vmatpush1.bf16.msra.mxu0 %v5316
        %5504 = vmatprep.subr.bf16.mxu0 %v5321
        %5505 = vmatpush1.bf16.msra.mxu0 %v5320
        %5506 = vmatprep.subr.bf16.mxu0 %v5325
        %5507 = vmatpush1.bf16.msra.mxu0 %v5324
        %5508 = vmatprep.subr.bf16.mxu0 %v5329
        %5509 = vmatpush1.bf16.msra.mxu0 %v5328
        %5510 = vmatprep.subr.bf16.mxu0 %v5333
        %5511 = vmatpush1.bf16.msra.mxu0 %v5332
        %5512 = vmatprep.subr.bf16.mxu0 %v5337
        %5513 = vmatpush1.bf16.msra.mxu0 %v5336
        %5514 = vmatprep.subr.bf16.mxu0 %v5341
        %5515 = vmatpush1.bf16.msra.mxu0 %v5340
        %5516 = vmatprep.subr.bf16.mxu0 %v5345
        %5517 = vmatpush1.bf16.msra.mxu0 %v5344
        %5518 = vmatprep.subr.bf16.mxu0 %v5349
        %5519 = vmatpush1.bf16.msra.mxu0 %v5348
        %5520 = vmatprep.subr.bf16.mxu0 %v5353
        %5521 = vmatpush1.bf16.msra.mxu0 %v5352
        %5522 = vmatprep.subr.bf16.mxu0 %v5357
        %5523 = vmatpush1.bf16.msra.mxu0 %v5356
        %5524 = vmatprep.subr.bf16.mxu0 %v5361
        %5525 = vmatpush1.bf16.msra.mxu0 %v5360
        %5526 = vmatprep.subr.bf16.mxu0 %v5365
        %5527 = vmatpush1.bf16.msra.mxu0 %v5364
        %5528 = vmatprep.mubr.bf16.mxu0 %v350
        %5529 = vmatmul.mubr.bf16.gmra.mrb[0].mxu0 %v349
        %v5530 = vpop.f32.mrb[0].mxu0
        %v5531 = vadd.f32 %v4999, %v5530
        %v5532 = vpop.f32.mrb[0].mxu0
        %v5533 = vadd.f32 %v5003, %v5532
        %v5534 = vpop.f32.mrb[0].mxu0
        %v5535 = vadd.f32 %v4999, %v5534
        %v5536 = vpop.f32.mrb[0].mxu0
        %v5537 = vadd.f32 %v5003, %v5536
        %5538 = vmatprep.mubr.bf16.mxu0 %v353
        %5539 = vmatmul.mubr.bf16.gmra.mrb[0].mxu0 %v352
        %v5540 = vpop.f32.mrb[0].mxu0
        %v5541 = vadd.f32 %v4999, %v5540
        %v5542 = vpop.f32.mrb[0].mxu0
        %v5543 = vadd.f32 %v5003, %v5542
        %v5544 = vpop.f32.mrb[0].mxu0
        %v5545 = vadd.f32 %v4999, %v5544
        %v5546 = vpop.f32.mrb[0].mxu0
        %v5547 = vadd.f32 %v5003, %v5546
        %5548 = vmatprep.mubr.bf16.mxu0 %v356
        %5549 = vmatmul.mubr.bf16.gmra.mrb[0].mxu0 %v355
        %v5550 = vpop.f32.mrb[0].mxu0
        %v5551 = vadd.f32 %v4999, %v5550
        %v5552 = vpop.f32.mrb[0].mxu0
        %v5553 = vadd.f32 %v5003, %v5552
        %v5554 = vpop.f32.mrb[0].mxu0
        %v5555 = vadd.f32 %v4999, %v5554
        %v5556 = vpop.f32.mrb[0].mxu0
        %v5557 = vadd.f32 %v5003, %v5556
        %5558 = vmatprep.mubr.bf16.mxu0 %v359
        %5559 = vmatmul.mubr.bf16.gmra.mrb[0].mxu0 %v358
        %v5560 = vpop.f32.mrb[0].mxu0
        %v5561 = vadd.f32 %v4999, %v5560
        %v5562 = vpop.f32.mrb[0].mxu0
        %v5563 = vadd.f32 %v5003, %v5562
        %v5564 = vpop.f32.mrb[0].mxu0
        %v5565 = vadd.f32 %v4999, %v5564
        %v5566 = vpop.f32.mrb[0].mxu0
        %v5567 = vadd.f32 %v5003, %v5566
        %5568 = vmatprep.mubr.bf16.mxu0 %v362
        %5569 = vmatmul.mubr.bf16.gmra.mrb[0].mxu0 %v361
        %v5570 = vpop.f32.mrb[0].mxu0
        %v5571 = vadd.f32 %v4999, %v5570
        %v5572 = vpop.f32.mrb[0].mxu0
        %v5573 = vadd.f32 %v5003, %v5572
        %v5574 = vpop.f32.mrb[0].mxu0
        %v5575 = vadd.f32 %v4999, %v5574
        %v5576 = vpop.f32.mrb[0].mxu0
        %v5577 = vadd.f32 %v5003, %v5576
        %5578 = vmatprep.mubr.bf16.mxu0 %v365
        %5579 = vmatmul.mubr.bf16.gmra.mrb[0].mxu0 %v364
        %v5580 = vpop.f32.mrb[0].mxu0
        %v5581 = vadd.f32 %v4999, %v5580
        %v5582 = vpop.f32.mrb[0].mxu0
        %v5583 = vadd.f32 %v5003, %v5582
        %v5584 = vpop.f32.mrb[0].mxu0
        %v5585 = vadd.f32 %v4999, %v5584
        %v5586 = vpop.f32.mrb[0].mxu0
        %v5587 = vadd.f32 %v5003, %v5586
        %5588 = vmatprep.mubr.bf16.mxu0 %v368
        %5589 = vmatmul.mubr.bf16.gmra.mrb[0].mxu0 %v367
        %v5590 = vpop.f32.mrb[0].mxu0
        %v5591 = vadd.f32 %v4999, %v5590
        %v5592 = vpop.f32.mrb[0].mxu0
        %v5593 = vadd.f32 %v5003, %v5592
        %v5594 = vpop.f32.mrb[0].mxu0
        %v5595 = vadd.f32 %v4999, %v5594
        %v5596 = vpop.f32.mrb[0].mxu0
        %v5597 = vadd.f32 %v5003, %v5596
        %5598 = vmatprep.mubr.bf16.mxu0 %v371
        %5599 = vmatmul.mubr.bf16.gmra.mrb[0].mxu0 %v370
        %v5600 = vpop.f32.mrb[0].mxu0
        %v5601 = vadd.f32 %v4999, %v5600
        %v5602 = vpop.f32.mrb[0].mxu0
        %v5603 = vadd.f32 %v5003, %v5602
        %v5604 = vpop.f32.mrb[0].mxu0
        %v5605 = vadd.f32 %v4999, %v5604
        %v5606 = vpop.f32.mrb[0].mxu0
        %v5607 = vadd.f32 %v5003, %v5606
        %5608 = vdwg.mxu0
        %5609 = vmatprep.subr.bf16.mxu0 %v5369
        %5610 = vmatpush1.bf16.msra.mxu0 %v5368
        %5611 = vmatprep.subr.bf16.mxu0 %v5373
        %5612 = vmatpush1.bf16.msra.mxu0 %v5372
        %5613 = vmatprep.subr.bf16.mxu0 %v5377
        %5614 = vmatpush1.bf16.msra.mxu0 %v5376
        %5615 = vmatprep.subr.bf16.mxu0 %v5381
        %5616 = vmatpush1.bf16.msra.mxu0 %v5380
        %5617 = vmatprep.subr.bf16.mxu0 %v5385
        %5618 = vmatpush1.bf16.msra.mxu0 %v5384
        %5619 = vmatprep.subr.bf16.mxu0 %v5389
        %5620 = vmatpush1.bf16.msra.mxu0 %v5388
        %5621 = vmatprep.subr.bf16.mxu0 %v5393
        %5622 = vmatpush1.bf16.msra.mxu0 %v5392
        %5623 = vmatprep.subr.bf16.mxu0 %v5397
        %5624 = vmatpush1.bf16.msra.mxu0 %v5396
        %5625 = vmatprep.subr.bf16.mxu0 0
        %5626 = vmatpush1.bf16.msra.mxu0 0
        %5627 = vmatprep.subr.bf16.mxu0 0
        %5628 = vmatpush1.bf16.msra.mxu0 0
        %5629 = vmatprep.subr.bf16.mxu0 0
        %5630 = vmatpush1.bf16.msra.mxu0 0
        %5631 = vmatprep.subr.bf16.mxu0 0
        %5632 = vmatpush1.bf16.msra.mxu0 0
        %5633 = vmatprep.subr.bf16.mxu0 0
        %5634 = vmatpush1.bf16.msra.mxu0 0
        %5635 = vmatprep.subr.bf16.mxu0 0
        %5636 = vmatpush1.bf16.msra.mxu0 0
        %5637 = vmatprep.subr.bf16.mxu0 0
        %5638 = vmatpush1.bf16.msra.mxu0 0
        %5639 = vmatprep.subr.bf16.mxu0 0
        %5640 = vmatpush1.bf16.msra.mxu0 0
        %5641 = vmatprep.mubr.bf16.mxu0 0
        %5642 = vmatmul.mubr.bf16.gmra.mrb[0].mxu0 %v351
        %v5643 = vpop.f32.mrb[0].mxu0
        %v5644 = vadd.f32 %v5531, %v5643
        %v5645 = vpop.f32.mrb[0].mxu0
        %v5646 = vadd.f32 %v5533, %v5645
        %v5647 = vpop.f32.mrb[0].mxu0
        %v5648 = vadd.f32 %v5535, %v5647
        %v5649 = vpop.f32.mrb[0].mxu0
        %v5650 = vadd.f32 %v5537, %v5649
        %5651 = vmatprep.mubr.bf16.mxu0 0
        %5652 = vmatmul.mubr.bf16.gmra.mrb[0].mxu0 %v354
        %v5653 = vpop.f32.mrb[0].mxu0
        %v5654 = vadd.f32 %v5541, %v5653
        %v5655 = vpop.f32.mrb[0].mxu0
        %v5656 = vadd.f32 %v5543, %v5655
        %v5657 = vpop.f32.mrb[0].mxu0
        %v5658 = vadd.f32 %v5545, %v5657
        %v5659 = vpop.f32.mrb[0].mxu0
        %v5660 = vadd.f32 %v5547, %v5659
        %5661 = vmatprep.mubr.bf16.mxu0 0
        %5662 = vmatmul.mubr.bf16.gmra.mrb[0].mxu0 %v357
        %v5663 = vpop.f32.mrb[0].mxu0
        %v5664 = vadd.f32 %v5551, %v5663
        %v5665 = vpop.f32.mrb[0].mxu0
        %v5666 = vadd.f32 %v5553, %v5665
        %v5667 = vpop.f32.mrb[0].mxu0
        %v5668 = vadd.f32 %v5555, %v5667
        %v5669 = vpop.f32.mrb[0].mxu0
        %v5670 = vadd.f32 %v5557, %v5669
        %5671 = vmatprep.mubr.bf16.mxu0 0
        %5672 = vmatmul.mubr.bf16.gmra.mrb[0].mxu0 %v360
        %v5673 = vpop.f32.mrb[0].mxu0
        %v5674 = vadd.f32 %v5561, %v5673
        %v5675 = vpop.f32.mrb[0].mxu0
        %v5676 = vadd.f32 %v5563, %v5675
        %v5677 = vpop.f32.mrb[0].mxu0
        %v5678 = vadd.f32 %v5565, %v5677
        %v5679 = vpop.f32.mrb[0].mxu0
        %v5680 = vadd.f32 %v5567, %v5679
        %5681 = vmatprep.mubr.bf16.mxu0 0
        %5682 = vmatmul.mubr.bf16.gmra.mrb[0].mxu0 %v363
        %v5683 = vpop.f32.mrb[0].mxu0
        %v5684 = vadd.f32 %v5571, %v5683
        %v5685 = vpop.f32.mrb[0].mxu0
        %v5686 = vadd.f32 %v5573, %v5685
        %v5687 = vpop.f32.mrb[0].mxu0
        %v5688 = vadd.f32 %v5575, %v5687
        %v5689 = vpop.f32.mrb[0].mxu0
        %v5690 = vadd.f32 %v5577, %v5689
        %5691 = vmatprep.mubr.bf16.mxu0 0
        %5692 = vmatmul.mubr.bf16.gmra.mrb[0].mxu0 %v366
        %v5693 = vpop.f32.mrb[0].mxu0
        %v5694 = vadd.f32 %v5581, %v5693
        %v5695 = vpop.f32.mrb[0].mxu0
        %v5696 = vadd.f32 %v5583, %v5695
        %v5697 = vpop.f32.mrb[0].mxu0
        %v5698 = vadd.f32 %v5585, %v5697
        %v5699 = vpop.f32.mrb[0].mxu0
        %v5700 = vadd.f32 %v5587, %v5699
        %5701 = vmatprep.mubr.bf16.mxu0 0
        %5702 = vmatmul.mubr.bf16.gmra.mrb[0].mxu0 %v369
        %v5703 = vpop.f32.mrb[0].mxu0
        %v5704 = vadd.f32 %v5591, %v5703
        %v5705 = vpop.f32.mrb[0].mxu0
        %v5706 = vadd.f32 %v5593, %v5705
        %v5707 = vpop.f32.mrb[0].mxu0
        %v5708 = vadd.f32 %v5595, %v5707
        %v5709 = vpop.f32.mrb[0].mxu0
        %v5710 = vadd.f32 %v5597, %v5709
        %5711 = vmatprep.mubr.bf16.mxu0 0
        %5712 = vmatmul.mubr.bf16.gmra.mrb[0].mxu0 %v372
        %v5713 = vpop.f32.mrb[0].mxu0
        %v5714 = vadd.f32 %v5601, %v5713
        %v5715 = vpop.f32.mrb[0].mxu0
        %v5716 = vadd.f32 %v5603, %v5715
        %v5717 = vpop.f32.mrb[0].mxu0
        %v5718 = vadd.f32 %v5605, %v5717
        %v5719 = vpop.f32.mrb[0].mxu0
        %v5720 = vadd.f32 %v5607, %v5719
        %5721 = vdwg.mxu0
        %5722 = vmatprep.subr.bf16.mxu0 %v5307
        %5723 = vmatpush1.bf16.msra.mxu0 %v5306
        %5724 = vmatprep.subr.bf16.mxu0 %v5311
        %5725 = vmatpush1.bf16.msra.mxu0 %v5310
        %5726 = vmatprep.subr.bf16.mxu0 %v5315
        %5727 = vmatpush1.bf16.msra.mxu0 %v5314
        %5728 = vmatprep.subr.bf16.mxu0 %v5319
        %5729 = vmatpush1.bf16.msra.mxu0 %v5318
        %5730 = vmatprep.subr.bf16.mxu0 %v5323
        %5731 = vmatpush1.bf16.msra.mxu0 %v5322
        %5732 = vmatprep.subr.bf16.mxu0 %v5327
        %5733 = vmatpush1.bf16.msra.mxu0 %v5326
        %5734 = vmatprep.subr.bf16.mxu0 %v5331
        %5735 = vmatpush1.bf16.msra.mxu0 %v5330
        %5736 = vmatprep.subr.bf16.mxu0 %v5335
        %5737 = vmatpush1.bf16.msra.mxu0 %v5334
        %5738 = vmatprep.subr.bf16.mxu0 %v5339
        %5739 = vmatpush1.bf16.msra.mxu0 %v5338
        %5740 = vmatprep.subr.bf16.mxu0 %v5343
        %5741 = vmatpush1.bf16.msra.mxu0 %v5342
        %5742 = vmatprep.subr.bf16.mxu0 %v5347
        %5743 = vmatpush1.bf16.msra.mxu0 %v5346
        %5744 = vmatprep.subr.bf16.mxu0 %v5351
        %5745 = vmatpush1.bf16.msra.mxu0 %v5350
        %5746 = vmatprep.subr.bf16.mxu0 %v5355
        %5747 = vmatpush1.bf16.msra.mxu0 %v5354
        %5748 = vmatprep.subr.bf16.mxu0 %v5359
        %5749 = vmatpush1.bf16.msra.mxu0 %v5358
        %5750 = vmatprep.subr.bf16.mxu0 %v5363
        %5751 = vmatpush1.bf16.msra.mxu0 %v5362
        %5752 = vmatprep.subr.bf16.mxu0 %v5367
        %5753 = vmatpush1.bf16.msra.mxu0 %v5366
        %5754 = vmatprep.mubr.bf16.mxu0 %v350
        %5755 = vmatmul.mubr.bf16.gmra.mrb[0].mxu0 %v349
        %v5756 = vpop.f32.mrb[0].mxu0
        %v5757 = vadd.f32 %v5007, %v5756
        %v5758 = vpop.f32.mrb[0].mxu0
        %v5759 = vadd.f32 %v5011, %v5758
        %v5760 = vpop.f32.mrb[0].mxu0
        %v5761 = vadd.f32 %v5007, %v5760
        %v5762 = vpop.f32.mrb[0].mxu0
        %v5763 = vadd.f32 %v5011, %v5762
        %5764 = vmatprep.mubr.bf16.mxu0 %v353
        %5765 = vmatmul.mubr.bf16.gmra.mrb[0].mxu0 %v352
        %v5766 = vpop.f32.mrb[0].mxu0
        %v5767 = vadd.f32 %v5007, %v5766
        %v5768 = vpop.f32.mrb[0].mxu0
        %v5769 = vadd.f32 %v5011, %v5768
        %v5770 = vpop.f32.mrb[0].mxu0
        %v5771 = vadd.f32 %v5007, %v5770
        %v5772 = vpop.f32.mrb[0].mxu0
        %v5773 = vadd.f32 %v5011, %v5772
        %5774 = vmatprep.mubr.bf16.mxu0 %v356
        %5775 = vmatmul.mubr.bf16.gmra.mrb[0].mxu0 %v355
        %v5776 = vpop.f32.mrb[0].mxu0
        %v5777 = vadd.f32 %v5007, %v5776
        %v5778 = vpop.f32.mrb[0].mxu0
        %v5779 = vadd.f32 %v5011, %v5778
        %v5780 = vpop.f32.mrb[0].mxu0
        %v5781 = vadd.f32 %v5007, %v5780
        %v5782 = vpop.f32.mrb[0].mxu0
        %v5783 = vadd.f32 %v5011, %v5782
        %5784 = vmatprep.mubr.bf16.mxu0 %v359
        %5785 = vmatmul.mubr.bf16.gmra.mrb[0].mxu0 %v358
        %v5786 = vpop.f32.mrb[0].mxu0
        %v5787 = vadd.f32 %v5007, %v5786
        %v5788 = vpop.f32.mrb[0].mxu0
        %v5789 = vadd.f32 %v5011, %v5788
        %v5790 = vpop.f32.mrb[0].mxu0
        %v5791 = vadd.f32 %v5007, %v5790
        %v5792 = vpop.f32.mrb[0].mxu0
        %v5793 = vadd.f32 %v5011, %v5792
        %5794 = vmatprep.mubr.bf16.mxu0 %v362
        %5795 = vmatmul.mubr.bf16.gmra.mrb[0].mxu0 %v361
        %v5796 = vpop.f32.mrb[0].mxu0
        %v5797 = vadd.f32 %v5007, %v5796
        %v5798 = vpop.f32.mrb[0].mxu0
        %v5799 = vadd.f32 %v5011, %v5798
        %v5800 = vpop.f32.mrb[0].mxu0
        %v5801 = vadd.f32 %v5007, %v5800
        %v5802 = vpop.f32.mrb[0].mxu0
        %v5803 = vadd.f32 %v5011, %v5802
        %5804 = vmatprep.mubr.bf16.mxu0 %v365
        %5805 = vmatmul.mubr.bf16.gmra.mrb[0].mxu0 %v364
        %v5806 = vpop.f32.mrb[0].mxu0
        %v5807 = vadd.f32 %v5007, %v5806
        %v5808 = vpop.f32.mrb[0].mxu0
        %v5809 = vadd.f32 %v5011, %v5808
        %v5810 = vpop.f32.mrb[0].mxu0
        %v5811 = vadd.f32 %v5007, %v5810
        %v5812 = vpop.f32.mrb[0].mxu0
        %v5813 = vadd.f32 %v5011, %v5812
        %5814 = vmatprep.mubr.bf16.mxu0 %v368
        %5815 = vmatmul.mubr.bf16.gmra.mrb[0].mxu0 %v367
        %v5816 = vpop.f32.mrb[0].mxu0
        %v5817 = vadd.f32 %v5007, %v5816
        %v5818 = vpop.f32.mrb[0].mxu0
        %v5819 = vadd.f32 %v5011, %v5818
        %v5820 = vpop.f32.mrb[0].mxu0
        %v5821 = vadd.f32 %v5007, %v5820
        %v5822 = vpop.f32.mrb[0].mxu0
        %v5823 = vadd.f32 %v5011, %v5822
        %5824 = vmatprep.mubr.bf16.mxu0 %v371
        %5825 = vmatmul.mubr.bf16.gmra.mrb[0].mxu0 %v370
        %v5826 = vpop.f32.mrb[0].mxu0
        %v5827 = vadd.f32 %v5007, %v5826
        %v5828 = vpop.f32.mrb[0].mxu0
        %v5829 = vadd.f32 %v5011, %v5828
        %v5830 = vpop.f32.mrb[0].mxu0
        %v5831 = vadd.f32 %v5007, %v5830
        %v5832 = vpop.f32.mrb[0].mxu0
        %v5833 = vadd.f32 %v5011, %v5832
        %5834 = vdwg.mxu0
        %5835 = vmatprep.subr.bf16.mxu0 %v5371
        %5836 = vmatpush1.bf16.msra.mxu0 %v5370
        %5837 = vmatprep.subr.bf16.mxu0 %v5375
        %5838 = vmatpush1.bf16.msra.mxu0 %v5374
        %5839 = vmatprep.subr.bf16.mxu0 %v5379
        %5840 = vmatpush1.bf16.msra.mxu0 %v5378
        %5841 = vmatprep.subr.bf16.mxu0 %v5383
        %5842 = vmatpush1.bf16.msra.mxu0 %v5382
        %5843 = vmatprep.subr.bf16.mxu0 %v5387
        %5844 = vmatpush1.bf16.msra.mxu0 %v5386
        %5845 = vmatprep.subr.bf16.mxu0 %v5391
        %5846 = vmatpush1.bf16.msra.mxu0 %v5390
        %5847 = vmatprep.subr.bf16.mxu0 %v5395
        %5848 = vmatpush1.bf16.msra.mxu0 %v5394
        %5849 = vmatprep.subr.bf16.mxu0 %v5399
        %5850 = vmatpush1.bf16.msra.mxu0 %v5398
        %5851 = vmatprep.subr.bf16.mxu0 0
        %5852 = vmatpush1.bf16.msra.mxu0 0
        %5853 = vmatprep.subr.bf16.mxu0 0
        %5854 = vmatpush1.bf16.msra.mxu0 0
        %5855 = vmatprep.subr.bf16.mxu0 0
        %5856 = vmatpush1.bf16.msra.mxu0 0
        %5857 = vmatprep.subr.bf16.mxu0 0
        %5858 = vmatpush1.bf16.msra.mxu0 0
        %5859 = vmatprep.subr.bf16.mxu0 0
        %5860 = vmatpush1.bf16.msra.mxu0 0
        %5861 = vmatprep.subr.bf16.mxu0 0
        %5862 = vmatpush1.bf16.msra.mxu0 0
        %5863 = vmatprep.subr.bf16.mxu0 0
        %5864 = vmatpush1.bf16.msra.mxu0 0
        %5865 = vmatprep.subr.bf16.mxu0 0
        %5866 = vmatpush1.bf16.msra.mxu0 0
        %5867 = vmatprep.mubr.bf16.mxu0 0
        %5868 = vmatmul.mubr.bf16.gmra.mrb[0].mxu0 %v351
        %v5869 = vpop.f32.mrb[0].mxu0
        %v5870 = vadd.f32 %v5757, %v5869
        %v5871 = vpop.f32.mrb[0].mxu0
        %v5872 = vadd.f32 %v5759, %v5871
        %v5873 = vpop.f32.mrb[0].mxu0
        %v5874 = vadd.f32 %v5761, %v5873
        %v5875 = vpop.f32.mrb[0].mxu0
        %v5876 = vadd.f32 %v5763, %v5875
        %5877 = vmatprep.mubr.bf16.mxu0 0
        %5878 = vmatmul.mubr.bf16.gmra.mrb[0].mxu0 %v354
        %v5879 = vpop.f32.mrb[0].mxu0
        %v5880 = vadd.f32 %v5767, %v5879
        %v5881 = vpop.f32.mrb[0].mxu0
        %v5882 = vadd.f32 %v5769, %v5881
        %v5883 = vpop.f32.mrb[0].mxu0
        %v5884 = vadd.f32 %v5771, %v5883
        %v5885 = vpop.f32.mrb[0].mxu0
        %v5886 = vadd.f32 %v5773, %v5885
        %5887 = vmatprep.mubr.bf16.mxu0 0
        %5888 = vmatmul.mubr.bf16.gmra.mrb[0].mxu0 %v357
        %v5889 = vpop.f32.mrb[0].mxu0
        %v5890 = vadd.f32 %v5777, %v5889
        %v5891 = vpop.f32.mrb[0].mxu0
        %v5892 = vadd.f32 %v5779, %v5891
        %v5893 = vpop.f32.mrb[0].mxu0
        %v5894 = vadd.f32 %v5781, %v5893
        %v5895 = vpop.f32.mrb[0].mxu0
        %v5896 = vadd.f32 %v5783, %v5895
        %5897 = vmatprep.mubr.bf16.mxu0 0
        %5898 = vmatmul.mubr.bf16.gmra.mrb[0].mxu0 %v360
        %v5899 = vpop.f32.mrb[0].mxu0
        %v5900 = vadd.f32 %v5787, %v5899
        %v5901 = vpop.f32.mrb[0].mxu0
        %v5902 = vadd.f32 %v5789, %v5901
        %v5903 = vpop.f32.mrb[0].mxu0
        %v5904 = vadd.f32 %v5791, %v5903
        %v5905 = vpop.f32.mrb[0].mxu0
        %v5906 = vadd.f32 %v5793, %v5905
        %5907 = vmatprep.mubr.bf16.mxu0 0
        %5908 = vmatmul.mubr.bf16.gmra.mrb[0].mxu0 %v363
        %v5909 = vpop.f32.mrb[0].mxu0
        %v5910 = vadd.f32 %v5797, %v5909
        %v5911 = vpop.f32.mrb[0].mxu0
        %v5912 = vadd.f32 %v5799, %v5911
        %v5913 = vpop.f32.mrb[0].mxu0
        %v5914 = vadd.f32 %v5801, %v5913
        %v5915 = vpop.f32.mrb[0].mxu0
        %v5916 = vadd.f32 %v5803, %v5915
        %5917 = vmatprep.mubr.bf16.mxu0 0
        %5918 = vmatmul.mubr.bf16.gmra.mrb[0].mxu0 %v366
        %v5919 = vpop.f32.mrb[0].mxu0
        %v5920 = vadd.f32 %v5807, %v5919
        %v5921 = vpop.f32.mrb[0].mxu0
        %v5922 = vadd.f32 %v5809, %v5921
        %v5923 = vpop.f32.mrb[0].mxu0
        %v5924 = vadd.f32 %v5811, %v5923
        %v5925 = vpop.f32.mrb[0].mxu0
        %v5926 = vadd.f32 %v5813, %v5925
        %5927 = vmatprep.mubr.bf16.mxu0 0
        %5928 = vmatmul.mubr.bf16.gmra.mrb[0].mxu0 %v369
        %v5929 = vpop.f32.mrb[0].mxu0
        %v5930 = vadd.f32 %v5817, %v5929
        %v5931 = vpop.f32.mrb[0].mxu0
        %v5932 = vadd.f32 %v5819, %v5931
        %v5933 = vpop.f32.mrb[0].mxu0
        %v5934 = vadd.f32 %v5821, %v5933
        %v5935 = vpop.f32.mrb[0].mxu0
        %v5936 = vadd.f32 %v5823, %v5935
        %5937 = vmatprep.mubr.bf16.mxu0 0
        %5938 = vmatmul.mubr.bf16.gmra.mrb[0].mxu0 %v372
        %v5939 = vpop.f32.mrb[0].mxu0
        %v5940 = vadd.f32 %v5827, %v5939
        %v5941 = vpop.f32.mrb[0].mxu0
        %v5942 = vadd.f32 %v5829, %v5941
        %v5943 = vpop.f32.mrb[0].mxu0
        %v5944 = vadd.f32 %v5831, %v5943
        %v5945 = vpop.f32.mrb[0].mxu0
        %v5946 = vadd.f32 %v5833, %v5945
        %5947 = vdwg.mxu0
        %v5948 = vmax.f32 %v5644, 0.0
        %v5949 = vmax.f32 %v5646, 0.0
        %v5950 = vmax.f32 %v5870, 0.0
        %v5951 = vmax.f32 %v5872, 0.0
        %v5952 = vmax.f32 %v5648, 0.0
        %v5953 = vmax.f32 %v5650, 0.0
        %v5954 = vmax.f32 %v5874, 0.0
        %v5955 = vmax.f32 %v5876, 0.0
        %v5956 = vmax.f32 %v5654, 0.0
        %v5957 = vmax.f32 %v5656, 0.0
        %v5958 = vmax.f32 %v5880, 0.0
        %v5959 = vmax.f32 %v5882, 0.0
        %v5960 = vmax.f32 %v5658, 0.0
        %v5961 = vmax.f32 %v5660, 0.0
        %v5962 = vmax.f32 %v5884, 0.0
        %v5963 = vmax.f32 %v5886, 0.0
        %v5964 = vmax.f32 %v5664, 0.0
        %v5965 = vmax.f32 %v5666, 0.0
        %v5966 = vmax.f32 %v5890, 0.0
        %v5967 = vmax.f32 %v5892, 0.0
        %v5968 = vmax.f32 %v5668, 0.0
        %v5969 = vmax.f32 %v5670, 0.0
        %v5970 = vmax.f32 %v5894, 0.0
        %v5971 = vmax.f32 %v5896, 0.0
        %v5972 = vmax.f32 %v5674, 0.0
        %v5973 = vmax.f32 %v5676, 0.0
        %v5974 = vmax.f32 %v5900, 0.0
        %v5975 = vmax.f32 %v5902, 0.0
        %v5976 = vmax.f32 %v5678, 0.0
        %v5977 = vmax.f32 %v5680, 0.0
        %v5978 = vmax.f32 %v5904, 0.0
        %v5979 = vmax.f32 %v5906, 0.0
        %v5980 = vmax.f32 %v5684, 0.0
        %v5981 = vmax.f32 %v5686, 0.0
        %v5982 = vmax.f32 %v5910, 0.0
        %v5983 = vmax.f32 %v5912, 0.0
        %v5984 = vmax.f32 %v5688, 0.0
        %v5985 = vmax.f32 %v5690, 0.0
        %v5986 = vmax.f32 %v5914, 0.0
        %v5987 = vmax.f32 %v5916, 0.0
        %v5988 = vmax.f32 %v5694, 0.0
        %v5989 = vmax.f32 %v5696, 0.0
        %v5990 = vmax.f32 %v5920, 0.0
        %v5991 = vmax.f32 %v5922, 0.0
        %v5992 = vmax.f32 %v5698, 0.0
        %v5993 = vmax.f32 %v5700, 0.0
        %v5994 = vmax.f32 %v5924, 0.0
        %v5995 = vmax.f32 %v5926, 0.0
        %v5996 = vmax.f32 %v5704, 0.0
        %v5997 = vmax.f32 %v5706, 0.0
        %v5998 = vmax.f32 %v5930, 0.0
        %v5999 = vmax.f32 %v5932, 0.0
        %v6000 = vmax.f32 %v5708, 0.0
        %v6001 = vmax.f32 %v5710, 0.0
        %v6002 = vmax.f32 %v5934, 0.0
        %v6003 = vmax.f32 %v5936, 0.0
        %v6004 = vmax.f32 %v5714, 0.0
        %v6005 = vmax.f32 %v5716, 0.0
        %v6006 = vmax.f32 %v5940, 0.0
        %v6007 = vmax.f32 %v5942, 0.0
        %v6008 = vmax.f32 %v5718, 0.0
        %v6009 = vmax.f32 %v5720, 0.0
        %v6010 = vmax.f32 %v5944, 0.0
        %v6011 = vmax.f32 %v5946, 0.0
        %v6012 = vpack.c.bf16 %v5952, %v5948
        %v6013 = vpack.c.bf16 %v5953, %v5949
        %v6014 = vpack.c.bf16 %v5954, %v5950
        %v6015 = vpack.c.bf16 %v5955, %v5951
        %v6016 = vpack.c.bf16 %v5960, %v5956
        %v6017 = vpack.c.bf16 %v5961, %v5957
        %v6018 = vpack.c.bf16 %v5962, %v5958
        %v6019 = vpack.c.bf16 %v5963, %v5959
        %v6020 = vpack.c.bf16 %v5968, %v5964
        %v6021 = vpack.c.bf16 %v5969, %v5965
        %v6022 = vpack.c.bf16 %v5970, %v5966
        %v6023 = vpack.c.bf16 %v5971, %v5967
        %v6024 = vpack.c.bf16 %v5976, %v5972
        %v6025 = vpack.c.bf16 %v5977, %v5973
        %v6026 = vpack.c.bf16 %v5978, %v5974
        %v6027 = vpack.c.bf16 %v5979, %v5975
        %v6028 = vpack.c.bf16 %v5984, %v5980
        %v6029 = vpack.c.bf16 %v5985, %v5981
        %v6030 = vpack.c.bf16 %v5986, %v5982
        %v6031 = vpack.c.bf16 %v5987, %v5983
        %v6032 = vpack.c.bf16 %v5992, %v5988
        %v6033 = vpack.c.bf16 %v5993, %v5989
        %v6034 = vpack.c.bf16 %v5994, %v5990
        %v6035 = vpack.c.bf16 %v5995, %v5991
        %v6036 = vpack.c.bf16 %v6000, %v5996
        %v6037 = vpack.c.bf16 %v6001, %v5997
        %v6038 = vpack.c.bf16 %v6002, %v5998
        %v6039 = vpack.c.bf16 %v6003, %v5999
        %v6040 = vpack.c.bf16 %v6008, %v6004
        %v6041 = vpack.c.bf16 %v6009, %v6005
        %v6042 = vpack.c.bf16 %v6010, %v6006
        %v6043 = vpack.c.bf16 %v6011, %v6007
        %v6044 = vld [vmem:[#allocation8 + $0x600] sm:$0xff]
        %v6045 = vld [vmem:[#allocation8 + $0x608] sm:$0xf]
        %v6046 = vld [vmem:[#allocation8 + $0x60c] sm:$0xff]
        %v6047 = vld [vmem:[#allocation8 + $0x614] sm:$0xf]
        %v6048 = vld [vmem:[#allocation8 + $0x618] sm:$0xff]
        %v6049 = vld [vmem:[#allocation8 + $0x620] sm:$0xf]
        %v6050 = vld [vmem:[#allocation8 + $0x624] sm:$0xff]
        %v6051 = vld [vmem:[#allocation8 + $0x62c] sm:$0xf]
        %v6052 = vld [vmem:[#allocation8 + $0x630] sm:$0xff]
        %v6053 = vld [vmem:[#allocation8 + $0x638] sm:$0xf]
        %v6054 = vld [vmem:[#allocation8 + $0x63c] sm:$0xff]
        %v6055 = vld [vmem:[#allocation8 + $0x644] sm:$0xf]
        %v6056 = vld [vmem:[#allocation8 + $0x648] sm:$0xff]
        %v6057 = vld [vmem:[#allocation8 + $0x650] sm:$0xf]
        %v6058 = vld [vmem:[#allocation8 + $0x654] sm:$0xff]
        %v6059 = vld [vmem:[#allocation8 + $0x65c] sm:$0xf]
        %v6060 = vld [vmem:[#allocation8 + $0x660] sm:$0xff]
        %v6061 = vld [vmem:[#allocation8 + $0x668] sm:$0xf]
        %v6062 = vld [vmem:[#allocation8 + $0x66c] sm:$0xff]
        %v6063 = vld [vmem:[#allocation8 + $0x674] sm:$0xf]
        %v6064 = vld [vmem:[#allocation8 + $0x678] sm:$0xff]
        %v6065 = vld [vmem:[#allocation8 + $0x680] sm:$0xf]
        %v6066 = vld [vmem:[#allocation8 + $0x684] sm:$0xff]
        %v6067 = vld [vmem:[#allocation8 + $0x68c] sm:$0xf]
        %v6068 = vld [vmem:[#allocation8 + $0x690] sm:$0xff]
        %v6069 = vld [vmem:[#allocation8 + $0x698] sm:$0xf]
        %v6070 = vld [vmem:[#allocation8 + $0x69c] sm:$0xff]
        %v6071 = vld [vmem:[#allocation8 + $0x6a4] sm:$0xf]
        %v6072 = vld [vmem:[#allocation8 + $0x6a8] sm:$0xff]
        %v6073 = vld [vmem:[#allocation8 + $0x6b0] sm:$0xf]
        %v6074 = vld [vmem:[#allocation8 + $0x6b4] sm:$0xff]
        %v6075 = vld [vmem:[#allocation8 + $0x6bc] sm:$0xf]
        %v6076 = vld [vmem:[#allocation8 + $0x6c0] sm:$0xff]
        %v6077 = vld [vmem:[#allocation8 + $0x6c8] sm:$0xf]
        %v6078 = vld [vmem:[#allocation8 + $0x6cc] sm:$0xff]
        %v6079 = vld [vmem:[#allocation8 + $0x6d4] sm:$0xf]
        %v6080 = vld [vmem:[#allocation8 + $0x6d8] sm:$0xff]
        %v6081 = vld [vmem:[#allocation8 + $0x6e0] sm:$0xf]
        %v6082 = vld [vmem:[#allocation8 + $0x6e4] sm:$0xff]
        %v6083 = vld [vmem:[#allocation8 + $0x6ec] sm:$0xf]
        %v6084 = vld [vmem:[#allocation8 + $0x6f0] sm:$0xff]
        %v6085 = vld [vmem:[#allocation8 + $0x6f8] sm:$0xf]
        %v6086 = vld [vmem:[#allocation8 + $0x6fc] sm:$0xff]
        %v6087 = vld [vmem:[#allocation8 + $0x704] sm:$0xf]
        %v6088 = vld [vmem:[#allocation8 + $0x708] sm:$0xff]
        %v6089 = vld [vmem:[#allocation8 + $0x710] sm:$0xf]
        %v6090 = vld [vmem:[#allocation8 + $0x714] sm:$0xff]
        %v6091 = vld [vmem:[#allocation8 + $0x71c] sm:$0xf]
        %v6092 = vld [vmem:[#allocation8 + $0x720] sm:$0xff]
        %v6093 = vld [vmem:[#allocation8 + $0x728] sm:$0xf]
        %v6094 = vld [vmem:[#allocation8 + $0x72c] sm:$0xff]
        %v6095 = vld [vmem:[#allocation8 + $0x734] sm:$0xf]
        %v6096 = vld [vmem:[#allocation8 + $0x738] sm:$0xff]
        %v6097 = vld [vmem:[#allocation8 + $0x740] sm:$0xf]
        %v6098 = vld [vmem:[#allocation8 + $0x744] sm:$0xff]
        %v6099 = vld [vmem:[#allocation8 + $0x74c] sm:$0xf]
        %v6100 = vld [vmem:[#allocation8 + $0x750] sm:$0xff]
        %v6101 = vld [vmem:[#allocation8 + $0x758] sm:$0xf]
        %v6102 = vld [vmem:[#allocation8 + $0x75c] sm:$0xff]
        %v6103 = vld [vmem:[#allocation8 + $0x764] sm:$0xf]
        %v6104 = vld [vmem:[#allocation8 + $0x768] sm:$0xff]
        %v6105 = vld [vmem:[#allocation8 + $0x770] sm:$0xf]
        %v6106 = vld [vmem:[#allocation8 + $0x774] sm:$0xff]
        %v6107 = vld [vmem:[#allocation8 + $0x77c] sm:$0xf]
        %v6108 = vld [vmem:[#allocation8 + $0x780] sm:$0xff]
        %v6109 = vld [vmem:[#allocation8 + $0x788] sm:$0xf]
        %v6110 = vld [vmem:[#allocation8 + $0x78c] sm:$0xff]
        %v6111 = vld [vmem:[#allocation8 + $0x794] sm:$0xf]
        %v6112 = vld [vmem:[#allocation8 + $0x798] sm:$0xff]
        %v6113 = vld [vmem:[#allocation8 + $0x7a0] sm:$0xf]
        %v6114 = vld [vmem:[#allocation8 + $0x7a4] sm:$0xff]
        %v6115 = vld [vmem:[#allocation8 + $0x7ac] sm:$0xf]
        %v6116 = vld [vmem:[#allocation8 + $0x7b0] sm:$0xff]
        %v6117 = vld [vmem:[#allocation8 + $0x7b8] sm:$0xf]
        %v6118 = vld [vmem:[#allocation8 + $0x7bc] sm:$0xff]
        %v6119 = vld [vmem:[#allocation8 + $0x7c4] sm:$0xf]
        %v6120 = vld [vmem:[#allocation8 + $0x7c8] sm:$0xff]
        %v6121 = vld [vmem:[#allocation8 + $0x7d0] sm:$0xf]
        %v6122 = vld [vmem:[#allocation8 + $0x7d4] sm:$0xff]
        %v6123 = vld [vmem:[#allocation8 + $0x7dc] sm:$0xf]
        %v6124 = vld [vmem:[#allocation8 + $0x7e0] sm:$0xff]
        %v6125 = vld [vmem:[#allocation8 + $0x7e8] sm:$0xf]
        %v6126 = vld [vmem:[#allocation8 + $0x7ec] sm:$0xff]
        %v6127 = vld [vmem:[#allocation8 + $0x7f4] sm:$0xf]
        %v6128 = vld [vmem:[#allocation8 + $0x7f8] sm:$0xff]
        %v6129 = vld [vmem:[#allocation8 + $0x800] sm:$0xf]
        %v6130 = vld [vmem:[#allocation8 + $0x804] sm:$0xff]
        %v6131 = vld [vmem:[#allocation8 + $0x80c] sm:$0xf]
        %v6132 = vld [vmem:[#allocation8 + $0x810] sm:$0xff]
        %v6133 = vld [vmem:[#allocation8 + $0x818] sm:$0xf]
        %v6134 = vld [vmem:[#allocation8 + $0x81c] sm:$0xff]
        %v6135 = vld [vmem:[#allocation8 + $0x824] sm:$0xf]
        %v6136 = vld [vmem:[#allocation8 + $0x828] sm:$0xff]
        %v6137 = vld [vmem:[#allocation8 + $0x830] sm:$0xf]
        %v6138 = vld [vmem:[#allocation8 + $0x834] sm:$0xff]
        %v6139 = vld [vmem:[#allocation8 + $0x83c] sm:$0xf]
        %v6140 = vld [vmem:[#allocation8 + $0x840] sm:$0xff]
        %v6141 = vld [vmem:[#allocation8 + $0x848] sm:$0xf]
        %v6142 = vld [vmem:[#allocation8 + $0x84c] sm:$0xff]
        %v6143 = vld [vmem:[#allocation8 + $0x854] sm:$0xf]
        %v6144 = vld [vmem:[#allocation8 + $0x858] sm:$0xff]
        %v6145 = vld [vmem:[#allocation8 + $0x860] sm:$0xf]
        %v6146 = vld [vmem:[#allocation8 + $0x864] sm:$0xff]
        %v6147 = vld [vmem:[#allocation8 + $0x86c] sm:$0xf]
        %v6148 = vld [vmem:[#allocation8 + $0x870] sm:$0xff]
        %v6149 = vld [vmem:[#allocation8 + $0x878] sm:$0xf]
        %v6150 = vld [vmem:[#allocation8 + $0x87c] sm:$0xff]
        %v6151 = vld [vmem:[#allocation8 + $0x884] sm:$0xf]
        %v6152 = vld [vmem:[#allocation8 + $0x888] sm:$0xff]
        %v6153 = vld [vmem:[#allocation8 + $0x890] sm:$0xf]
        %v6154 = vld [vmem:[#allocation8 + $0x894] sm:$0xff]
        %v6155 = vld [vmem:[#allocation8 + $0x89c] sm:$0xf]
        %v6156 = vld [vmem:[#allocation8 + $0x8a0] sm:$0xff]
        %v6157 = vld [vmem:[#allocation8 + $0x8a8] sm:$0xf]
        %v6158 = vld [vmem:[#allocation8 + $0x8ac] sm:$0xff]
        %v6159 = vld [vmem:[#allocation8 + $0x8b4] sm:$0xf]
        %v6160 = vld [vmem:[#allocation8 + $0x8b8] sm:$0xff]
        %v6161 = vld [vmem:[#allocation8 + $0x8c0] sm:$0xf]
        %v6162 = vld [vmem:[#allocation8 + $0x8c4] sm:$0xff]
        %v6163 = vld [vmem:[#allocation8 + $0x8cc] sm:$0xf]
        %v6164 = vld [vmem:[#allocation8 + $0x8d0] sm:$0xff]
        %v6165 = vld [vmem:[#allocation8 + $0x8d8] sm:$0xf]
        %v6166 = vld [vmem:[#allocation8 + $0x8dc] sm:$0xff]
        %v6167 = vld [vmem:[#allocation8 + $0x8e4] sm:$0xf]
        %v6168 = vld [vmem:[#allocation8 + $0x8e8] sm:$0xff]
        %v6169 = vld [vmem:[#allocation8 + $0x8f0] sm:$0xf]
        %v6170 = vld [vmem:[#allocation8 + $0x8f4] sm:$0xff]
        %v6171 = vld [vmem:[#allocation8 + $0x8fc] sm:$0xf]
        %v6300 = vunpack.c.l.b16 %v6044
        %v6301 = vunpack.c.h.b16 %v6044
        %v6302 = vunpack.c.l.b16 %v6045
        %v6303 = vunpack.c.l.b16 %v6046
        %v6304 = vunpack.c.h.b16 %v6046
        %v6305 = vunpack.c.l.b16 %v6047
        %v6306 = vunpack.c.l.b16 %v6048
        %v6307 = vunpack.c.h.b16 %v6048
        %v6308 = vunpack.c.l.b16 %v6049
        %v6309 = vunpack.c.l.b16 %v6050
        %v6310 = vunpack.c.h.b16 %v6050
        %v6311 = vunpack.c.l.b16 %v6051
        %v6312 = vunpack.c.l.b16 %v6052
        %v6313 = vunpack.c.h.b16 %v6052
        %v6314 = vunpack.c.l.b16 %v6053
        %v6315 = vunpack.c.l.b16 %v6054
        %v6316 = vunpack.c.h.b16 %v6054
        %v6317 = vunpack.c.l.b16 %v6055
        %v6318 = vunpack.c.l.b16 %v6056
        %v6319 = vunpack.c.h.b16 %v6056
        %v6320 = vunpack.c.l.b16 %v6057
        %v6321 = vunpack.c.l.b16 %v6058
        %v6322 = vunpack.c.h.b16 %v6058
        %v6323 = vunpack.c.l.b16 %v6059
        %v6324 = vunpack.c.l.b16 %v6060
        %v6325 = vunpack.c.h.b16 %v6060
        %v6326 = vunpack.c.l.b16 %v6061
        %v6327 = vunpack.c.l.b16 %v6062
        %v6328 = vunpack.c.h.b16 %v6062
        %v6329 = vunpack.c.l.b16 %v6063
        %v6330 = vunpack.c.l.b16 %v6064
        %v6331 = vunpack.c.h.b16 %v6064
        %v6332 = vunpack.c.l.b16 %v6065
        %v6333 = vunpack.c.l.b16 %v6066
        %v6334 = vunpack.c.h.b16 %v6066
        %v6335 = vunpack.c.l.b16 %v6067
        %v6336 = vunpack.c.l.b16 %v6068
        %v6337 = vunpack.c.h.b16 %v6068
        %v6338 = vunpack.c.l.b16 %v6069
        %v6339 = vunpack.c.l.b16 %v6070
        %v6340 = vunpack.c.h.b16 %v6070
        %v6341 = vunpack.c.l.b16 %v6071
        %v6342 = vunpack.c.l.b16 %v6072
        %v6343 = vunpack.c.h.b16 %v6072
        %v6344 = vunpack.c.l.b16 %v6073
        %v6345 = vunpack.c.l.b16 %v6074
        %v6346 = vunpack.c.h.b16 %v6074
        %v6347 = vunpack.c.l.b16 %v6075
        %v6348 = vunpack.c.l.b16 %v6076
        %v6349 = vunpack.c.h.b16 %v6076
        %v6350 = vunpack.c.l.b16 %v6077
        %v6351 = vunpack.c.l.b16 %v6078
        %v6352 = vunpack.c.h.b16 %v6078
        %v6353 = vunpack.c.l.b16 %v6079
        %v6354 = vunpack.c.l.b16 %v6080
        %v6355 = vunpack.c.h.b16 %v6080
        %v6356 = vunpack.c.l.b16 %v6081
        %v6357 = vunpack.c.l.b16 %v6082
        %v6358 = vunpack.c.h.b16 %v6082
        %v6359 = vunpack.c.l.b16 %v6083
        %v6360 = vunpack.c.l.b16 %v6084
        %v6361 = vunpack.c.h.b16 %v6084
        %v6362 = vunpack.c.l.b16 %v6085
        %v6363 = vunpack.c.l.b16 %v6086
        %v6364 = vunpack.c.h.b16 %v6086
        %v6365 = vunpack.c.l.b16 %v6087
        %v6366 = vunpack.c.l.b16 %v6088
        %v6367 = vunpack.c.h.b16 %v6088
        %v6368 = vunpack.c.l.b16 %v6089
        %v6369 = vunpack.c.l.b16 %v6090
        %v6370 = vunpack.c.h.b16 %v6090
        %v6371 = vunpack.c.l.b16 %v6091
        %v6372 = vunpack.c.l.b16 %v6092
        %v6373 = vunpack.c.h.b16 %v6092
        %v6374 = vunpack.c.l.b16 %v6093
        %v6375 = vunpack.c.l.b16 %v6094
        %v6376 = vunpack.c.h.b16 %v6094
        %v6377 = vunpack.c.l.b16 %v6095
        %v6378 = vunpack.c.l.b16 %v6096
        %v6379 = vunpack.c.h.b16 %v6096
        %v6380 = vunpack.c.l.b16 %v6097
        %v6381 = vunpack.c.l.b16 %v6098
        %v6382 = vunpack.c.h.b16 %v6098
        %v6383 = vunpack.c.l.b16 %v6099
        %v6384 = vunpack.c.l.b16 %v6100
        %v6385 = vunpack.c.h.b16 %v6100
        %v6386 = vunpack.c.l.b16 %v6101
        %v6387 = vunpack.c.l.b16 %v6102
        %v6388 = vunpack.c.h.b16 %v6102
        %v6389 = vunpack.c.l.b16 %v6103
        %v6390 = vunpack.c.l.b16 %v6104
        %v6391 = vunpack.c.h.b16 %v6104
        %v6392 = vunpack.c.l.b16 %v6105
        %v6393 = vunpack.c.l.b16 %v6106
        %v6394 = vunpack.c.h.b16 %v6106
        %v6395 = vunpack.c.l.b16 %v6107
        %v6396 = vunpack.c.l.b16 %v6108
        %v6397 = vunpack.c.h.b16 %v6108
        %v6398 = vunpack.c.l.b16 %v6109
        %v6399 = vunpack.c.l.b16 %v6110
        %v6400 = vunpack.c.h.b16 %v6110
        %v6401 = vunpack.c.l.b16 %v6111
        %v6402 = vunpack.c.l.b16 %v6112
        %v6403 = vunpack.c.h.b16 %v6112
        %v6404 = vunpack.c.l.b16 %v6113
        %v6405 = vunpack.c.l.b16 %v6114
        %v6406 = vunpack.c.h.b16 %v6114
        %v6407 = vunpack.c.l.b16 %v6115
        %v6408 = vunpack.c.l.b16 %v6116
        %v6409 = vunpack.c.h.b16 %v6116
        %v6410 = vunpack.c.l.b16 %v6117
        %v6411 = vunpack.c.l.b16 %v6118
        %v6412 = vunpack.c.h.b16 %v6118
        %v6413 = vunpack.c.l.b16 %v6119
        %v6414 = vunpack.c.l.b16 %v6120
        %v6415 = vunpack.c.h.b16 %v6120
        %v6416 = vunpack.c.l.b16 %v6121
        %v6417 = vunpack.c.l.b16 %v6122
        %v6418 = vunpack.c.h.b16 %v6122
        %v6419 = vunpack.c.l.b16 %v6123
        %v6420 = vunpack.c.l.b16 %v6124
        %v6421 = vunpack.c.h.b16 %v6124
        %v6422 = vunpack.c.l.b16 %v6125
        %v6423 = vunpack.c.l.b16 %v6126
        %v6424 = vunpack.c.h.b16 %v6126
        %v6425 = vunpack.c.l.b16 %v6127
        %v6426 = vunpack.c.l.b16 %v6128
        %v6427 = vunpack.c.h.b16 %v6128
        %v6428 = vunpack.c.l.b16 %v6129
        %v6429 = vunpack.c.l.b16 %v6130
        %v6430 = vunpack.c.h.b16 %v6130
        %v6431 = vunpack.c.l.b16 %v6131
        %v6432 = vunpack.c.l.b16 %v6132
        %v6433 = vunpack.c.h.b16 %v6132
        %v6434 = vunpack.c.l.b16 %v6133
        %v6435 = vunpack.c.l.b16 %v6134
        %v6436 = vunpack.c.h.b16 %v6134
        %v6437 = vunpack.c.l.b16 %v6135
        %v6438 = vunpack.c.l.b16 %v6136
        %v6439 = vunpack.c.h.b16 %v6136
        %v6440 = vunpack.c.l.b16 %v6137
        %v6441 = vunpack.c.l.b16 %v6138
        %v6442 = vunpack.c.h.b16 %v6138
        %v6443 = vunpack.c.l.b16 %v6139
        %v6444 = vunpack.c.l.b16 %v6140
        %v6445 = vunpack.c.h.b16 %v6140
        %v6446 = vunpack.c.l.b16 %v6141
        %v6447 = vunpack.c.l.b16 %v6142
        %v6448 = vunpack.c.h.b16 %v6142
        %v6449 = vunpack.c.l.b16 %v6143
        %v6450 = vunpack.c.l.b16 %v6144
        %v6451 = vunpack.c.h.b16 %v6144
        %v6452 = vunpack.c.l.b16 %v6145
        %v6453 = vunpack.c.l.b16 %v6146
        %v6454 = vunpack.c.h.b16 %v6146
        %v6455 = vunpack.c.l.b16 %v6147
        %v6456 = vunpack.c.l.b16 %v6148
        %v6457 = vunpack.c.h.b16 %v6148
        %v6458 = vunpack.c.l.b16 %v6149
        %v6459 = vunpack.c.l.b16 %v6150
        %v6460 = vunpack.c.h.b16 %v6150
        %v6461 = vunpack.c.l.b16 %v6151
        %v6462 = vunpack.c.l.b16 %v6152
        %v6463 = vunpack.c.h.b16 %v6152
        %v6464 = vunpack.c.l.b16 %v6153
        %v6465 = vunpack.c.l.b16 %v6154
        %v6466 = vunpack.c.h.b16 %v6154
        %v6467 = vunpack.c.l.b16 %v6155
        %v6468 = vunpack.c.l.b16 %v6156
        %v6469 = vunpack.c.h.b16 %v6156
        %v6470 = vunpack.c.l.b16 %v6157
        %v6471 = vunpack.c.l.b16 %v6158
        %v6472 = vunpack.c.h.b16 %v6158
        %v6473 = vunpack.c.l.b16 %v6159
        %v6474 = vunpack.c.l.b16 %v6160
        %v6475 = vunpack.c.h.b16 %v6160
        %v6476 = vunpack.c.l.b16 %v6161
        %v6477 = vunpack.c.l.b16 %v6162
        %v6478 = vunpack.c.h.b16 %v6162
        %v6479 = vunpack.c.l.b16 %v6163
        %v6480 = vunpack.c.l.b16 %v6164
        %v6481 = vunpack.c.h.b16 %v6164
        %v6482 = vunpack.c.l.b16 %v6165
        %v6483 = vunpack.c.l.b16 %v6166
        %v6484 = vunpack.c.h.b16 %v6166
        %v6485 = vunpack.c.l.b16 %v6167
        %v6486 = vunpack.c.l.b16 %v6168
        %v6487 = vunpack.c.h.b16 %v6168
        %v6488 = vunpack.c.l.b16 %v6169
        %v6489 = vunpack.c.l.b16 %v6170
        %v6490 = vunpack.c.h.b16 %v6170
        %v6491 = vunpack.c.l.b16 %v6171
        %v6492 = vpack.c.b16 %v6303, %v6300
        %v6493 = vpack.c.b16 %v6304, %v6301
        %v6494 = vpack.c.b16 %v6305, %v6302
        %v6495 = vpack.c.b16 %v6309, %v6306
        %v6496 = vpack.c.b16 %v6310, %v6307
        %v6497 = vpack.c.b16 %v6311, %v6308
        %v6498 = vpack.c.b16 %v6315, %v6312
        %v6499 = vpack.c.b16 %v6316, %v6313
        %v6500 = vpack.c.b16 %v6317, %v6314
        %v6501 = vpack.c.b16 %v6321, %v6318
        %v6502 = vpack.c.b16 %v6322, %v6319
        %v6503 = vpack.c.b16 %v6323, %v6320
        %v6504 = vpack.c.b16 %v6327, %v6324
        %v6505 = vpack.c.b16 %v6328, %v6325
        %v6506 = vpack.c.b16 %v6329, %v6326
        %v6507 = vpack.c.b16 %v6333, %v6330
        %v6508 = vpack.c.b16 %v6334, %v6331
        %v6509 = vpack.c.b16 %v6335, %v6332
        %v6510 = vpack.c.b16 %v6339, %v6336
        %v6511 = vpack.c.b16 %v6340, %v6337
        %v6512 = vpack.c.b16 %v6341, %v6338
        %v6513 = vpack.c.b16 %v6345, %v6342
        %v6514 = vpack.c.b16 %v6346, %v6343
        %v6515 = vpack.c.b16 %v6347, %v6344
        %v6516 = vpack.c.b16 %v6351, %v6348
        %v6517 = vpack.c.b16 %v6352, %v6349
        %v6518 = vpack.c.b16 %v6353, %v6350
        %v6519 = vpack.c.b16 %v6357, %v6354
        %v6520 = vpack.c.b16 %v6358, %v6355
        %v6521 = vpack.c.b16 %v6359, %v6356
        %v6522 = vpack.c.b16 %v6363, %v6360
        %v6523 = vpack.c.b16 %v6364, %v6361
        %v6524 = vpack.c.b16 %v6365, %v6362
        %v6525 = vpack.c.b16 %v6369, %v6366
        %v6526 = vpack.c.b16 %v6370, %v6367
        %v6527 = vpack.c.b16 %v6371, %v6368
        %v6528 = vpack.c.b16 %v6375, %v6372
        %v6529 = vpack.c.b16 %v6376, %v6373
        %v6530 = vpack.c.b16 %v6377, %v6374
        %v6531 = vpack.c.b16 %v6381, %v6378
        %v6532 = vpack.c.b16 %v6382, %v6379
        %v6533 = vpack.c.b16 %v6383, %v6380
        %v6534 = vpack.c.b16 %v6387, %v6384
        %v6535 = vpack.c.b16 %v6388, %v6385
        %v6536 = vpack.c.b16 %v6389, %v6386
        %v6537 = vpack.c.b16 %v6393, %v6390
        %v6538 = vpack.c.b16 %v6394, %v6391
        %v6539 = vpack.c.b16 %v6395, %v6392
        %v6540 = vpack.c.b16 %v6399, %v6396
        %v6541 = vpack.c.b16 %v6400, %v6397
        %v6542 = vpack.c.b16 %v6401, %v6398
        %v6543 = vpack.c.b16 %v6405, %v6402
        %v6544 = vpack.c.b16 %v6406, %v6403
        %v6545 = vpack.c.b16 %v6407, %v6404
        %v6546 = vpack.c.b16 %v6411, %v6408
        %v6547 = vpack.c.b16 %v6412, %v6409
        %v6548 = vpack.c.b16 %v6413, %v6410
        %v6549 = vpack.c.b16 %v6417, %v6414
        %v6550 = vpack.c.b16 %v6418, %v6415
        %v6551 = vpack.c.b16 %v6419, %v6416
        %v6552 = vpack.c.b16 %v6423, %v6420
        %v6553 = vpack.c.b16 %v6424, %v6421
        %v6554 = vpack.c.b16 %v6425, %v6422
        %v6555 = vpack.c.b16 %v6429, %v6426
        %v6556 = vpack.c.b16 %v6430, %v6427
        %v6557 = vpack.c.b16 %v6431, %v6428
        %v6558 = vpack.c.b16 %v6435, %v6432
        %v6559 = vpack.c.b16 %v6436, %v6433
        %v6560 = vpack.c.b16 %v6437, %v6434
        %v6561 = vpack.c.b16 %v6441, %v6438
        %v6562 = vpack.c.b16 %v6442, %v6439
        %v6563 = vpack.c.b16 %v6443, %v6440
        %v6564 = vpack.c.b16 %v6447, %v6444
        %v6565 = vpack.c.b16 %v6448, %v6445
        %v6566 = vpack.c.b16 %v6449, %v6446
        %v6567 = vpack.c.b16 %v6453, %v6450
        %v6568 = vpack.c.b16 %v6454, %v6451
        %v6569 = vpack.c.b16 %v6455, %v6452
        %v6570 = vpack.c.b16 %v6459, %v6456
        %v6571 = vpack.c.b16 %v6460, %v6457
        %v6572 = vpack.c.b16 %v6461, %v6458
        %v6573 = vpack.c.b16 %v6465, %v6462
        %v6574 = vpack.c.b16 %v6466, %v6463
        %v6575 = vpack.c.b16 %v6467, %v6464
        %v6576 = vpack.c.b16 %v6471, %v6468
        %v6577 = vpack.c.b16 %v6472, %v6469
        %v6578 = vpack.c.b16 %v6473, %v6470
        %v6579 = vpack.c.b16 %v6477, %v6474
        %v6580 = vpack.c.b16 %v6478, %v6475
        %v6581 = vpack.c.b16 %v6479, %v6476
        %v6582 = vpack.c.b16 %v6483, %v6480
        %v6583 = vpack.c.b16 %v6484, %v6481
        %v6584 = vpack.c.b16 %v6485, %v6482
        %v6585 = vpack.c.b16 %v6489, %v6486
        %v6586 = vpack.c.b16 %v6490, %v6487
        %v6587 = vpack.c.b16 %v6491, %v6488
        %6684 = vmatprep.subr.bf16.mxu0 %v6493
        %6685 = vmatpush1.bf16.msra.mxu0 %v6492
        %6686 = vmatprep.subr.bf16.mxu0 %v6496
        %6687 = vmatpush1.bf16.msra.mxu0 %v6495
        %6688 = vmatprep.subr.bf16.mxu0 %v6499
        %6689 = vmatpush1.bf16.msra.mxu0 %v6498
        %6690 = vmatprep.subr.bf16.mxu0 %v6502
        %6691 = vmatpush1.bf16.msra.mxu0 %v6501
        %6692 = vmatprep.subr.bf16.mxu0 %v6505
        %6693 = vmatpush1.bf16.msra.mxu0 %v6504
        %6694 = vmatprep.subr.bf16.mxu0 %v6508
        %6695 = vmatpush1.bf16.msra.mxu0 %v6507
        %6696 = vmatprep.subr.bf16.mxu0 %v6511
        %6697 = vmatpush1.bf16.msra.mxu0 %v6510
        %6698 = vmatprep.subr.bf16.mxu0 %v6514
        %6699 = vmatpush1.bf16.msra.mxu0 %v6513
        %6700 = vmatprep.subr.bf16.mxu0 %v6517
        %6701 = vmatpush1.bf16.msra.mxu0 %v6516
        %6702 = vmatprep.subr.bf16.mxu0 %v6520
        %6703 = vmatpush1.bf16.msra.mxu0 %v6519
        %6704 = vmatprep.subr.bf16.mxu0 %v6523
        %6705 = vmatpush1.bf16.msra.mxu0 %v6522
        %6706 = vmatprep.subr.bf16.mxu0 %v6526
        %6707 = vmatpush1.bf16.msra.mxu0 %v6525
        %6708 = vmatprep.subr.bf16.mxu0 %v6529
        %6709 = vmatpush1.bf16.msra.mxu0 %v6528
        %6710 = vmatprep.subr.bf16.mxu0 %v6532
        %6711 = vmatpush1.bf16.msra.mxu0 %v6531
        %6712 = vmatprep.subr.bf16.mxu0 %v6535
        %6713 = vmatpush1.bf16.msra.mxu0 %v6534
        %6714 = vmatprep.subr.bf16.mxu0 %v6538
        %6715 = vmatpush1.bf16.msra.mxu0 %v6537
        %6716 = vmatprep.mubr.bf16.mxu0 %v6013
        %6717 = vmatmul.mubr.bf16.gmra.mrb[0].mxu0 %v6012
        %v6718 = vpop.f32.mrb[0].mxu0
        %v6719 = vadd.f32 0.0, %v6718
        %v6720 = vpop.f32.mrb[0].mxu0
        %v6721 = vadd.f32 0.0, %v6720
        %v6722 = vpop.f32.mrb[0].mxu0
        %v6723 = vadd.f32 0.0, %v6722
        %v6724 = vpop.f32.mrb[0].mxu0
        %v6725 = vadd.f32 0.0, %v6724
        %6726 = vmatprep.mubr.bf16.mxu0 %v6017
        %6727 = vmatmul.mubr.bf16.gmra.mrb[0].mxu0 %v6016
        %v6728 = vpop.f32.mrb[0].mxu0
        %v6729 = vadd.f32 0.0, %v6728
        %v6730 = vpop.f32.mrb[0].mxu0
        %v6731 = vadd.f32 0.0, %v6730
        %v6732 = vpop.f32.mrb[0].mxu0
        %v6733 = vadd.f32 0.0, %v6732
        %v6734 = vpop.f32.mrb[0].mxu0
        %v6735 = vadd.f32 0.0, %v6734
        %6736 = vmatprep.mubr.bf16.mxu0 %v6021
        %6737 = vmatmul.mubr.bf16.gmra.mrb[0].mxu0 %v6020
        %v6738 = vpop.f32.mrb[0].mxu0
        %v6739 = vadd.f32 0.0, %v6738
        %v6740 = vpop.f32.mrb[0].mxu0
        %v6741 = vadd.f32 0.0, %v6740
        %v6742 = vpop.f32.mrb[0].mxu0
        %v6743 = vadd.f32 0.0, %v6742
        %v6744 = vpop.f32.mrb[0].mxu0
        %v6745 = vadd.f32 0.0, %v6744
        %6746 = vmatprep.mubr.bf16.mxu0 %v6025
        %6747 = vmatmul.mubr.bf16.gmra.mrb[0].mxu0 %v6024
        %v6748 = vpop.f32.mrb[0].mxu0
        %v6749 = vadd.f32 0.0, %v6748
        %v6750 = vpop.f32.mrb[0].mxu0
        %v6751 = vadd.f32 0.0, %v6750
        %v6752 = vpop.f32.mrb[0].mxu0
        %v6753 = vadd.f32 0.0, %v6752
        %v6754 = vpop.f32.mrb[0].mxu0
        %v6755 = vadd.f32 0.0, %v6754
        %6756 = vmatprep.mubr.bf16.mxu0 %v6029
        %6757 = vmatmul.mubr.bf16.gmra.mrb[0].mxu0 %v6028
        %v6758 = vpop.f32.mrb[0].mxu0
        %v6759 = vadd.f32 0.0, %v6758
        %v6760 = vpop.f32.mrb[0].mxu0
        %v6761 = vadd.f32 0.0, %v6760
        %v6762 = vpop.f32.mrb[0].mxu0
        %v6763 = vadd.f32 0.0, %v6762
        %v6764 = vpop.f32.mrb[0].mxu0
        %v6765 = vadd.f32 0.0, %v6764
        %6766 = vmatprep.mubr.bf16.mxu0 %v6033
        %6767 = vmatmul.mubr.bf16.gmra.mrb[0].mxu0 %v6032
        %v6768 = vpop.f32.mrb[0].mxu0
        %v6769 = vadd.f32 0.0, %v6768
        %v6770 = vpop.f32.mrb[0].mxu0
        %v6771 = vadd.f32 0.0, %v6770
        %v6772 = vpop.f32.mrb[0].mxu0
        %v6773 = vadd.f32 0.0, %v6772
        %v6774 = vpop.f32.mrb[0].mxu0
        %v6775 = vadd.f32 0.0, %v6774
        %6776 = vmatprep.mubr.bf16.mxu0 %v6037
        %6777 = vmatmul.mubr.bf16.gmra.mrb[0].mxu0 %v6036
        %v6778 = vpop.f32.mrb[0].mxu0
        %v6779 = vadd.f32 0.0, %v6778
        %v6780 = vpop.f32.mrb[0].mxu0
        %v6781 = vadd.f32 0.0, %v6780
        %v6782 = vpop.f32.mrb[0].mxu0
        %v6783 = vadd.f32 0.0, %v6782
        %v6784 = vpop.f32.mrb[0].mxu0
        %v6785 = vadd.f32 0.0, %v6784
        %6786 = vmatprep.mubr.bf16.mxu0 %v6041
        %6787 = vmatmul.mubr.bf16.gmra.mrb[0].mxu0 %v6040
        %v6788 = vpop.f32.mrb[0].mxu0
        %v6789 = vadd.f32 0.0, %v6788
        %v6790 = vpop.f32.mrb[0].mxu0
        %v6791 = vadd.f32 0.0, %v6790
        %v6792 = vpop.f32.mrb[0].mxu0
        %v6793 = vadd.f32 0.0, %v6792
        %v6794 = vpop.f32.mrb[0].mxu0
        %v6795 = vadd.f32 0.0, %v6794
        %6796 = vdwg.mxu0
        %6797 = vmatprep.subr.bf16.mxu0 %v6541
        %6798 = vmatpush1.bf16.msra.mxu0 %v6540
        %6799 = vmatprep.subr.bf16.mxu0 %v6544
        %6800 = vmatpush1.bf16.msra.mxu0 %v6543
        %6801 = vmatprep.subr.bf16.mxu0 %v6547
        %6802 = vmatpush1.bf16.msra.mxu0 %v6546
        %6803 = vmatprep.subr.bf16.mxu0 %v6550
        %6804 = vmatpush1.bf16.msra.mxu0 %v6549
        %6805 = vmatprep.subr.bf16.mxu0 %v6553
        %6806 = vmatpush1.bf16.msra.mxu0 %v6552
        %6807 = vmatprep.subr.bf16.mxu0 %v6556
        %6808 = vmatpush1.bf16.msra.mxu0 %v6555
        %6809 = vmatprep.subr.bf16.mxu0 %v6559
        %6810 = vmatpush1.bf16.msra.mxu0 %v6558
        %6811 = vmatprep.subr.bf16.mxu0 %v6562
        %6812 = vmatpush1.bf16.msra.mxu0 %v6561
        %6813 = vmatprep.subr.bf16.mxu0 %v6565
        %6814 = vmatpush1.bf16.msra.mxu0 %v6564
        %6815 = vmatprep.subr.bf16.mxu0 %v6568
        %6816 = vmatpush1.bf16.msra.mxu0 %v6567
        %6817 = vmatprep.subr.bf16.mxu0 %v6571
        %6818 = vmatpush1.bf16.msra.mxu0 %v6570
        %6819 = vmatprep.subr.bf16.mxu0 %v6574
        %6820 = vmatpush1.bf16.msra.mxu0 %v6573
        %6821 = vmatprep.subr.bf16.mxu0 %v6577
        %6822 = vmatpush1.bf16.msra.mxu0 %v6576
        %6823 = vmatprep.subr.bf16.mxu0 %v6580
        %6824 = vmatpush1.bf16.msra.mxu0 %v6579
        %6825 = vmatprep.subr.bf16.mxu0 %v6583
        %6826 = vmatpush1.bf16.msra.mxu0 %v6582
        %6827 = vmatprep.subr.bf16.mxu0 %v6586
        %6828 = vmatpush1.bf16.msra.mxu0 %v6585
        %6829 = vmatprep.mubr.bf16.mxu0 %v6015
        %6830 = vmatmul.mubr.bf16.gmra.mrb[0].mxu0 %v6014
        %v6831 = vpop.f32.mrb[0].mxu0
        %v6832 = vadd.f32 %v6719, %v6831
        %v6833 = vpop.f32.mrb[0].mxu0
        %v6834 = vadd.f32 %v6721, %v6833
        %v6835 = vpop.f32.mrb[0].mxu0
        %v6836 = vadd.f32 %v6723, %v6835
        %v6837 = vpop.f32.mrb[0].mxu0
        %v6838 = vadd.f32 %v6725, %v6837
        %6839 = vmatprep.mubr.bf16.mxu0 %v6019
        %6840 = vmatmul.mubr.bf16.gmra.mrb[0].mxu0 %v6018
        %v6841 = vpop.f32.mrb[0].mxu0
        %v6842 = vadd.f32 %v6729, %v6841
        %v6843 = vpop.f32.mrb[0].mxu0
        %v6844 = vadd.f32 %v6731, %v6843
        %v6845 = vpop.f32.mrb[0].mxu0
        %v6846 = vadd.f32 %v6733, %v6845
        %v6847 = vpop.f32.mrb[0].mxu0
        %v6848 = vadd.f32 %v6735, %v6847
        %6849 = vmatprep.mubr.bf16.mxu0 %v6023
        %6850 = vmatmul.mubr.bf16.gmra.mrb[0].mxu0 %v6022
        %v6851 = vpop.f32.mrb[0].mxu0
        %v6852 = vadd.f32 %v6739, %v6851
        %v6853 = vpop.f32.mrb[0].mxu0
        %v6854 = vadd.f32 %v6741, %v6853
        %v6855 = vpop.f32.mrb[0].mxu0
        %v6856 = vadd.f32 %v6743, %v6855
        %v6857 = vpop.f32.mrb[0].mxu0
        %v6858 = vadd.f32 %v6745, %v6857
        %6859 = vmatprep.mubr.bf16.mxu0 %v6027
        %6860 = vmatmul.mubr.bf16.gmra.mrb[0].mxu0 %v6026
        %v6861 = vpop.f32.mrb[0].mxu0
        %v6862 = vadd.f32 %v6749, %v6861
        %v6863 = vpop.f32.mrb[0].mxu0
        %v6864 = vadd.f32 %v6751, %v6863
        %v6865 = vpop.f32.mrb[0].mxu0
        %v6866 = vadd.f32 %v6753, %v6865
        %v6867 = vpop.f32.mrb[0].mxu0
        %v6868 = vadd.f32 %v6755, %v6867
        %6869 = vmatprep.mubr.bf16.mxu0 %v6031
        %6870 = vmatmul.mubr.bf16.gmra.mrb[0].mxu0 %v6030
        %v6871 = vpop.f32.mrb[0].mxu0
        %v6872 = vadd.f32 %v6759, %v6871
        %v6873 = vpop.f32.mrb[0].mxu0
        %v6874 = vadd.f32 %v6761, %v6873
        %v6875 = vpop.f32.mrb[0].mxu0
        %v6876 = vadd.f32 %v6763, %v6875
        %v6877 = vpop.f32.mrb[0].mxu0
        %v6878 = vadd.f32 %v6765, %v6877
        %6879 = vmatprep.mubr.bf16.mxu0 %v6035
        %6880 = vmatmul.mubr.bf16.gmra.mrb[0].mxu0 %v6034
        %v6881 = vpop.f32.mrb[0].mxu0
        %v6882 = vadd.f32 %v6769, %v6881
        %v6883 = vpop.f32.mrb[0].mxu0
        %v6884 = vadd.f32 %v6771, %v6883
        %v6885 = vpop.f32.mrb[0].mxu0
        %v6886 = vadd.f32 %v6773, %v6885
        %v6887 = vpop.f32.mrb[0].mxu0
        %v6888 = vadd.f32 %v6775, %v6887
        %6889 = vmatprep.mubr.bf16.mxu0 %v6039
        %6890 = vmatmul.mubr.bf16.gmra.mrb[0].mxu0 %v6038
        %v6891 = vpop.f32.mrb[0].mxu0
        %v6892 = vadd.f32 %v6779, %v6891
        %v6893 = vpop.f32.mrb[0].mxu0
        %v6894 = vadd.f32 %v6781, %v6893
        %v6895 = vpop.f32.mrb[0].mxu0
        %v6896 = vadd.f32 %v6783, %v6895
        %v6897 = vpop.f32.mrb[0].mxu0
        %v6898 = vadd.f32 %v6785, %v6897
        %6899 = vmatprep.mubr.bf16.mxu0 %v6043
        %6900 = vmatmul.mubr.bf16.gmra.mrb[0].mxu0 %v6042
        %v6901 = vpop.f32.mrb[0].mxu0
        %v6902 = vadd.f32 %v6789, %v6901
        %v6903 = vpop.f32.mrb[0].mxu0
        %v6904 = vadd.f32 %v6791, %v6903
        %v6905 = vpop.f32.mrb[0].mxu0
        %v6906 = vadd.f32 %v6793, %v6905
        %v6907 = vpop.f32.mrb[0].mxu0
        %v6908 = vadd.f32 %v6795, %v6907
        %6909 = vdwg.mxu0
        %6910 = vmatprep.subr.bf16.mxu0 0
        %6911 = vmatpush1.bf16.msra.mxu0 %v6494
        %6912 = vmatprep.subr.bf16.mxu0 0
        %6913 = vmatpush1.bf16.msra.mxu0 %v6497
        %6914 = vmatprep.subr.bf16.mxu0 0
        %6915 = vmatpush1.bf16.msra.mxu0 %v6500
        %6916 = vmatprep.subr.bf16.mxu0 0
        %6917 = vmatpush1.bf16.msra.mxu0 %v6503
        %6918 = vmatprep.subr.bf16.mxu0 0
        %6919 = vmatpush1.bf16.msra.mxu0 %v6506
        %6920 = vmatprep.subr.bf16.mxu0 0
        %6921 = vmatpush1.bf16.msra.mxu0 %v6509
        %6922 = vmatprep.subr.bf16.mxu0 0
        %6923 = vmatpush1.bf16.msra.mxu0 %v6512
        %6924 = vmatprep.subr.bf16.mxu0 0
        %6925 = vmatpush1.bf16.msra.mxu0 %v6515
        %6926 = vmatprep.subr.bf16.mxu0 0
        %6927 = vmatpush1.bf16.msra.mxu0 %v6518
        %6928 = vmatprep.subr.bf16.mxu0 0
        %6929 = vmatpush1.bf16.msra.mxu0 %v6521
        %6930 = vmatprep.subr.bf16.mxu0 0
        %6931 = vmatpush1.bf16.msra.mxu0 %v6524
        %6932 = vmatprep.subr.bf16.mxu0 0
        %6933 = vmatpush1.bf16.msra.mxu0 %v6527
        %6934 = vmatprep.subr.bf16.mxu0 0
        %6935 = vmatpush1.bf16.msra.mxu0 %v6530
        %6936 = vmatprep.subr.bf16.mxu0 0
        %6937 = vmatpush1.bf16.msra.mxu0 %v6533
        %6938 = vmatprep.subr.bf16.mxu0 0
        %6939 = vmatpush1.bf16.msra.mxu0 %v6536
        %6940 = vmatprep.subr.bf16.mxu0 0
        %6941 = vmatpush1.bf16.msra.mxu0 %v6539
        %6942 = vmatprep.mubr.bf16.mxu0 %v6013
        %6943 = vmatmul.mubr.bf16.gmra.mrb[0].mxu0 %v6012
        %v6944 = vpop.f32.mrb[0].mxu0
        %v6945 = vadd.f32 0.0, %v6944
        %v6946 = vpop.f32.mrb[0].mxu0
        %v6947 = vpop.f32.mrb[0].mxu0
        %v6948 = vadd.f32 0.0, %v6947
        %v6949 = vpop.f32.mrb[0].mxu0
        %6950 = vmatprep.mubr.bf16.mxu0 %v6017
        %6951 = vmatmul.mubr.bf16.gmra.mrb[0].mxu0 %v6016
        %v6952 = vpop.f32.mrb[0].mxu0
        %v6953 = vadd.f32 0.0, %v6952
        %v6954 = vpop.f32.mrb[0].mxu0
        %v6955 = vpop.f32.mrb[0].mxu0
        %v6956 = vadd.f32 0.0, %v6955
        %v6957 = vpop.f32.mrb[0].mxu0
        %6958 = vmatprep.mubr.bf16.mxu0 %v6021
        %6959 = vmatmul.mubr.bf16.gmra.mrb[0].mxu0 %v6020
        %v6960 = vpop.f32.mrb[0].mxu0
        %v6961 = vadd.f32 0.0, %v6960
        %v6962 = vpop.f32.mrb[0].mxu0
        %v6963 = vpop.f32.mrb[0].mxu0
        %v6964 = vadd.f32 0.0, %v6963
        %v6965 = vpop.f32.mrb[0].mxu0
        %6966 = vmatprep.mubr.bf16.mxu0 %v6025
        %6967 = vmatmul.mubr.bf16.gmra.mrb[0].mxu0 %v6024
        %v6968 = vpop.f32.mrb[0].mxu0
        %v6969 = vadd.f32 0.0, %v6968
        %v6970 = vpop.f32.mrb[0].mxu0
        %v6971 = vpop.f32.mrb[0].mxu0
        %v6972 = vadd.f32 0.0, %v6971
        %v6973 = vpop.f32.mrb[0].mxu0
        %6974 = vmatprep.mubr.bf16.mxu0 %v6029
        %6975 = vmatmul.mubr.bf16.gmra.mrb[0].mxu0 %v6028
        %v6976 = vpop.f32.mrb[0].mxu0
        %v6977 = vadd.f32 0.0, %v6976
        %v6978 = vpop.f32.mrb[0].mxu0
        %v6979 = vpop.f32.mrb[0].mxu0
        %v6980 = vadd.f32 0.0, %v6979
        %v6981 = vpop.f32.mrb[0].mxu0
        %6982 = vmatprep.mubr.bf16.mxu0 %v6033
        %6983 = vmatmul.mubr.bf16.gmra.mrb[0].mxu0 %v6032
        %v6984 = vpop.f32.mrb[0].mxu0
        %v6985 = vadd.f32 0.0, %v6984
        %v6986 = vpop.f32.mrb[0].mxu0
        %v6987 = vpop.f32.mrb[0].mxu0
        %v6988 = vadd.f32 0.0, %v6987
        %v6989 = vpop.f32.mrb[0].mxu0
        %6990 = vmatprep.mubr.bf16.mxu0 %v6037
        %6991 = vmatmul.mubr.bf16.gmra.mrb[0].mxu0 %v6036
        %v6992 = vpop.f32.mrb[0].mxu0
        %v6993 = vadd.f32 0.0, %v6992
        %v6994 = vpop.f32.mrb[0].mxu0
        %v6995 = vpop.f32.mrb[0].mxu0
        %v6996 = vadd.f32 0.0, %v6995
        %v6997 = vpop.f32.mrb[0].mxu0
        %6998 = vmatprep.mubr.bf16.mxu0 %v6041
        %6999 = vmatmul.mubr.bf16.gmra.mrb[0].mxu0 %v6040
        %v7000 = vpop.f32.mrb[0].mxu0
        %v7001 = vadd.f32 0.0, %v7000
        %v7002 = vpop.f32.mrb[0].mxu0
        %v7003 = vpop.f32.mrb[0].mxu0
        %v7004 = vadd.f32 0.0, %v7003
        %v7005 = vpop.f32.mrb[0].mxu0
        %7006 = vdwg.mxu0
        %7007 = vmatprep.subr.bf16.mxu0 0
        %7008 = vmatpush1.bf16.msra.mxu0 %v6542
        %7009 = vmatprep.subr.bf16.mxu0 0
        %7010 = vmatpush1.bf16.msra.mxu0 %v6545
        %7011 = vmatprep.subr.bf16.mxu0 0
        %7012 = vmatpush1.bf16.msra.mxu0 %v6548
        %7013 = vmatprep.subr.bf16.mxu0 0
        %7014 = vmatpush1.bf16.msra.mxu0 %v6551
        %7015 = vmatprep.subr.bf16.mxu0 0
        %7016 = vmatpush1.bf16.msra.mxu0 %v6554
        %7017 = vmatprep.subr.bf16.mxu0 0
        %7018 = vmatpush1.bf16.msra.mxu0 %v6557
        %7019 = vmatprep.subr.bf16.mxu0 0
        %7020 = vmatpush1.bf16.msra.mxu0 %v6560
        %7021 = vmatprep.subr.bf16.mxu0 0
        %7022 = vmatpush1.bf16.msra.mxu0 %v6563
        %7023 = vmatprep.subr.bf16.mxu0 0
        %7024 = vmatpush1.bf16.msra.mxu0 %v6566
        %7025 = vmatprep.subr.bf16.mxu0 0
        %7026 = vmatpush1.bf16.msra.mxu0 %v6569
        %7027 = vmatprep.subr.bf16.mxu0 0
        %7028 = vmatpush1.bf16.msra.mxu0 %v6572
        %7029 = vmatprep.subr.bf16.mxu0 0
        %7030 = vmatpush1.bf16.msra.mxu0 %v6575
        %7031 = vmatprep.subr.bf16.mxu0 0
        %7032 = vmatpush1.bf16.msra.mxu0 %v6578
        %7033 = vmatprep.subr.bf16.mxu0 0
        %7034 = vmatpush1.bf16.msra.mxu0 %v6581
        %7035 = vmatprep.subr.bf16.mxu0 0
        %7036 = vmatpush1.bf16.msra.mxu0 %v6584
        %7037 = vmatprep.subr.bf16.mxu0 0
        %7038 = vmatpush1.bf16.msra.mxu0 %v6587
        %7039 = vmatprep.mubr.bf16.mxu0 %v6015
        %7040 = vmatmul.mubr.bf16.gmra.mrb[0].mxu0 %v6014
        %v7041 = vpop.f32.mrb[0].mxu0
        %v7042 = vadd.f32 %v6945, %v7041
        %v7043 = vpop.f32.mrb[0].mxu0
        %v7044 = vpop.f32.mrb[0].mxu0
        %v7045 = vadd.f32 %v6948, %v7044
        %v7046 = vpop.f32.mrb[0].mxu0
        %7047 = vmatprep.mubr.bf16.mxu0 %v6019
        %7048 = vmatmul.mubr.bf16.gmra.mrb[0].mxu0 %v6018
        %v7049 = vpop.f32.mrb[0].mxu0
        %v7050 = vadd.f32 %v6953, %v7049
        %v7051 = vpop.f32.mrb[0].mxu0
        %v7052 = vpop.f32.mrb[0].mxu0
        %v7053 = vadd.f32 %v6956, %v7052
        %v7054 = vpop.f32.mrb[0].mxu0
        %7055 = vmatprep.mubr.bf16.mxu0 %v6023
        %7056 = vmatmul.mubr.bf16.gmra.mrb[0].mxu0 %v6022
        %v7057 = vpop.f32.mrb[0].mxu0
        %v7058 = vadd.f32 %v6961, %v7057
        %v7059 = vpop.f32.mrb[0].mxu0
        %v7060 = vpop.f32.mrb[0].mxu0
        %v7061 = vadd.f32 %v6964, %v7060
        %v7062 = vpop.f32.mrb[0].mxu0
        %7063 = vmatprep.mubr.bf16.mxu0 %v6027
        %7064 = vmatmul.mubr.bf16.gmra.mrb[0].mxu0 %v6026
        %v7065 = vpop.f32.mrb[0].mxu0
        %v7066 = vadd.f32 %v6969, %v7065
        %v7067 = vpop.f32.mrb[0].mxu0
        %v7068 = vpop.f32.mrb[0].mxu0
        %v7069 = vadd.f32 %v6972, %v7068
        %v7070 = vpop.f32.mrb[0].mxu0
        %7071 = vmatprep.mubr.bf16.mxu0 %v6031
        %7072 = vmatmul.mubr.bf16.gmra.mrb[0].mxu0 %v6030
        %v7073 = vpop.f32.mrb[0].mxu0
        %v7074 = vadd.f32 %v6977, %v7073
        %v7075 = vpop.f32.mrb[0].mxu0
        %v7076 = vpop.f32.mrb[0].mxu0
        %v7077 = vadd.f32 %v6980, %v7076
        %v7078 = vpop.f32.mrb[0].mxu0
        %7079 = vmatprep.mubr.bf16.mxu0 %v6035
        %7080 = vmatmul.mubr.bf16.gmra.mrb[0].mxu0 %v6034
        %v7081 = vpop.f32.mrb[0].mxu0
        %v7082 = vadd.f32 %v6985, %v7081
        %v7083 = vpop.f32.mrb[0].mxu0
        %v7084 = vpop.f32.mrb[0].mxu0
        %v7085 = vadd.f32 %v6988, %v7084
        %v7086 = vpop.f32.mrb[0].mxu0
        %7087 = vmatprep.mubr.bf16.mxu0 %v6039
        %7088 = vmatmul.mubr.bf16.gmra.mrb[0].mxu0 %v6038
        %v7089 = vpop.f32.mrb[0].mxu0
        %v7090 = vadd.f32 %v6993, %v7089
        %v7091 = vpop.f32.mrb[0].mxu0
        %v7092 = vpop.f32.mrb[0].mxu0
        %v7093 = vadd.f32 %v6996, %v7092
        %v7094 = vpop.f32.mrb[0].mxu0
        %7095 = vmatprep.mubr.bf16.mxu0 %v6043
        %7096 = vmatmul.mubr.bf16.gmra.mrb[0].mxu0 %v6042
        %v7097 = vpop.f32.mrb[0].mxu0
        %v7098 = vadd.f32 %v7001, %v7097
        %v7099 = vpop.f32.mrb[0].mxu0
        %v7100 = vpop.f32.mrb[0].mxu0
        %v7101 = vadd.f32 %v7004, %v7100
        %v7102 = vpop.f32.mrb[0].mxu0
        %7103 = vdwg.mxu0
        %v7104 = vadd.f32 %v4850, %v6832
        %v7105 = vadd.f32 %v4851, %v6834
        %v7106 = vadd.f32 %v4852, %v7042
        %v7107 = vadd.f32 %v4853, %v6836
        %v7108 = vadd.f32 %v4854, %v6838
        %v7109 = vadd.f32 %v4855, %v7045
        %v7110 = vadd.f32 %v4856, %v6842
        %v7111 = vadd.f32 %v4857, %v6844
        %v7112 = vadd.f32 %v4858, %v7050
        %v7113 = vadd.f32 %v4859, %v6846
        %v7114 = vadd.f32 %v4860, %v6848
        %v7115 = vadd.f32 %v4861, %v7053
        %v7116 = vadd.f32 %v4862, %v6852
        %v7117 = vadd.f32 %v4863, %v6854
        %v7118 = vadd.f32 %v4864, %v7058
        %v7119 = vadd.f32 %v4865, %v6856
        %v7120 = vadd.f32 %v4866, %v6858
        %v7121 = vadd.f32 %v4867, %v7061
        %v7122 = vadd.f32 %v4868, %v6862
        %v7123 = vadd.f32 %v4869, %v6864
        %v7124 = vadd.f32 %v4870, %v7066
        %v7125 = vadd.f32 %v4871, %v6866
        %v7126 = vadd.f32 %v4872, %v6868
        %v7127 = vadd.f32 %v4873, %v7069
        %v7128 = vadd.f32 %v4874, %v6872
        %v7129 = vadd.f32 %v4875, %v6874
        %v7130 = vadd.f32 %v4876, %v7074
        %v7131 = vadd.f32 %v4877, %v6876
        %v7132 = vadd.f32 %v4878, %v6878
        %v7133 = vadd.f32 %v4879, %v7077
        %v7134 = vadd.f32 %v4880, %v6882
        %v7135 = vadd.f32 %v4881, %v6884
        %v7136 = vadd.f32 %v4882, %v7082
        %v7137 = vadd.f32 %v4883, %v6886
        %v7138 = vadd.f32 %v4884, %v6888
        %v7139 = vadd.f32 %v4885, %v7085
        %v7140 = vadd.f32 %v4886, %v6892
        %v7141 = vadd.f32 %v4887, %v6894
        %v7142 = vadd.f32 %v4888, %v7090
        %v7143 = vadd.f32 %v4889, %v6896
        %v7144 = vadd.f32 %v4890, %v6898
        %v7145 = vadd.f32 %v4891, %v7093
        %v7146 = vadd.f32 %v4892, %v6902
        %v7147 = vadd.f32 %v4893, %v6904
        %v7148 = vadd.f32 %v4894, %v7098
        %v7149 = vadd.f32 %v4895, %v6906
        %v7150 = vadd.f32 %v4896, %v6908
        %v7151 = vadd.f32 %v4897, %v7101
        %7152 = vst [vmem:[%s297] sm:$0xff] %v7104
        %7153 = vst [vmem:[%s297 + $0x8] sm:$0xff] %v7105
        %7154 = vst [vmem:[%s297 + $0x10] sm:$0xff] %v7106
        %7155 = vst [vmem:[%s297 + $0x18] sm:$0xff] %v7107
        %7156 = vst [vmem:[%s297 + $0x20] sm:$0xff] %v7108
        %7157 = vst [vmem:[%s297 + $0x28] sm:$0xff] %v7109
        %7158 = vst [vmem:[%s297 + $0x30] sm:$0xff] %v7110
        %7159 = vst [vmem:[%s297 + $0x38] sm:$0xff] %v7111
        %7160 = vst [vmem:[%s297 + $0x40] sm:$0xff] %v7112
        %7161 = vst [vmem:[%s297 + $0x48] sm:$0xff] %v7113
        %7162 = vst [vmem:[%s297 + $0x50] sm:$0xff] %v7114
        %7163 = vst [vmem:[%s297 + $0x58] sm:$0xff] %v7115
        %7164 = vst [vmem:[%s297 + $0x60] sm:$0xff] %v7116
        %7165 = vst [vmem:[%s297 + $0x68] sm:$0xff] %v7117
        %7166 = vst [vmem:[%s297 + $0x70] sm:$0xff] %v7118
        %7167 = vst [vmem:[%s297 + $0x78] sm:$0xff] %v7119
        %7168 = vst [vmem:[%s297 + $0x80] sm:$0xff] %v7120
        %7169 = vst [vmem:[%s297 + $0x88] sm:$0xff] %v7121
        %7170 = vst [vmem:[%s297 + $0x90] sm:$0xff] %v7122
        %7171 = vst [vmem:[%s297 + $0x98] sm:$0xff] %v7123
        %7172 = vst [vmem:[%s297 + $0xa0] sm:$0xff] %v7124
        %7173 = vst [vmem:[%s297 + $0xa8] sm:$0xff] %v7125
        %7174 = vst [vmem:[%s297 + $0xb0] sm:$0xff] %v7126
        %7175 = vst [vmem:[%s297 + $0xb8] sm:$0xff] %v7127
        %7176 = vst [vmem:[%s297 + $0xc0] sm:$0xff] %v7128
        %7177 = vst [vmem:[%s297 + $0xc8] sm:$0xff] %v7129
        %7178 = vst [vmem:[%s297 + $0xd0] sm:$0xff] %v7130
        %7179 = vst [vmem:[%s297 + $0xd8] sm:$0xff] %v7131
        %7180 = vst [vmem:[%s297 + $0xe0] sm:$0xff] %v7132
        %7181 = vst [vmem:[%s297 + $0xe8] sm:$0xff] %v7133
        %7182 = vst [vmem:[%s297 + $0xf0] sm:$0xff] %v7134
        %7183 = vst [vmem:[%s297 + $0xf8] sm:$0xff] %v7135
        %7184 = vst [vmem:[%s297 + $0x100] sm:$0xff] %v7136
        %7185 = vst [vmem:[%s297 + $0x108] sm:$0xff] %v7137
        %7186 = vst [vmem:[%s297 + $0x110] sm:$0xff] %v7138
        %7187 = vst [vmem:[%s297 + $0x118] sm:$0xff] %v7139
        %7188 = vst [vmem:[%s297 + $0x120] sm:$0xff] %v7140
        %7189 = vst [vmem:[%s297 + $0x128] sm:$0xff] %v7141
        %7190 = vst [vmem:[%s297 + $0x130] sm:$0xff] %v7142
        %7191 = vst [vmem:[%s297 + $0x138] sm:$0xff] %v7143
        %7192 = vst [vmem:[%s297 + $0x140] sm:$0xff] %v7144
        %7193 = vst [vmem:[%s297 + $0x148] sm:$0xff] %v7145
        %7194 = vst [vmem:[%s297 + $0x150] sm:$0xff] %v7146
        %7195 = vst [vmem:[%s297 + $0x158] sm:$0xff] %v7147
        %7196 = vst [vmem:[%s297 + $0x160] sm:$0xff] %v7148
        %7197 = vst [vmem:[%s297 + $0x168] sm:$0xff] %v7149
        %7198 = vst [vmem:[%s297 + $0x170] sm:$0xff] %v7150
        %7199 = vst [vmem:[%s297 + $0x178] sm:$0xff] %v7151
        %s7200 = sand.u32 %s142, 1
        %s7201 = scalar_lea.sflag [#allocation4], %s7200
        %s7202 = sand.u32 %s142, 1
        %s7203 = smul.addr %s7202, 384
        %s7204 = scalar_lea.vmem [#allocation11], %s7203
        // Predicated region
        $region61: #{tpu_custom_call.1} parent=39 // pred_check
          %p7205 = pneg %p152
        $region62: #{tpu_custom_call.1} parent=39 // pred_check_branch
          %7207 = sbr.rel (%p7205) target = $region64
        $region63: #{tpu_custom_call.1} parent=39 // pred_region
          %s7208 = smul.u32 16, %s24
          %s7210 = ssub.s32 6144, 6144
          %7211 = vsyncadd %s7201, %s7210
          %s7212 = smul.addr %s7208, 3
          %s7213 = smul.addr %s7212, 128
          %s7214 = scalar_lea.hbm %s5, %s7213
          %s7215 = sshll.u32 %s7204, 4
          %s7216 = int_to_ptr.vmem [resolvable:$true] %s7215
          %7221 = dma.vmem_to_hbm [thread:$0]  %s7216, 6144, %s7214, %s7201, 384, 384, 24
        $region64: #{tpu_custom_call.1} parent=39 // pred_fallthru
          _
      $region40: #{tpu_custom_call.1} parent=5 // pred_fallthru
        _
      %p7222 = scmp.le.s32.totalorder 2, %s19
      // Predicated region
      $region65: #{tpu_custom_call.1} parent=5 // pred_check
        %p7223 = pneg %p7222
      $region66: #{tpu_custom_call.1} parent=5 // pred_check_branch
        %7225 = sbr.rel (%p7223) target = $region68
      $region67: #{tpu_custom_call.1} parent=5 // pred_region
        %s7226 = ssub.s32 %s19, 2
        // Predicated region
        $region69: #{tpu_custom_call.1} parent=67 // pred_check
          %p7227 = pneg %p158
        $region70: #{tpu_custom_call.1} parent=67 // pred_check_branch
          %7229 = sbr.rel (%p7227) target = $region72
        $region71: #{tpu_custom_call.1} parent=67 // pred_region
          %s7230 = sand.u32 %s143, 1
          %s7231 = scalar_lea.sflag [#allocation4], %s7230
          %s7232 = sand.u32 %s143, 1
          %s7233 = smul.addr %s7232, 384
          %s7234 = scalar_lea.vmem [#allocation11], %s7233
          %7235 = dma.done %s7231, 6144
        $region72: #{tpu_custom_call.1} parent=67 // pred_fallthru
          _
      $region68: #{tpu_custom_call.1} parent=5 // pred_fallthru
        _
    $region6: #{tpu_custom_call.1} parent=1 // loop_footer
      %s23 = sadd.s32 1, %s19
    $region7: #{tpu_custom_call.1} parent=1 // loop_footer_branch
      %18 = sbr.rel target = $region3
    $region8: #{tpu_custom_call.1} parent=1 // loop_exit
      _
    %7236 = vsyncpa [#allocation3], 1
    %s7237 = scalar_lea.sflag [#allocation3], 1
    %7238 = vsyncpa %s7237, 1
    %7239 = vsyncpa [#allocation6], 1
    %7240 = vsyncpa [#allocation9], 1
    %7241 = vsyncpa [#allocation4], 1
    %s7242 = scalar_lea.sflag [#allocation4], 1
    %7243 = vsyncpa %s7242, 1

</llo_original>
